<compile_context>
chip_gen: v7x
topology: tpu7x:2x2x1
jax: 0.10.0
libtpu: 0.0.40
codegen_flags: <defaults>
</compile_context>

<pallas_src>
import jax
import jax.numpy as jnp
from jax.experimental import pallas as pl
from jax.experimental.pallas import tpu as pltpu


TB = 128          # batch tile (MXU M dimension)
N_OUT_PAD = 128   # padded lane-dense width of the final layer


def _discriminator_kernel(
    x_ref,
    w1_ref, b1_ref,
    w2_ref, b2_ref,
    w3_ref, b3_ref,
    w4_ref, b4_ref,
    o_ref,
):
    """One (TB, features) batch tile of the MLP; weights are VMEM-resident."""
    slope = jnp.float32(0.2)

    # Layer 1: Linear(896 -> 1024) + LeakyReLU(0.2)   [Dropout = identity]
    h = jnp.dot(x_ref[...], w1_ref[...], preferred_element_type=jnp.float32)
    h = h + b1_ref[...]
    h = jnp.where(h > 0, h, slope * h).astype(jnp.bfloat16)

    # Layer 2: Linear(1024 -> 512) + LeakyReLU(0.2)   [Dropout = identity]
    h = jnp.dot(h, w2_ref[...], preferred_element_type=jnp.float32)
    h = h + b2_ref[...]
    h = jnp.where(h > 0, h, slope * h).astype(jnp.bfloat16)

    # Layer 3: Linear(512 -> 256) + LeakyReLU(0.2)    [Dropout = identity]
    h = jnp.dot(h, w3_ref[...], preferred_element_type=jnp.float32)
    h = h + b3_ref[...]
    h = jnp.where(h > 0, h, slope * h).astype(jnp.bfloat16)

    # Layer 4: Linear(256 -> 128 padded; real column is 0) + Sigmoid
    h = jnp.dot(h, w4_ref[...], preferred_element_type=jnp.float32)
    h = h + b4_ref[...]
    o_ref[...] = jax.nn.sigmoid(h)


def discriminator_forward(x, params):
    """x: (B, data_dim) or (B, 1, H, W) with H*W == data_dim (NCHW, like PyTorch)."""
    batch = x.shape[0]
    x2d = x.reshape(batch, -1).astype(jnp.float32)           # x.view(B, -1)
    data_dim = x2d.shape[1]

    (w1, b1), (w2, b2), (w3, b3), (w4, b4) = params
    d1 = w1.shape[1]   # 1024
    d2 = w2.shape[1]   # 512
    d3 = w3.shape[1]   # 256

    # ---- padding to lane/MXU-friendly shapes ----
    k_pad = 128 * pl.cdiv(data_dim, 128)                     # 784 -> 896
    b_pad = TB * pl.cdiv(batch, TB)

    xp = jnp.zeros((b_pad, k_pad), jnp.float32).at[:batch, :data_dim].set(x2d)
    xp = xp.astype(jnp.bfloat16)

    w1p = jnp.zeros((k_pad, d1), jnp.float32).at[:data_dim, :].set(w1)
    w1p = w1p.astype(jnp.bfloat16)
    w2b = w2.astype(jnp.bfloat16)
    w3b = w3.astype(jnp.bfloat16)
    w4p = jnp.zeros((d3, N_OUT_PAD), jnp.float32).at[:, :1].set(w4)
    w4p = w4p.astype(jnp.bfloat16)

    b1f = b1.astype(jnp.float32)
    b2f = b2.astype(jnp.float32)
    b3f = b3.astype(jnp.float32)
    b4p = jnp.zeros((1, N_OUT_PAD), jnp.float32).at[:, :1].set(b4)

    # ---- grid / BlockSpecs: tile batch, keep weights resident ----
    grid = (b_pad // TB,)
    const = lambda i: (0, 0)
    in_specs = [
        pl.BlockSpec((TB, k_pad), lambda i: (i, 0)),          # x tile
        pl.BlockSpec((k_pad, d1), const), pl.BlockSpec((1, d1), const),
        pl.BlockSpec((d1, d2), const),    pl.BlockSpec((1, d2), const),
        pl.BlockSpec((d2, d3), const),    pl.BlockSpec((1, d3), const),
        pl.BlockSpec((d3, N_OUT_PAD), const), pl.BlockSpec((1, N_OUT_PAD), const),
    ]
    out_specs = pl.BlockSpec((TB, N_OUT_PAD), lambda i: (i, 0))

    flops = 2 * b_pad * (k_pad * d1 + d1 * d2 + d2 * d3 + d3 * N_OUT_PAD)
    bytes_accessed = (
        xp.size * 2
        + (w1p.size + w2b.size + w3b.size + w4p.size) * 2
        + (d1 + d2 + d3 + N_OUT_PAD) * 4
        + b_pad * N_OUT_PAD * 4
    )
    cost = pl.CostEstimate(
        flops=flops,
        transcendentals=b_pad * N_OUT_PAD,   # sigmoid / exp
        bytes_accessed=bytes_accessed,
    )

    out = pl.pallas_call(
        _discriminator_kernel,
        out_shape=jax.ShapeDtypeStruct((b_pad, N_OUT_PAD), jnp.float32),
        grid=grid,
        in_specs=in_specs,
        out_specs=out_specs,
        compiler_params=pltpu.CompilerParams(
            dimension_semantics=("parallel",),
            vmem_limit_bytes=32 * 1024 * 1024,
        ),
        cost_estimate=cost,
    )(xp, w1p, b1f, w2b, b2f, w3b, b3f, w4p, b4p)

    return out[:batch, :1]


def init_discriminator_params(key, data_dim=784):
    """Deterministic init matching nn.Linear's default U(-1/sqrt(fan_in), +1/sqrt(fan_in)).

    Weights are returned as (in_features, out_features); biases as (1, out_features).
    """
    dims = [(data_dim, 1024), (1024, 512), (512, 256), (256, 1)]
    params = []
    for (fan_in, fan_out) in dims:
        key, kw, kb = jax.random.split(key, 3)
        bound = 1.0 / jnp.sqrt(jnp.float32(fan_in))
        w = jax.random.uniform(kw, (fan_in, fan_out), jnp.float32, -bound, bound)
        b = jax.random.uniform(kb, (1, fan_out), jnp.float32, -bound, bound)
        params.append((w, b))
    return params


def _reference_forward(x, params):
    """Pure-JAX f32 reference of the same forward (eval-mode dropout)."""
    h = x.reshape(x.shape[0], -1).astype(jnp.float32)
    for i, (w, b) in enumerate(params):
        h = h @ w + b
        if i < 3:
            h = jnp.where(h > 0, h, 0.2 * h)
        else:
            h = jax.nn.sigmoid(h)
    return h


if __name__ == "__main__":
    key = jax.random.PRNGKey(0)
    pkey, xkey = jax.random.split(key)

    data_dim = 784
    batch = 4
    params = init_discriminator_params(pkey, data_dim=data_dim)

    # "Real data" layout: (batch, 1, 28, 28) NCHW, flattened inside the wrapper.
    x = jax.random.normal(xkey, (batch, 1, 28, 28), dtype=jnp.float32)

    y = discriminator_forward(x, params)
    y = jax.block_until_ready(y)

    y_ref = _reference_forward(x, params)
    assert y.shape == (batch, 1)
    # bf16 inputs / f32 accumulation vs f32 reference -> loose tolerance.
    assert jnp.allclose(y, y_ref, atol=2e-2, rtol=2e-2), "mismatch vs JAX reference"

    print("KERNEL_OK")
</pallas_src>

<mosaic_0001>
module attributes {stable_mosaic.version = 11 : i64} {
  func.func @_discriminator_kernel(%arg0: i32, %arg1: memref<128x896xbf16, #tpu.memory_space<vmem>>, %arg2: memref<896x1024xbf16, #tpu.memory_space<vmem>>, %arg3: memref<1x1024xf32, #tpu.memory_space<vmem>>, %arg4: memref<1024x512xbf16, #tpu.memory_space<vmem>>, %arg5: memref<1x512xf32, #tpu.memory_space<vmem>>, %arg6: memref<512x256xbf16, #tpu.memory_space<vmem>>, %arg7: memref<1x256xf32, #tpu.memory_space<vmem>>, %arg8: memref<256x128xbf16, #tpu.memory_space<vmem>>, %arg9: memref<1x128xf32, #tpu.memory_space<vmem>>, %arg10: memref<128x128xf32, #tpu.memory_space<vmem>>) attributes {dimension_semantics = [#tpu.dimension_semantics<parallel>], iteration_bounds = array<i64: 1>, scalar_prefetch = 0 : i64, scratch_operands = 0 : i64, tpu.core_type = #tpu.core_type<tc>, window_params = [{transform_indices = @transform_0, window_bounds = array<i64: 128, 896>}, {pipeline_mode = #tpu.pipeline_mode<synchronous>, transform_indices = @transform_1, window_bounds = array<i64: 896, 1024>}, {pipeline_mode = #tpu.pipeline_mode<synchronous>, transform_indices = @transform_2, window_bounds = array<i64: 1, 1024>}, {pipeline_mode = #tpu.pipeline_mode<synchronous>, transform_indices = @transform_3, window_bounds = array<i64: 1024, 512>}, {pipeline_mode = #tpu.pipeline_mode<synchronous>, transform_indices = @transform_4, window_bounds = array<i64: 1, 512>}, {pipeline_mode = #tpu.pipeline_mode<synchronous>, transform_indices = @transform_5, window_bounds = array<i64: 512, 256>}, {pipeline_mode = #tpu.pipeline_mode<synchronous>, transform_indices = @transform_6, window_bounds = array<i64: 1, 256>}, {pipeline_mode = #tpu.pipeline_mode<synchronous>, transform_indices = @transform_7, window_bounds = array<i64: 256, 128>}, {pipeline_mode = #tpu.pipeline_mode<synchronous>, transform_indices = @transform_8, window_bounds = array<i64: 1, 128>}, {transform_indices = @transform_9, window_bounds = array<i64: 128, 128>}]} {
    %c0 = arith.constant 0 : index
    %c0_0 = arith.constant 0 : index
    %0 = vector.load %arg1[%c0, %c0_0] : memref<128x896xbf16, #tpu.memory_space<vmem>>, vector<128x896xbf16>
    %c0_1 = arith.constant 0 : index
    %c0_2 = arith.constant 0 : index
    %1 = vector.load %arg2[%c0_1, %c0_2] : memref<896x1024xbf16, #tpu.memory_space<vmem>>, vector<896x1024xbf16>
    %cst = arith.constant dense<0.000000e+00> : vector<128x1024xf32>
    %2 = tpu.matmul %0, %1, %cst {dimension_numbers = #tpu.dot_dimension_numbers<[1], [0], [0], [1], [0, 0, 1, 1], [], []>} : vector<128x896xbf16>, vector<896x1024xbf16>, vector<128x1024xf32> -> vector<128x1024xf32>
    %c0_3 = arith.constant 0 : index
    %c0_4 = arith.constant 0 : index
    %3 = vector.load %arg3[%c0_3, %c0_4] : memref<1x1024xf32, #tpu.memory_space<vmem>>, vector<1x1024xf32>
    %4 = vector.broadcast %3 : vector<1x1024xf32> to vector<128x1024xf32>
    %5 = arith.addf %2, %4 : vector<128x1024xf32>
    %cst_5 = arith.constant 0.000000e+00 : f32
    %6 = vector.broadcast %cst_5 : f32 to vector<128x1024xf32>
    %7 = arith.cmpf ogt, %5, %6 : vector<128x1024xf32>
    %cst_6 = arith.constant 2.000000e-01 : f32
    %8 = vector.broadcast %cst_6 : f32 to vector<128x1024xf32>
    %9 = arith.mulf %8, %5 : vector<128x1024xf32>
    %10 = arith.select %7, %5, %9 : vector<128x1024xi1>, vector<128x1024xf32>
    %11 = arith.truncf %10 : vector<128x1024xf32> to vector<128x1024xbf16>
    %c0_7 = arith.constant 0 : index
    %c0_8 = arith.constant 0 : index
    %12 = vector.load %arg4[%c0_7, %c0_8] : memref<1024x512xbf16, #tpu.memory_space<vmem>>, vector<1024x512xbf16>
    %cst_9 = arith.constant dense<0.000000e+00> : vector<128x512xf32>
    %13 = tpu.matmul %11, %12, %cst_9 {dimension_numbers = #tpu.dot_dimension_numbers<[1], [0], [0], [1], [0, 0, 1, 1], [], []>} : vector<128x1024xbf16>, vector<1024x512xbf16>, vector<128x512xf32> -> vector<128x512xf32>
    %c0_10 = arith.constant 0 : index
    %c0_11 = arith.constant 0 : index
    %14 = vector.load %arg5[%c0_10, %c0_11] : memref<1x512xf32, #tpu.memory_space<vmem>>, vector<1x512xf32>
    %15 = vector.broadcast %14 : vector<1x512xf32> to vector<128x512xf32>
    %16 = arith.addf %13, %15 : vector<128x512xf32>
    %cst_12 = arith.constant 0.000000e+00 : f32
    %17 = vector.broadcast %cst_12 : f32 to vector<128x512xf32>
    %18 = arith.cmpf ogt, %16, %17 : vector<128x512xf32>
    %cst_13 = arith.constant 2.000000e-01 : f32
    %19 = vector.broadcast %cst_13 : f32 to vector<128x512xf32>
    %20 = arith.mulf %19, %16 : vector<128x512xf32>
    %21 = arith.select %18, %16, %20 : vector<128x512xi1>, vector<128x512xf32>
    %22 = arith.truncf %21 : vector<128x512xf32> to vector<128x512xbf16>
    %c0_14 = arith.constant 0 : index
    %c0_15 = arith.constant 0 : index
    %23 = vector.load %arg6[%c0_14, %c0_15] : memref<512x256xbf16, #tpu.memory_space<vmem>>, vector<512x256xbf16>
    %cst_16 = arith.constant dense<0.000000e+00> : vector<128x256xf32>
    %24 = tpu.matmul %22, %23, %cst_16 {dimension_numbers = #tpu.dot_dimension_numbers<[1], [0], [0], [1], [0, 0, 1, 1], [], []>} : vector<128x512xbf16>, vector<512x256xbf16>, vector<128x256xf32> -> vector<128x256xf32>
    %c0_17 = arith.constant 0 : index
    %c0_18 = arith.constant 0 : index
    %25 = vector.load %arg7[%c0_17, %c0_18] : memref<1x256xf32, #tpu.memory_space<vmem>>, vector<1x256xf32>
    %26 = vector.broadcast %25 : vector<1x256xf32> to vector<128x256xf32>
    %27 = arith.addf %24, %26 : vector<128x256xf32>
    %cst_19 = arith.constant 0.000000e+00 : f32
    %28 = vector.broadcast %cst_19 : f32 to vector<128x256xf32>
    %29 = arith.cmpf ogt, %27, %28 : vector<128x256xf32>
    %cst_20 = arith.constant 2.000000e-01 : f32
    %30 = vector.broadcast %cst_20 : f32 to vector<128x256xf32>
    %31 = arith.mulf %30, %27 : vector<128x256xf32>
    %32 = arith.select %29, %27, %31 : vector<128x256xi1>, vector<128x256xf32>
    %33 = arith.truncf %32 : vector<128x256xf32> to vector<128x256xbf16>
    %c0_21 = arith.constant 0 : index
    %c0_22 = arith.constant 0 : index
    %34 = vector.load %arg8[%c0_21, %c0_22] : memref<256x128xbf16, #tpu.memory_space<vmem>>, vector<256x128xbf16>
    %cst_23 = arith.constant dense<0.000000e+00> : vector<128x128xf32>
    %35 = tpu.matmul %33, %34, %cst_23 {dimension_numbers = #tpu.dot_dimension_numbers<[1], [0], [0], [1], [0, 0, 1, 1], [], []>} : vector<128x256xbf16>, vector<256x128xbf16>, vector<128x128xf32> -> vector<128x128xf32>
    %c0_24 = arith.constant 0 : index
    %c0_25 = arith.constant 0 : index
    %36 = vector.load %arg9[%c0_24, %c0_25] : memref<1x128xf32, #tpu.memory_space<vmem>>, vector<1x128xf32>
    %37 = vector.broadcast %36 : vector<1x128xf32> to vector<128x128xf32>
    %38 = arith.addf %35, %37 : vector<128x128xf32>
    %39 = arith.negf %38 : vector<128x128xf32>
    %40 = math.exp %39 : vector<128x128xf32>
    %cst_26 = arith.constant 1.000000e+00 : f32
    %41 = vector.broadcast %cst_26 : f32 to vector<128x128xf32>
    %42 = arith.addf %41, %40 : vector<128x128xf32>
    %43 = arith.divf %41, %42 : vector<128x128xf32>
    %c0_27 = arith.constant 0 : index
    %c0_28 = arith.constant 0 : index
    %44 = vector.load %arg10[%c0_27, %c0_28] : memref<128x128xf32, #tpu.memory_space<vmem>>, vector<128x128xf32>
    tpu.vector_store %arg10[%c0_27, %c0_28], %43 {strides = array<i32>} : memref<128x128xf32, #tpu.memory_space<vmem>>, vector<128x128xf32>,
    return
  }
  func.func @transform_0(%arg0: i32) -> (i32, i32) {
    %c0_i32 = arith.constant 0 : i32
    %c0_i32_0 = arith.constant 0 : i32
    return %arg0, %c0_i32 : i32, i32
  }
  func.func @transform_1(%arg0: i32) -> (i32, i32) {
    %c0_i32 = arith.constant 0 : i32
    %c0_i32_0 = arith.constant 0 : i32
    %c0_i32_1 = arith.constant 0 : i32
    return %c0_i32, %c0_i32_0 : i32, i32
  }
  func.func @transform_2(%arg0: i32) -> (i32, i32) {
    %c0_i32 = arith.constant 0 : i32
    %c0_i32_0 = arith.constant 0 : i32
    %c0_i32_1 = arith.constant 0 : i32
    return %c0_i32, %c0_i32_0 : i32, i32
  }
  func.func @transform_3(%arg0: i32) -> (i32, i32) {
    %c0_i32 = arith.constant 0 : i32
    %c0_i32_0 = arith.constant 0 : i32
    %c0_i32_1 = arith.constant 0 : i32
    return %c0_i32, %c0_i32_0 : i32, i32
  }
  func.func @transform_4(%arg0: i32) -> (i32, i32) {
    %c0_i32 = arith.constant 0 : i32
    %c0_i32_0 = arith.constant 0 : i32
    %c0_i32_1 = arith.constant 0 : i32
    return %c0_i32, %c0_i32_0 : i32, i32
  }
  func.func @transform_5(%arg0: i32) -> (i32, i32) {
    %c0_i32 = arith.constant 0 : i32
    %c0_i32_0 = arith.constant 0 : i32
    %c0_i32_1 = arith.constant 0 : i32
    return %c0_i32, %c0_i32_0 : i32, i32
  }
  func.func @transform_6(%arg0: i32) -> (i32, i32) {
    %c0_i32 = arith.constant 0 : i32
    %c0_i32_0 = arith.constant 0 : i32
    %c0_i32_1 = arith.constant 0 : i32
    return %c0_i32, %c0_i32_0 : i32, i32
  }
  func.func @transform_7(%arg0: i32) -> (i32, i32) {
    %c0_i32 = arith.constant 0 : i32
    %c0_i32_0 = arith.constant 0 : i32
    %c0_i32_1 = arith.constant 0 : i32
    return %c0_i32, %c0_i32_0 : i32, i32
  }
  func.func @transform_8(%arg0: i32) -> (i32, i32) {
    %c0_i32 = arith.constant 0 : i32
    %c0_i32_0 = arith.constant 0 : i32
    %c0_i32_1 = arith.constant 0 : i32
    return %c0_i32, %c0_i32_0 : i32, i32
  }
  func.func @transform_9(%arg0: i32) -> (i32, i32) {
    %c0_i32 = arith.constant 0 : i32
    %c0_i32_0 = arith.constant 0 : i32
    return %arg0, %c0_i32 : i32, i32
  }
}

</mosaic_0001>

<llo_original>
// kernel: tpu_custom_call.1
$region0: #{tpu_custom_call.1}
  #allocation0 [shape = 'u32[]', space=smem, size = 0x4, offset = 0x4, fixed_abs, tag = 'smem constant byte address 0x4 - core index']
  #allocation1 [shape = 'u32[144,128]{1,0:T(1,128)}', space=vmem, size = 0x12000, scoped, tag = 'internal scratch']
  %s0 = inlined_call_operand.hbm [shape: bf16[128,896], index: 0, kind: input, shape index: {}]
  %s1 = inlined_call_operand.hbm [shape: bf16[896,1024], index: 1, kind: input, shape index: {}]
  %s2 = inlined_call_operand.hbm [shape: f32[1,1024], index: 2, kind: input, shape index: {}]
  %s3 = inlined_call_operand.hbm [shape: bf16[1024,512], index: 3, kind: input, shape index: {}]
  %s4 = inlined_call_operand.hbm [shape: f32[1,512], index: 4, kind: input, shape index: {}]
  %s5 = inlined_call_operand.hbm [shape: bf16[512,256], index: 5, kind: input, shape index: {}]
  %s6 = inlined_call_operand.hbm [shape: f32[1,256], index: 6, kind: input, shape index: {}]
  %s7 = inlined_call_operand.hbm [shape: bf16[256,128], index: 7, kind: input, shape index: {}]
  %s8 = inlined_call_operand.hbm [shape: f32[1,128], index: 8, kind: input, shape index: {}]
  %s9 = inlined_call_operand.hbm [shape: f32[128,128], index: 9, kind: output, shape index: {}]
  %s10 = sld [smem:[#allocation0]]
  $region82: #{tpu_custom_call.1} parent=0
    _
  %s12 = ssub.s32 1, %s10
  %s13 = scalar_select 0, %s12, %s10
  $region1: #{tpu_custom_call.1} parent=0
    #allocation2 [shape = 'u8[229376]{0}', space=vmem, size = 0x38000, scoped, tag = 'input window, operand 0, single buffered']
    #allocation3 [shape = 's32[1]{0}', space=sflag, size = 0x4, scoped, tag = 'scoped memory for tpu_custom_call.1']
    #allocation4 [shape = 's32[1]{0}', space=sflag, size = 0x4, scoped, tag = 'scoped memory for tpu_custom_call.1']
    #allocation5 [shape = 'u8[1835008]{0}', space=vmem, size = 0x1c0000, scoped, tag = 'input window, operand 1, single buffered']
    #allocation6 [shape = 's32[1]{0}', space=sflag, size = 0x4, scoped, tag = 'scoped memory for tpu_custom_call.1']
    #allocation7 [shape = 'u8[4096]{0}', space=vmem, size = 0x1000, scoped, tag = 'input window, operand 2, single buffered']
    #allocation8 [shape = 'u8[1048576]{0}', space=vmem, size = 0x100000, scoped, tag = 'input window, operand 3, single buffered']
    #allocation9 [shape = 's32[1]{0}', space=sflag, size = 0x4, scoped, tag = 'scoped memory for tpu_custom_call.1']
    #allocation10 [shape = 'u8[2048]{0}', space=vmem, size = 0x800, scoped, tag = 'input window, operand 4, single buffered']
    #allocation11 [shape = 'u8[262144]{0}', space=vmem, size = 0x40000, scoped, tag = 'input window, operand 5, single buffered']
    #allocation12 [shape = 's32[1]{0}', space=sflag, size = 0x4, scoped, tag = 'scoped memory for tpu_custom_call.1']
    #allocation13 [shape = 'u8[1024]{0}', space=vmem, size = 0x400, scoped, tag = 'input window, operand 6, single buffered']
    #allocation14 [shape = 'u8[65536]{0}', space=vmem, size = 0x10000, scoped, tag = 'input window, operand 7, single buffered']
    #allocation15 [shape = 's32[1]{0}', space=sflag, size = 0x4, scoped, tag = 'scoped memory for tpu_custom_call.1']
    #allocation16 [shape = 'u8[512]{0}', space=vmem, size = 0x400, scoped, tag = 'input window, operand 8, single buffered']
    #allocation17 [shape = 'u8[65536]{0}', space=vmem, size = 0x10000, scoped, tag = 'output window, operand 0, single buffered']
    %14 = vsyncpa [#allocation3], 0
    %15 = vsyncpa [#allocation6], 0
    %16 = vsyncpa [#allocation9], 0
    %17 = vsyncpa [#allocation12], 0
    %18 = vsyncpa [#allocation15], 0
    %19 = vsyncpa [#allocation4], 0
    // Predicated region
    $region2: #{tpu_custom_call.1} parent=1 // pred_check
      _
    $region3: #{tpu_custom_call.1} parent=1 // pred_check_branch
      %21 = sbr.rel (0) target = $region5
    $region4: #{tpu_custom_call.1} parent=1 // pred_region
      %s23 = ssub.s32 7168, 7168
      %24 = vsyncadd [#allocation3], %s23
      %s25 = sshll.u32 [#allocation2], 4
      %s26 = int_to_ptr.vmem [resolvable:$true] %s25
      %31 = dma.hbm_to_vmem [thread:$0]  %s0, 7168, %s26, [#allocation3], 448, 448, 28
    $region5: #{tpu_custom_call.1} parent=1 // pred_fallthru
      _
    // Predicated region
    $region6: #{tpu_custom_call.1} parent=1 // pred_check
      _
    $region7: #{tpu_custom_call.1} parent=1 // pred_check_branch
      %33 = sbr.rel (0) target = $region9
    $region8: #{tpu_custom_call.1} parent=1 // pred_region
      %s35 = ssub.s32 57344, 57344
      %36 = vsyncadd [#allocation6], %s35
      %s37 = sshll.u32 [#allocation5], 4
      %s38 = int_to_ptr.vmem [resolvable:$true] %s37
      %43 = dma.hbm_to_vmem [thread:$0]  %s1, 57344, %s38, [#allocation6], 512, 512, 32
    $region9: #{tpu_custom_call.1} parent=1 // pred_fallthru
      _
    // Predicated region
    $region10: #{tpu_custom_call.1} parent=1 // pred_check
      _
    $region11: #{tpu_custom_call.1} parent=1 // pred_check_branch
      %45 = sbr.rel (0) target = $region13
    $region12: #{tpu_custom_call.1} parent=1 // pred_region
      %s47 = ssub.s32 128, 128
      %48 = vsyncadd [#allocation6], %s47
      %s50 = sshll.u32 [#allocation7], 4
      %s51 = int_to_ptr.vmem [resolvable:$true] %s50
      %53 = dma.hbm_to_vmem [thread:$0]  %s2, 128, %s51, [#allocation6]
    $region13: #{tpu_custom_call.1} parent=1 // pred_fallthru
      _
    // Predicated region
    $region14: #{tpu_custom_call.1} parent=1 // pred_check
      _
    $region15: #{tpu_custom_call.1} parent=1 // pred_check_branch
      %55 = sbr.rel (0) target = $region17
    $region16: #{tpu_custom_call.1} parent=1 // pred_region
      %s57 = ssub.s32 32768, 32768
      %58 = vsyncadd [#allocation9], %s57
      %s59 = sshll.u32 [#allocation8], 4
      %s60 = int_to_ptr.vmem [resolvable:$true] %s59
      %65 = dma.hbm_to_vmem [thread:$0]  %s3, 32768, %s60, [#allocation9], 256, 256, 16
    $region17: #{tpu_custom_call.1} parent=1 // pred_fallthru
      _
    // Predicated region
    $region18: #{tpu_custom_call.1} parent=1 // pred_check
      _
    $region19: #{tpu_custom_call.1} parent=1 // pred_check_branch
      %67 = sbr.rel (0) target = $region21
    $region20: #{tpu_custom_call.1} parent=1 // pred_region
      %s69 = ssub.s32 64, 64
      %70 = vsyncadd [#allocation9], %s69
      %s72 = sshll.u32 [#allocation10], 4
      %s73 = int_to_ptr.vmem [resolvable:$true] %s72
      %75 = dma.hbm_to_vmem [thread:$0]  %s4, 64, %s73, [#allocation9]
    $region21: #{tpu_custom_call.1} parent=1 // pred_fallthru
      _
    // Predicated region
    $region22: #{tpu_custom_call.1} parent=1 // pred_check
      _
    $region23: #{tpu_custom_call.1} parent=1 // pred_check_branch
      %77 = sbr.rel (0) target = $region25
    $region24: #{tpu_custom_call.1} parent=1 // pred_region
      %s79 = ssub.s32 8192, 8192
      %80 = vsyncadd [#allocation12], %s79
      %s81 = sshll.u32 [#allocation11], 4
      %s82 = int_to_ptr.vmem [resolvable:$true] %s81
      %87 = dma.hbm_to_vmem [thread:$0]  %s5, 8192, %s82, [#allocation12], 128, 128, 8
    $region25: #{tpu_custom_call.1} parent=1 // pred_fallthru
      _
    // Predicated region
    $region26: #{tpu_custom_call.1} parent=1 // pred_check
      _
    $region27: #{tpu_custom_call.1} parent=1 // pred_check_branch
      %89 = sbr.rel (0) target = $region29
    $region28: #{tpu_custom_call.1} parent=1 // pred_region
      %s91 = ssub.s32 32, 32
      %92 = vsyncadd [#allocation12], %s91
      %s94 = sshll.u32 [#allocation13], 4
      %s95 = int_to_ptr.vmem [resolvable:$true] %s94
      %97 = dma.hbm_to_vmem [thread:$0]  %s6, 32, %s95, [#allocation12]
    $region29: #{tpu_custom_call.1} parent=1 // pred_fallthru
      _
    // Predicated region
    $region30: #{tpu_custom_call.1} parent=1 // pred_check
      _
    $region31: #{tpu_custom_call.1} parent=1 // pred_check_branch
      %99 = sbr.rel (0) target = $region33
    $region32: #{tpu_custom_call.1} parent=1 // pred_region
      %s101 = ssub.s32 2048, 2048
      %102 = vsyncadd [#allocation15], %s101
      %s103 = sshll.u32 [#allocation14], 4
      %s104 = int_to_ptr.vmem [resolvable:$true] %s103
      %109 = dma.hbm_to_vmem [thread:$0]  %s7, 2048, %s104, [#allocation15], 64, 64, 4
    $region33: #{tpu_custom_call.1} parent=1 // pred_fallthru
      _
    // Predicated region
    $region34: #{tpu_custom_call.1} parent=1 // pred_check
      _
    $region35: #{tpu_custom_call.1} parent=1 // pred_check_branch
      %111 = sbr.rel (0) target = $region37
    $region36: #{tpu_custom_call.1} parent=1 // pred_region
      %s113 = ssub.s32 16, 16
      %114 = vsyncadd [#allocation15], %s113
      %s116 = sshll.u32 [#allocation16], 4
      %s117 = int_to_ptr.vmem [resolvable:$true] %s116
      %119 = dma.hbm_to_vmem [thread:$0]  %s8, 16, %s117, [#allocation15]
    $region37: #{tpu_custom_call.1} parent=1 // pred_fallthru
      _
    // Predicated region
    $region38: #{tpu_custom_call.1} parent=1 // pred_check
      _
    $region39: #{tpu_custom_call.1} parent=1 // pred_check_branch
      %121 = sbr.rel (0) target = $region41
    $region40: #{tpu_custom_call.1} parent=1 // pred_region
      %122 = dma.done [#allocation3], 7168
    $region41: #{tpu_custom_call.1} parent=1 // pred_fallthru
      _
    // Predicated region
    $region42: #{tpu_custom_call.1} parent=1 // pred_check
      _
    $region43: #{tpu_custom_call.1} parent=1 // pred_check_branch
      %124 = sbr.rel (0) target = $region45
    $region44: #{tpu_custom_call.1} parent=1 // pred_region
      %125 = dma.done [#allocation6], 57344
    $region45: #{tpu_custom_call.1} parent=1 // pred_fallthru
      _
    // Predicated region
    $region46: #{tpu_custom_call.1} parent=1 // pred_check
      _
    $region47: #{tpu_custom_call.1} parent=1 // pred_check_branch
      %127 = sbr.rel (0) target = $region49
    $region48: #{tpu_custom_call.1} parent=1 // pred_region
      %128 = dma.done [#allocation6], 128
    $region49: #{tpu_custom_call.1} parent=1 // pred_fallthru
      _
    // Predicated region
    $region50: #{tpu_custom_call.1} parent=1 // pred_check
      _
    $region51: #{tpu_custom_call.1} parent=1 // pred_check_branch
      %130 = sbr.rel (0) target = $region53
    $region52: #{tpu_custom_call.1} parent=1 // pred_region
      %131 = dma.done [#allocation9], 32768
    $region53: #{tpu_custom_call.1} parent=1 // pred_fallthru
      _
    // Predicated region
    $region54: #{tpu_custom_call.1} parent=1 // pred_check
      _
    $region55: #{tpu_custom_call.1} parent=1 // pred_check_branch
      %133 = sbr.rel (0) target = $region57
    $region56: #{tpu_custom_call.1} parent=1 // pred_region
      %134 = dma.done [#allocation9], 64
    $region57: #{tpu_custom_call.1} parent=1 // pred_fallthru
      _
    // Predicated region
    $region58: #{tpu_custom_call.1} parent=1 // pred_check
      _
    $region59: #{tpu_custom_call.1} parent=1 // pred_check_branch
      %136 = sbr.rel (0) target = $region61
    $region60: #{tpu_custom_call.1} parent=1 // pred_region
      %137 = dma.done [#allocation12], 8192
    $region61: #{tpu_custom_call.1} parent=1 // pred_fallthru
      _
    // Predicated region
    $region62: #{tpu_custom_call.1} parent=1 // pred_check
      _
    $region63: #{tpu_custom_call.1} parent=1 // pred_check_branch
      %139 = sbr.rel (0) target = $region65
    $region64: #{tpu_custom_call.1} parent=1 // pred_region
      %140 = dma.done [#allocation12], 32
    $region65: #{tpu_custom_call.1} parent=1 // pred_fallthru
      _
    // Predicated region
    $region66: #{tpu_custom_call.1} parent=1 // pred_check
      _
    $region67: #{tpu_custom_call.1} parent=1 // pred_check_branch
      %142 = sbr.rel (0) target = $region69
    $region68: #{tpu_custom_call.1} parent=1 // pred_region
      %143 = dma.done [#allocation15], 2048
    $region69: #{tpu_custom_call.1} parent=1 // pred_fallthru
      _
    // Predicated region
    $region70: #{tpu_custom_call.1} parent=1 // pred_check
      _
    $region71: #{tpu_custom_call.1} parent=1 // pred_check_branch
      %145 = sbr.rel (0) target = $region73
    $region72: #{tpu_custom_call.1} parent=1 // pred_region
      %146 = dma.done [#allocation15], 16
    $region73: #{tpu_custom_call.1} parent=1 // pred_fallthru
      _
    %v148 = vld [vmem:[#allocation2] sm:$0xff]
    %v149 = vld [vmem:[#allocation2 + $0x8] sm:$0xff]
    %v150 = vld [vmem:[#allocation2 + $0x10] sm:$0xff]
    %v151 = vld [vmem:[#allocation2 + $0x18] sm:$0xf]
    %v152 = vld [vmem:[#allocation2 + $0x1c] sm:$0xff]
    %v153 = vld [vmem:[#allocation2 + $0x24] sm:$0xff]
    %v154 = vld [vmem:[#allocation2 + $0x2c] sm:$0xff]
    %v155 = vld [vmem:[#allocation2 + $0x34] sm:$0xf]
    %v156 = vld [vmem:[#allocation2 + $0x38] sm:$0xff]
    %v157 = vld [vmem:[#allocation2 + $0x40] sm:$0xff]
    %v158 = vld [vmem:[#allocation2 + $0x48] sm:$0xff]
    %v159 = vld [vmem:[#allocation2 + $0x50] sm:$0xf]
    %v160 = vld [vmem:[#allocation2 + $0x54] sm:$0xff]
    %v161 = vld [vmem:[#allocation2 + $0x5c] sm:$0xff]
    %v162 = vld [vmem:[#allocation2 + $0x64] sm:$0xff]
    %v163 = vld [vmem:[#allocation2 + $0x6c] sm:$0xf]
    %v164 = vld [vmem:[#allocation2 + $0x70] sm:$0xff]
    %v165 = vld [vmem:[#allocation2 + $0x78] sm:$0xff]
    %v166 = vld [vmem:[#allocation2 + $0x80] sm:$0xff]
    %v167 = vld [vmem:[#allocation2 + $0x88] sm:$0xf]
    %v168 = vld [vmem:[#allocation2 + $0x8c] sm:$0xff]
    %v169 = vld [vmem:[#allocation2 + $0x94] sm:$0xff]
    %v170 = vld [vmem:[#allocation2 + $0x9c] sm:$0xff]
    %v171 = vld [vmem:[#allocation2 + $0xa4] sm:$0xf]
    %v172 = vld [vmem:[#allocation2 + $0xa8] sm:$0xff]
    %v173 = vld [vmem:[#allocation2 + $0xb0] sm:$0xff]
    %v174 = vld [vmem:[#allocation2 + $0xb8] sm:$0xff]
    %v175 = vld [vmem:[#allocation2 + $0xc0] sm:$0xf]
    %v176 = vld [vmem:[#allocation2 + $0xc4] sm:$0xff]
    %v177 = vld [vmem:[#allocation2 + $0xcc] sm:$0xff]
    %v178 = vld [vmem:[#allocation2 + $0xd4] sm:$0xff]
    %v179 = vld [vmem:[#allocation2 + $0xdc] sm:$0xf]
    %v180 = vld [vmem:[#allocation2 + $0xe0] sm:$0xff]
    %v181 = vld [vmem:[#allocation2 + $0xe8] sm:$0xff]
    %v182 = vld [vmem:[#allocation2 + $0xf0] sm:$0xff]
    %v183 = vld [vmem:[#allocation2 + $0xf8] sm:$0xf]
    %v184 = vld [vmem:[#allocation2 + $0xfc] sm:$0xff]
    %v185 = vld [vmem:[#allocation2 + $0x104] sm:$0xff]
    %v186 = vld [vmem:[#allocation2 + $0x10c] sm:$0xff]
    %v187 = vld [vmem:[#allocation2 + $0x114] sm:$0xf]
    %v188 = vld [vmem:[#allocation2 + $0x118] sm:$0xff]
    %v189 = vld [vmem:[#allocation2 + $0x120] sm:$0xff]
    %v190 = vld [vmem:[#allocation2 + $0x128] sm:$0xff]
    %v191 = vld [vmem:[#allocation2 + $0x130] sm:$0xf]
    %v192 = vld [vmem:[#allocation2 + $0x134] sm:$0xff]
    %v193 = vld [vmem:[#allocation2 + $0x13c] sm:$0xff]
    %v194 = vld [vmem:[#allocation2 + $0x144] sm:$0xff]
    %v195 = vld [vmem:[#allocation2 + $0x14c] sm:$0xf]
    %v196 = vld [vmem:[#allocation2 + $0x150] sm:$0xff]
    %v197 = vld [vmem:[#allocation2 + $0x158] sm:$0xff]
    %v198 = vld [vmem:[#allocation2 + $0x160] sm:$0xff]
    %v199 = vld [vmem:[#allocation2 + $0x168] sm:$0xf]
    %v200 = vld [vmem:[#allocation2 + $0x16c] sm:$0xff]
    %v201 = vld [vmem:[#allocation2 + $0x174] sm:$0xff]
    %v202 = vld [vmem:[#allocation2 + $0x17c] sm:$0xff]
    %v203 = vld [vmem:[#allocation2 + $0x184] sm:$0xf]
    %v204 = vld [vmem:[#allocation2 + $0x188] sm:$0xff]
    %v205 = vld [vmem:[#allocation2 + $0x190] sm:$0xff]
    %v206 = vld [vmem:[#allocation2 + $0x198] sm:$0xff]
    %v207 = vld [vmem:[#allocation2 + $0x1a0] sm:$0xf]
    %v208 = vld [vmem:[#allocation2 + $0x1a4] sm:$0xff]
    %v209 = vld [vmem:[#allocation2 + $0x1ac] sm:$0xff]
    %v210 = vld [vmem:[#allocation2 + $0x1b4] sm:$0xff]
    %v211 = vld [vmem:[#allocation2 + $0x1bc] sm:$0xf]
    %v212 = vld [vmem:[#allocation5] sm:$0xff]
    %v213 = vld [vmem:[#allocation5 + $0x8] sm:$0xff]
    %v214 = vld [vmem:[#allocation5 + $0x10] sm:$0xff]
    %v215 = vld [vmem:[#allocation5 + $0x18] sm:$0xff]
    %v216 = vld [vmem:[#allocation5 + $0x20] sm:$0xff]
    %v217 = vld [vmem:[#allocation5 + $0x28] sm:$0xff]
    %v218 = vld [vmem:[#allocation5 + $0x30] sm:$0xff]
    %v219 = vld [vmem:[#allocation5 + $0x38] sm:$0xff]
    %v220 = vld [vmem:[#allocation5 + $0x40] sm:$0xff]
    %v221 = vld [vmem:[#allocation5 + $0x48] sm:$0xff]
    %v222 = vld [vmem:[#allocation5 + $0x50] sm:$0xff]
    %v223 = vld [vmem:[#allocation5 + $0x58] sm:$0xff]
    %v224 = vld [vmem:[#allocation5 + $0x60] sm:$0xff]
    %v225 = vld [vmem:[#allocation5 + $0x68] sm:$0xff]
    %v226 = vld [vmem:[#allocation5 + $0x70] sm:$0xff]
    %v227 = vld [vmem:[#allocation5 + $0x78] sm:$0xff]
    %v228 = vld [vmem:[#allocation5 + $0x80] sm:$0xff]
    %v229 = vld [vmem:[#allocation5 + $0x88] sm:$0xff]
    %v230 = vld [vmem:[#allocation5 + $0x90] sm:$0xff]
    %v231 = vld [vmem:[#allocation5 + $0x98] sm:$0xff]
    %v232 = vld [vmem:[#allocation5 + $0xa0] sm:$0xff]
    %v233 = vld [vmem:[#allocation5 + $0xa8] sm:$0xff]
    %v234 = vld [vmem:[#allocation5 + $0xb0] sm:$0xff]
    %v235 = vld [vmem:[#allocation5 + $0xb8] sm:$0xff]
    %v236 = vld [vmem:[#allocation5 + $0xc0] sm:$0xff]
    %v237 = vld [vmem:[#allocation5 + $0xc8] sm:$0xff]
    %v238 = vld [vmem:[#allocation5 + $0xd0] sm:$0xff]
    %v239 = vld [vmem:[#allocation5 + $0xd8] sm:$0xff]
    %v240 = vld [vmem:[#allocation5 + $0xe0] sm:$0xff]
    %v241 = vld [vmem:[#allocation5 + $0xe8] sm:$0xff]
    %v242 = vld [vmem:[#allocation5 + $0xf0] sm:$0xff]
    %v243 = vld [vmem:[#allocation5 + $0xf8] sm:$0xff]
    %v244 = vld [vmem:[#allocation5 + $0x100] sm:$0xff]
    %v245 = vld [vmem:[#allocation5 + $0x108] sm:$0xff]
    %v246 = vld [vmem:[#allocation5 + $0x110] sm:$0xff]
    %v247 = vld [vmem:[#allocation5 + $0x118] sm:$0xff]
    %v248 = vld [vmem:[#allocation5 + $0x120] sm:$0xff]
    %v249 = vld [vmem:[#allocation5 + $0x128] sm:$0xff]
    %v250 = vld [vmem:[#allocation5 + $0x130] sm:$0xff]
    %v251 = vld [vmem:[#allocation5 + $0x138] sm:$0xff]
    %v252 = vld [vmem:[#allocation5 + $0x140] sm:$0xff]
    %v253 = vld [vmem:[#allocation5 + $0x148] sm:$0xff]
    %v254 = vld [vmem:[#allocation5 + $0x150] sm:$0xff]
    %v255 = vld [vmem:[#allocation5 + $0x158] sm:$0xff]
    %v256 = vld [vmem:[#allocation5 + $0x160] sm:$0xff]
    %v257 = vld [vmem:[#allocation5 + $0x168] sm:$0xff]
    %v258 = vld [vmem:[#allocation5 + $0x170] sm:$0xff]
    %v259 = vld [vmem:[#allocation5 + $0x178] sm:$0xff]
    %v260 = vld [vmem:[#allocation5 + $0x180] sm:$0xff]
    %v261 = vld [vmem:[#allocation5 + $0x188] sm:$0xff]
    %v262 = vld [vmem:[#allocation5 + $0x190] sm:$0xff]
    %v263 = vld [vmem:[#allocation5 + $0x198] sm:$0xff]
    %v264 = vld [vmem:[#allocation5 + $0x1a0] sm:$0xff]
    %v265 = vld [vmem:[#allocation5 + $0x1a8] sm:$0xff]
    %v266 = vld [vmem:[#allocation5 + $0x1b0] sm:$0xff]
    %v267 = vld [vmem:[#allocation5 + $0x1b8] sm:$0xff]
    %v268 = vld [vmem:[#allocation5 + $0x1c0] sm:$0xff]
    %v269 = vld [vmem:[#allocation5 + $0x1c8] sm:$0xff]
    %v270 = vld [vmem:[#allocation5 + $0x1d0] sm:$0xff]
    %v271 = vld [vmem:[#allocation5 + $0x1d8] sm:$0xff]
    %v272 = vld [vmem:[#allocation5 + $0x1e0] sm:$0xff]
    %v273 = vld [vmem:[#allocation5 + $0x1e8] sm:$0xff]
    %v274 = vld [vmem:[#allocation5 + $0x1f0] sm:$0xff]
    %v275 = vld [vmem:[#allocation5 + $0x1f8] sm:$0xff]
    %v276 = vld [vmem:[#allocation5 + $0x200] sm:$0xff]
    %v277 = vld [vmem:[#allocation5 + $0x208] sm:$0xff]
    %v278 = vld [vmem:[#allocation5 + $0x210] sm:$0xff]
    %v279 = vld [vmem:[#allocation5 + $0x218] sm:$0xff]
    %v280 = vld [vmem:[#allocation5 + $0x220] sm:$0xff]
    %v281 = vld [vmem:[#allocation5 + $0x228] sm:$0xff]
    %v282 = vld [vmem:[#allocation5 + $0x230] sm:$0xff]
    %v283 = vld [vmem:[#allocation5 + $0x238] sm:$0xff]
    %v284 = vld [vmem:[#allocation5 + $0x240] sm:$0xff]
    %v285 = vld [vmem:[#allocation5 + $0x248] sm:$0xff]
    %v286 = vld [vmem:[#allocation5 + $0x250] sm:$0xff]
    %v287 = vld [vmem:[#allocation5 + $0x258] sm:$0xff]
    %v288 = vld [vmem:[#allocation5 + $0x260] sm:$0xff]
    %v289 = vld [vmem:[#allocation5 + $0x268] sm:$0xff]
    %v290 = vld [vmem:[#allocation5 + $0x270] sm:$0xff]
    %v291 = vld [vmem:[#allocation5 + $0x278] sm:$0xff]
    %v292 = vld [vmem:[#allocation5 + $0x280] sm:$0xff]
    %v293 = vld [vmem:[#allocation5 + $0x288] sm:$0xff]
    %v294 = vld [vmem:[#allocation5 + $0x290] sm:$0xff]
    %v295 = vld [vmem:[#allocation5 + $0x298] sm:$0xff]
    %v296 = vld [vmem:[#allocation5 + $0x2a0] sm:$0xff]
    %v297 = vld [vmem:[#allocation5 + $0x2a8] sm:$0xff]
    %v298 = vld [vmem:[#allocation5 + $0x2b0] sm:$0xff]
    %v299 = vld [vmem:[#allocation5 + $0x2b8] sm:$0xff]
    %v300 = vld [vmem:[#allocation5 + $0x2c0] sm:$0xff]
    %v301 = vld [vmem:[#allocation5 + $0x2c8] sm:$0xff]
    %v302 = vld [vmem:[#allocation5 + $0x2d0] sm:$0xff]
    %v303 = vld [vmem:[#allocation5 + $0x2d8] sm:$0xff]
    %v304 = vld [vmem:[#allocation5 + $0x2e0] sm:$0xff]
    %v305 = vld [vmem:[#allocation5 + $0x2e8] sm:$0xff]
    %v306 = vld [vmem:[#allocation5 + $0x2f0] sm:$0xff]
    %v307 = vld [vmem:[#allocation5 + $0x2f8] sm:$0xff]
    %v308 = vld [vmem:[#allocation5 + $0x300] sm:$0xff]
    %v309 = vld [vmem:[#allocation5 + $0x308] sm:$0xff]
    %v310 = vld [vmem:[#allocation5 + $0x310] sm:$0xff]
    %v311 = vld [vmem:[#allocation5 + $0x318] sm:$0xff]
    %v312 = vld [vmem:[#allocation5 + $0x320] sm:$0xff]
    %v313 = vld [vmem:[#allocation5 + $0x328] sm:$0xff]
    %v314 = vld [vmem:[#allocation5 + $0x330] sm:$0xff]
    %v315 = vld [vmem:[#allocation5 + $0x338] sm:$0xff]
    %v316 = vld [vmem:[#allocation5 + $0x340] sm:$0xff]
    %v317 = vld [vmem:[#allocation5 + $0x348] sm:$0xff]
    %v318 = vld [vmem:[#allocation5 + $0x350] sm:$0xff]
    %v319 = vld [vmem:[#allocation5 + $0x358] sm:$0xff]
    %v320 = vld [vmem:[#allocation5 + $0x360] sm:$0xff]
    %v321 = vld [vmem:[#allocation5 + $0x368] sm:$0xff]
    %v322 = vld [vmem:[#allocation5 + $0x370] sm:$0xff]
    %v323 = vld [vmem:[#allocation5 + $0x378] sm:$0xff]
    %v324 = vld [vmem:[#allocation5 + $0x380] sm:$0xff]
    %v325 = vld [vmem:[#allocation5 + $0x388] sm:$0xff]
    %v326 = vld [vmem:[#allocation5 + $0x390] sm:$0xff]
    %v327 = vld [vmem:[#allocation5 + $0x398] sm:$0xff]
    %v328 = vld [vmem:[#allocation5 + $0x3a0] sm:$0xff]
    %v329 = vld [vmem:[#allocation5 + $0x3a8] sm:$0xff]
    %v330 = vld [vmem:[#allocation5 + $0x3b0] sm:$0xff]
    %v331 = vld [vmem:[#allocation5 + $0x3b8] sm:$0xff]
    %v332 = vld [vmem:[#allocation5 + $0x3c0] sm:$0xff]
    %v333 = vld [vmem:[#allocation5 + $0x3c8] sm:$0xff]
    %v334 = vld [vmem:[#allocation5 + $0x3d0] sm:$0xff]
    %v335 = vld [vmem:[#allocation5 + $0x3d8] sm:$0xff]
    %v336 = vld [vmem:[#allocation5 + $0x3e0] sm:$0xff]
    %v337 = vld [vmem:[#allocation5 + $0x3e8] sm:$0xff]
    %v338 = vld [vmem:[#allocation5 + $0x3f0] sm:$0xff]
    %v339 = vld [vmem:[#allocation5 + $0x3f8] sm:$0xff]
    %v340 = vld [vmem:[#allocation5 + $0x400] sm:$0xff]
    %v341 = vld [vmem:[#allocation5 + $0x408] sm:$0xff]
    %v342 = vld [vmem:[#allocation5 + $0x410] sm:$0xff]
    %v343 = vld [vmem:[#allocation5 + $0x418] sm:$0xff]
    %v344 = vld [vmem:[#allocation5 + $0x420] sm:$0xff]
    %v345 = vld [vmem:[#allocation5 + $0x428] sm:$0xff]
    %v346 = vld [vmem:[#allocation5 + $0x430] sm:$0xff]
    %v347 = vld [vmem:[#allocation5 + $0x438] sm:$0xff]
    %v348 = vld [vmem:[#allocation5 + $0x440] sm:$0xff]
    %v349 = vld [vmem:[#allocation5 + $0x448] sm:$0xff]
    %v350 = vld [vmem:[#allocation5 + $0x450] sm:$0xff]
    %v351 = vld [vmem:[#allocation5 + $0x458] sm:$0xff]
    %v352 = vld [vmem:[#allocation5 + $0x460] sm:$0xff]
    %v353 = vld [vmem:[#allocation5 + $0x468] sm:$0xff]
    %v354 = vld [vmem:[#allocation5 + $0x470] sm:$0xff]
    %v355 = vld [vmem:[#allocation5 + $0x478] sm:$0xff]
    %v356 = vld [vmem:[#allocation5 + $0x480] sm:$0xff]
    %v357 = vld [vmem:[#allocation5 + $0x488] sm:$0xff]
    %v358 = vld [vmem:[#allocation5 + $0x490] sm:$0xff]
    %v359 = vld [vmem:[#allocation5 + $0x498] sm:$0xff]
    %v360 = vld [vmem:[#allocation5 + $0x4a0] sm:$0xff]
    %v361 = vld [vmem:[#allocation5 + $0x4a8] sm:$0xff]
    %v362 = vld [vmem:[#allocation5 + $0x4b0] sm:$0xff]
    %v363 = vld [vmem:[#allocation5 + $0x4b8] sm:$0xff]
    %v364 = vld [vmem:[#allocation5 + $0x4c0] sm:$0xff]
    %v365 = vld [vmem:[#allocation5 + $0x4c8] sm:$0xff]
    %v366 = vld [vmem:[#allocation5 + $0x4d0] sm:$0xff]
    %v367 = vld [vmem:[#allocation5 + $0x4d8] sm:$0xff]
    %v368 = vld [vmem:[#allocation5 + $0x4e0] sm:$0xff]
    %v369 = vld [vmem:[#allocation5 + $0x4e8] sm:$0xff]
    %v370 = vld [vmem:[#allocation5 + $0x4f0] sm:$0xff]
    %v371 = vld [vmem:[#allocation5 + $0x4f8] sm:$0xff]
    %v372 = vld [vmem:[#allocation5 + $0x500] sm:$0xff]
    %v373 = vld [vmem:[#allocation5 + $0x508] sm:$0xff]
    %v374 = vld [vmem:[#allocation5 + $0x510] sm:$0xff]
    %v375 = vld [vmem:[#allocation5 + $0x518] sm:$0xff]
    %v376 = vld [vmem:[#allocation5 + $0x520] sm:$0xff]
    %v377 = vld [vmem:[#allocation5 + $0x528] sm:$0xff]
    %v378 = vld [vmem:[#allocation5 + $0x530] sm:$0xff]
    %v379 = vld [vmem:[#allocation5 + $0x538] sm:$0xff]
    %v380 = vld [vmem:[#allocation5 + $0x540] sm:$0xff]
    %v381 = vld [vmem:[#allocation5 + $0x548] sm:$0xff]
    %v382 = vld [vmem:[#allocation5 + $0x550] sm:$0xff]
    %v383 = vld [vmem:[#allocation5 + $0x558] sm:$0xff]
    %v384 = vld [vmem:[#allocation5 + $0x560] sm:$0xff]
    %v385 = vld [vmem:[#allocation5 + $0x568] sm:$0xff]
    %v386 = vld [vmem:[#allocation5 + $0x570] sm:$0xff]
    %v387 = vld [vmem:[#allocation5 + $0x578] sm:$0xff]
    %v388 = vld [vmem:[#allocation5 + $0x580] sm:$0xff]
    %v389 = vld [vmem:[#allocation5 + $0x588] sm:$0xff]
    %v390 = vld [vmem:[#allocation5 + $0x590] sm:$0xff]
    %v391 = vld [vmem:[#allocation5 + $0x598] sm:$0xff]
    %v392 = vld [vmem:[#allocation5 + $0x5a0] sm:$0xff]
    %v393 = vld [vmem:[#allocation5 + $0x5a8] sm:$0xff]
    %v394 = vld [vmem:[#allocation5 + $0x5b0] sm:$0xff]
    %v395 = vld [vmem:[#allocation5 + $0x5b8] sm:$0xff]
    %v396 = vld [vmem:[#allocation5 + $0x5c0] sm:$0xff]
    %v397 = vld [vmem:[#allocation5 + $0x5c8] sm:$0xff]
    %v398 = vld [vmem:[#allocation5 + $0x5d0] sm:$0xff]
    %v399 = vld [vmem:[#allocation5 + $0x5d8] sm:$0xff]
    %v400 = vld [vmem:[#allocation5 + $0x5e0] sm:$0xff]
    %v401 = vld [vmem:[#allocation5 + $0x5e8] sm:$0xff]
    %v402 = vld [vmem:[#allocation5 + $0x5f0] sm:$0xff]
    %v403 = vld [vmem:[#allocation5 + $0x5f8] sm:$0xff]
    %v404 = vld [vmem:[#allocation5 + $0x600] sm:$0xff]
    %v405 = vld [vmem:[#allocation5 + $0x608] sm:$0xff]
    %v406 = vld [vmem:[#allocation5 + $0x610] sm:$0xff]
    %v407 = vld [vmem:[#allocation5 + $0x618] sm:$0xff]
    %v408 = vld [vmem:[#allocation5 + $0x620] sm:$0xff]
    %v409 = vld [vmem:[#allocation5 + $0x628] sm:$0xff]
    %v410 = vld [vmem:[#allocation5 + $0x630] sm:$0xff]
    %v411 = vld [vmem:[#allocation5 + $0x638] sm:$0xff]
    %v412 = vld [vmem:[#allocation5 + $0x640] sm:$0xff]
    %v413 = vld [vmem:[#allocation5 + $0x648] sm:$0xff]
    %v414 = vld [vmem:[#allocation5 + $0x650] sm:$0xff]
    %v415 = vld [vmem:[#allocation5 + $0x658] sm:$0xff]
    %v416 = vld [vmem:[#allocation5 + $0x660] sm:$0xff]
    %v417 = vld [vmem:[#allocation5 + $0x668] sm:$0xff]
    %v418 = vld [vmem:[#allocation5 + $0x670] sm:$0xff]
    %v419 = vld [vmem:[#allocation5 + $0x678] sm:$0xff]
    %v420 = vld [vmem:[#allocation5 + $0x680] sm:$0xff]
    %v421 = vld [vmem:[#allocation5 + $0x688] sm:$0xff]
    %v422 = vld [vmem:[#allocation5 + $0x690] sm:$0xff]
    %v423 = vld [vmem:[#allocation5 + $0x698] sm:$0xff]
    %v424 = vld [vmem:[#allocation5 + $0x6a0] sm:$0xff]
    %v425 = vld [vmem:[#allocation5 + $0x6a8] sm:$0xff]
    %v426 = vld [vmem:[#allocation5 + $0x6b0] sm:$0xff]
    %v427 = vld [vmem:[#allocation5 + $0x6b8] sm:$0xff]
    %v428 = vld [vmem:[#allocation5 + $0x6c0] sm:$0xff]
    %v429 = vld [vmem:[#allocation5 + $0x6c8] sm:$0xff]
    %v430 = vld [vmem:[#allocation5 + $0x6d0] sm:$0xff]
    %v431 = vld [vmem:[#allocation5 + $0x6d8] sm:$0xff]
    %v432 = vld [vmem:[#allocation5 + $0x6e0] sm:$0xff]
    %v433 = vld [vmem:[#allocation5 + $0x6e8] sm:$0xff]
    %v434 = vld [vmem:[#allocation5 + $0x6f0] sm:$0xff]
    %v435 = vld [vmem:[#allocation5 + $0x6f8] sm:$0xff]
    %v436 = vld [vmem:[#allocation5 + $0x700] sm:$0xff]
    %v437 = vld [vmem:[#allocation5 + $0x708] sm:$0xff]
    %v438 = vld [vmem:[#allocation5 + $0x710] sm:$0xff]
    %v439 = vld [vmem:[#allocation5 + $0x718] sm:$0xff]
    %v440 = vld [vmem:[#allocation5 + $0x720] sm:$0xff]
    %v441 = vld [vmem:[#allocation5 + $0x728] sm:$0xff]
    %v442 = vld [vmem:[#allocation5 + $0x730] sm:$0xff]
    %v443 = vld [vmem:[#allocation5 + $0x738] sm:$0xff]
    %v444 = vld [vmem:[#allocation5 + $0x740] sm:$0xff]
    %v445 = vld [vmem:[#allocation5 + $0x748] sm:$0xff]
    %v446 = vld [vmem:[#allocation5 + $0x750] sm:$0xff]
    %v447 = vld [vmem:[#allocation5 + $0x758] sm:$0xff]
    %v448 = vld [vmem:[#allocation5 + $0x760] sm:$0xff]
    %v449 = vld [vmem:[#allocation5 + $0x768] sm:$0xff]
    %v450 = vld [vmem:[#allocation5 + $0x770] sm:$0xff]
    %v451 = vld [vmem:[#allocation5 + $0x778] sm:$0xff]
    %v452 = vld [vmem:[#allocation5 + $0x780] sm:$0xff]
    %v453 = vld [vmem:[#allocation5 + $0x788] sm:$0xff]
    %v454 = vld [vmem:[#allocation5 + $0x790] sm:$0xff]
    %v455 = vld [vmem:[#allocation5 + $0x798] sm:$0xff]
    %v456 = vld [vmem:[#allocation5 + $0x7a0] sm:$0xff]
    %v457 = vld [vmem:[#allocation5 + $0x7a8] sm:$0xff]
    %v458 = vld [vmem:[#allocation5 + $0x7b0] sm:$0xff]
    %v459 = vld [vmem:[#allocation5 + $0x7b8] sm:$0xff]
    %v460 = vld [vmem:[#allocation5 + $0x7c0] sm:$0xff]
    %v461 = vld [vmem:[#allocation5 + $0x7c8] sm:$0xff]
    %v462 = vld [vmem:[#allocation5 + $0x7d0] sm:$0xff]
    %v463 = vld [vmem:[#allocation5 + $0x7d8] sm:$0xff]
    %v464 = vld [vmem:[#allocation5 + $0x7e0] sm:$0xff]
    %v465 = vld [vmem:[#allocation5 + $0x7e8] sm:$0xff]
    %v466 = vld [vmem:[#allocation5 + $0x7f0] sm:$0xff]
    %v467 = vld [vmem:[#allocation5 + $0x7f8] sm:$0xff]
    %v468 = vld [vmem:[#allocation5 + $0x800] sm:$0xff]
    %v469 = vld [vmem:[#allocation5 + $0x808] sm:$0xff]
    %v470 = vld [vmem:[#allocation5 + $0x810] sm:$0xff]
    %v471 = vld [vmem:[#allocation5 + $0x818] sm:$0xff]
    %v472 = vld [vmem:[#allocation5 + $0x820] sm:$0xff]
    %v473 = vld [vmem:[#allocation5 + $0x828] sm:$0xff]
    %v474 = vld [vmem:[#allocation5 + $0x830] sm:$0xff]
    %v475 = vld [vmem:[#allocation5 + $0x838] sm:$0xff]
    %v476 = vld [vmem:[#allocation5 + $0x840] sm:$0xff]
    %v477 = vld [vmem:[#allocation5 + $0x848] sm:$0xff]
    %v478 = vld [vmem:[#allocation5 + $0x850] sm:$0xff]
    %v479 = vld [vmem:[#allocation5 + $0x858] sm:$0xff]
    %v480 = vld [vmem:[#allocation5 + $0x860] sm:$0xff]
    %v481 = vld [vmem:[#allocation5 + $0x868] sm:$0xff]
    %v482 = vld [vmem:[#allocation5 + $0x870] sm:$0xff]
    %v483 = vld [vmem:[#allocation5 + $0x878] sm:$0xff]
    %v484 = vld [vmem:[#allocation5 + $0x880] sm:$0xff]
    %v485 = vld [vmem:[#allocation5 + $0x888] sm:$0xff]
    %v486 = vld [vmem:[#allocation5 + $0x890] sm:$0xff]
    %v487 = vld [vmem:[#allocation5 + $0x898] sm:$0xff]
    %v488 = vld [vmem:[#allocation5 + $0x8a0] sm:$0xff]
    %v489 = vld [vmem:[#allocation5 + $0x8a8] sm:$0xff]
    %v490 = vld [vmem:[#allocation5 + $0x8b0] sm:$0xff]
    %v491 = vld [vmem:[#allocation5 + $0x8b8] sm:$0xff]
    %v492 = vld [vmem:[#allocation5 + $0x8c0] sm:$0xff]
    %v493 = vld [vmem:[#allocation5 + $0x8c8] sm:$0xff]
    %v494 = vld [vmem:[#allocation5 + $0x8d0] sm:$0xff]
    %v495 = vld [vmem:[#allocation5 + $0x8d8] sm:$0xff]
    %v496 = vld [vmem:[#allocation5 + $0x8e0] sm:$0xff]
    %v497 = vld [vmem:[#allocation5 + $0x8e8] sm:$0xff]
    %v498 = vld [vmem:[#allocation5 + $0x8f0] sm:$0xff]
    %v499 = vld [vmem:[#allocation5 + $0x8f8] sm:$0xff]
    %v500 = vld [vmem:[#allocation5 + $0x900] sm:$0xff]
    %v501 = vld [vmem:[#allocation5 + $0x908] sm:$0xff]
    %v502 = vld [vmem:[#allocation5 + $0x910] sm:$0xff]
    %v503 = vld [vmem:[#allocation5 + $0x918] sm:$0xff]
    %v504 = vld [vmem:[#allocation5 + $0x920] sm:$0xff]
    %v505 = vld [vmem:[#allocation5 + $0x928] sm:$0xff]
    %v506 = vld [vmem:[#allocation5 + $0x930] sm:$0xff]
    %v507 = vld [vmem:[#allocation5 + $0x938] sm:$0xff]
    %v508 = vld [vmem:[#allocation5 + $0x940] sm:$0xff]
    %v509 = vld [vmem:[#allocation5 + $0x948] sm:$0xff]
    %v510 = vld [vmem:[#allocation5 + $0x950] sm:$0xff]
    %v511 = vld [vmem:[#allocation5 + $0x958] sm:$0xff]
    %v512 = vld [vmem:[#allocation5 + $0x960] sm:$0xff]
    %v513 = vld [vmem:[#allocation5 + $0x968] sm:$0xff]
    %v514 = vld [vmem:[#allocation5 + $0x970] sm:$0xff]
    %v515 = vld [vmem:[#allocation5 + $0x978] sm:$0xff]
    %v516 = vld [vmem:[#allocation5 + $0x980] sm:$0xff]
    %v517 = vld [vmem:[#allocation5 + $0x988] sm:$0xff]
    %v518 = vld [vmem:[#allocation5 + $0x990] sm:$0xff]
    %v519 = vld [vmem:[#allocation5 + $0x998] sm:$0xff]
    %v520 = vld [vmem:[#allocation5 + $0x9a0] sm:$0xff]
    %v521 = vld [vmem:[#allocation5 + $0x9a8] sm:$0xff]
    %v522 = vld [vmem:[#allocation5 + $0x9b0] sm:$0xff]
    %v523 = vld [vmem:[#allocation5 + $0x9b8] sm:$0xff]
    %v524 = vld [vmem:[#allocation5 + $0x9c0] sm:$0xff]
    %v525 = vld [vmem:[#allocation5 + $0x9c8] sm:$0xff]
    %v526 = vld [vmem:[#allocation5 + $0x9d0] sm:$0xff]
    %v527 = vld [vmem:[#allocation5 + $0x9d8] sm:$0xff]
    %v528 = vld [vmem:[#allocation5 + $0x9e0] sm:$0xff]
    %v529 = vld [vmem:[#allocation5 + $0x9e8] sm:$0xff]
    %v530 = vld [vmem:[#allocation5 + $0x9f0] sm:$0xff]
    %v531 = vld [vmem:[#allocation5 + $0x9f8] sm:$0xff]
    %v532 = vld [vmem:[#allocation5 + $0xa00] sm:$0xff]
    %v533 = vld [vmem:[#allocation5 + $0xa08] sm:$0xff]
    %v534 = vld [vmem:[#allocation5 + $0xa10] sm:$0xff]
    %v535 = vld [vmem:[#allocation5 + $0xa18] sm:$0xff]
    %v536 = vld [vmem:[#allocation5 + $0xa20] sm:$0xff]
    %v537 = vld [vmem:[#allocation5 + $0xa28] sm:$0xff]
    %v538 = vld [vmem:[#allocation5 + $0xa30] sm:$0xff]
    %v539 = vld [vmem:[#allocation5 + $0xa38] sm:$0xff]
    %v540 = vld [vmem:[#allocation5 + $0xa40] sm:$0xff]
    %v541 = vld [vmem:[#allocation5 + $0xa48] sm:$0xff]
    %v542 = vld [vmem:[#allocation5 + $0xa50] sm:$0xff]
    %v543 = vld [vmem:[#allocation5 + $0xa58] sm:$0xff]
    %v544 = vld [vmem:[#allocation5 + $0xa60] sm:$0xff]
    %v545 = vld [vmem:[#allocation5 + $0xa68] sm:$0xff]
    %v546 = vld [vmem:[#allocation5 + $0xa70] sm:$0xff]
    %v547 = vld [vmem:[#allocation5 + $0xa78] sm:$0xff]
    %v548 = vld [vmem:[#allocation5 + $0xa80] sm:$0xff]
    %v549 = vld [vmem:[#allocation5 + $0xa88] sm:$0xff]
    %v550 = vld [vmem:[#allocation5 + $0xa90] sm:$0xff]
    %v551 = vld [vmem:[#allocation5 + $0xa98] sm:$0xff]
    %v552 = vld [vmem:[#allocation5 + $0xaa0] sm:$0xff]
    %v553 = vld [vmem:[#allocation5 + $0xaa8] sm:$0xff]
    %v554 = vld [vmem:[#allocation5 + $0xab0] sm:$0xff]
    %v555 = vld [vmem:[#allocation5 + $0xab8] sm:$0xff]
    %v556 = vld [vmem:[#allocation5 + $0xac0] sm:$0xff]
    %v557 = vld [vmem:[#allocation5 + $0xac8] sm:$0xff]
    %v558 = vld [vmem:[#allocation5 + $0xad0] sm:$0xff]
    %v559 = vld [vmem:[#allocation5 + $0xad8] sm:$0xff]
    %v560 = vld [vmem:[#allocation5 + $0xae0] sm:$0xff]
    %v561 = vld [vmem:[#allocation5 + $0xae8] sm:$0xff]
    %v562 = vld [vmem:[#allocation5 + $0xaf0] sm:$0xff]
    %v563 = vld [vmem:[#allocation5 + $0xaf8] sm:$0xff]
    %v564 = vld [vmem:[#allocation5 + $0xb00] sm:$0xff]
    %v565 = vld [vmem:[#allocation5 + $0xb08] sm:$0xff]
    %v566 = vld [vmem:[#allocation5 + $0xb10] sm:$0xff]
    %v567 = vld [vmem:[#allocation5 + $0xb18] sm:$0xff]
    %v568 = vld [vmem:[#allocation5 + $0xb20] sm:$0xff]
    %v569 = vld [vmem:[#allocation5 + $0xb28] sm:$0xff]
    %v570 = vld [vmem:[#allocation5 + $0xb30] sm:$0xff]
    %v571 = vld [vmem:[#allocation5 + $0xb38] sm:$0xff]
    %v572 = vld [vmem:[#allocation5 + $0xb40] sm:$0xff]
    %v573 = vld [vmem:[#allocation5 + $0xb48] sm:$0xff]
    %v574 = vld [vmem:[#allocation5 + $0xb50] sm:$0xff]
    %v575 = vld [vmem:[#allocation5 + $0xb58] sm:$0xff]
    %v576 = vld [vmem:[#allocation5 + $0xb60] sm:$0xff]
    %v577 = vld [vmem:[#allocation5 + $0xb68] sm:$0xff]
    %v578 = vld [vmem:[#allocation5 + $0xb70] sm:$0xff]
    %v579 = vld [vmem:[#allocation5 + $0xb78] sm:$0xff]
    %v580 = vld [vmem:[#allocation5 + $0xb80] sm:$0xff]
    %v581 = vld [vmem:[#allocation5 + $0xb88] sm:$0xff]
    %v582 = vld [vmem:[#allocation5 + $0xb90] sm:$0xff]
    %v583 = vld [vmem:[#allocation5 + $0xb98] sm:$0xff]
    %v584 = vld [vmem:[#allocation5 + $0xba0] sm:$0xff]
    %v585 = vld [vmem:[#allocation5 + $0xba8] sm:$0xff]
    %v586 = vld [vmem:[#allocation5 + $0xbb0] sm:$0xff]
    %v587 = vld [vmem:[#allocation5 + $0xbb8] sm:$0xff]
    %v588 = vld [vmem:[#allocation5 + $0xbc0] sm:$0xff]
    %v589 = vld [vmem:[#allocation5 + $0xbc8] sm:$0xff]
    %v590 = vld [vmem:[#allocation5 + $0xbd0] sm:$0xff]
    %v591 = vld [vmem:[#allocation5 + $0xbd8] sm:$0xff]
    %v592 = vld [vmem:[#allocation5 + $0xbe0] sm:$0xff]
    %v593 = vld [vmem:[#allocation5 + $0xbe8] sm:$0xff]
    %v594 = vld [vmem:[#allocation5 + $0xbf0] sm:$0xff]
    %v595 = vld [vmem:[#allocation5 + $0xbf8] sm:$0xff]
    %v596 = vld [vmem:[#allocation5 + $0xc00] sm:$0xff]
    %v597 = vld [vmem:[#allocation5 + $0xc08] sm:$0xff]
    %v598 = vld [vmem:[#allocation5 + $0xc10] sm:$0xff]
    %v599 = vld [vmem:[#allocation5 + $0xc18] sm:$0xff]
    %v600 = vld [vmem:[#allocation5 + $0xc20] sm:$0xff]
    %v601 = vld [vmem:[#allocation5 + $0xc28] sm:$0xff]
    %v602 = vld [vmem:[#allocation5 + $0xc30] sm:$0xff]
    %v603 = vld [vmem:[#allocation5 + $0xc38] sm:$0xff]
    %v604 = vld [vmem:[#allocation5 + $0xc40] sm:$0xff]
    %v605 = vld [vmem:[#allocation5 + $0xc48] sm:$0xff]
    %v606 = vld [vmem:[#allocation5 + $0xc50] sm:$0xff]
    %v607 = vld [vmem:[#allocation5 + $0xc58] sm:$0xff]
    %v608 = vld [vmem:[#allocation5 + $0xc60] sm:$0xff]
    %v609 = vld [vmem:[#allocation5 + $0xc68] sm:$0xff]
    %v610 = vld [vmem:[#allocation5 + $0xc70] sm:$0xff]
    %v611 = vld [vmem:[#allocation5 + $0xc78] sm:$0xff]
    %v612 = vld [vmem:[#allocation5 + $0xc80] sm:$0xff]
    %v613 = vld [vmem:[#allocation5 + $0xc88] sm:$0xff]
    %v614 = vld [vmem:[#allocation5 + $0xc90] sm:$0xff]
    %v615 = vld [vmem:[#allocation5 + $0xc98] sm:$0xff]
    %v616 = vld [vmem:[#allocation5 + $0xca0] sm:$0xff]
    %v617 = vld [vmem:[#allocation5 + $0xca8] sm:$0xff]
    %v618 = vld [vmem:[#allocation5 + $0xcb0] sm:$0xff]
    %v619 = vld [vmem:[#allocation5 + $0xcb8] sm:$0xff]
    %v620 = vld [vmem:[#allocation5 + $0xcc0] sm:$0xff]
    %v621 = vld [vmem:[#allocation5 + $0xcc8] sm:$0xff]
    %v622 = vld [vmem:[#allocation5 + $0xcd0] sm:$0xff]
    %v623 = vld [vmem:[#allocation5 + $0xcd8] sm:$0xff]
    %v624 = vld [vmem:[#allocation5 + $0xce0] sm:$0xff]
    %v625 = vld [vmem:[#allocation5 + $0xce8] sm:$0xff]
    %v626 = vld [vmem:[#allocation5 + $0xcf0] sm:$0xff]
    %v627 = vld [vmem:[#allocation5 + $0xcf8] sm:$0xff]
    %v628 = vld [vmem:[#allocation5 + $0xd00] sm:$0xff]
    %v629 = vld [vmem:[#allocation5 + $0xd08] sm:$0xff]
    %v630 = vld [vmem:[#allocation5 + $0xd10] sm:$0xff]
    %v631 = vld [vmem:[#allocation5 + $0xd18] sm:$0xff]
    %v632 = vld [vmem:[#allocation5 + $0xd20] sm:$0xff]
    %v633 = vld [vmem:[#allocation5 + $0xd28] sm:$0xff]
    %v634 = vld [vmem:[#allocation5 + $0xd30] sm:$0xff]
    %v635 = vld [vmem:[#allocation5 + $0xd38] sm:$0xff]
    %v636 = vld [vmem:[#allocation5 + $0xd40] sm:$0xff]
    %v637 = vld [vmem:[#allocation5 + $0xd48] sm:$0xff]
    %v638 = vld [vmem:[#allocation5 + $0xd50] sm:$0xff]
    %v639 = vld [vmem:[#allocation5 + $0xd58] sm:$0xff]
    %v640 = vld [vmem:[#allocation5 + $0xd60] sm:$0xff]
    %v641 = vld [vmem:[#allocation5 + $0xd68] sm:$0xff]
    %v642 = vld [vmem:[#allocation5 + $0xd70] sm:$0xff]
    %v643 = vld [vmem:[#allocation5 + $0xd78] sm:$0xff]
    %v644 = vld [vmem:[#allocation5 + $0xd80] sm:$0xff]
    %v645 = vld [vmem:[#allocation5 + $0xd88] sm:$0xff]
    %v646 = vld [vmem:[#allocation5 + $0xd90] sm:$0xff]
    %v647 = vld [vmem:[#allocation5 + $0xd98] sm:$0xff]
    %v648 = vld [vmem:[#allocation5 + $0xda0] sm:$0xff]
    %v649 = vld [vmem:[#allocation5 + $0xda8] sm:$0xff]
    %v650 = vld [vmem:[#allocation5 + $0xdb0] sm:$0xff]
    %v651 = vld [vmem:[#allocation5 + $0xdb8] sm:$0xff]
    %v652 = vld [vmem:[#allocation5 + $0xdc0] sm:$0xff]
    %v653 = vld [vmem:[#allocation5 + $0xdc8] sm:$0xff]
    %v654 = vld [vmem:[#allocation5 + $0xdd0] sm:$0xff]
    %v655 = vld [vmem:[#allocation5 + $0xdd8] sm:$0xff]
    %v656 = vld [vmem:[#allocation5 + $0xde0] sm:$0xff]
    %v657 = vld [vmem:[#allocation5 + $0xde8] sm:$0xff]
    %v658 = vld [vmem:[#allocation5 + $0xdf0] sm:$0xff]
    %v659 = vld [vmem:[#allocation5 + $0xdf8] sm:$0xff]
    %v660 = vld [vmem:[#allocation7] sm:$0xff]
    %v662 = vlaneseq
    %v663 = vshrl.u32 %v662, 7
    %v664 = vsub.s32 0, %v663
    %v665 = vrot.slane %v660, %v664
    %v666 = vlaneseq
    %v667 = vshrl.u32 %v666, 7
    %v668 = vsub.s32 1, %v667
    %v669 = vrot.slane %v660, %v668
    %v670 = vlaneseq
    %v671 = vshrl.u32 %v670, 7
    %v672 = vsub.s32 2, %v671
    %v673 = vrot.slane %v660, %v672
    %v674 = vlaneseq
    %v675 = vshrl.u32 %v674, 7
    %v676 = vsub.s32 3, %v675
    %v677 = vrot.slane %v660, %v676
    %v678 = vlaneseq
    %v679 = vshrl.u32 %v678, 7
    %v680 = vsub.s32 4, %v679
    %v681 = vrot.slane %v660, %v680
    %v682 = vlaneseq
    %v683 = vshrl.u32 %v682, 7
    %v684 = vsub.s32 5, %v683
    %v685 = vrot.slane %v660, %v684
    %v686 = vlaneseq
    %v687 = vshrl.u32 %v686, 7
    %v688 = vsub.s32 6, %v687
    %v689 = vrot.slane %v660, %v688
    %v690 = vlaneseq
    %v691 = vshrl.u32 %v690, 7
    %v692 = vsub.s32 7, %v691
    %v693 = vrot.slane %v660, %v692
    %v766 = vunpack.c.l.b16 %v148
    %v767 = vunpack.c.h.b16 %v148
    %v768 = vunpack.c.l.b16 %v149
    %v769 = vunpack.c.h.b16 %v149
    %v770 = vunpack.c.l.b16 %v150
    %v771 = vunpack.c.h.b16 %v150
    %v772 = vunpack.c.l.b16 %v151
    %v773 = vunpack.c.l.b16 %v152
    %v774 = vunpack.c.h.b16 %v152
    %v775 = vunpack.c.l.b16 %v153
    %v776 = vunpack.c.h.b16 %v153
    %v777 = vunpack.c.l.b16 %v154
    %v778 = vunpack.c.h.b16 %v154
    %v779 = vunpack.c.l.b16 %v155
    %v780 = vunpack.c.l.b16 %v156
    %v781 = vunpack.c.h.b16 %v156
    %v782 = vunpack.c.l.b16 %v157
    %v783 = vunpack.c.h.b16 %v157
    %v784 = vunpack.c.l.b16 %v158
    %v785 = vunpack.c.h.b16 %v158
    %v786 = vunpack.c.l.b16 %v159
    %v787 = vunpack.c.l.b16 %v160
    %v788 = vunpack.c.h.b16 %v160
    %v789 = vunpack.c.l.b16 %v161
    %v790 = vunpack.c.h.b16 %v161
    %v791 = vunpack.c.l.b16 %v162
    %v792 = vunpack.c.h.b16 %v162
    %v793 = vunpack.c.l.b16 %v163
    %v794 = vunpack.c.l.b16 %v164
    %v795 = vunpack.c.h.b16 %v164
    %v796 = vunpack.c.l.b16 %v165
    %v797 = vunpack.c.h.b16 %v165
    %v798 = vunpack.c.l.b16 %v166
    %v799 = vunpack.c.h.b16 %v166
    %v800 = vunpack.c.l.b16 %v167
    %v801 = vunpack.c.l.b16 %v168
    %v802 = vunpack.c.h.b16 %v168
    %v803 = vunpack.c.l.b16 %v169
    %v804 = vunpack.c.h.b16 %v169
    %v805 = vunpack.c.l.b16 %v170
    %v806 = vunpack.c.h.b16 %v170
    %v807 = vunpack.c.l.b16 %v171
    %v808 = vunpack.c.l.b16 %v172
    %v809 = vunpack.c.h.b16 %v172
    %v810 = vunpack.c.l.b16 %v173
    %v811 = vunpack.c.h.b16 %v173
    %v812 = vunpack.c.l.b16 %v174
    %v813 = vunpack.c.h.b16 %v174
    %v814 = vunpack.c.l.b16 %v175
    %v815 = vunpack.c.l.b16 %v176
    %v816 = vunpack.c.h.b16 %v176
    %v817 = vunpack.c.l.b16 %v177
    %v818 = vunpack.c.h.b16 %v177
    %v819 = vunpack.c.l.b16 %v178
    %v820 = vunpack.c.h.b16 %v178
    %v821 = vunpack.c.l.b16 %v179
    %v822 = vunpack.c.l.b16 %v180
    %v823 = vunpack.c.h.b16 %v180
    %v824 = vunpack.c.l.b16 %v181
    %v825 = vunpack.c.h.b16 %v181
    %v826 = vunpack.c.l.b16 %v182
    %v827 = vunpack.c.h.b16 %v182
    %v828 = vunpack.c.l.b16 %v183
    %v829 = vunpack.c.l.b16 %v184
    %v830 = vunpack.c.h.b16 %v184
    %v831 = vunpack.c.l.b16 %v185
    %v832 = vunpack.c.h.b16 %v185
    %v833 = vunpack.c.l.b16 %v186
    %v834 = vunpack.c.h.b16 %v186
    %v835 = vunpack.c.l.b16 %v187
    %v836 = vunpack.c.l.b16 %v188
    %v837 = vunpack.c.h.b16 %v188
    %v838 = vunpack.c.l.b16 %v189
    %v839 = vunpack.c.h.b16 %v189
    %v840 = vunpack.c.l.b16 %v190
    %v841 = vunpack.c.h.b16 %v190
    %v842 = vunpack.c.l.b16 %v191
    %v843 = vunpack.c.l.b16 %v192
    %v844 = vunpack.c.h.b16 %v192
    %v845 = vunpack.c.l.b16 %v193
    %v846 = vunpack.c.h.b16 %v193
    %v847 = vunpack.c.l.b16 %v194
    %v848 = vunpack.c.h.b16 %v194
    %v849 = vunpack.c.l.b16 %v195
    %v850 = vunpack.c.l.b16 %v196
    %v851 = vunpack.c.h.b16 %v196
    %v852 = vunpack.c.l.b16 %v197
    %v853 = vunpack.c.h.b16 %v197
    %v854 = vunpack.c.l.b16 %v198
    %v855 = vunpack.c.h.b16 %v198
    %v856 = vunpack.c.l.b16 %v199
    %v857 = vunpack.c.l.b16 %v200
    %v858 = vunpack.c.h.b16 %v200
    %v859 = vunpack.c.l.b16 %v201
    %v860 = vunpack.c.h.b16 %v201
    %v861 = vunpack.c.l.b16 %v202
    %v862 = vunpack.c.h.b16 %v202
    %v863 = vunpack.c.l.b16 %v203
    %v864 = vunpack.c.l.b16 %v204
    %v865 = vunpack.c.h.b16 %v204
    %v866 = vunpack.c.l.b16 %v205
    %v867 = vunpack.c.h.b16 %v205
    %v868 = vunpack.c.l.b16 %v206
    %v869 = vunpack.c.h.b16 %v206
    %v870 = vunpack.c.l.b16 %v207
    %v871 = vunpack.c.l.b16 %v208
    %v872 = vunpack.c.h.b16 %v208
    %v873 = vunpack.c.l.b16 %v209
    %v874 = vunpack.c.h.b16 %v209
    %v875 = vunpack.c.l.b16 %v210
    %v876 = vunpack.c.h.b16 %v210
    %v877 = vunpack.c.l.b16 %v211
    %v878 = vpack.c.b16 %v773, %v766
    %v879 = vpack.c.b16 %v774, %v767
    %v880 = vpack.c.b16 %v775, %v768
    %v881 = vpack.c.b16 %v776, %v769
    %v882 = vpack.c.b16 %v777, %v770
    %v883 = vpack.c.b16 %v778, %v771
    %v884 = vpack.c.b16 %v779, %v772
    %v885 = vpack.c.b16 %v787, %v780
    %v886 = vpack.c.b16 %v788, %v781
    %v887 = vpack.c.b16 %v789, %v782
    %v888 = vpack.c.b16 %v790, %v783
    %v889 = vpack.c.b16 %v791, %v784
    %v890 = vpack.c.b16 %v792, %v785
    %v891 = vpack.c.b16 %v793, %v786
    %v892 = vpack.c.b16 %v801, %v794
    %v893 = vpack.c.b16 %v802, %v795
    %v894 = vpack.c.b16 %v803, %v796
    %v895 = vpack.c.b16 %v804, %v797
    %v896 = vpack.c.b16 %v805, %v798
    %v897 = vpack.c.b16 %v806, %v799
    %v898 = vpack.c.b16 %v807, %v800
    %v899 = vpack.c.b16 %v815, %v808
    %v900 = vpack.c.b16 %v816, %v809
    %v901 = vpack.c.b16 %v817, %v810
    %v902 = vpack.c.b16 %v818, %v811
    %v903 = vpack.c.b16 %v819, %v812
    %v904 = vpack.c.b16 %v820, %v813
    %v905 = vpack.c.b16 %v821, %v814
    %v906 = vpack.c.b16 %v829, %v822
    %v907 = vpack.c.b16 %v830, %v823
    %v908 = vpack.c.b16 %v831, %v824
    %v909 = vpack.c.b16 %v832, %v825
    %v910 = vpack.c.b16 %v833, %v826
    %v911 = vpack.c.b16 %v834, %v827
    %v912 = vpack.c.b16 %v835, %v828
    %v913 = vpack.c.b16 %v843, %v836
    %v914 = vpack.c.b16 %v844, %v837
    %v915 = vpack.c.b16 %v845, %v838
    %v916 = vpack.c.b16 %v846, %v839
    %v917 = vpack.c.b16 %v847, %v840
    %v918 = vpack.c.b16 %v848, %v841
    %v919 = vpack.c.b16 %v849, %v842
    %v920 = vpack.c.b16 %v857, %v850
    %v921 = vpack.c.b16 %v858, %v851
    %v922 = vpack.c.b16 %v859, %v852
    %v923 = vpack.c.b16 %v860, %v853
    %v924 = vpack.c.b16 %v861, %v854
    %v925 = vpack.c.b16 %v862, %v855
    %v926 = vpack.c.b16 %v863, %v856
    %v927 = vpack.c.b16 %v871, %v864
    %v928 = vpack.c.b16 %v872, %v865
    %v929 = vpack.c.b16 %v873, %v866
    %v930 = vpack.c.b16 %v874, %v867
    %v931 = vpack.c.b16 %v875, %v868
    %v932 = vpack.c.b16 %v876, %v869
    %v933 = vpack.c.b16 %v877, %v870
    %v1438 = vunpack.c.l.b16 %v212
    %v1439 = vunpack.c.h.b16 %v212
    %v1440 = vunpack.c.l.b16 %v213
    %v1441 = vunpack.c.h.b16 %v213
    %v1442 = vunpack.c.l.b16 %v214
    %v1443 = vunpack.c.h.b16 %v214
    %v1444 = vunpack.c.l.b16 %v215
    %v1445 = vunpack.c.h.b16 %v215
    %v1446 = vunpack.c.l.b16 %v216
    %v1447 = vunpack.c.h.b16 %v216
    %v1448 = vunpack.c.l.b16 %v217
    %v1449 = vunpack.c.h.b16 %v217
    %v1450 = vunpack.c.l.b16 %v218
    %v1451 = vunpack.c.h.b16 %v218
    %v1452 = vunpack.c.l.b16 %v219
    %v1453 = vunpack.c.h.b16 %v219
    %v1454 = vunpack.c.l.b16 %v220
    %v1455 = vunpack.c.h.b16 %v220
    %v1456 = vunpack.c.l.b16 %v221
    %v1457 = vunpack.c.h.b16 %v221
    %v1458 = vunpack.c.l.b16 %v222
    %v1459 = vunpack.c.h.b16 %v222
    %v1460 = vunpack.c.l.b16 %v223
    %v1461 = vunpack.c.h.b16 %v223
    %v1462 = vunpack.c.l.b16 %v224
    %v1463 = vunpack.c.h.b16 %v224
    %v1464 = vunpack.c.l.b16 %v225
    %v1465 = vunpack.c.h.b16 %v225
    %v1466 = vunpack.c.l.b16 %v226
    %v1467 = vunpack.c.h.b16 %v226
    %v1468 = vunpack.c.l.b16 %v227
    %v1469 = vunpack.c.h.b16 %v227
    %v1470 = vunpack.c.l.b16 %v228
    %v1471 = vunpack.c.h.b16 %v228
    %v1472 = vunpack.c.l.b16 %v229
    %v1473 = vunpack.c.h.b16 %v229
    %v1474 = vunpack.c.l.b16 %v230
    %v1475 = vunpack.c.h.b16 %v230
    %v1476 = vunpack.c.l.b16 %v231
    %v1477 = vunpack.c.h.b16 %v231
    %v1478 = vunpack.c.l.b16 %v232
    %v1479 = vunpack.c.h.b16 %v232
    %v1480 = vunpack.c.l.b16 %v233
    %v1481 = vunpack.c.h.b16 %v233
    %v1482 = vunpack.c.l.b16 %v234
    %v1483 = vunpack.c.h.b16 %v234
    %v1484 = vunpack.c.l.b16 %v235
    %v1485 = vunpack.c.h.b16 %v235
    %v1486 = vunpack.c.l.b16 %v236
    %v1487 = vunpack.c.h.b16 %v236
    %v1488 = vunpack.c.l.b16 %v237
    %v1489 = vunpack.c.h.b16 %v237
    %v1490 = vunpack.c.l.b16 %v238
    %v1491 = vunpack.c.h.b16 %v238
    %v1492 = vunpack.c.l.b16 %v239
    %v1493 = vunpack.c.h.b16 %v239
    %v1494 = vunpack.c.l.b16 %v240
    %v1495 = vunpack.c.h.b16 %v240
    %v1496 = vunpack.c.l.b16 %v241
    %v1497 = vunpack.c.h.b16 %v241
    %v1498 = vunpack.c.l.b16 %v242
    %v1499 = vunpack.c.h.b16 %v242
    %v1500 = vunpack.c.l.b16 %v243
    %v1501 = vunpack.c.h.b16 %v243
    %v1502 = vunpack.c.l.b16 %v244
    %v1503 = vunpack.c.h.b16 %v244
    %v1504 = vunpack.c.l.b16 %v245
    %v1505 = vunpack.c.h.b16 %v245
    %v1506 = vunpack.c.l.b16 %v246
    %v1507 = vunpack.c.h.b16 %v246
    %v1508 = vunpack.c.l.b16 %v247
    %v1509 = vunpack.c.h.b16 %v247
    %v1510 = vunpack.c.l.b16 %v248
    %v1511 = vunpack.c.h.b16 %v248
    %v1512 = vunpack.c.l.b16 %v249
    %v1513 = vunpack.c.h.b16 %v249
    %v1514 = vunpack.c.l.b16 %v250
    %v1515 = vunpack.c.h.b16 %v250
    %v1516 = vunpack.c.l.b16 %v251
    %v1517 = vunpack.c.h.b16 %v251
    %v1518 = vunpack.c.l.b16 %v252
    %v1519 = vunpack.c.h.b16 %v252
    %v1520 = vunpack.c.l.b16 %v253
    %v1521 = vunpack.c.h.b16 %v253
    %v1522 = vunpack.c.l.b16 %v254
    %v1523 = vunpack.c.h.b16 %v254
    %v1524 = vunpack.c.l.b16 %v255
    %v1525 = vunpack.c.h.b16 %v255
    %v1526 = vunpack.c.l.b16 %v256
    %v1527 = vunpack.c.h.b16 %v256
    %v1528 = vunpack.c.l.b16 %v257
    %v1529 = vunpack.c.h.b16 %v257
    %v1530 = vunpack.c.l.b16 %v258
    %v1531 = vunpack.c.h.b16 %v258
    %v1532 = vunpack.c.l.b16 %v259
    %v1533 = vunpack.c.h.b16 %v259
    %v1534 = vunpack.c.l.b16 %v260
    %v1535 = vunpack.c.h.b16 %v260
    %v1536 = vunpack.c.l.b16 %v261
    %v1537 = vunpack.c.h.b16 %v261
    %v1538 = vunpack.c.l.b16 %v262
    %v1539 = vunpack.c.h.b16 %v262
    %v1540 = vunpack.c.l.b16 %v263
    %v1541 = vunpack.c.h.b16 %v263
    %v1542 = vunpack.c.l.b16 %v264
    %v1543 = vunpack.c.h.b16 %v264
    %v1544 = vunpack.c.l.b16 %v265
    %v1545 = vunpack.c.h.b16 %v265
    %v1546 = vunpack.c.l.b16 %v266
    %v1547 = vunpack.c.h.b16 %v266
    %v1548 = vunpack.c.l.b16 %v267
    %v1549 = vunpack.c.h.b16 %v267
    %v1550 = vunpack.c.l.b16 %v268
    %v1551 = vunpack.c.h.b16 %v268
    %v1552 = vunpack.c.l.b16 %v269
    %v1553 = vunpack.c.h.b16 %v269
    %v1554 = vunpack.c.l.b16 %v270
    %v1555 = vunpack.c.h.b16 %v270
    %v1556 = vunpack.c.l.b16 %v271
    %v1557 = vunpack.c.h.b16 %v271
    %v1558 = vunpack.c.l.b16 %v272
    %v1559 = vunpack.c.h.b16 %v272
    %v1560 = vunpack.c.l.b16 %v273
    %v1561 = vunpack.c.h.b16 %v273
    %v1562 = vunpack.c.l.b16 %v274
    %v1563 = vunpack.c.h.b16 %v274
    %v1564 = vunpack.c.l.b16 %v275
    %v1565 = vunpack.c.h.b16 %v275
    %v1566 = vunpack.c.l.b16 %v276
    %v1567 = vunpack.c.h.b16 %v276
    %v1568 = vunpack.c.l.b16 %v277
    %v1569 = vunpack.c.h.b16 %v277
    %v1570 = vunpack.c.l.b16 %v278
    %v1571 = vunpack.c.h.b16 %v278
    %v1572 = vunpack.c.l.b16 %v279
    %v1573 = vunpack.c.h.b16 %v279
    %v1574 = vunpack.c.l.b16 %v280
    %v1575 = vunpack.c.h.b16 %v280
    %v1576 = vunpack.c.l.b16 %v281
    %v1577 = vunpack.c.h.b16 %v281
    %v1578 = vunpack.c.l.b16 %v282
    %v1579 = vunpack.c.h.b16 %v282
    %v1580 = vunpack.c.l.b16 %v283
    %v1581 = vunpack.c.h.b16 %v283
    %v1582 = vunpack.c.l.b16 %v284
    %v1583 = vunpack.c.h.b16 %v284
    %v1584 = vunpack.c.l.b16 %v285
    %v1585 = vunpack.c.h.b16 %v285
    %v1586 = vunpack.c.l.b16 %v286
    %v1587 = vunpack.c.h.b16 %v286
    %v1588 = vunpack.c.l.b16 %v287
    %v1589 = vunpack.c.h.b16 %v287
    %v1590 = vunpack.c.l.b16 %v288
    %v1591 = vunpack.c.h.b16 %v288
    %v1592 = vunpack.c.l.b16 %v289
    %v1593 = vunpack.c.h.b16 %v289
    %v1594 = vunpack.c.l.b16 %v290
    %v1595 = vunpack.c.h.b16 %v290
    %v1596 = vunpack.c.l.b16 %v291
    %v1597 = vunpack.c.h.b16 %v291
    %v1598 = vunpack.c.l.b16 %v292
    %v1599 = vunpack.c.h.b16 %v292
    %v1600 = vunpack.c.l.b16 %v293
    %v1601 = vunpack.c.h.b16 %v293
    %v1602 = vunpack.c.l.b16 %v294
    %v1603 = vunpack.c.h.b16 %v294
    %v1604 = vunpack.c.l.b16 %v295
    %v1605 = vunpack.c.h.b16 %v295
    %v1606 = vunpack.c.l.b16 %v296
    %v1607 = vunpack.c.h.b16 %v296
    %v1608 = vunpack.c.l.b16 %v297
    %v1609 = vunpack.c.h.b16 %v297
    %v1610 = vunpack.c.l.b16 %v298
    %v1611 = vunpack.c.h.b16 %v298
    %v1612 = vunpack.c.l.b16 %v299
    %v1613 = vunpack.c.h.b16 %v299
    %v1614 = vunpack.c.l.b16 %v300
    %v1615 = vunpack.c.h.b16 %v300
    %v1616 = vunpack.c.l.b16 %v301
    %v1617 = vunpack.c.h.b16 %v301
    %v1618 = vunpack.c.l.b16 %v302
    %v1619 = vunpack.c.h.b16 %v302
    %v1620 = vunpack.c.l.b16 %v303
    %v1621 = vunpack.c.h.b16 %v303
    %v1622 = vunpack.c.l.b16 %v304
    %v1623 = vunpack.c.h.b16 %v304
    %v1624 = vunpack.c.l.b16 %v305
    %v1625 = vunpack.c.h.b16 %v305
    %v1626 = vunpack.c.l.b16 %v306
    %v1627 = vunpack.c.h.b16 %v306
    %v1628 = vunpack.c.l.b16 %v307
    %v1629 = vunpack.c.h.b16 %v307
    %v1630 = vunpack.c.l.b16 %v308
    %v1631 = vunpack.c.h.b16 %v308
    %v1632 = vunpack.c.l.b16 %v309
    %v1633 = vunpack.c.h.b16 %v309
    %v1634 = vunpack.c.l.b16 %v310
    %v1635 = vunpack.c.h.b16 %v310
    %v1636 = vunpack.c.l.b16 %v311
    %v1637 = vunpack.c.h.b16 %v311
    %v1638 = vunpack.c.l.b16 %v312
    %v1639 = vunpack.c.h.b16 %v312
    %v1640 = vunpack.c.l.b16 %v313
    %v1641 = vunpack.c.h.b16 %v313
    %v1642 = vunpack.c.l.b16 %v314
    %v1643 = vunpack.c.h.b16 %v314
    %v1644 = vunpack.c.l.b16 %v315
    %v1645 = vunpack.c.h.b16 %v315
    %v1646 = vunpack.c.l.b16 %v316
    %v1647 = vunpack.c.h.b16 %v316
    %v1648 = vunpack.c.l.b16 %v317
    %v1649 = vunpack.c.h.b16 %v317
    %v1650 = vunpack.c.l.b16 %v318
    %v1651 = vunpack.c.h.b16 %v318
    %v1652 = vunpack.c.l.b16 %v319
    %v1653 = vunpack.c.h.b16 %v319
    %v1654 = vunpack.c.l.b16 %v320
    %v1655 = vunpack.c.h.b16 %v320
    %v1656 = vunpack.c.l.b16 %v321
    %v1657 = vunpack.c.h.b16 %v321
    %v1658 = vunpack.c.l.b16 %v322
    %v1659 = vunpack.c.h.b16 %v322
    %v1660 = vunpack.c.l.b16 %v323
    %v1661 = vunpack.c.h.b16 %v323
    %v1662 = vunpack.c.l.b16 %v324
    %v1663 = vunpack.c.h.b16 %v324
    %v1664 = vunpack.c.l.b16 %v325
    %v1665 = vunpack.c.h.b16 %v325
    %v1666 = vunpack.c.l.b16 %v326
    %v1667 = vunpack.c.h.b16 %v326
    %v1668 = vunpack.c.l.b16 %v327
    %v1669 = vunpack.c.h.b16 %v327
    %v1670 = vunpack.c.l.b16 %v328
    %v1671 = vunpack.c.h.b16 %v328
    %v1672 = vunpack.c.l.b16 %v329
    %v1673 = vunpack.c.h.b16 %v329
    %v1674 = vunpack.c.l.b16 %v330
    %v1675 = vunpack.c.h.b16 %v330
    %v1676 = vunpack.c.l.b16 %v331
    %v1677 = vunpack.c.h.b16 %v331
    %v1678 = vunpack.c.l.b16 %v332
    %v1679 = vunpack.c.h.b16 %v332
    %v1680 = vunpack.c.l.b16 %v333
    %v1681 = vunpack.c.h.b16 %v333
    %v1682 = vunpack.c.l.b16 %v334
    %v1683 = vunpack.c.h.b16 %v334
    %v1684 = vunpack.c.l.b16 %v335
    %v1685 = vunpack.c.h.b16 %v335
    %v1686 = vunpack.c.l.b16 %v336
    %v1687 = vunpack.c.h.b16 %v336
    %v1688 = vunpack.c.l.b16 %v337
    %v1689 = vunpack.c.h.b16 %v337
    %v1690 = vunpack.c.l.b16 %v338
    %v1691 = vunpack.c.h.b16 %v338
    %v1692 = vunpack.c.l.b16 %v339
    %v1693 = vunpack.c.h.b16 %v339
    %v1694 = vunpack.c.l.b16 %v340
    %v1695 = vunpack.c.h.b16 %v340
    %v1696 = vunpack.c.l.b16 %v341
    %v1697 = vunpack.c.h.b16 %v341
    %v1698 = vunpack.c.l.b16 %v342
    %v1699 = vunpack.c.h.b16 %v342
    %v1700 = vunpack.c.l.b16 %v343
    %v1701 = vunpack.c.h.b16 %v343
    %v1702 = vunpack.c.l.b16 %v344
    %v1703 = vunpack.c.h.b16 %v344
    %v1704 = vunpack.c.l.b16 %v345
    %v1705 = vunpack.c.h.b16 %v345
    %v1706 = vunpack.c.l.b16 %v346
    %v1707 = vunpack.c.h.b16 %v346
    %v1708 = vunpack.c.l.b16 %v347
    %v1709 = vunpack.c.h.b16 %v347
    %v1710 = vunpack.c.l.b16 %v348
    %v1711 = vunpack.c.h.b16 %v348
    %v1712 = vunpack.c.l.b16 %v349
    %v1713 = vunpack.c.h.b16 %v349
    %v1714 = vunpack.c.l.b16 %v350
    %v1715 = vunpack.c.h.b16 %v350
    %v1716 = vunpack.c.l.b16 %v351
    %v1717 = vunpack.c.h.b16 %v351
    %v1718 = vunpack.c.l.b16 %v352
    %v1719 = vunpack.c.h.b16 %v352
    %v1720 = vunpack.c.l.b16 %v353
    %v1721 = vunpack.c.h.b16 %v353
    %v1722 = vunpack.c.l.b16 %v354
    %v1723 = vunpack.c.h.b16 %v354
    %v1724 = vunpack.c.l.b16 %v355
    %v1725 = vunpack.c.h.b16 %v355
    %v1726 = vunpack.c.l.b16 %v356
    %v1727 = vunpack.c.h.b16 %v356
    %v1728 = vunpack.c.l.b16 %v357
    %v1729 = vunpack.c.h.b16 %v357
    %v1730 = vunpack.c.l.b16 %v358
    %v1731 = vunpack.c.h.b16 %v358
    %v1732 = vunpack.c.l.b16 %v359
    %v1733 = vunpack.c.h.b16 %v359
    %v1734 = vunpack.c.l.b16 %v360
    %v1735 = vunpack.c.h.b16 %v360
    %v1736 = vunpack.c.l.b16 %v361
    %v1737 = vunpack.c.h.b16 %v361
    %v1738 = vunpack.c.l.b16 %v362
    %v1739 = vunpack.c.h.b16 %v362
    %v1740 = vunpack.c.l.b16 %v363
    %v1741 = vunpack.c.h.b16 %v363
    %v1742 = vunpack.c.l.b16 %v364
    %v1743 = vunpack.c.h.b16 %v364
    %v1744 = vunpack.c.l.b16 %v365
    %v1745 = vunpack.c.h.b16 %v365
    %v1746 = vunpack.c.l.b16 %v366
    %v1747 = vunpack.c.h.b16 %v366
    %v1748 = vunpack.c.l.b16 %v367
    %v1749 = vunpack.c.h.b16 %v367
    %v1750 = vunpack.c.l.b16 %v368
    %v1751 = vunpack.c.h.b16 %v368
    %v1752 = vunpack.c.l.b16 %v369
    %v1753 = vunpack.c.h.b16 %v369
    %v1754 = vunpack.c.l.b16 %v370
    %v1755 = vunpack.c.h.b16 %v370
    %v1756 = vunpack.c.l.b16 %v371
    %v1757 = vunpack.c.h.b16 %v371
    %v1758 = vunpack.c.l.b16 %v372
    %v1759 = vunpack.c.h.b16 %v372
    %v1760 = vunpack.c.l.b16 %v373
    %v1761 = vunpack.c.h.b16 %v373
    %v1762 = vunpack.c.l.b16 %v374
    %v1763 = vunpack.c.h.b16 %v374
    %v1764 = vunpack.c.l.b16 %v375
    %v1765 = vunpack.c.h.b16 %v375
    %v1766 = vunpack.c.l.b16 %v376
    %v1767 = vunpack.c.h.b16 %v376
    %v1768 = vunpack.c.l.b16 %v377
    %v1769 = vunpack.c.h.b16 %v377
    %v1770 = vunpack.c.l.b16 %v378
    %v1771 = vunpack.c.h.b16 %v378
    %v1772 = vunpack.c.l.b16 %v379
    %v1773 = vunpack.c.h.b16 %v379
    %v1774 = vunpack.c.l.b16 %v380
    %v1775 = vunpack.c.h.b16 %v380
    %v1776 = vunpack.c.l.b16 %v381
    %v1777 = vunpack.c.h.b16 %v381
    %v1778 = vunpack.c.l.b16 %v382
    %v1779 = vunpack.c.h.b16 %v382
    %v1780 = vunpack.c.l.b16 %v383
    %v1781 = vunpack.c.h.b16 %v383
    %v1782 = vunpack.c.l.b16 %v384
    %v1783 = vunpack.c.h.b16 %v384
    %v1784 = vunpack.c.l.b16 %v385
    %v1785 = vunpack.c.h.b16 %v385
    %v1786 = vunpack.c.l.b16 %v386
    %v1787 = vunpack.c.h.b16 %v386
    %v1788 = vunpack.c.l.b16 %v387
    %v1789 = vunpack.c.h.b16 %v387
    %v1790 = vunpack.c.l.b16 %v388
    %v1791 = vunpack.c.h.b16 %v388
    %v1792 = vunpack.c.l.b16 %v389
    %v1793 = vunpack.c.h.b16 %v389
    %v1794 = vunpack.c.l.b16 %v390
    %v1795 = vunpack.c.h.b16 %v390
    %v1796 = vunpack.c.l.b16 %v391
    %v1797 = vunpack.c.h.b16 %v391
    %v1798 = vunpack.c.l.b16 %v392
    %v1799 = vunpack.c.h.b16 %v392
    %v1800 = vunpack.c.l.b16 %v393
    %v1801 = vunpack.c.h.b16 %v393
    %v1802 = vunpack.c.l.b16 %v394
    %v1803 = vunpack.c.h.b16 %v394
    %v1804 = vunpack.c.l.b16 %v395
    %v1805 = vunpack.c.h.b16 %v395
    %v1806 = vunpack.c.l.b16 %v396
    %v1807 = vunpack.c.h.b16 %v396
    %v1808 = vunpack.c.l.b16 %v397
    %v1809 = vunpack.c.h.b16 %v397
    %v1810 = vunpack.c.l.b16 %v398
    %v1811 = vunpack.c.h.b16 %v398
    %v1812 = vunpack.c.l.b16 %v399
    %v1813 = vunpack.c.h.b16 %v399
    %v1814 = vunpack.c.l.b16 %v400
    %v1815 = vunpack.c.h.b16 %v400
    %v1816 = vunpack.c.l.b16 %v401
    %v1817 = vunpack.c.h.b16 %v401
    %v1818 = vunpack.c.l.b16 %v402
    %v1819 = vunpack.c.h.b16 %v402
    %v1820 = vunpack.c.l.b16 %v403
    %v1821 = vunpack.c.h.b16 %v403
    %v1822 = vunpack.c.l.b16 %v404
    %v1823 = vunpack.c.h.b16 %v404
    %v1824 = vunpack.c.l.b16 %v405
    %v1825 = vunpack.c.h.b16 %v405
    %v1826 = vunpack.c.l.b16 %v406
    %v1827 = vunpack.c.h.b16 %v406
    %v1828 = vunpack.c.l.b16 %v407
    %v1829 = vunpack.c.h.b16 %v407
    %v1830 = vunpack.c.l.b16 %v408
    %v1831 = vunpack.c.h.b16 %v408
    %v1832 = vunpack.c.l.b16 %v409
    %v1833 = vunpack.c.h.b16 %v409
    %v1834 = vunpack.c.l.b16 %v410
    %v1835 = vunpack.c.h.b16 %v410
    %v1836 = vunpack.c.l.b16 %v411
    %v1837 = vunpack.c.h.b16 %v411
    %v1838 = vunpack.c.l.b16 %v412
    %v1839 = vunpack.c.h.b16 %v412
    %v1840 = vunpack.c.l.b16 %v413
    %v1841 = vunpack.c.h.b16 %v413
    %v1842 = vunpack.c.l.b16 %v414
    %v1843 = vunpack.c.h.b16 %v414
    %v1844 = vunpack.c.l.b16 %v415
    %v1845 = vunpack.c.h.b16 %v415
    %v1846 = vunpack.c.l.b16 %v416
    %v1847 = vunpack.c.h.b16 %v416
    %v1848 = vunpack.c.l.b16 %v417
    %v1849 = vunpack.c.h.b16 %v417
    %v1850 = vunpack.c.l.b16 %v418
    %v1851 = vunpack.c.h.b16 %v418
    %v1852 = vunpack.c.l.b16 %v419
    %v1853 = vunpack.c.h.b16 %v419
    %v1854 = vunpack.c.l.b16 %v420
    %v1855 = vunpack.c.h.b16 %v420
    %v1856 = vunpack.c.l.b16 %v421
    %v1857 = vunpack.c.h.b16 %v421
    %v1858 = vunpack.c.l.b16 %v422
    %v1859 = vunpack.c.h.b16 %v422
    %v1860 = vunpack.c.l.b16 %v423
    %v1861 = vunpack.c.h.b16 %v423
    %v1862 = vunpack.c.l.b16 %v424
    %v1863 = vunpack.c.h.b16 %v424
    %v1864 = vunpack.c.l.b16 %v425
    %v1865 = vunpack.c.h.b16 %v425
    %v1866 = vunpack.c.l.b16 %v426
    %v1867 = vunpack.c.h.b16 %v426
    %v1868 = vunpack.c.l.b16 %v427
    %v1869 = vunpack.c.h.b16 %v427
    %v1870 = vunpack.c.l.b16 %v428
    %v1871 = vunpack.c.h.b16 %v428
    %v1872 = vunpack.c.l.b16 %v429
    %v1873 = vunpack.c.h.b16 %v429
    %v1874 = vunpack.c.l.b16 %v430
    %v1875 = vunpack.c.h.b16 %v430
    %v1876 = vunpack.c.l.b16 %v431
    %v1877 = vunpack.c.h.b16 %v431
    %v1878 = vunpack.c.l.b16 %v432
    %v1879 = vunpack.c.h.b16 %v432
    %v1880 = vunpack.c.l.b16 %v433
    %v1881 = vunpack.c.h.b16 %v433
    %v1882 = vunpack.c.l.b16 %v434
    %v1883 = vunpack.c.h.b16 %v434
    %v1884 = vunpack.c.l.b16 %v435
    %v1885 = vunpack.c.h.b16 %v435
    %v1886 = vunpack.c.l.b16 %v436
    %v1887 = vunpack.c.h.b16 %v436
    %v1888 = vunpack.c.l.b16 %v437
    %v1889 = vunpack.c.h.b16 %v437
    %v1890 = vunpack.c.l.b16 %v438
    %v1891 = vunpack.c.h.b16 %v438
    %v1892 = vunpack.c.l.b16 %v439
    %v1893 = vunpack.c.h.b16 %v439
    %v1894 = vunpack.c.l.b16 %v440
    %v1895 = vunpack.c.h.b16 %v440
    %v1896 = vunpack.c.l.b16 %v441
    %v1897 = vunpack.c.h.b16 %v441
    %v1898 = vunpack.c.l.b16 %v442
    %v1899 = vunpack.c.h.b16 %v442
    %v1900 = vunpack.c.l.b16 %v443
    %v1901 = vunpack.c.h.b16 %v443
    %v1902 = vunpack.c.l.b16 %v444
    %v1903 = vunpack.c.h.b16 %v444
    %v1904 = vunpack.c.l.b16 %v445
    %v1905 = vunpack.c.h.b16 %v445
    %v1906 = vunpack.c.l.b16 %v446
    %v1907 = vunpack.c.h.b16 %v446
    %v1908 = vunpack.c.l.b16 %v447
    %v1909 = vunpack.c.h.b16 %v447
    %v1910 = vunpack.c.l.b16 %v448
    %v1911 = vunpack.c.h.b16 %v448
    %v1912 = vunpack.c.l.b16 %v449
    %v1913 = vunpack.c.h.b16 %v449
    %v1914 = vunpack.c.l.b16 %v450
    %v1915 = vunpack.c.h.b16 %v450
    %v1916 = vunpack.c.l.b16 %v451
    %v1917 = vunpack.c.h.b16 %v451
    %v1918 = vunpack.c.l.b16 %v452
    %v1919 = vunpack.c.h.b16 %v452
    %v1920 = vunpack.c.l.b16 %v453
    %v1921 = vunpack.c.h.b16 %v453
    %v1922 = vunpack.c.l.b16 %v454
    %v1923 = vunpack.c.h.b16 %v454
    %v1924 = vunpack.c.l.b16 %v455
    %v1925 = vunpack.c.h.b16 %v455
    %v1926 = vunpack.c.l.b16 %v456
    %v1927 = vunpack.c.h.b16 %v456
    %v1928 = vunpack.c.l.b16 %v457
    %v1929 = vunpack.c.h.b16 %v457
    %v1930 = vunpack.c.l.b16 %v458
    %v1931 = vunpack.c.h.b16 %v458
    %v1932 = vunpack.c.l.b16 %v459
    %v1933 = vunpack.c.h.b16 %v459
    %v1934 = vunpack.c.l.b16 %v460
    %v1935 = vunpack.c.h.b16 %v460
    %v1936 = vunpack.c.l.b16 %v461
    %v1937 = vunpack.c.h.b16 %v461
    %v1938 = vunpack.c.l.b16 %v462
    %v1939 = vunpack.c.h.b16 %v462
    %v1940 = vunpack.c.l.b16 %v463
    %v1941 = vunpack.c.h.b16 %v463
    %v1942 = vunpack.c.l.b16 %v464
    %v1943 = vunpack.c.h.b16 %v464
    %v1944 = vunpack.c.l.b16 %v465
    %v1945 = vunpack.c.h.b16 %v465
    %v1946 = vunpack.c.l.b16 %v466
    %v1947 = vunpack.c.h.b16 %v466
    %v1948 = vunpack.c.l.b16 %v467
    %v1949 = vunpack.c.h.b16 %v467
    %v1950 = vunpack.c.l.b16 %v468
    %v1951 = vunpack.c.h.b16 %v468
    %v1952 = vunpack.c.l.b16 %v469
    %v1953 = vunpack.c.h.b16 %v469
    %v1954 = vunpack.c.l.b16 %v470
    %v1955 = vunpack.c.h.b16 %v470
    %v1956 = vunpack.c.l.b16 %v471
    %v1957 = vunpack.c.h.b16 %v471
    %v1958 = vunpack.c.l.b16 %v472
    %v1959 = vunpack.c.h.b16 %v472
    %v1960 = vunpack.c.l.b16 %v473
    %v1961 = vunpack.c.h.b16 %v473
    %v1962 = vunpack.c.l.b16 %v474
    %v1963 = vunpack.c.h.b16 %v474
    %v1964 = vunpack.c.l.b16 %v475
    %v1965 = vunpack.c.h.b16 %v475
    %v1966 = vunpack.c.l.b16 %v476
    %v1967 = vunpack.c.h.b16 %v476
    %v1968 = vunpack.c.l.b16 %v477
    %v1969 = vunpack.c.h.b16 %v477
    %v1970 = vunpack.c.l.b16 %v478
    %v1971 = vunpack.c.h.b16 %v478
    %v1972 = vunpack.c.l.b16 %v479
    %v1973 = vunpack.c.h.b16 %v479
    %v1974 = vunpack.c.l.b16 %v480
    %v1975 = vunpack.c.h.b16 %v480
    %v1976 = vunpack.c.l.b16 %v481
    %v1977 = vunpack.c.h.b16 %v481
    %v1978 = vunpack.c.l.b16 %v482
    %v1979 = vunpack.c.h.b16 %v482
    %v1980 = vunpack.c.l.b16 %v483
    %v1981 = vunpack.c.h.b16 %v483
    %v1982 = vunpack.c.l.b16 %v484
    %v1983 = vunpack.c.h.b16 %v484
    %v1984 = vunpack.c.l.b16 %v485
    %v1985 = vunpack.c.h.b16 %v485
    %v1986 = vunpack.c.l.b16 %v486
    %v1987 = vunpack.c.h.b16 %v486
    %v1988 = vunpack.c.l.b16 %v487
    %v1989 = vunpack.c.h.b16 %v487
    %v1990 = vunpack.c.l.b16 %v488
    %v1991 = vunpack.c.h.b16 %v488
    %v1992 = vunpack.c.l.b16 %v489
    %v1993 = vunpack.c.h.b16 %v489
    %v1994 = vunpack.c.l.b16 %v490
    %v1995 = vunpack.c.h.b16 %v490
    %v1996 = vunpack.c.l.b16 %v491
    %v1997 = vunpack.c.h.b16 %v491
    %v1998 = vunpack.c.l.b16 %v492
    %v1999 = vunpack.c.h.b16 %v492
    %v2000 = vunpack.c.l.b16 %v493
    %v2001 = vunpack.c.h.b16 %v493
    %v2002 = vunpack.c.l.b16 %v494
    %v2003 = vunpack.c.h.b16 %v494
    %v2004 = vunpack.c.l.b16 %v495
    %v2005 = vunpack.c.h.b16 %v495
    %v2006 = vunpack.c.l.b16 %v496
    %v2007 = vunpack.c.h.b16 %v496
    %v2008 = vunpack.c.l.b16 %v497
    %v2009 = vunpack.c.h.b16 %v497
    %v2010 = vunpack.c.l.b16 %v498
    %v2011 = vunpack.c.h.b16 %v498
    %v2012 = vunpack.c.l.b16 %v499
    %v2013 = vunpack.c.h.b16 %v499
    %v2014 = vunpack.c.l.b16 %v500
    %v2015 = vunpack.c.h.b16 %v500
    %v2016 = vunpack.c.l.b16 %v501
    %v2017 = vunpack.c.h.b16 %v501
    %v2018 = vunpack.c.l.b16 %v502
    %v2019 = vunpack.c.h.b16 %v502
    %v2020 = vunpack.c.l.b16 %v503
    %v2021 = vunpack.c.h.b16 %v503
    %v2022 = vunpack.c.l.b16 %v504
    %v2023 = vunpack.c.h.b16 %v504
    %v2024 = vunpack.c.l.b16 %v505
    %v2025 = vunpack.c.h.b16 %v505
    %v2026 = vunpack.c.l.b16 %v506
    %v2027 = vunpack.c.h.b16 %v506
    %v2028 = vunpack.c.l.b16 %v507
    %v2029 = vunpack.c.h.b16 %v507
    %v2030 = vunpack.c.l.b16 %v508
    %v2031 = vunpack.c.h.b16 %v508
    %v2032 = vunpack.c.l.b16 %v509
    %v2033 = vunpack.c.h.b16 %v509
    %v2034 = vunpack.c.l.b16 %v510
    %v2035 = vunpack.c.h.b16 %v510
    %v2036 = vunpack.c.l.b16 %v511
    %v2037 = vunpack.c.h.b16 %v511
    %v2038 = vunpack.c.l.b16 %v512
    %v2039 = vunpack.c.h.b16 %v512
    %v2040 = vunpack.c.l.b16 %v513
    %v2041 = vunpack.c.h.b16 %v513
    %v2042 = vunpack.c.l.b16 %v514
    %v2043 = vunpack.c.h.b16 %v514
    %v2044 = vunpack.c.l.b16 %v515
    %v2045 = vunpack.c.h.b16 %v515
    %v2046 = vunpack.c.l.b16 %v516
    %v2047 = vunpack.c.h.b16 %v516
    %v2048 = vunpack.c.l.b16 %v517
    %v2049 = vunpack.c.h.b16 %v517
    %v2050 = vunpack.c.l.b16 %v518
    %v2051 = vunpack.c.h.b16 %v518
    %v2052 = vunpack.c.l.b16 %v519
    %v2053 = vunpack.c.h.b16 %v519
    %v2054 = vunpack.c.l.b16 %v520
    %v2055 = vunpack.c.h.b16 %v520
    %v2056 = vunpack.c.l.b16 %v521
    %v2057 = vunpack.c.h.b16 %v521
    %v2058 = vunpack.c.l.b16 %v522
    %v2059 = vunpack.c.h.b16 %v522
    %v2060 = vunpack.c.l.b16 %v523
    %v2061 = vunpack.c.h.b16 %v523
    %v2062 = vunpack.c.l.b16 %v524
    %v2063 = vunpack.c.h.b16 %v524
    %v2064 = vunpack.c.l.b16 %v525
    %v2065 = vunpack.c.h.b16 %v525
    %v2066 = vunpack.c.l.b16 %v526
    %v2067 = vunpack.c.h.b16 %v526
    %v2068 = vunpack.c.l.b16 %v527
    %v2069 = vunpack.c.h.b16 %v527
    %v2070 = vunpack.c.l.b16 %v528
    %v2071 = vunpack.c.h.b16 %v528
    %v2072 = vunpack.c.l.b16 %v529
    %v2073 = vunpack.c.h.b16 %v529
    %v2074 = vunpack.c.l.b16 %v530
    %v2075 = vunpack.c.h.b16 %v530
    %v2076 = vunpack.c.l.b16 %v531
    %v2077 = vunpack.c.h.b16 %v531
    %v2078 = vunpack.c.l.b16 %v532
    %v2079 = vunpack.c.h.b16 %v532
    %v2080 = vunpack.c.l.b16 %v533
    %v2081 = vunpack.c.h.b16 %v533
    %v2082 = vunpack.c.l.b16 %v534
    %v2083 = vunpack.c.h.b16 %v534
    %v2084 = vunpack.c.l.b16 %v535
    %v2085 = vunpack.c.h.b16 %v535
    %v2086 = vunpack.c.l.b16 %v536
    %v2087 = vunpack.c.h.b16 %v536
    %v2088 = vunpack.c.l.b16 %v537
    %v2089 = vunpack.c.h.b16 %v537
    %v2090 = vunpack.c.l.b16 %v538
    %v2091 = vunpack.c.h.b16 %v538
    %v2092 = vunpack.c.l.b16 %v539
    %v2093 = vunpack.c.h.b16 %v539
    %v2094 = vunpack.c.l.b16 %v540
    %v2095 = vunpack.c.h.b16 %v540
    %v2096 = vunpack.c.l.b16 %v541
    %v2097 = vunpack.c.h.b16 %v541
    %v2098 = vunpack.c.l.b16 %v542
    %v2099 = vunpack.c.h.b16 %v542
    %v2100 = vunpack.c.l.b16 %v543
    %v2101 = vunpack.c.h.b16 %v543
    %v2102 = vunpack.c.l.b16 %v544
    %v2103 = vunpack.c.h.b16 %v544
    %v2104 = vunpack.c.l.b16 %v545
    %v2105 = vunpack.c.h.b16 %v545
    %v2106 = vunpack.c.l.b16 %v546
    %v2107 = vunpack.c.h.b16 %v546
    %v2108 = vunpack.c.l.b16 %v547
    %v2109 = vunpack.c.h.b16 %v547
    %v2110 = vunpack.c.l.b16 %v548
    %v2111 = vunpack.c.h.b16 %v548
    %v2112 = vunpack.c.l.b16 %v549
    %v2113 = vunpack.c.h.b16 %v549
    %v2114 = vunpack.c.l.b16 %v550
    %v2115 = vunpack.c.h.b16 %v550
    %v2116 = vunpack.c.l.b16 %v551
    %v2117 = vunpack.c.h.b16 %v551
    %v2118 = vunpack.c.l.b16 %v552
    %v2119 = vunpack.c.h.b16 %v552
    %v2120 = vunpack.c.l.b16 %v553
    %v2121 = vunpack.c.h.b16 %v553
    %v2122 = vunpack.c.l.b16 %v554
    %v2123 = vunpack.c.h.b16 %v554
    %v2124 = vunpack.c.l.b16 %v555
    %v2125 = vunpack.c.h.b16 %v555
    %v2126 = vunpack.c.l.b16 %v556
    %v2127 = vunpack.c.h.b16 %v556
    %v2128 = vunpack.c.l.b16 %v557
    %v2129 = vunpack.c.h.b16 %v557
    %v2130 = vunpack.c.l.b16 %v558
    %v2131 = vunpack.c.h.b16 %v558
    %v2132 = vunpack.c.l.b16 %v559
    %v2133 = vunpack.c.h.b16 %v559
    %v2134 = vunpack.c.l.b16 %v560
    %v2135 = vunpack.c.h.b16 %v560
    %v2136 = vunpack.c.l.b16 %v561
    %v2137 = vunpack.c.h.b16 %v561
    %v2138 = vunpack.c.l.b16 %v562
    %v2139 = vunpack.c.h.b16 %v562
    %v2140 = vunpack.c.l.b16 %v563
    %v2141 = vunpack.c.h.b16 %v563
    %v2142 = vunpack.c.l.b16 %v564
    %v2143 = vunpack.c.h.b16 %v564
    %v2144 = vunpack.c.l.b16 %v565
    %v2145 = vunpack.c.h.b16 %v565
    %v2146 = vunpack.c.l.b16 %v566
    %v2147 = vunpack.c.h.b16 %v566
    %v2148 = vunpack.c.l.b16 %v567
    %v2149 = vunpack.c.h.b16 %v567
    %v2150 = vunpack.c.l.b16 %v568
    %v2151 = vunpack.c.h.b16 %v568
    %v2152 = vunpack.c.l.b16 %v569
    %v2153 = vunpack.c.h.b16 %v569
    %v2154 = vunpack.c.l.b16 %v570
    %v2155 = vunpack.c.h.b16 %v570
    %v2156 = vunpack.c.l.b16 %v571
    %v2157 = vunpack.c.h.b16 %v571
    %v2158 = vunpack.c.l.b16 %v572
    %v2159 = vunpack.c.h.b16 %v572
    %v2160 = vunpack.c.l.b16 %v573
    %v2161 = vunpack.c.h.b16 %v573
    %v2162 = vunpack.c.l.b16 %v574
    %v2163 = vunpack.c.h.b16 %v574
    %v2164 = vunpack.c.l.b16 %v575
    %v2165 = vunpack.c.h.b16 %v575
    %v2166 = vunpack.c.l.b16 %v576
    %v2167 = vunpack.c.h.b16 %v576
    %v2168 = vunpack.c.l.b16 %v577
    %v2169 = vunpack.c.h.b16 %v577
    %v2170 = vunpack.c.l.b16 %v578
    %v2171 = vunpack.c.h.b16 %v578
    %v2172 = vunpack.c.l.b16 %v579
    %v2173 = vunpack.c.h.b16 %v579
    %v2174 = vunpack.c.l.b16 %v580
    %v2175 = vunpack.c.h.b16 %v580
    %v2176 = vunpack.c.l.b16 %v581
    %v2177 = vunpack.c.h.b16 %v581
    %v2178 = vunpack.c.l.b16 %v582
    %v2179 = vunpack.c.h.b16 %v582
    %v2180 = vunpack.c.l.b16 %v583
    %v2181 = vunpack.c.h.b16 %v583
    %v2182 = vunpack.c.l.b16 %v584
    %v2183 = vunpack.c.h.b16 %v584
    %v2184 = vunpack.c.l.b16 %v585
    %v2185 = vunpack.c.h.b16 %v585
    %v2186 = vunpack.c.l.b16 %v586
    %v2187 = vunpack.c.h.b16 %v586
    %v2188 = vunpack.c.l.b16 %v587
    %v2189 = vunpack.c.h.b16 %v587
    %v2190 = vunpack.c.l.b16 %v588
    %v2191 = vunpack.c.h.b16 %v588
    %v2192 = vunpack.c.l.b16 %v589
    %v2193 = vunpack.c.h.b16 %v589
    %v2194 = vunpack.c.l.b16 %v590
    %v2195 = vunpack.c.h.b16 %v590
    %v2196 = vunpack.c.l.b16 %v591
    %v2197 = vunpack.c.h.b16 %v591
    %v2198 = vunpack.c.l.b16 %v592
    %v2199 = vunpack.c.h.b16 %v592
    %v2200 = vunpack.c.l.b16 %v593
    %v2201 = vunpack.c.h.b16 %v593
    %v2202 = vunpack.c.l.b16 %v594
    %v2203 = vunpack.c.h.b16 %v594
    %v2204 = vunpack.c.l.b16 %v595
    %v2205 = vunpack.c.h.b16 %v595
    %v2206 = vunpack.c.l.b16 %v596
    %v2207 = vunpack.c.h.b16 %v596
    %v2208 = vunpack.c.l.b16 %v597
    %v2209 = vunpack.c.h.b16 %v597
    %v2210 = vunpack.c.l.b16 %v598
    %v2211 = vunpack.c.h.b16 %v598
    %v2212 = vunpack.c.l.b16 %v599
    %v2213 = vunpack.c.h.b16 %v599
    %v2214 = vunpack.c.l.b16 %v600
    %v2215 = vunpack.c.h.b16 %v600
    %v2216 = vunpack.c.l.b16 %v601
    %v2217 = vunpack.c.h.b16 %v601
    %v2218 = vunpack.c.l.b16 %v602
    %v2219 = vunpack.c.h.b16 %v602
    %v2220 = vunpack.c.l.b16 %v603
    %v2221 = vunpack.c.h.b16 %v603
    %v2222 = vunpack.c.l.b16 %v604
    %v2223 = vunpack.c.h.b16 %v604
    %v2224 = vunpack.c.l.b16 %v605
    %v2225 = vunpack.c.h.b16 %v605
    %v2226 = vunpack.c.l.b16 %v606
    %v2227 = vunpack.c.h.b16 %v606
    %v2228 = vunpack.c.l.b16 %v607
    %v2229 = vunpack.c.h.b16 %v607
    %v2230 = vunpack.c.l.b16 %v608
    %v2231 = vunpack.c.h.b16 %v608
    %v2232 = vunpack.c.l.b16 %v609
    %v2233 = vunpack.c.h.b16 %v609
    %v2234 = vunpack.c.l.b16 %v610
    %v2235 = vunpack.c.h.b16 %v610
    %v2236 = vunpack.c.l.b16 %v611
    %v2237 = vunpack.c.h.b16 %v611
    %v2238 = vunpack.c.l.b16 %v612
    %v2239 = vunpack.c.h.b16 %v612
    %v2240 = vunpack.c.l.b16 %v613
    %v2241 = vunpack.c.h.b16 %v613
    %v2242 = vunpack.c.l.b16 %v614
    %v2243 = vunpack.c.h.b16 %v614
    %v2244 = vunpack.c.l.b16 %v615
    %v2245 = vunpack.c.h.b16 %v615
    %v2246 = vunpack.c.l.b16 %v616
    %v2247 = vunpack.c.h.b16 %v616
    %v2248 = vunpack.c.l.b16 %v617
    %v2249 = vunpack.c.h.b16 %v617
    %v2250 = vunpack.c.l.b16 %v618
    %v2251 = vunpack.c.h.b16 %v618
    %v2252 = vunpack.c.l.b16 %v619
    %v2253 = vunpack.c.h.b16 %v619
    %v2254 = vunpack.c.l.b16 %v620
    %v2255 = vunpack.c.h.b16 %v620
    %v2256 = vunpack.c.l.b16 %v621
    %v2257 = vunpack.c.h.b16 %v621
    %v2258 = vunpack.c.l.b16 %v622
    %v2259 = vunpack.c.h.b16 %v622
    %v2260 = vunpack.c.l.b16 %v623
    %v2261 = vunpack.c.h.b16 %v623
    %v2262 = vunpack.c.l.b16 %v624
    %v2263 = vunpack.c.h.b16 %v624
    %v2264 = vunpack.c.l.b16 %v625
    %v2265 = vunpack.c.h.b16 %v625
    %v2266 = vunpack.c.l.b16 %v626
    %v2267 = vunpack.c.h.b16 %v626
    %v2268 = vunpack.c.l.b16 %v627
    %v2269 = vunpack.c.h.b16 %v627
    %v2270 = vunpack.c.l.b16 %v628
    %v2271 = vunpack.c.h.b16 %v628
    %v2272 = vunpack.c.l.b16 %v629
    %v2273 = vunpack.c.h.b16 %v629
    %v2274 = vunpack.c.l.b16 %v630
    %v2275 = vunpack.c.h.b16 %v630
    %v2276 = vunpack.c.l.b16 %v631
    %v2277 = vunpack.c.h.b16 %v631
    %v2278 = vunpack.c.l.b16 %v632
    %v2279 = vunpack.c.h.b16 %v632
    %v2280 = vunpack.c.l.b16 %v633
    %v2281 = vunpack.c.h.b16 %v633
    %v2282 = vunpack.c.l.b16 %v634
    %v2283 = vunpack.c.h.b16 %v634
    %v2284 = vunpack.c.l.b16 %v635
    %v2285 = vunpack.c.h.b16 %v635
    %v2286 = vunpack.c.l.b16 %v636
    %v2287 = vunpack.c.h.b16 %v636
    %v2288 = vunpack.c.l.b16 %v637
    %v2289 = vunpack.c.h.b16 %v637
    %v2290 = vunpack.c.l.b16 %v638
    %v2291 = vunpack.c.h.b16 %v638
    %v2292 = vunpack.c.l.b16 %v639
    %v2293 = vunpack.c.h.b16 %v639
    %v2294 = vunpack.c.l.b16 %v640
    %v2295 = vunpack.c.h.b16 %v640
    %v2296 = vunpack.c.l.b16 %v641
    %v2297 = vunpack.c.h.b16 %v641
    %v2298 = vunpack.c.l.b16 %v642
    %v2299 = vunpack.c.h.b16 %v642
    %v2300 = vunpack.c.l.b16 %v643
    %v2301 = vunpack.c.h.b16 %v643
    %v2302 = vunpack.c.l.b16 %v644
    %v2303 = vunpack.c.h.b16 %v644
    %v2304 = vunpack.c.l.b16 %v645
    %v2305 = vunpack.c.h.b16 %v645
    %v2306 = vunpack.c.l.b16 %v646
    %v2307 = vunpack.c.h.b16 %v646
    %v2308 = vunpack.c.l.b16 %v647
    %v2309 = vunpack.c.h.b16 %v647
    %v2310 = vunpack.c.l.b16 %v648
    %v2311 = vunpack.c.h.b16 %v648
    %v2312 = vunpack.c.l.b16 %v649
    %v2313 = vunpack.c.h.b16 %v649
    %v2314 = vunpack.c.l.b16 %v650
    %v2315 = vunpack.c.h.b16 %v650
    %v2316 = vunpack.c.l.b16 %v651
    %v2317 = vunpack.c.h.b16 %v651
    %v2318 = vunpack.c.l.b16 %v652
    %v2319 = vunpack.c.h.b16 %v652
    %v2320 = vunpack.c.l.b16 %v653
    %v2321 = vunpack.c.h.b16 %v653
    %v2322 = vunpack.c.l.b16 %v654
    %v2323 = vunpack.c.h.b16 %v654
    %v2324 = vunpack.c.l.b16 %v655
    %v2325 = vunpack.c.h.b16 %v655
    %v2326 = vunpack.c.l.b16 %v656
    %v2327 = vunpack.c.h.b16 %v656
    %v2328 = vunpack.c.l.b16 %v657
    %v2329 = vunpack.c.h.b16 %v657
    %v2330 = vunpack.c.l.b16 %v658
    %v2331 = vunpack.c.h.b16 %v658
    %v2332 = vunpack.c.l.b16 %v659
    %v2333 = vunpack.c.h.b16 %v659
    %v2334 = vpack.c.b16 %v1446, %v1438
    %v2335 = vpack.c.b16 %v1447, %v1439
    %v2336 = vpack.c.b16 %v1448, %v1440
    %v2337 = vpack.c.b16 %v1449, %v1441
    %v2338 = vpack.c.b16 %v1450, %v1442
    %v2339 = vpack.c.b16 %v1451, %v1443
    %v2340 = vpack.c.b16 %v1452, %v1444
    %v2341 = vpack.c.b16 %v1453, %v1445
    %v2342 = vpack.c.b16 %v1462, %v1454
    %v2343 = vpack.c.b16 %v1463, %v1455
    %v2344 = vpack.c.b16 %v1464, %v1456
    %v2345 = vpack.c.b16 %v1465, %v1457
    %v2346 = vpack.c.b16 %v1466, %v1458
    %v2347 = vpack.c.b16 %v1467, %v1459
    %v2348 = vpack.c.b16 %v1468, %v1460
    %v2349 = vpack.c.b16 %v1469, %v1461
    %v2350 = vpack.c.b16 %v1478, %v1470
    %v2351 = vpack.c.b16 %v1479, %v1471
    %v2352 = vpack.c.b16 %v1480, %v1472
    %v2353 = vpack.c.b16 %v1481, %v1473
    %v2354 = vpack.c.b16 %v1482, %v1474
    %v2355 = vpack.c.b16 %v1483, %v1475
    %v2356 = vpack.c.b16 %v1484, %v1476
    %v2357 = vpack.c.b16 %v1485, %v1477
    %v2358 = vpack.c.b16 %v1494, %v1486
    %v2359 = vpack.c.b16 %v1495, %v1487
    %v2360 = vpack.c.b16 %v1496, %v1488
    %v2361 = vpack.c.b16 %v1497, %v1489
    %v2362 = vpack.c.b16 %v1498, %v1490
    %v2363 = vpack.c.b16 %v1499, %v1491
    %v2364 = vpack.c.b16 %v1500, %v1492
    %v2365 = vpack.c.b16 %v1501, %v1493
    %v2366 = vpack.c.b16 %v1510, %v1502
    %v2367 = vpack.c.b16 %v1511, %v1503
    %v2368 = vpack.c.b16 %v1512, %v1504
    %v2369 = vpack.c.b16 %v1513, %v1505
    %v2370 = vpack.c.b16 %v1514, %v1506
    %v2371 = vpack.c.b16 %v1515, %v1507
    %v2372 = vpack.c.b16 %v1516, %v1508
    %v2373 = vpack.c.b16 %v1517, %v1509
    %v2374 = vpack.c.b16 %v1526, %v1518
    %v2375 = vpack.c.b16 %v1527, %v1519
    %v2376 = vpack.c.b16 %v1528, %v1520
    %v2377 = vpack.c.b16 %v1529, %v1521
    %v2378 = vpack.c.b16 %v1530, %v1522
    %v2379 = vpack.c.b16 %v1531, %v1523
    %v2380 = vpack.c.b16 %v1532, %v1524
    %v2381 = vpack.c.b16 %v1533, %v1525
    %v2382 = vpack.c.b16 %v1542, %v1534
    %v2383 = vpack.c.b16 %v1543, %v1535
    %v2384 = vpack.c.b16 %v1544, %v1536
    %v2385 = vpack.c.b16 %v1545, %v1537
    %v2386 = vpack.c.b16 %v1546, %v1538
    %v2387 = vpack.c.b16 %v1547, %v1539
    %v2388 = vpack.c.b16 %v1548, %v1540
    %v2389 = vpack.c.b16 %v1549, %v1541
    %v2390 = vpack.c.b16 %v1558, %v1550
    %v2391 = vpack.c.b16 %v1559, %v1551
    %v2392 = vpack.c.b16 %v1560, %v1552
    %v2393 = vpack.c.b16 %v1561, %v1553
    %v2394 = vpack.c.b16 %v1562, %v1554
    %v2395 = vpack.c.b16 %v1563, %v1555
    %v2396 = vpack.c.b16 %v1564, %v1556
    %v2397 = vpack.c.b16 %v1565, %v1557
    %v2398 = vpack.c.b16 %v1574, %v1566
    %v2399 = vpack.c.b16 %v1575, %v1567
    %v2400 = vpack.c.b16 %v1576, %v1568
    %v2401 = vpack.c.b16 %v1577, %v1569
    %v2402 = vpack.c.b16 %v1578, %v1570
    %v2403 = vpack.c.b16 %v1579, %v1571
    %v2404 = vpack.c.b16 %v1580, %v1572
    %v2405 = vpack.c.b16 %v1581, %v1573
    %v2406 = vpack.c.b16 %v1590, %v1582
    %v2407 = vpack.c.b16 %v1591, %v1583
    %v2408 = vpack.c.b16 %v1592, %v1584
    %v2409 = vpack.c.b16 %v1593, %v1585
    %v2410 = vpack.c.b16 %v1594, %v1586
    %v2411 = vpack.c.b16 %v1595, %v1587
    %v2412 = vpack.c.b16 %v1596, %v1588
    %v2413 = vpack.c.b16 %v1597, %v1589
    %v2414 = vpack.c.b16 %v1606, %v1598
    %v2415 = vpack.c.b16 %v1607, %v1599
    %v2416 = vpack.c.b16 %v1608, %v1600
    %v2417 = vpack.c.b16 %v1609, %v1601
    %v2418 = vpack.c.b16 %v1610, %v1602
    %v2419 = vpack.c.b16 %v1611, %v1603
    %v2420 = vpack.c.b16 %v1612, %v1604
    %v2421 = vpack.c.b16 %v1613, %v1605
    %v2422 = vpack.c.b16 %v1622, %v1614
    %v2423 = vpack.c.b16 %v1623, %v1615
    %v2424 = vpack.c.b16 %v1624, %v1616
    %v2425 = vpack.c.b16 %v1625, %v1617
    %v2426 = vpack.c.b16 %v1626, %v1618
    %v2427 = vpack.c.b16 %v1627, %v1619
    %v2428 = vpack.c.b16 %v1628, %v1620
    %v2429 = vpack.c.b16 %v1629, %v1621
    %v2430 = vpack.c.b16 %v1638, %v1630
    %v2431 = vpack.c.b16 %v1639, %v1631
    %v2432 = vpack.c.b16 %v1640, %v1632
    %v2433 = vpack.c.b16 %v1641, %v1633
    %v2434 = vpack.c.b16 %v1642, %v1634
    %v2435 = vpack.c.b16 %v1643, %v1635
    %v2436 = vpack.c.b16 %v1644, %v1636
    %v2437 = vpack.c.b16 %v1645, %v1637
    %v2438 = vpack.c.b16 %v1654, %v1646
    %v2439 = vpack.c.b16 %v1655, %v1647
    %v2440 = vpack.c.b16 %v1656, %v1648
    %v2441 = vpack.c.b16 %v1657, %v1649
    %v2442 = vpack.c.b16 %v1658, %v1650
    %v2443 = vpack.c.b16 %v1659, %v1651
    %v2444 = vpack.c.b16 %v1660, %v1652
    %v2445 = vpack.c.b16 %v1661, %v1653
    %v2446 = vpack.c.b16 %v1670, %v1662
    %v2447 = vpack.c.b16 %v1671, %v1663
    %v2448 = vpack.c.b16 %v1672, %v1664
    %v2449 = vpack.c.b16 %v1673, %v1665
    %v2450 = vpack.c.b16 %v1674, %v1666
    %v2451 = vpack.c.b16 %v1675, %v1667
    %v2452 = vpack.c.b16 %v1676, %v1668
    %v2453 = vpack.c.b16 %v1677, %v1669
    %v2454 = vpack.c.b16 %v1686, %v1678
    %v2455 = vpack.c.b16 %v1687, %v1679
    %v2456 = vpack.c.b16 %v1688, %v1680
    %v2457 = vpack.c.b16 %v1689, %v1681
    %v2458 = vpack.c.b16 %v1690, %v1682
    %v2459 = vpack.c.b16 %v1691, %v1683
    %v2460 = vpack.c.b16 %v1692, %v1684
    %v2461 = vpack.c.b16 %v1693, %v1685
    %v2462 = vpack.c.b16 %v1702, %v1694
    %v2463 = vpack.c.b16 %v1703, %v1695
    %v2464 = vpack.c.b16 %v1704, %v1696
    %v2465 = vpack.c.b16 %v1705, %v1697
    %v2466 = vpack.c.b16 %v1706, %v1698
    %v2467 = vpack.c.b16 %v1707, %v1699
    %v2468 = vpack.c.b16 %v1708, %v1700
    %v2469 = vpack.c.b16 %v1709, %v1701
    %v2470 = vpack.c.b16 %v1718, %v1710
    %v2471 = vpack.c.b16 %v1719, %v1711
    %v2472 = vpack.c.b16 %v1720, %v1712
    %v2473 = vpack.c.b16 %v1721, %v1713
    %v2474 = vpack.c.b16 %v1722, %v1714
    %v2475 = vpack.c.b16 %v1723, %v1715
    %v2476 = vpack.c.b16 %v1724, %v1716
    %v2477 = vpack.c.b16 %v1725, %v1717
    %v2478 = vpack.c.b16 %v1734, %v1726
    %v2479 = vpack.c.b16 %v1735, %v1727
    %v2480 = vpack.c.b16 %v1736, %v1728
    %v2481 = vpack.c.b16 %v1737, %v1729
    %v2482 = vpack.c.b16 %v1738, %v1730
    %v2483 = vpack.c.b16 %v1739, %v1731
    %v2484 = vpack.c.b16 %v1740, %v1732
    %v2485 = vpack.c.b16 %v1741, %v1733
    %v2486 = vpack.c.b16 %v1750, %v1742
    %v2487 = vpack.c.b16 %v1751, %v1743
    %v2488 = vpack.c.b16 %v1752, %v1744
    %v2489 = vpack.c.b16 %v1753, %v1745
    %v2490 = vpack.c.b16 %v1754, %v1746
    %v2491 = vpack.c.b16 %v1755, %v1747
    %v2492 = vpack.c.b16 %v1756, %v1748
    %v2493 = vpack.c.b16 %v1757, %v1749
    %v2494 = vpack.c.b16 %v1766, %v1758
    %v2495 = vpack.c.b16 %v1767, %v1759
    %v2496 = vpack.c.b16 %v1768, %v1760
    %v2497 = vpack.c.b16 %v1769, %v1761
    %v2498 = vpack.c.b16 %v1770, %v1762
    %v2499 = vpack.c.b16 %v1771, %v1763
    %v2500 = vpack.c.b16 %v1772, %v1764
    %v2501 = vpack.c.b16 %v1773, %v1765
    %v2502 = vpack.c.b16 %v1782, %v1774
    %v2503 = vpack.c.b16 %v1783, %v1775
    %v2504 = vpack.c.b16 %v1784, %v1776
    %v2505 = vpack.c.b16 %v1785, %v1777
    %v2506 = vpack.c.b16 %v1786, %v1778
    %v2507 = vpack.c.b16 %v1787, %v1779
    %v2508 = vpack.c.b16 %v1788, %v1780
    %v2509 = vpack.c.b16 %v1789, %v1781
    %v2510 = vpack.c.b16 %v1798, %v1790
    %v2511 = vpack.c.b16 %v1799, %v1791
    %v2512 = vpack.c.b16 %v1800, %v1792
    %v2513 = vpack.c.b16 %v1801, %v1793
    %v2514 = vpack.c.b16 %v1802, %v1794
    %v2515 = vpack.c.b16 %v1803, %v1795
    %v2516 = vpack.c.b16 %v1804, %v1796
    %v2517 = vpack.c.b16 %v1805, %v1797
    %v2518 = vpack.c.b16 %v1814, %v1806
    %v2519 = vpack.c.b16 %v1815, %v1807
    %v2520 = vpack.c.b16 %v1816, %v1808
    %v2521 = vpack.c.b16 %v1817, %v1809
    %v2522 = vpack.c.b16 %v1818, %v1810
    %v2523 = vpack.c.b16 %v1819, %v1811
    %v2524 = vpack.c.b16 %v1820, %v1812
    %v2525 = vpack.c.b16 %v1821, %v1813
    %v2526 = vpack.c.b16 %v1830, %v1822
    %v2527 = vpack.c.b16 %v1831, %v1823
    %v2528 = vpack.c.b16 %v1832, %v1824
    %v2529 = vpack.c.b16 %v1833, %v1825
    %v2530 = vpack.c.b16 %v1834, %v1826
    %v2531 = vpack.c.b16 %v1835, %v1827
    %v2532 = vpack.c.b16 %v1836, %v1828
    %v2533 = vpack.c.b16 %v1837, %v1829
    %v2534 = vpack.c.b16 %v1846, %v1838
    %v2535 = vpack.c.b16 %v1847, %v1839
    %v2536 = vpack.c.b16 %v1848, %v1840
    %v2537 = vpack.c.b16 %v1849, %v1841
    %v2538 = vpack.c.b16 %v1850, %v1842
    %v2539 = vpack.c.b16 %v1851, %v1843
    %v2540 = vpack.c.b16 %v1852, %v1844
    %v2541 = vpack.c.b16 %v1853, %v1845
    %v2542 = vpack.c.b16 %v1862, %v1854
    %v2543 = vpack.c.b16 %v1863, %v1855
    %v2544 = vpack.c.b16 %v1864, %v1856
    %v2545 = vpack.c.b16 %v1865, %v1857
    %v2546 = vpack.c.b16 %v1866, %v1858
    %v2547 = vpack.c.b16 %v1867, %v1859
    %v2548 = vpack.c.b16 %v1868, %v1860
    %v2549 = vpack.c.b16 %v1869, %v1861
    %v2550 = vpack.c.b16 %v1878, %v1870
    %v2551 = vpack.c.b16 %v1879, %v1871
    %v2552 = vpack.c.b16 %v1880, %v1872
    %v2553 = vpack.c.b16 %v1881, %v1873
    %v2554 = vpack.c.b16 %v1882, %v1874
    %v2555 = vpack.c.b16 %v1883, %v1875
    %v2556 = vpack.c.b16 %v1884, %v1876
    %v2557 = vpack.c.b16 %v1885, %v1877
    %v2558 = vpack.c.b16 %v1894, %v1886
    %v2559 = vpack.c.b16 %v1895, %v1887
    %v2560 = vpack.c.b16 %v1896, %v1888
    %v2561 = vpack.c.b16 %v1897, %v1889
    %v2562 = vpack.c.b16 %v1898, %v1890
    %v2563 = vpack.c.b16 %v1899, %v1891
    %v2564 = vpack.c.b16 %v1900, %v1892
    %v2565 = vpack.c.b16 %v1901, %v1893
    %v2566 = vpack.c.b16 %v1910, %v1902
    %v2567 = vpack.c.b16 %v1911, %v1903
    %v2568 = vpack.c.b16 %v1912, %v1904
    %v2569 = vpack.c.b16 %v1913, %v1905
    %v2570 = vpack.c.b16 %v1914, %v1906
    %v2571 = vpack.c.b16 %v1915, %v1907
    %v2572 = vpack.c.b16 %v1916, %v1908
    %v2573 = vpack.c.b16 %v1917, %v1909
    %v2574 = vpack.c.b16 %v1926, %v1918
    %v2575 = vpack.c.b16 %v1927, %v1919
    %v2576 = vpack.c.b16 %v1928, %v1920
    %v2577 = vpack.c.b16 %v1929, %v1921
    %v2578 = vpack.c.b16 %v1930, %v1922
    %v2579 = vpack.c.b16 %v1931, %v1923
    %v2580 = vpack.c.b16 %v1932, %v1924
    %v2581 = vpack.c.b16 %v1933, %v1925
    %v2582 = vpack.c.b16 %v1942, %v1934
    %v2583 = vpack.c.b16 %v1943, %v1935
    %v2584 = vpack.c.b16 %v1944, %v1936
    %v2585 = vpack.c.b16 %v1945, %v1937
    %v2586 = vpack.c.b16 %v1946, %v1938
    %v2587 = vpack.c.b16 %v1947, %v1939
    %v2588 = vpack.c.b16 %v1948, %v1940
    %v2589 = vpack.c.b16 %v1949, %v1941
    %v2590 = vpack.c.b16 %v1958, %v1950
    %v2591 = vpack.c.b16 %v1959, %v1951
    %v2592 = vpack.c.b16 %v1960, %v1952
    %v2593 = vpack.c.b16 %v1961, %v1953
    %v2594 = vpack.c.b16 %v1962, %v1954
    %v2595 = vpack.c.b16 %v1963, %v1955
    %v2596 = vpack.c.b16 %v1964, %v1956
    %v2597 = vpack.c.b16 %v1965, %v1957
    %v2598 = vpack.c.b16 %v1974, %v1966
    %v2599 = vpack.c.b16 %v1975, %v1967
    %v2600 = vpack.c.b16 %v1976, %v1968
    %v2601 = vpack.c.b16 %v1977, %v1969
    %v2602 = vpack.c.b16 %v1978, %v1970
    %v2603 = vpack.c.b16 %v1979, %v1971
    %v2604 = vpack.c.b16 %v1980, %v1972
    %v2605 = vpack.c.b16 %v1981, %v1973
    %v2606 = vpack.c.b16 %v1990, %v1982
    %v2607 = vpack.c.b16 %v1991, %v1983
    %v2608 = vpack.c.b16 %v1992, %v1984
    %v2609 = vpack.c.b16 %v1993, %v1985
    %v2610 = vpack.c.b16 %v1994, %v1986
    %v2611 = vpack.c.b16 %v1995, %v1987
    %v2612 = vpack.c.b16 %v1996, %v1988
    %v2613 = vpack.c.b16 %v1997, %v1989
    %v2614 = vpack.c.b16 %v2006, %v1998
    %v2615 = vpack.c.b16 %v2007, %v1999
    %v2616 = vpack.c.b16 %v2008, %v2000
    %v2617 = vpack.c.b16 %v2009, %v2001
    %v2618 = vpack.c.b16 %v2010, %v2002
    %v2619 = vpack.c.b16 %v2011, %v2003
    %v2620 = vpack.c.b16 %v2012, %v2004
    %v2621 = vpack.c.b16 %v2013, %v2005
    %v2622 = vpack.c.b16 %v2022, %v2014
    %v2623 = vpack.c.b16 %v2023, %v2015
    %v2624 = vpack.c.b16 %v2024, %v2016
    %v2625 = vpack.c.b16 %v2025, %v2017
    %v2626 = vpack.c.b16 %v2026, %v2018
    %v2627 = vpack.c.b16 %v2027, %v2019
    %v2628 = vpack.c.b16 %v2028, %v2020
    %v2629 = vpack.c.b16 %v2029, %v2021
    %v2630 = vpack.c.b16 %v2038, %v2030
    %v2631 = vpack.c.b16 %v2039, %v2031
    %v2632 = vpack.c.b16 %v2040, %v2032
    %v2633 = vpack.c.b16 %v2041, %v2033
    %v2634 = vpack.c.b16 %v2042, %v2034
    %v2635 = vpack.c.b16 %v2043, %v2035
    %v2636 = vpack.c.b16 %v2044, %v2036
    %v2637 = vpack.c.b16 %v2045, %v2037
    %v2638 = vpack.c.b16 %v2054, %v2046
    %v2639 = vpack.c.b16 %v2055, %v2047
    %v2640 = vpack.c.b16 %v2056, %v2048
    %v2641 = vpack.c.b16 %v2057, %v2049
    %v2642 = vpack.c.b16 %v2058, %v2050
    %v2643 = vpack.c.b16 %v2059, %v2051
    %v2644 = vpack.c.b16 %v2060, %v2052
    %v2645 = vpack.c.b16 %v2061, %v2053
    %v2646 = vpack.c.b16 %v2070, %v2062
    %v2647 = vpack.c.b16 %v2071, %v2063
    %v2648 = vpack.c.b16 %v2072, %v2064
    %v2649 = vpack.c.b16 %v2073, %v2065
    %v2650 = vpack.c.b16 %v2074, %v2066
    %v2651 = vpack.c.b16 %v2075, %v2067
    %v2652 = vpack.c.b16 %v2076, %v2068
    %v2653 = vpack.c.b16 %v2077, %v2069
    %v2654 = vpack.c.b16 %v2086, %v2078
    %v2655 = vpack.c.b16 %v2087, %v2079
    %v2656 = vpack.c.b16 %v2088, %v2080
    %v2657 = vpack.c.b16 %v2089, %v2081
    %v2658 = vpack.c.b16 %v2090, %v2082
    %v2659 = vpack.c.b16 %v2091, %v2083
    %v2660 = vpack.c.b16 %v2092, %v2084
    %v2661 = vpack.c.b16 %v2093, %v2085
    %v2662 = vpack.c.b16 %v2102, %v2094
    %v2663 = vpack.c.b16 %v2103, %v2095
    %v2664 = vpack.c.b16 %v2104, %v2096
    %v2665 = vpack.c.b16 %v2105, %v2097
    %v2666 = vpack.c.b16 %v2106, %v2098
    %v2667 = vpack.c.b16 %v2107, %v2099
    %v2668 = vpack.c.b16 %v2108, %v2100
    %v2669 = vpack.c.b16 %v2109, %v2101
    %v2670 = vpack.c.b16 %v2118, %v2110
    %v2671 = vpack.c.b16 %v2119, %v2111
    %v2672 = vpack.c.b16 %v2120, %v2112
    %v2673 = vpack.c.b16 %v2121, %v2113
    %v2674 = vpack.c.b16 %v2122, %v2114
    %v2675 = vpack.c.b16 %v2123, %v2115
    %v2676 = vpack.c.b16 %v2124, %v2116
    %v2677 = vpack.c.b16 %v2125, %v2117
    %v2678 = vpack.c.b16 %v2134, %v2126
    %v2679 = vpack.c.b16 %v2135, %v2127
    %v2680 = vpack.c.b16 %v2136, %v2128
    %v2681 = vpack.c.b16 %v2137, %v2129
    %v2682 = vpack.c.b16 %v2138, %v2130
    %v2683 = vpack.c.b16 %v2139, %v2131
    %v2684 = vpack.c.b16 %v2140, %v2132
    %v2685 = vpack.c.b16 %v2141, %v2133
    %v2686 = vpack.c.b16 %v2150, %v2142
    %v2687 = vpack.c.b16 %v2151, %v2143
    %v2688 = vpack.c.b16 %v2152, %v2144
    %v2689 = vpack.c.b16 %v2153, %v2145
    %v2690 = vpack.c.b16 %v2154, %v2146
    %v2691 = vpack.c.b16 %v2155, %v2147
    %v2692 = vpack.c.b16 %v2156, %v2148
    %v2693 = vpack.c.b16 %v2157, %v2149
    %v2694 = vpack.c.b16 %v2166, %v2158
    %v2695 = vpack.c.b16 %v2167, %v2159
    %v2696 = vpack.c.b16 %v2168, %v2160
    %v2697 = vpack.c.b16 %v2169, %v2161
    %v2698 = vpack.c.b16 %v2170, %v2162
    %v2699 = vpack.c.b16 %v2171, %v2163
    %v2700 = vpack.c.b16 %v2172, %v2164
    %v2701 = vpack.c.b16 %v2173, %v2165
    %v2702 = vpack.c.b16 %v2182, %v2174
    %v2703 = vpack.c.b16 %v2183, %v2175
    %v2704 = vpack.c.b16 %v2184, %v2176
    %v2705 = vpack.c.b16 %v2185, %v2177
    %v2706 = vpack.c.b16 %v2186, %v2178
    %v2707 = vpack.c.b16 %v2187, %v2179
    %v2708 = vpack.c.b16 %v2188, %v2180
    %v2709 = vpack.c.b16 %v2189, %v2181
    %v2710 = vpack.c.b16 %v2198, %v2190
    %v2711 = vpack.c.b16 %v2199, %v2191
    %v2712 = vpack.c.b16 %v2200, %v2192
    %v2713 = vpack.c.b16 %v2201, %v2193
    %v2714 = vpack.c.b16 %v2202, %v2194
    %v2715 = vpack.c.b16 %v2203, %v2195
    %v2716 = vpack.c.b16 %v2204, %v2196
    %v2717 = vpack.c.b16 %v2205, %v2197
    %v2718 = vpack.c.b16 %v2214, %v2206
    %v2719 = vpack.c.b16 %v2215, %v2207
    %v2720 = vpack.c.b16 %v2216, %v2208
    %v2721 = vpack.c.b16 %v2217, %v2209
    %v2722 = vpack.c.b16 %v2218, %v2210
    %v2723 = vpack.c.b16 %v2219, %v2211
    %v2724 = vpack.c.b16 %v2220, %v2212
    %v2725 = vpack.c.b16 %v2221, %v2213
    %v2726 = vpack.c.b16 %v2230, %v2222
    %v2727 = vpack.c.b16 %v2231, %v2223
    %v2728 = vpack.c.b16 %v2232, %v2224
    %v2729 = vpack.c.b16 %v2233, %v2225
    %v2730 = vpack.c.b16 %v2234, %v2226
    %v2731 = vpack.c.b16 %v2235, %v2227
    %v2732 = vpack.c.b16 %v2236, %v2228
    %v2733 = vpack.c.b16 %v2237, %v2229
    %v2734 = vpack.c.b16 %v2246, %v2238
    %v2735 = vpack.c.b16 %v2247, %v2239
    %v2736 = vpack.c.b16 %v2248, %v2240
    %v2737 = vpack.c.b16 %v2249, %v2241
    %v2738 = vpack.c.b16 %v2250, %v2242
    %v2739 = vpack.c.b16 %v2251, %v2243
    %v2740 = vpack.c.b16 %v2252, %v2244
    %v2741 = vpack.c.b16 %v2253, %v2245
    %v2742 = vpack.c.b16 %v2262, %v2254
    %v2743 = vpack.c.b16 %v2263, %v2255
    %v2744 = vpack.c.b16 %v2264, %v2256
    %v2745 = vpack.c.b16 %v2265, %v2257
    %v2746 = vpack.c.b16 %v2266, %v2258
    %v2747 = vpack.c.b16 %v2267, %v2259
    %v2748 = vpack.c.b16 %v2268, %v2260
    %v2749 = vpack.c.b16 %v2269, %v2261
    %v2750 = vpack.c.b16 %v2278, %v2270
    %v2751 = vpack.c.b16 %v2279, %v2271
    %v2752 = vpack.c.b16 %v2280, %v2272
    %v2753 = vpack.c.b16 %v2281, %v2273
    %v2754 = vpack.c.b16 %v2282, %v2274
    %v2755 = vpack.c.b16 %v2283, %v2275
    %v2756 = vpack.c.b16 %v2284, %v2276
    %v2757 = vpack.c.b16 %v2285, %v2277
    %v2758 = vpack.c.b16 %v2294, %v2286
    %v2759 = vpack.c.b16 %v2295, %v2287
    %v2760 = vpack.c.b16 %v2296, %v2288
    %v2761 = vpack.c.b16 %v2297, %v2289
    %v2762 = vpack.c.b16 %v2298, %v2290
    %v2763 = vpack.c.b16 %v2299, %v2291
    %v2764 = vpack.c.b16 %v2300, %v2292
    %v2765 = vpack.c.b16 %v2301, %v2293
    %v2766 = vpack.c.b16 %v2310, %v2302
    %v2767 = vpack.c.b16 %v2311, %v2303
    %v2768 = vpack.c.b16 %v2312, %v2304
    %v2769 = vpack.c.b16 %v2313, %v2305
    %v2770 = vpack.c.b16 %v2314, %v2306
    %v2771 = vpack.c.b16 %v2315, %v2307
    %v2772 = vpack.c.b16 %v2316, %v2308
    %v2773 = vpack.c.b16 %v2317, %v2309
    %v2774 = vpack.c.b16 %v2326, %v2318
    %v2775 = vpack.c.b16 %v2327, %v2319
    %v2776 = vpack.c.b16 %v2328, %v2320
    %v2777 = vpack.c.b16 %v2329, %v2321
    %v2778 = vpack.c.b16 %v2330, %v2322
    %v2779 = vpack.c.b16 %v2331, %v2323
    %v2780 = vpack.c.b16 %v2332, %v2324
    %v2781 = vpack.c.b16 %v2333, %v2325
    %3230 = vmatprep.subr.bf16.mxu0 %v2335
    %3231 = vmatpush1.bf16.msra.mxu0 %v2334
    %3232 = vmatprep.subr.bf16.mxu0 %v2343
    %3233 = vmatpush1.bf16.msra.mxu0 %v2342
    %3234 = vmatprep.subr.bf16.mxu0 %v2351
    %3235 = vmatpush1.bf16.msra.mxu0 %v2350
    %3236 = vmatprep.subr.bf16.mxu0 %v2359
    %3237 = vmatpush1.bf16.msra.mxu0 %v2358
    %3238 = vmatprep.subr.bf16.mxu0 %v2367
    %3239 = vmatpush1.bf16.msra.mxu0 %v2366
    %3240 = vmatprep.subr.bf16.mxu0 %v2375
    %3241 = vmatpush1.bf16.msra.mxu0 %v2374
    %3242 = vmatprep.subr.bf16.mxu0 %v2383
    %3243 = vmatpush1.bf16.msra.mxu0 %v2382
    %3244 = vmatprep.subr.bf16.mxu0 %v2391
    %3245 = vmatpush1.bf16.msra.mxu0 %v2390
    %3246 = vmatprep.subr.bf16.mxu0 %v2399
    %3247 = vmatpush1.bf16.msra.mxu0 %v2398
    %3248 = vmatprep.subr.bf16.mxu0 %v2407
    %3249 = vmatpush1.bf16.msra.mxu0 %v2406
    %3250 = vmatprep.subr.bf16.mxu0 %v2415
    %3251 = vmatpush1.bf16.msra.mxu0 %v2414
    %3252 = vmatprep.subr.bf16.mxu0 %v2423
    %3253 = vmatpush1.bf16.msra.mxu0 %v2422
    %3254 = vmatprep.subr.bf16.mxu0 %v2431
    %3255 = vmatpush1.bf16.msra.mxu0 %v2430
    %3256 = vmatprep.subr.bf16.mxu0 %v2439
    %3257 = vmatpush1.bf16.msra.mxu0 %v2438
    %3258 = vmatprep.subr.bf16.mxu0 %v2447
    %3259 = vmatpush1.bf16.msra.mxu0 %v2446
    %3260 = vmatprep.subr.bf16.mxu0 %v2455
    %3261 = vmatpush1.bf16.msra.mxu0 %v2454
    %3262 = vmatprep.mubr.bf16.mxu0 %v879
    %3263 = vmatmul.mubr.bf16.gmra.mrb[0].mxu0 %v878
    %v3264 = vpop.f32.mrb[0].mxu0
    %v3265 = vadd.f32 %v665, %v3264
    %v3266 = vpop.f32.mrb[0].mxu0
    %v3267 = vadd.f32 %v669, %v3266
    %v3268 = vpop.f32.mrb[0].mxu0
    %v3269 = vadd.f32 %v665, %v3268
    %v3270 = vpop.f32.mrb[0].mxu0
    %v3271 = vadd.f32 %v669, %v3270
    %3272 = vmatprep.mubr.bf16.mxu0 %v886
    %3273 = vmatmul.mubr.bf16.gmra.mrb[0].mxu0 %v885
    %v3274 = vpop.f32.mrb[0].mxu0
    %v3275 = vadd.f32 %v665, %v3274
    %v3276 = vpop.f32.mrb[0].mxu0
    %v3277 = vadd.f32 %v669, %v3276
    %v3278 = vpop.f32.mrb[0].mxu0
    %v3279 = vadd.f32 %v665, %v3278
    %v3280 = vpop.f32.mrb[0].mxu0
    %v3281 = vadd.f32 %v669, %v3280
    %3282 = vmatprep.mubr.bf16.mxu0 %v893
    %3283 = vmatmul.mubr.bf16.gmra.mrb[0].mxu0 %v892
    %v3284 = vpop.f32.mrb[0].mxu0
    %v3285 = vadd.f32 %v665, %v3284
    %v3286 = vpop.f32.mrb[0].mxu0
    %v3287 = vadd.f32 %v669, %v3286
    %v3288 = vpop.f32.mrb[0].mxu0
    %v3289 = vadd.f32 %v665, %v3288
    %v3290 = vpop.f32.mrb[0].mxu0
    %v3291 = vadd.f32 %v669, %v3290
    %3292 = vmatprep.mubr.bf16.mxu0 %v900
    %3293 = vmatmul.mubr.bf16.gmra.mrb[0].mxu0 %v899
    %v3294 = vpop.f32.mrb[0].mxu0
    %v3295 = vadd.f32 %v665, %v3294
    %v3296 = vpop.f32.mrb[0].mxu0
    %v3297 = vadd.f32 %v669, %v3296
    %v3298 = vpop.f32.mrb[0].mxu0
    %v3299 = vadd.f32 %v665, %v3298
    %v3300 = vpop.f32.mrb[0].mxu0
    %v3301 = vadd.f32 %v669, %v3300
    %3302 = vmatprep.mubr.bf16.mxu0 %v907
    %3303 = vmatmul.mubr.bf16.gmra.mrb[0].mxu0 %v906
    %v3304 = vpop.f32.mrb[0].mxu0
    %v3305 = vadd.f32 %v665, %v3304
    %v3306 = vpop.f32.mrb[0].mxu0
    %v3307 = vadd.f32 %v669, %v3306
    %v3308 = vpop.f32.mrb[0].mxu0
    %v3309 = vadd.f32 %v665, %v3308
    %v3310 = vpop.f32.mrb[0].mxu0
    %v3311 = vadd.f32 %v669, %v3310
    %3312 = vmatprep.mubr.bf16.mxu0 %v914
    %3313 = vmatmul.mubr.bf16.gmra.mrb[0].mxu0 %v913
    %v3314 = vpop.f32.mrb[0].mxu0
    %v3315 = vadd.f32 %v665, %v3314
    %v3316 = vpop.f32.mrb[0].mxu0
    %v3317 = vadd.f32 %v669, %v3316
    %v3318 = vpop.f32.mrb[0].mxu0
    %v3319 = vadd.f32 %v665, %v3318
    %v3320 = vpop.f32.mrb[0].mxu0
    %v3321 = vadd.f32 %v669, %v3320
    %3322 = vmatprep.mubr.bf16.mxu0 %v921
    %3323 = vmatmul.mubr.bf16.gmra.mrb[0].mxu0 %v920
    %v3324 = vpop.f32.mrb[0].mxu0
    %v3325 = vadd.f32 %v665, %v3324
    %v3326 = vpop.f32.mrb[0].mxu0
    %v3327 = vadd.f32 %v669, %v3326
    %v3328 = vpop.f32.mrb[0].mxu0
    %v3329 = vadd.f32 %v665, %v3328
    %v3330 = vpop.f32.mrb[0].mxu0
    %v3331 = vadd.f32 %v669, %v3330
    %3332 = vmatprep.mubr.bf16.mxu0 %v928
    %3333 = vmatmul.mubr.bf16.gmra.mrb[0].mxu0 %v927
    %v3334 = vpop.f32.mrb[0].mxu0
    %v3335 = vadd.f32 %v665, %v3334
    %v3336 = vpop.f32.mrb[0].mxu0
    %v3337 = vadd.f32 %v669, %v3336
    %v3338 = vpop.f32.mrb[0].mxu0
    %v3339 = vadd.f32 %v665, %v3338
    %v3340 = vpop.f32.mrb[0].mxu0
    %v3341 = vadd.f32 %v669, %v3340
    %3342 = vdwg.mxu0
    %3343 = vmatprep.subr.bf16.mxu0 %v2463
    %3344 = vmatpush1.bf16.msra.mxu0 %v2462
    %3345 = vmatprep.subr.bf16.mxu0 %v2471
    %3346 = vmatpush1.bf16.msra.mxu0 %v2470
    %3347 = vmatprep.subr.bf16.mxu0 %v2479
    %3348 = vmatpush1.bf16.msra.mxu0 %v2478
    %3349 = vmatprep.subr.bf16.mxu0 %v2487
    %3350 = vmatpush1.bf16.msra.mxu0 %v2486
    %3351 = vmatprep.subr.bf16.mxu0 %v2495
    %3352 = vmatpush1.bf16.msra.mxu0 %v2494
    %3353 = vmatprep.subr.bf16.mxu0 %v2503
    %3354 = vmatpush1.bf16.msra.mxu0 %v2502
    %3355 = vmatprep.subr.bf16.mxu0 %v2511
    %3356 = vmatpush1.bf16.msra.mxu0 %v2510
    %3357 = vmatprep.subr.bf16.mxu0 %v2519
    %3358 = vmatpush1.bf16.msra.mxu0 %v2518
    %3359 = vmatprep.subr.bf16.mxu0 %v2527
    %3360 = vmatpush1.bf16.msra.mxu0 %v2526
    %3361 = vmatprep.subr.bf16.mxu0 %v2535
    %3362 = vmatpush1.bf16.msra.mxu0 %v2534
    %3363 = vmatprep.subr.bf16.mxu0 %v2543
    %3364 = vmatpush1.bf16.msra.mxu0 %v2542
    %3365 = vmatprep.subr.bf16.mxu0 %v2551
    %3366 = vmatpush1.bf16.msra.mxu0 %v2550
    %3367 = vmatprep.subr.bf16.mxu0 %v2559
    %3368 = vmatpush1.bf16.msra.mxu0 %v2558
    %3369 = vmatprep.subr.bf16.mxu0 %v2567
    %3370 = vmatpush1.bf16.msra.mxu0 %v2566
    %3371 = vmatprep.subr.bf16.mxu0 %v2575
    %3372 = vmatpush1.bf16.msra.mxu0 %v2574
    %3373 = vmatprep.subr.bf16.mxu0 %v2583
    %3374 = vmatpush1.bf16.msra.mxu0 %v2582
    %3375 = vmatprep.mubr.bf16.mxu0 %v881
    %3376 = vmatmul.mubr.bf16.gmra.mrb[0].mxu0 %v880
    %v3377 = vpop.f32.mrb[0].mxu0
    %v3378 = vadd.f32 %v3265, %v3377
    %v3379 = vpop.f32.mrb[0].mxu0
    %v3380 = vadd.f32 %v3267, %v3379
    %v3381 = vpop.f32.mrb[0].mxu0
    %v3382 = vadd.f32 %v3269, %v3381
    %v3383 = vpop.f32.mrb[0].mxu0
    %v3384 = vadd.f32 %v3271, %v3383
    %3385 = vmatprep.mubr.bf16.mxu0 %v888
    %3386 = vmatmul.mubr.bf16.gmra.mrb[0].mxu0 %v887
    %v3387 = vpop.f32.mrb[0].mxu0
    %v3388 = vadd.f32 %v3275, %v3387
    %v3389 = vpop.f32.mrb[0].mxu0
    %v3390 = vadd.f32 %v3277, %v3389
    %v3391 = vpop.f32.mrb[0].mxu0
    %v3392 = vadd.f32 %v3279, %v3391
    %v3393 = vpop.f32.mrb[0].mxu0
    %v3394 = vadd.f32 %v3281, %v3393
    %3395 = vmatprep.mubr.bf16.mxu0 %v895
    %3396 = vmatmul.mubr.bf16.gmra.mrb[0].mxu0 %v894
    %v3397 = vpop.f32.mrb[0].mxu0
    %v3398 = vadd.f32 %v3285, %v3397
    %v3399 = vpop.f32.mrb[0].mxu0
    %v3400 = vadd.f32 %v3287, %v3399
    %v3401 = vpop.f32.mrb[0].mxu0
    %v3402 = vadd.f32 %v3289, %v3401
    %v3403 = vpop.f32.mrb[0].mxu0
    %v3404 = vadd.f32 %v3291, %v3403
    %3405 = vmatprep.mubr.bf16.mxu0 %v902
    %3406 = vmatmul.mubr.bf16.gmra.mrb[0].mxu0 %v901
    %v3407 = vpop.f32.mrb[0].mxu0
    %v3408 = vadd.f32 %v3295, %v3407
    %v3409 = vpop.f32.mrb[0].mxu0
    %v3410 = vadd.f32 %v3297, %v3409
    %v3411 = vpop.f32.mrb[0].mxu0
    %v3412 = vadd.f32 %v3299, %v3411
    %v3413 = vpop.f32.mrb[0].mxu0
    %v3414 = vadd.f32 %v3301, %v3413
    %3415 = vmatprep.mubr.bf16.mxu0 %v909
    %3416 = vmatmul.mubr.bf16.gmra.mrb[0].mxu0 %v908
    %v3417 = vpop.f32.mrb[0].mxu0
    %v3418 = vadd.f32 %v3305, %v3417
    %v3419 = vpop.f32.mrb[0].mxu0
    %v3420 = vadd.f32 %v3307, %v3419
    %v3421 = vpop.f32.mrb[0].mxu0
    %v3422 = vadd.f32 %v3309, %v3421
    %v3423 = vpop.f32.mrb[0].mxu0
    %v3424 = vadd.f32 %v3311, %v3423
    %3425 = vmatprep.mubr.bf16.mxu0 %v916
    %3426 = vmatmul.mubr.bf16.gmra.mrb[0].mxu0 %v915
    %v3427 = vpop.f32.mrb[0].mxu0
    %v3428 = vadd.f32 %v3315, %v3427
    %v3429 = vpop.f32.mrb[0].mxu0
    %v3430 = vadd.f32 %v3317, %v3429
    %v3431 = vpop.f32.mrb[0].mxu0
    %v3432 = vadd.f32 %v3319, %v3431
    %v3433 = vpop.f32.mrb[0].mxu0
    %v3434 = vadd.f32 %v3321, %v3433
    %3435 = vmatprep.mubr.bf16.mxu0 %v923
    %3436 = vmatmul.mubr.bf16.gmra.mrb[0].mxu0 %v922
    %v3437 = vpop.f32.mrb[0].mxu0
    %v3438 = vadd.f32 %v3325, %v3437
    %v3439 = vpop.f32.mrb[0].mxu0
    %v3440 = vadd.f32 %v3327, %v3439
    %v3441 = vpop.f32.mrb[0].mxu0
    %v3442 = vadd.f32 %v3329, %v3441
    %v3443 = vpop.f32.mrb[0].mxu0
    %v3444 = vadd.f32 %v3331, %v3443
    %3445 = vmatprep.mubr.bf16.mxu0 %v930
    %3446 = vmatmul.mubr.bf16.gmra.mrb[0].mxu0 %v929
    %v3447 = vpop.f32.mrb[0].mxu0
    %v3448 = vadd.f32 %v3335, %v3447
    %v3449 = vpop.f32.mrb[0].mxu0
    %v3450 = vadd.f32 %v3337, %v3449
    %v3451 = vpop.f32.mrb[0].mxu0
    %v3452 = vadd.f32 %v3339, %v3451
    %v3453 = vpop.f32.mrb[0].mxu0
    %v3454 = vadd.f32 %v3341, %v3453
    %3455 = vdwg.mxu0
    %3456 = vmatprep.subr.bf16.mxu0 %v2591
    %3457 = vmatpush1.bf16.msra.mxu0 %v2590
    %3458 = vmatprep.subr.bf16.mxu0 %v2599
    %3459 = vmatpush1.bf16.msra.mxu0 %v2598
    %3460 = vmatprep.subr.bf16.mxu0 %v2607
    %3461 = vmatpush1.bf16.msra.mxu0 %v2606
    %3462 = vmatprep.subr.bf16.mxu0 %v2615
    %3463 = vmatpush1.bf16.msra.mxu0 %v2614
    %3464 = vmatprep.subr.bf16.mxu0 %v2623
    %3465 = vmatpush1.bf16.msra.mxu0 %v2622
    %3466 = vmatprep.subr.bf16.mxu0 %v2631
    %3467 = vmatpush1.bf16.msra.mxu0 %v2630
    %3468 = vmatprep.subr.bf16.mxu0 %v2639
    %3469 = vmatpush1.bf16.msra.mxu0 %v2638
    %3470 = vmatprep.subr.bf16.mxu0 %v2647
    %3471 = vmatpush1.bf16.msra.mxu0 %v2646
    %3472 = vmatprep.subr.bf16.mxu0 %v2655
    %3473 = vmatpush1.bf16.msra.mxu0 %v2654
    %3474 = vmatprep.subr.bf16.mxu0 %v2663
    %3475 = vmatpush1.bf16.msra.mxu0 %v2662
    %3476 = vmatprep.subr.bf16.mxu0 %v2671
    %3477 = vmatpush1.bf16.msra.mxu0 %v2670
    %3478 = vmatprep.subr.bf16.mxu0 %v2679
    %3479 = vmatpush1.bf16.msra.mxu0 %v2678
    %3480 = vmatprep.subr.bf16.mxu0 %v2687
    %3481 = vmatpush1.bf16.msra.mxu0 %v2686
    %3482 = vmatprep.subr.bf16.mxu0 %v2695
    %3483 = vmatpush1.bf16.msra.mxu0 %v2694
    %3484 = vmatprep.subr.bf16.mxu0 %v2703
    %3485 = vmatpush1.bf16.msra.mxu0 %v2702
    %3486 = vmatprep.subr.bf16.mxu0 %v2711
    %3487 = vmatpush1.bf16.msra.mxu0 %v2710
    %3488 = vmatprep.mubr.bf16.mxu0 %v883
    %3489 = vmatmul.mubr.bf16.gmra.mrb[0].mxu0 %v882
    %v3490 = vpop.f32.mrb[0].mxu0
    %v3491 = vadd.f32 %v3378, %v3490
    %v3492 = vpop.f32.mrb[0].mxu0
    %v3493 = vadd.f32 %v3380, %v3492
    %v3494 = vpop.f32.mrb[0].mxu0
    %v3495 = vadd.f32 %v3382, %v3494
    %v3496 = vpop.f32.mrb[0].mxu0
    %v3497 = vadd.f32 %v3384, %v3496
    %3498 = vmatprep.mubr.bf16.mxu0 %v890
    %3499 = vmatmul.mubr.bf16.gmra.mrb[0].mxu0 %v889
    %v3500 = vpop.f32.mrb[0].mxu0
    %v3501 = vadd.f32 %v3388, %v3500
    %v3502 = vpop.f32.mrb[0].mxu0
    %v3503 = vadd.f32 %v3390, %v3502
    %v3504 = vpop.f32.mrb[0].mxu0
    %v3505 = vadd.f32 %v3392, %v3504
    %v3506 = vpop.f32.mrb[0].mxu0
    %v3507 = vadd.f32 %v3394, %v3506
    %3508 = vmatprep.mubr.bf16.mxu0 %v897
    %3509 = vmatmul.mubr.bf16.gmra.mrb[0].mxu0 %v896
    %v3510 = vpop.f32.mrb[0].mxu0
    %v3511 = vadd.f32 %v3398, %v3510
    %v3512 = vpop.f32.mrb[0].mxu0
    %v3513 = vadd.f32 %v3400, %v3512
    %v3514 = vpop.f32.mrb[0].mxu0
    %v3515 = vadd.f32 %v3402, %v3514
    %v3516 = vpop.f32.mrb[0].mxu0
    %v3517 = vadd.f32 %v3404, %v3516
    %3518 = vmatprep.mubr.bf16.mxu0 %v904
    %3519 = vmatmul.mubr.bf16.gmra.mrb[0].mxu0 %v903
    %v3520 = vpop.f32.mrb[0].mxu0
    %v3521 = vadd.f32 %v3408, %v3520
    %v3522 = vpop.f32.mrb[0].mxu0
    %v3523 = vadd.f32 %v3410, %v3522
    %v3524 = vpop.f32.mrb[0].mxu0
    %v3525 = vadd.f32 %v3412, %v3524
    %v3526 = vpop.f32.mrb[0].mxu0
    %v3527 = vadd.f32 %v3414, %v3526
    %3528 = vmatprep.mubr.bf16.mxu0 %v911
    %3529 = vmatmul.mubr.bf16.gmra.mrb[0].mxu0 %v910
    %v3530 = vpop.f32.mrb[0].mxu0
    %v3531 = vadd.f32 %v3418, %v3530
    %v3532 = vpop.f32.mrb[0].mxu0
    %v3533 = vadd.f32 %v3420, %v3532
    %v3534 = vpop.f32.mrb[0].mxu0
    %v3535 = vadd.f32 %v3422, %v3534
    %v3536 = vpop.f32.mrb[0].mxu0
    %v3537 = vadd.f32 %v3424, %v3536
    %3538 = vmatprep.mubr.bf16.mxu0 %v918
    %3539 = vmatmul.mubr.bf16.gmra.mrb[0].mxu0 %v917
    %v3540 = vpop.f32.mrb[0].mxu0
    %v3541 = vadd.f32 %v3428, %v3540
    %v3542 = vpop.f32.mrb[0].mxu0
    %v3543 = vadd.f32 %v3430, %v3542
    %v3544 = vpop.f32.mrb[0].mxu0
    %v3545 = vadd.f32 %v3432, %v3544
    %v3546 = vpop.f32.mrb[0].mxu0
    %v3547 = vadd.f32 %v3434, %v3546
    %3548 = vmatprep.mubr.bf16.mxu0 %v925
    %3549 = vmatmul.mubr.bf16.gmra.mrb[0].mxu0 %v924
    %v3550 = vpop.f32.mrb[0].mxu0
    %v3551 = vadd.f32 %v3438, %v3550
    %v3552 = vpop.f32.mrb[0].mxu0
    %v3553 = vadd.f32 %v3440, %v3552
    %v3554 = vpop.f32.mrb[0].mxu0
    %v3555 = vadd.f32 %v3442, %v3554
    %v3556 = vpop.f32.mrb[0].mxu0
    %v3557 = vadd.f32 %v3444, %v3556
    %3558 = vmatprep.mubr.bf16.mxu0 %v932
    %3559 = vmatmul.mubr.bf16.gmra.mrb[0].mxu0 %v931
    %v3560 = vpop.f32.mrb[0].mxu0
    %v3561 = vadd.f32 %v3448, %v3560
    %v3562 = vpop.f32.mrb[0].mxu0
    %v3563 = vadd.f32 %v3450, %v3562
    %v3564 = vpop.f32.mrb[0].mxu0
    %v3565 = vadd.f32 %v3452, %v3564
    %v3566 = vpop.f32.mrb[0].mxu0
    %v3567 = vadd.f32 %v3454, %v3566
    %3568 = vdwg.mxu0
    %3569 = vmatprep.subr.bf16.mxu0 %v2719
    %3570 = vmatpush1.bf16.msra.mxu0 %v2718
    %3571 = vmatprep.subr.bf16.mxu0 %v2727
    %3572 = vmatpush1.bf16.msra.mxu0 %v2726
    %3573 = vmatprep.subr.bf16.mxu0 %v2735
    %3574 = vmatpush1.bf16.msra.mxu0 %v2734
    %3575 = vmatprep.subr.bf16.mxu0 %v2743
    %3576 = vmatpush1.bf16.msra.mxu0 %v2742
    %3577 = vmatprep.subr.bf16.mxu0 %v2751
    %3578 = vmatpush1.bf16.msra.mxu0 %v2750
    %3579 = vmatprep.subr.bf16.mxu0 %v2759
    %3580 = vmatpush1.bf16.msra.mxu0 %v2758
    %3581 = vmatprep.subr.bf16.mxu0 %v2767
    %3582 = vmatpush1.bf16.msra.mxu0 %v2766
    %3583 = vmatprep.subr.bf16.mxu0 %v2775
    %3584 = vmatpush1.bf16.msra.mxu0 %v2774
    %3585 = vmatprep.subr.bf16.mxu0 0
    %3586 = vmatpush1.bf16.msra.mxu0 0
    %3587 = vmatprep.subr.bf16.mxu0 0
    %3588 = vmatpush1.bf16.msra.mxu0 0
    %3589 = vmatprep.subr.bf16.mxu0 0
    %3590 = vmatpush1.bf16.msra.mxu0 0
    %3591 = vmatprep.subr.bf16.mxu0 0
    %3592 = vmatpush1.bf16.msra.mxu0 0
    %3593 = vmatprep.subr.bf16.mxu0 0
    %3594 = vmatpush1.bf16.msra.mxu0 0
    %3595 = vmatprep.subr.bf16.mxu0 0
    %3596 = vmatpush1.bf16.msra.mxu0 0
    %3597 = vmatprep.subr.bf16.mxu0 0
    %3598 = vmatpush1.bf16.msra.mxu0 0
    %3599 = vmatprep.subr.bf16.mxu0 0
    %3600 = vmatpush1.bf16.msra.mxu0 0
    %3601 = vmatprep.mubr.bf16.mxu0 0
    %3602 = vmatmul.mubr.bf16.gmra.mrb[0].mxu0 %v884
    %v3603 = vpop.f32.mrb[0].mxu0
    %v3604 = vadd.f32 %v3491, %v3603
    %v3605 = vpop.f32.mrb[0].mxu0
    %v3606 = vadd.f32 %v3493, %v3605
    %v3607 = vpop.f32.mrb[0].mxu0
    %v3608 = vadd.f32 %v3495, %v3607
    %v3609 = vpop.f32.mrb[0].mxu0
    %v3610 = vadd.f32 %v3497, %v3609
    %3611 = vmatprep.mubr.bf16.mxu0 0
    %3612 = vmatmul.mubr.bf16.gmra.mrb[0].mxu0 %v891
    %v3613 = vpop.f32.mrb[0].mxu0
    %v3614 = vadd.f32 %v3501, %v3613
    %v3615 = vpop.f32.mrb[0].mxu0
    %v3616 = vadd.f32 %v3503, %v3615
    %v3617 = vpop.f32.mrb[0].mxu0
    %v3618 = vadd.f32 %v3505, %v3617
    %v3619 = vpop.f32.mrb[0].mxu0
    %v3620 = vadd.f32 %v3507, %v3619
    %3621 = vmatprep.mubr.bf16.mxu0 0
    %3622 = vmatmul.mubr.bf16.gmra.mrb[0].mxu0 %v898
    %v3623 = vpop.f32.mrb[0].mxu0
    %v3624 = vadd.f32 %v3511, %v3623
    %v3625 = vpop.f32.mrb[0].mxu0
    %v3626 = vadd.f32 %v3513, %v3625
    %v3627 = vpop.f32.mrb[0].mxu0
    %v3628 = vadd.f32 %v3515, %v3627
    %v3629 = vpop.f32.mrb[0].mxu0
    %v3630 = vadd.f32 %v3517, %v3629
    %3631 = vmatprep.mubr.bf16.mxu0 0
    %3632 = vmatmul.mubr.bf16.gmra.mrb[0].mxu0 %v905
    %v3633 = vpop.f32.mrb[0].mxu0
    %v3634 = vadd.f32 %v3521, %v3633
    %v3635 = vpop.f32.mrb[0].mxu0
    %v3636 = vadd.f32 %v3523, %v3635
    %v3637 = vpop.f32.mrb[0].mxu0
    %v3638 = vadd.f32 %v3525, %v3637
    %v3639 = vpop.f32.mrb[0].mxu0
    %v3640 = vadd.f32 %v3527, %v3639
    %3641 = vmatprep.mubr.bf16.mxu0 0
    %3642 = vmatmul.mubr.bf16.gmra.mrb[0].mxu0 %v912
    %v3643 = vpop.f32.mrb[0].mxu0
    %v3644 = vadd.f32 %v3531, %v3643
    %v3645 = vpop.f32.mrb[0].mxu0
    %v3646 = vadd.f32 %v3533, %v3645
    %v3647 = vpop.f32.mrb[0].mxu0
    %v3648 = vadd.f32 %v3535, %v3647
    %v3649 = vpop.f32.mrb[0].mxu0
    %v3650 = vadd.f32 %v3537, %v3649
    %3651 = vmatprep.mubr.bf16.mxu0 0
    %3652 = vmatmul.mubr.bf16.gmra.mrb[0].mxu0 %v919
    %v3653 = vpop.f32.mrb[0].mxu0
    %v3654 = vadd.f32 %v3541, %v3653
    %v3655 = vpop.f32.mrb[0].mxu0
    %v3656 = vadd.f32 %v3543, %v3655
    %v3657 = vpop.f32.mrb[0].mxu0
    %v3658 = vadd.f32 %v3545, %v3657
    %v3659 = vpop.f32.mrb[0].mxu0
    %v3660 = vadd.f32 %v3547, %v3659
    %3661 = vmatprep.mubr.bf16.mxu0 0
    %3662 = vmatmul.mubr.bf16.gmra.mrb[0].mxu0 %v926
    %v3663 = vpop.f32.mrb[0].mxu0
    %v3664 = vadd.f32 %v3551, %v3663
    %v3665 = vpop.f32.mrb[0].mxu0
    %v3666 = vadd.f32 %v3553, %v3665
    %v3667 = vpop.f32.mrb[0].mxu0
    %v3668 = vadd.f32 %v3555, %v3667
    %v3669 = vpop.f32.mrb[0].mxu0
    %v3670 = vadd.f32 %v3557, %v3669
    %3671 = vmatprep.mubr.bf16.mxu0 0
    %3672 = vmatmul.mubr.bf16.gmra.mrb[0].mxu0 %v933
    %v3673 = vpop.f32.mrb[0].mxu0
    %v3674 = vadd.f32 %v3561, %v3673
    %v3675 = vpop.f32.mrb[0].mxu0
    %v3676 = vadd.f32 %v3563, %v3675
    %v3677 = vpop.f32.mrb[0].mxu0
    %v3678 = vadd.f32 %v3565, %v3677
    %v3679 = vpop.f32.mrb[0].mxu0
    %v3680 = vadd.f32 %v3567, %v3679
    %3681 = vdwg.mxu0
    %3682 = vmatprep.subr.bf16.mxu0 %v2337
    %3683 = vmatpush1.bf16.msra.mxu0 %v2336
    %3684 = vmatprep.subr.bf16.mxu0 %v2345
    %3685 = vmatpush1.bf16.msra.mxu0 %v2344
    %3686 = vmatprep.subr.bf16.mxu0 %v2353
    %3687 = vmatpush1.bf16.msra.mxu0 %v2352
    %3688 = vmatprep.subr.bf16.mxu0 %v2361
    %3689 = vmatpush1.bf16.msra.mxu0 %v2360
    %3690 = vmatprep.subr.bf16.mxu0 %v2369
    %3691 = vmatpush1.bf16.msra.mxu0 %v2368
    %3692 = vmatprep.subr.bf16.mxu0 %v2377
    %3693 = vmatpush1.bf16.msra.mxu0 %v2376
    %3694 = vmatprep.subr.bf16.mxu0 %v2385
    %3695 = vmatpush1.bf16.msra.mxu0 %v2384
    %3696 = vmatprep.subr.bf16.mxu0 %v2393
    %3697 = vmatpush1.bf16.msra.mxu0 %v2392
    %3698 = vmatprep.subr.bf16.mxu0 %v2401
    %3699 = vmatpush1.bf16.msra.mxu0 %v2400
    %3700 = vmatprep.subr.bf16.mxu0 %v2409
    %3701 = vmatpush1.bf16.msra.mxu0 %v2408
    %3702 = vmatprep.subr.bf16.mxu0 %v2417
    %3703 = vmatpush1.bf16.msra.mxu0 %v2416
    %3704 = vmatprep.subr.bf16.mxu0 %v2425
    %3705 = vmatpush1.bf16.msra.mxu0 %v2424
    %3706 = vmatprep.subr.bf16.mxu0 %v2433
    %3707 = vmatpush1.bf16.msra.mxu0 %v2432
    %3708 = vmatprep.subr.bf16.mxu0 %v2441
    %3709 = vmatpush1.bf16.msra.mxu0 %v2440
    %3710 = vmatprep.subr.bf16.mxu0 %v2449
    %3711 = vmatpush1.bf16.msra.mxu0 %v2448
    %3712 = vmatprep.subr.bf16.mxu0 %v2457
    %3713 = vmatpush1.bf16.msra.mxu0 %v2456
    %3714 = vmatprep.mubr.bf16.mxu0 %v879
    %3715 = vmatmul.mubr.bf16.gmra.mrb[0].mxu0 %v878
    %v3716 = vpop.f32.mrb[0].mxu0
    %v3717 = vadd.f32 %v673, %v3716
    %v3718 = vpop.f32.mrb[0].mxu0
    %v3719 = vadd.f32 %v677, %v3718
    %v3720 = vpop.f32.mrb[0].mxu0
    %v3721 = vadd.f32 %v673, %v3720
    %v3722 = vpop.f32.mrb[0].mxu0
    %v3723 = vadd.f32 %v677, %v3722
    %3724 = vmatprep.mubr.bf16.mxu0 %v886
    %3725 = vmatmul.mubr.bf16.gmra.mrb[0].mxu0 %v885
    %v3726 = vpop.f32.mrb[0].mxu0
    %v3727 = vadd.f32 %v673, %v3726
    %v3728 = vpop.f32.mrb[0].mxu0
    %v3729 = vadd.f32 %v677, %v3728
    %v3730 = vpop.f32.mrb[0].mxu0
    %v3731 = vadd.f32 %v673, %v3730
    %v3732 = vpop.f32.mrb[0].mxu0
    %v3733 = vadd.f32 %v677, %v3732
    %3734 = vmatprep.mubr.bf16.mxu0 %v893
    %3735 = vmatmul.mubr.bf16.gmra.mrb[0].mxu0 %v892
    %v3736 = vpop.f32.mrb[0].mxu0
    %v3737 = vadd.f32 %v673, %v3736
    %v3738 = vpop.f32.mrb[0].mxu0
    %v3739 = vadd.f32 %v677, %v3738
    %v3740 = vpop.f32.mrb[0].mxu0
    %v3741 = vadd.f32 %v673, %v3740
    %v3742 = vpop.f32.mrb[0].mxu0
    %v3743 = vadd.f32 %v677, %v3742
    %3744 = vmatprep.mubr.bf16.mxu0 %v900
    %3745 = vmatmul.mubr.bf16.gmra.mrb[0].mxu0 %v899
    %v3746 = vpop.f32.mrb[0].mxu0
    %v3747 = vadd.f32 %v673, %v3746
    %v3748 = vpop.f32.mrb[0].mxu0
    %v3749 = vadd.f32 %v677, %v3748
    %v3750 = vpop.f32.mrb[0].mxu0
    %v3751 = vadd.f32 %v673, %v3750
    %v3752 = vpop.f32.mrb[0].mxu0
    %v3753 = vadd.f32 %v677, %v3752
    %3754 = vmatprep.mubr.bf16.mxu0 %v907
    %3755 = vmatmul.mubr.bf16.gmra.mrb[0].mxu0 %v906
    %v3756 = vpop.f32.mrb[0].mxu0
    %v3757 = vadd.f32 %v673, %v3756
    %v3758 = vpop.f32.mrb[0].mxu0
    %v3759 = vadd.f32 %v677, %v3758
    %v3760 = vpop.f32.mrb[0].mxu0
    %v3761 = vadd.f32 %v673, %v3760
    %v3762 = vpop.f32.mrb[0].mxu0
    %v3763 = vadd.f32 %v677, %v3762
    %3764 = vmatprep.mubr.bf16.mxu0 %v914
    %3765 = vmatmul.mubr.bf16.gmra.mrb[0].mxu0 %v913
    %v3766 = vpop.f32.mrb[0].mxu0
    %v3767 = vadd.f32 %v673, %v3766
    %v3768 = vpop.f32.mrb[0].mxu0
    %v3769 = vadd.f32 %v677, %v3768
    %v3770 = vpop.f32.mrb[0].mxu0
    %v3771 = vadd.f32 %v673, %v3770
    %v3772 = vpop.f32.mrb[0].mxu0
    %v3773 = vadd.f32 %v677, %v3772
    %3774 = vmatprep.mubr.bf16.mxu0 %v921
    %3775 = vmatmul.mubr.bf16.gmra.mrb[0].mxu0 %v920
    %v3776 = vpop.f32.mrb[0].mxu0
    %v3777 = vadd.f32 %v673, %v3776
    %v3778 = vpop.f32.mrb[0].mxu0
    %v3779 = vadd.f32 %v677, %v3778
    %v3780 = vpop.f32.mrb[0].mxu0
    %v3781 = vadd.f32 %v673, %v3780
    %v3782 = vpop.f32.mrb[0].mxu0
    %v3783 = vadd.f32 %v677, %v3782
    %3784 = vmatprep.mubr.bf16.mxu0 %v928
    %3785 = vmatmul.mubr.bf16.gmra.mrb[0].mxu0 %v927
    %v3786 = vpop.f32.mrb[0].mxu0
    %v3787 = vadd.f32 %v673, %v3786
    %v3788 = vpop.f32.mrb[0].mxu0
    %v3789 = vadd.f32 %v677, %v3788
    %v3790 = vpop.f32.mrb[0].mxu0
    %v3791 = vadd.f32 %v673, %v3790
    %v3792 = vpop.f32.mrb[0].mxu0
    %v3793 = vadd.f32 %v677, %v3792
    %3794 = vdwg.mxu0
    %3795 = vmatprep.subr.bf16.mxu0 %v2465
    %3796 = vmatpush1.bf16.msra.mxu0 %v2464
    %3797 = vmatprep.subr.bf16.mxu0 %v2473
    %3798 = vmatpush1.bf16.msra.mxu0 %v2472
    %3799 = vmatprep.subr.bf16.mxu0 %v2481
    %3800 = vmatpush1.bf16.msra.mxu0 %v2480
    %3801 = vmatprep.subr.bf16.mxu0 %v2489
    %3802 = vmatpush1.bf16.msra.mxu0 %v2488
    %3803 = vmatprep.subr.bf16.mxu0 %v2497
    %3804 = vmatpush1.bf16.msra.mxu0 %v2496
    %3805 = vmatprep.subr.bf16.mxu0 %v2505
    %3806 = vmatpush1.bf16.msra.mxu0 %v2504
    %3807 = vmatprep.subr.bf16.mxu0 %v2513
    %3808 = vmatpush1.bf16.msra.mxu0 %v2512
    %3809 = vmatprep.subr.bf16.mxu0 %v2521
    %3810 = vmatpush1.bf16.msra.mxu0 %v2520
    %3811 = vmatprep.subr.bf16.mxu0 %v2529
    %3812 = vmatpush1.bf16.msra.mxu0 %v2528
    %3813 = vmatprep.subr.bf16.mxu0 %v2537
    %3814 = vmatpush1.bf16.msra.mxu0 %v2536
    %3815 = vmatprep.subr.bf16.mxu0 %v2545
    %3816 = vmatpush1.bf16.msra.mxu0 %v2544
    %3817 = vmatprep.subr.bf16.mxu0 %v2553
    %3818 = vmatpush1.bf16.msra.mxu0 %v2552
    %3819 = vmatprep.subr.bf16.mxu0 %v2561
    %3820 = vmatpush1.bf16.msra.mxu0 %v2560
    %3821 = vmatprep.subr.bf16.mxu0 %v2569
    %3822 = vmatpush1.bf16.msra.mxu0 %v2568
    %3823 = vmatprep.subr.bf16.mxu0 %v2577
    %3824 = vmatpush1.bf16.msra.mxu0 %v2576
    %3825 = vmatprep.subr.bf16.mxu0 %v2585
    %3826 = vmatpush1.bf16.msra.mxu0 %v2584
    %3827 = vmatprep.mubr.bf16.mxu0 %v881
    %3828 = vmatmul.mubr.bf16.gmra.mrb[0].mxu0 %v880
    %v3829 = vpop.f32.mrb[0].mxu0
    %v3830 = vadd.f32 %v3717, %v3829
    %v3831 = vpop.f32.mrb[0].mxu0
    %v3832 = vadd.f32 %v3719, %v3831
    %v3833 = vpop.f32.mrb[0].mxu0
    %v3834 = vadd.f32 %v3721, %v3833
    %v3835 = vpop.f32.mrb[0].mxu0
    %v3836 = vadd.f32 %v3723, %v3835
    %3837 = vmatprep.mubr.bf16.mxu0 %v888
    %3838 = vmatmul.mubr.bf16.gmra.mrb[0].mxu0 %v887
    %v3839 = vpop.f32.mrb[0].mxu0
    %v3840 = vadd.f32 %v3727, %v3839
    %v3841 = vpop.f32.mrb[0].mxu0
    %v3842 = vadd.f32 %v3729, %v3841
    %v3843 = vpop.f32.mrb[0].mxu0
    %v3844 = vadd.f32 %v3731, %v3843
    %v3845 = vpop.f32.mrb[0].mxu0
    %v3846 = vadd.f32 %v3733, %v3845
    %3847 = vmatprep.mubr.bf16.mxu0 %v895
    %3848 = vmatmul.mubr.bf16.gmra.mrb[0].mxu0 %v894
    %v3849 = vpop.f32.mrb[0].mxu0
    %v3850 = vadd.f32 %v3737, %v3849
    %v3851 = vpop.f32.mrb[0].mxu0
    %v3852 = vadd.f32 %v3739, %v3851
    %v3853 = vpop.f32.mrb[0].mxu0
    %v3854 = vadd.f32 %v3741, %v3853
    %v3855 = vpop.f32.mrb[0].mxu0
    %v3856 = vadd.f32 %v3743, %v3855
    %3857 = vmatprep.mubr.bf16.mxu0 %v902
    %3858 = vmatmul.mubr.bf16.gmra.mrb[0].mxu0 %v901
    %v3859 = vpop.f32.mrb[0].mxu0
    %v3860 = vadd.f32 %v3747, %v3859
    %v3861 = vpop.f32.mrb[0].mxu0
    %v3862 = vadd.f32 %v3749, %v3861
    %v3863 = vpop.f32.mrb[0].mxu0
    %v3864 = vadd.f32 %v3751, %v3863
    %v3865 = vpop.f32.mrb[0].mxu0
    %v3866 = vadd.f32 %v3753, %v3865
    %3867 = vmatprep.mubr.bf16.mxu0 %v909
    %3868 = vmatmul.mubr.bf16.gmra.mrb[0].mxu0 %v908
    %v3869 = vpop.f32.mrb[0].mxu0
    %v3870 = vadd.f32 %v3757, %v3869
    %v3871 = vpop.f32.mrb[0].mxu0
    %v3872 = vadd.f32 %v3759, %v3871
    %v3873 = vpop.f32.mrb[0].mxu0
    %v3874 = vadd.f32 %v3761, %v3873
    %v3875 = vpop.f32.mrb[0].mxu0
    %v3876 = vadd.f32 %v3763, %v3875
    %3877 = vmatprep.mubr.bf16.mxu0 %v916
    %3878 = vmatmul.mubr.bf16.gmra.mrb[0].mxu0 %v915
    %v3879 = vpop.f32.mrb[0].mxu0
    %v3880 = vadd.f32 %v3767, %v3879
    %v3881 = vpop.f32.mrb[0].mxu0
    %v3882 = vadd.f32 %v3769, %v3881
    %v3883 = vpop.f32.mrb[0].mxu0
    %v3884 = vadd.f32 %v3771, %v3883
    %v3885 = vpop.f32.mrb[0].mxu0
    %v3886 = vadd.f32 %v3773, %v3885
    %3887 = vmatprep.mubr.bf16.mxu0 %v923
    %3888 = vmatmul.mubr.bf16.gmra.mrb[0].mxu0 %v922
    %v3889 = vpop.f32.mrb[0].mxu0
    %v3890 = vadd.f32 %v3777, %v3889
    %v3891 = vpop.f32.mrb[0].mxu0
    %v3892 = vadd.f32 %v3779, %v3891
    %v3893 = vpop.f32.mrb[0].mxu0
    %v3894 = vadd.f32 %v3781, %v3893
    %v3895 = vpop.f32.mrb[0].mxu0
    %v3896 = vadd.f32 %v3783, %v3895
    %3897 = vmatprep.mubr.bf16.mxu0 %v930
    %3898 = vmatmul.mubr.bf16.gmra.mrb[0].mxu0 %v929
    %v3899 = vpop.f32.mrb[0].mxu0
    %v3900 = vadd.f32 %v3787, %v3899
    %v3901 = vpop.f32.mrb[0].mxu0
    %v3902 = vadd.f32 %v3789, %v3901
    %v3903 = vpop.f32.mrb[0].mxu0
    %v3904 = vadd.f32 %v3791, %v3903
    %v3905 = vpop.f32.mrb[0].mxu0
    %v3906 = vadd.f32 %v3793, %v3905
    %3907 = vdwg.mxu0
    %3908 = vmatprep.subr.bf16.mxu0 %v2593
    %3909 = vmatpush1.bf16.msra.mxu0 %v2592
    %3910 = vmatprep.subr.bf16.mxu0 %v2601
    %3911 = vmatpush1.bf16.msra.mxu0 %v2600
    %3912 = vmatprep.subr.bf16.mxu0 %v2609
    %3913 = vmatpush1.bf16.msra.mxu0 %v2608
    %3914 = vmatprep.subr.bf16.mxu0 %v2617
    %3915 = vmatpush1.bf16.msra.mxu0 %v2616
    %3916 = vmatprep.subr.bf16.mxu0 %v2625
    %3917 = vmatpush1.bf16.msra.mxu0 %v2624
    %3918 = vmatprep.subr.bf16.mxu0 %v2633
    %3919 = vmatpush1.bf16.msra.mxu0 %v2632
    %3920 = vmatprep.subr.bf16.mxu0 %v2641
    %3921 = vmatpush1.bf16.msra.mxu0 %v2640
    %3922 = vmatprep.subr.bf16.mxu0 %v2649
    %3923 = vmatpush1.bf16.msra.mxu0 %v2648
    %3924 = vmatprep.subr.bf16.mxu0 %v2657
    %3925 = vmatpush1.bf16.msra.mxu0 %v2656
    %3926 = vmatprep.subr.bf16.mxu0 %v2665
    %3927 = vmatpush1.bf16.msra.mxu0 %v2664
    %3928 = vmatprep.subr.bf16.mxu0 %v2673
    %3929 = vmatpush1.bf16.msra.mxu0 %v2672
    %3930 = vmatprep.subr.bf16.mxu0 %v2681
    %3931 = vmatpush1.bf16.msra.mxu0 %v2680
    %3932 = vmatprep.subr.bf16.mxu0 %v2689
    %3933 = vmatpush1.bf16.msra.mxu0 %v2688
    %3934 = vmatprep.subr.bf16.mxu0 %v2697
    %3935 = vmatpush1.bf16.msra.mxu0 %v2696
    %3936 = vmatprep.subr.bf16.mxu0 %v2705
    %3937 = vmatpush1.bf16.msra.mxu0 %v2704
    %3938 = vmatprep.subr.bf16.mxu0 %v2713
    %3939 = vmatpush1.bf16.msra.mxu0 %v2712
    %3940 = vmatprep.mubr.bf16.mxu0 %v883
    %3941 = vmatmul.mubr.bf16.gmra.mrb[0].mxu0 %v882
    %v3942 = vpop.f32.mrb[0].mxu0
    %v3943 = vadd.f32 %v3830, %v3942
    %v3944 = vpop.f32.mrb[0].mxu0
    %v3945 = vadd.f32 %v3832, %v3944
    %v3946 = vpop.f32.mrb[0].mxu0
    %v3947 = vadd.f32 %v3834, %v3946
    %v3948 = vpop.f32.mrb[0].mxu0
    %v3949 = vadd.f32 %v3836, %v3948
    %3950 = vmatprep.mubr.bf16.mxu0 %v890
    %3951 = vmatmul.mubr.bf16.gmra.mrb[0].mxu0 %v889
    %v3952 = vpop.f32.mrb[0].mxu0
    %v3953 = vadd.f32 %v3840, %v3952
    %v3954 = vpop.f32.mrb[0].mxu0
    %v3955 = vadd.f32 %v3842, %v3954
    %v3956 = vpop.f32.mrb[0].mxu0
    %v3957 = vadd.f32 %v3844, %v3956
    %v3958 = vpop.f32.mrb[0].mxu0
    %v3959 = vadd.f32 %v3846, %v3958
    %3960 = vmatprep.mubr.bf16.mxu0 %v897
    %3961 = vmatmul.mubr.bf16.gmra.mrb[0].mxu0 %v896
    %v3962 = vpop.f32.mrb[0].mxu0
    %v3963 = vadd.f32 %v3850, %v3962
    %v3964 = vpop.f32.mrb[0].mxu0
    %v3965 = vadd.f32 %v3852, %v3964
    %v3966 = vpop.f32.mrb[0].mxu0
    %v3967 = vadd.f32 %v3854, %v3966
    %v3968 = vpop.f32.mrb[0].mxu0
    %v3969 = vadd.f32 %v3856, %v3968
    %3970 = vmatprep.mubr.bf16.mxu0 %v904
    %3971 = vmatmul.mubr.bf16.gmra.mrb[0].mxu0 %v903
    %v3972 = vpop.f32.mrb[0].mxu0
    %v3973 = vadd.f32 %v3860, %v3972
    %v3974 = vpop.f32.mrb[0].mxu0
    %v3975 = vadd.f32 %v3862, %v3974
    %v3976 = vpop.f32.mrb[0].mxu0
    %v3977 = vadd.f32 %v3864, %v3976
    %v3978 = vpop.f32.mrb[0].mxu0
    %v3979 = vadd.f32 %v3866, %v3978
    %3980 = vmatprep.mubr.bf16.mxu0 %v911
    %3981 = vmatmul.mubr.bf16.gmra.mrb[0].mxu0 %v910
    %v3982 = vpop.f32.mrb[0].mxu0
    %v3983 = vadd.f32 %v3870, %v3982
    %v3984 = vpop.f32.mrb[0].mxu0
    %v3985 = vadd.f32 %v3872, %v3984
    %v3986 = vpop.f32.mrb[0].mxu0
    %v3987 = vadd.f32 %v3874, %v3986
    %v3988 = vpop.f32.mrb[0].mxu0
    %v3989 = vadd.f32 %v3876, %v3988
    %3990 = vmatprep.mubr.bf16.mxu0 %v918
    %3991 = vmatmul.mubr.bf16.gmra.mrb[0].mxu0 %v917
    %v3992 = vpop.f32.mrb[0].mxu0
    %v3993 = vadd.f32 %v3880, %v3992
    %v3994 = vpop.f32.mrb[0].mxu0
    %v3995 = vadd.f32 %v3882, %v3994
    %v3996 = vpop.f32.mrb[0].mxu0
    %v3997 = vadd.f32 %v3884, %v3996
    %v3998 = vpop.f32.mrb[0].mxu0
    %v3999 = vadd.f32 %v3886, %v3998
    %4000 = vmatprep.mubr.bf16.mxu0 %v925
    %4001 = vmatmul.mubr.bf16.gmra.mrb[0].mxu0 %v924
    %v4002 = vpop.f32.mrb[0].mxu0
    %v4003 = vadd.f32 %v3890, %v4002
    %v4004 = vpop.f32.mrb[0].mxu0
    %v4005 = vadd.f32 %v3892, %v4004
    %v4006 = vpop.f32.mrb[0].mxu0
    %v4007 = vadd.f32 %v3894, %v4006
    %v4008 = vpop.f32.mrb[0].mxu0
    %v4009 = vadd.f32 %v3896, %v4008
    %4010 = vmatprep.mubr.bf16.mxu0 %v932
    %4011 = vmatmul.mubr.bf16.gmra.mrb[0].mxu0 %v931
    %v4012 = vpop.f32.mrb[0].mxu0
    %v4013 = vadd.f32 %v3900, %v4012
    %v4014 = vpop.f32.mrb[0].mxu0
    %v4015 = vadd.f32 %v3902, %v4014
    %v4016 = vpop.f32.mrb[0].mxu0
    %v4017 = vadd.f32 %v3904, %v4016
    %v4018 = vpop.f32.mrb[0].mxu0
    %v4019 = vadd.f32 %v3906, %v4018
    %4020 = vdwg.mxu0
    %4021 = vmatprep.subr.bf16.mxu0 %v2721
    %4022 = vmatpush1.bf16.msra.mxu0 %v2720
    %4023 = vmatprep.subr.bf16.mxu0 %v2729
    %4024 = vmatpush1.bf16.msra.mxu0 %v2728
    %4025 = vmatprep.subr.bf16.mxu0 %v2737
    %4026 = vmatpush1.bf16.msra.mxu0 %v2736
    %4027 = vmatprep.subr.bf16.mxu0 %v2745
    %4028 = vmatpush1.bf16.msra.mxu0 %v2744
    %4029 = vmatprep.subr.bf16.mxu0 %v2753
    %4030 = vmatpush1.bf16.msra.mxu0 %v2752
    %4031 = vmatprep.subr.bf16.mxu0 %v2761
    %4032 = vmatpush1.bf16.msra.mxu0 %v2760
    %4033 = vmatprep.subr.bf16.mxu0 %v2769
    %4034 = vmatpush1.bf16.msra.mxu0 %v2768
    %4035 = vmatprep.subr.bf16.mxu0 %v2777
    %4036 = vmatpush1.bf16.msra.mxu0 %v2776
    %4037 = vmatprep.subr.bf16.mxu0 0
    %4038 = vmatpush1.bf16.msra.mxu0 0
    %4039 = vmatprep.subr.bf16.mxu0 0
    %4040 = vmatpush1.bf16.msra.mxu0 0
    %4041 = vmatprep.subr.bf16.mxu0 0
    %4042 = vmatpush1.bf16.msra.mxu0 0
    %4043 = vmatprep.subr.bf16.mxu0 0
    %4044 = vmatpush1.bf16.msra.mxu0 0
    %4045 = vmatprep.subr.bf16.mxu0 0
    %4046 = vmatpush1.bf16.msra.mxu0 0
    %4047 = vmatprep.subr.bf16.mxu0 0
    %4048 = vmatpush1.bf16.msra.mxu0 0
    %4049 = vmatprep.subr.bf16.mxu0 0
    %4050 = vmatpush1.bf16.msra.mxu0 0
    %4051 = vmatprep.subr.bf16.mxu0 0
    %4052 = vmatpush1.bf16.msra.mxu0 0
    %4053 = vmatprep.mubr.bf16.mxu0 0
    %4054 = vmatmul.mubr.bf16.gmra.mrb[0].mxu0 %v884
    %v4055 = vpop.f32.mrb[0].mxu0
    %v4056 = vadd.f32 %v3943, %v4055
    %v4057 = vpop.f32.mrb[0].mxu0
    %v4058 = vadd.f32 %v3945, %v4057
    %v4059 = vpop.f32.mrb[0].mxu0
    %v4060 = vadd.f32 %v3947, %v4059
    %v4061 = vpop.f32.mrb[0].mxu0
    %v4062 = vadd.f32 %v3949, %v4061
    %4063 = vmatprep.mubr.bf16.mxu0 0
    %4064 = vmatmul.mubr.bf16.gmra.mrb[0].mxu0 %v891
    %v4065 = vpop.f32.mrb[0].mxu0
    %v4066 = vadd.f32 %v3953, %v4065
    %v4067 = vpop.f32.mrb[0].mxu0
    %v4068 = vadd.f32 %v3955, %v4067
    %v4069 = vpop.f32.mrb[0].mxu0
    %v4070 = vadd.f32 %v3957, %v4069
    %v4071 = vpop.f32.mrb[0].mxu0
    %v4072 = vadd.f32 %v3959, %v4071
    %4073 = vmatprep.mubr.bf16.mxu0 0
    %4074 = vmatmul.mubr.bf16.gmra.mrb[0].mxu0 %v898
    %v4075 = vpop.f32.mrb[0].mxu0
    %v4076 = vadd.f32 %v3963, %v4075
    %v4077 = vpop.f32.mrb[0].mxu0
    %v4078 = vadd.f32 %v3965, %v4077
    %v4079 = vpop.f32.mrb[0].mxu0
    %v4080 = vadd.f32 %v3967, %v4079
    %v4081 = vpop.f32.mrb[0].mxu0
    %v4082 = vadd.f32 %v3969, %v4081
    %4083 = vmatprep.mubr.bf16.mxu0 0
    %4084 = vmatmul.mubr.bf16.gmra.mrb[0].mxu0 %v905
    %v4085 = vpop.f32.mrb[0].mxu0
    %v4086 = vadd.f32 %v3973, %v4085
    %v4087 = vpop.f32.mrb[0].mxu0
    %v4088 = vadd.f32 %v3975, %v4087
    %v4089 = vpop.f32.mrb[0].mxu0
    %v4090 = vadd.f32 %v3977, %v4089
    %v4091 = vpop.f32.mrb[0].mxu0
    %v4092 = vadd.f32 %v3979, %v4091
    %4093 = vmatprep.mubr.bf16.mxu0 0
    %4094 = vmatmul.mubr.bf16.gmra.mrb[0].mxu0 %v912
    %v4095 = vpop.f32.mrb[0].mxu0
    %v4096 = vadd.f32 %v3983, %v4095
    %v4097 = vpop.f32.mrb[0].mxu0
    %v4098 = vadd.f32 %v3985, %v4097
    %v4099 = vpop.f32.mrb[0].mxu0
    %v4100 = vadd.f32 %v3987, %v4099
    %v4101 = vpop.f32.mrb[0].mxu0
    %v4102 = vadd.f32 %v3989, %v4101
    %4103 = vmatprep.mubr.bf16.mxu0 0
    %4104 = vmatmul.mubr.bf16.gmra.mrb[0].mxu0 %v919
    %v4105 = vpop.f32.mrb[0].mxu0
    %v4106 = vadd.f32 %v3993, %v4105
    %v4107 = vpop.f32.mrb[0].mxu0
    %v4108 = vadd.f32 %v3995, %v4107
    %v4109 = vpop.f32.mrb[0].mxu0
    %v4110 = vadd.f32 %v3997, %v4109
    %v4111 = vpop.f32.mrb[0].mxu0
    %v4112 = vadd.f32 %v3999, %v4111
    %4113 = vmatprep.mubr.bf16.mxu0 0
    %4114 = vmatmul.mubr.bf16.gmra.mrb[0].mxu0 %v926
    %v4115 = vpop.f32.mrb[0].mxu0
    %v4116 = vadd.f32 %v4003, %v4115
    %v4117 = vpop.f32.mrb[0].mxu0
    %v4118 = vadd.f32 %v4005, %v4117
    %v4119 = vpop.f32.mrb[0].mxu0
    %v4120 = vadd.f32 %v4007, %v4119
    %v4121 = vpop.f32.mrb[0].mxu0
    %v4122 = vadd.f32 %v4009, %v4121
    %4123 = vmatprep.mubr.bf16.mxu0 0
    %4124 = vmatmul.mubr.bf16.gmra.mrb[0].mxu0 %v933
    %v4125 = vpop.f32.mrb[0].mxu0
    %v4126 = vadd.f32 %v4013, %v4125
    %v4127 = vpop.f32.mrb[0].mxu0
    %v4128 = vadd.f32 %v4015, %v4127
    %v4129 = vpop.f32.mrb[0].mxu0
    %v4130 = vadd.f32 %v4017, %v4129
    %v4131 = vpop.f32.mrb[0].mxu0
    %v4132 = vadd.f32 %v4019, %v4131
    %4133 = vdwg.mxu0
    %4134 = vmatprep.subr.bf16.mxu0 %v2339
    %4135 = vmatpush1.bf16.msra.mxu0 %v2338
    %4136 = vmatprep.subr.bf16.mxu0 %v2347
    %4137 = vmatpush1.bf16.msra.mxu0 %v2346
    %4138 = vmatprep.subr.bf16.mxu0 %v2355
    %4139 = vmatpush1.bf16.msra.mxu0 %v2354
    %4140 = vmatprep.subr.bf16.mxu0 %v2363
    %4141 = vmatpush1.bf16.msra.mxu0 %v2362
    %4142 = vmatprep.subr.bf16.mxu0 %v2371
    %4143 = vmatpush1.bf16.msra.mxu0 %v2370
    %4144 = vmatprep.subr.bf16.mxu0 %v2379
    %4145 = vmatpush1.bf16.msra.mxu0 %v2378
    %4146 = vmatprep.subr.bf16.mxu0 %v2387
    %4147 = vmatpush1.bf16.msra.mxu0 %v2386
    %4148 = vmatprep.subr.bf16.mxu0 %v2395
    %4149 = vmatpush1.bf16.msra.mxu0 %v2394
    %4150 = vmatprep.subr.bf16.mxu0 %v2403
    %4151 = vmatpush1.bf16.msra.mxu0 %v2402
    %4152 = vmatprep.subr.bf16.mxu0 %v2411
    %4153 = vmatpush1.bf16.msra.mxu0 %v2410
    %4154 = vmatprep.subr.bf16.mxu0 %v2419
    %4155 = vmatpush1.bf16.msra.mxu0 %v2418
    %4156 = vmatprep.subr.bf16.mxu0 %v2427
    %4157 = vmatpush1.bf16.msra.mxu0 %v2426
    %4158 = vmatprep.subr.bf16.mxu0 %v2435
    %4159 = vmatpush1.bf16.msra.mxu0 %v2434
    %4160 = vmatprep.subr.bf16.mxu0 %v2443
    %4161 = vmatpush1.bf16.msra.mxu0 %v2442
    %4162 = vmatprep.subr.bf16.mxu0 %v2451
    %4163 = vmatpush1.bf16.msra.mxu0 %v2450
    %4164 = vmatprep.subr.bf16.mxu0 %v2459
    %4165 = vmatpush1.bf16.msra.mxu0 %v2458
    %4166 = vmatprep.mubr.bf16.mxu0 %v879
    %4167 = vmatmul.mubr.bf16.gmra.mrb[0].mxu0 %v878
    %v4168 = vpop.f32.mrb[0].mxu0
    %v4169 = vadd.f32 %v681, %v4168
    %v4170 = vpop.f32.mrb[0].mxu0
    %v4171 = vadd.f32 %v685, %v4170
    %v4172 = vpop.f32.mrb[0].mxu0
    %v4173 = vadd.f32 %v681, %v4172
    %v4174 = vpop.f32.mrb[0].mxu0
    %v4175 = vadd.f32 %v685, %v4174
    %4176 = vmatprep.mubr.bf16.mxu0 %v886
    %4177 = vmatmul.mubr.bf16.gmra.mrb[0].mxu0 %v885
    %v4178 = vpop.f32.mrb[0].mxu0
    %v4179 = vadd.f32 %v681, %v4178
    %v4180 = vpop.f32.mrb[0].mxu0
    %v4181 = vadd.f32 %v685, %v4180
    %v4182 = vpop.f32.mrb[0].mxu0
    %v4183 = vadd.f32 %v681, %v4182
    %v4184 = vpop.f32.mrb[0].mxu0
    %v4185 = vadd.f32 %v685, %v4184
    %4186 = vmatprep.mubr.bf16.mxu0 %v893
    %4187 = vmatmul.mubr.bf16.gmra.mrb[0].mxu0 %v892
    %v4188 = vpop.f32.mrb[0].mxu0
    %v4189 = vadd.f32 %v681, %v4188
    %v4190 = vpop.f32.mrb[0].mxu0
    %v4191 = vadd.f32 %v685, %v4190
    %v4192 = vpop.f32.mrb[0].mxu0
    %v4193 = vadd.f32 %v681, %v4192
    %v4194 = vpop.f32.mrb[0].mxu0
    %v4195 = vadd.f32 %v685, %v4194
    %4196 = vmatprep.mubr.bf16.mxu0 %v900
    %4197 = vmatmul.mubr.bf16.gmra.mrb[0].mxu0 %v899
    %v4198 = vpop.f32.mrb[0].mxu0
    %v4199 = vadd.f32 %v681, %v4198
    %v4200 = vpop.f32.mrb[0].mxu0
    %v4201 = vadd.f32 %v685, %v4200
    %v4202 = vpop.f32.mrb[0].mxu0
    %v4203 = vadd.f32 %v681, %v4202
    %v4204 = vpop.f32.mrb[0].mxu0
    %v4205 = vadd.f32 %v685, %v4204
    %4206 = vmatprep.mubr.bf16.mxu0 %v907
    %4207 = vmatmul.mubr.bf16.gmra.mrb[0].mxu0 %v906
    %v4208 = vpop.f32.mrb[0].mxu0
    %v4209 = vadd.f32 %v681, %v4208
    %v4210 = vpop.f32.mrb[0].mxu0
    %v4211 = vadd.f32 %v685, %v4210
    %v4212 = vpop.f32.mrb[0].mxu0
    %v4213 = vadd.f32 %v681, %v4212
    %v4214 = vpop.f32.mrb[0].mxu0
    %v4215 = vadd.f32 %v685, %v4214
    %4216 = vmatprep.mubr.bf16.mxu0 %v914
    %4217 = vmatmul.mubr.bf16.gmra.mrb[0].mxu0 %v913
    %v4218 = vpop.f32.mrb[0].mxu0
    %v4219 = vadd.f32 %v681, %v4218
    %v4220 = vpop.f32.mrb[0].mxu0
    %v4221 = vadd.f32 %v685, %v4220
    %v4222 = vpop.f32.mrb[0].mxu0
    %v4223 = vadd.f32 %v681, %v4222
    %v4224 = vpop.f32.mrb[0].mxu0
    %v4225 = vadd.f32 %v685, %v4224
    %4226 = vmatprep.mubr.bf16.mxu0 %v921
    %4227 = vmatmul.mubr.bf16.gmra.mrb[0].mxu0 %v920
    %v4228 = vpop.f32.mrb[0].mxu0
    %v4229 = vadd.f32 %v681, %v4228
    %v4230 = vpop.f32.mrb[0].mxu0
    %v4231 = vadd.f32 %v685, %v4230
    %v4232 = vpop.f32.mrb[0].mxu0
    %v4233 = vadd.f32 %v681, %v4232
    %v4234 = vpop.f32.mrb[0].mxu0
    %v4235 = vadd.f32 %v685, %v4234
    %4236 = vmatprep.mubr.bf16.mxu0 %v928
    %4237 = vmatmul.mubr.bf16.gmra.mrb[0].mxu0 %v927
    %v4238 = vpop.f32.mrb[0].mxu0
    %v4239 = vadd.f32 %v681, %v4238
    %v4240 = vpop.f32.mrb[0].mxu0
    %v4241 = vadd.f32 %v685, %v4240
    %v4242 = vpop.f32.mrb[0].mxu0
    %v4243 = vadd.f32 %v681, %v4242
    %v4244 = vpop.f32.mrb[0].mxu0
    %v4245 = vadd.f32 %v685, %v4244
    %4246 = vdwg.mxu0
    %4247 = vmatprep.subr.bf16.mxu0 %v2467
    %4248 = vmatpush1.bf16.msra.mxu0 %v2466
    %4249 = vmatprep.subr.bf16.mxu0 %v2475
    %4250 = vmatpush1.bf16.msra.mxu0 %v2474
    %4251 = vmatprep.subr.bf16.mxu0 %v2483
    %4252 = vmatpush1.bf16.msra.mxu0 %v2482
    %4253 = vmatprep.subr.bf16.mxu0 %v2491
    %4254 = vmatpush1.bf16.msra.mxu0 %v2490
    %4255 = vmatprep.subr.bf16.mxu0 %v2499
    %4256 = vmatpush1.bf16.msra.mxu0 %v2498
    %4257 = vmatprep.subr.bf16.mxu0 %v2507
    %4258 = vmatpush1.bf16.msra.mxu0 %v2506
    %4259 = vmatprep.subr.bf16.mxu0 %v2515
    %4260 = vmatpush1.bf16.msra.mxu0 %v2514
    %4261 = vmatprep.subr.bf16.mxu0 %v2523
    %4262 = vmatpush1.bf16.msra.mxu0 %v2522
    %4263 = vmatprep.subr.bf16.mxu0 %v2531
    %4264 = vmatpush1.bf16.msra.mxu0 %v2530
    %4265 = vmatprep.subr.bf16.mxu0 %v2539
    %4266 = vmatpush1.bf16.msra.mxu0 %v2538
    %4267 = vmatprep.subr.bf16.mxu0 %v2547
    %4268 = vmatpush1.bf16.msra.mxu0 %v2546
    %4269 = vmatprep.subr.bf16.mxu0 %v2555
    %4270 = vmatpush1.bf16.msra.mxu0 %v2554
    %4271 = vmatprep.subr.bf16.mxu0 %v2563
    %4272 = vmatpush1.bf16.msra.mxu0 %v2562
    %4273 = vmatprep.subr.bf16.mxu0 %v2571
    %4274 = vmatpush1.bf16.msra.mxu0 %v2570
    %4275 = vmatprep.subr.bf16.mxu0 %v2579
    %4276 = vmatpush1.bf16.msra.mxu0 %v2578
    %4277 = vmatprep.subr.bf16.mxu0 %v2587
    %4278 = vmatpush1.bf16.msra.mxu0 %v2586
    %4279 = vmatprep.mubr.bf16.mxu0 %v881
    %4280 = vmatmul.mubr.bf16.gmra.mrb[0].mxu0 %v880
    %v4281 = vpop.f32.mrb[0].mxu0
    %v4282 = vadd.f32 %v4169, %v4281
    %v4283 = vpop.f32.mrb[0].mxu0
    %v4284 = vadd.f32 %v4171, %v4283
    %v4285 = vpop.f32.mrb[0].mxu0
    %v4286 = vadd.f32 %v4173, %v4285
    %v4287 = vpop.f32.mrb[0].mxu0
    %v4288 = vadd.f32 %v4175, %v4287
    %4289 = vmatprep.mubr.bf16.mxu0 %v888
    %4290 = vmatmul.mubr.bf16.gmra.mrb[0].mxu0 %v887
    %v4291 = vpop.f32.mrb[0].mxu0
    %v4292 = vadd.f32 %v4179, %v4291
    %v4293 = vpop.f32.mrb[0].mxu0
    %v4294 = vadd.f32 %v4181, %v4293
    %v4295 = vpop.f32.mrb[0].mxu0
    %v4296 = vadd.f32 %v4183, %v4295
    %v4297 = vpop.f32.mrb[0].mxu0
    %v4298 = vadd.f32 %v4185, %v4297
    %4299 = vmatprep.mubr.bf16.mxu0 %v895
    %4300 = vmatmul.mubr.bf16.gmra.mrb[0].mxu0 %v894
    %v4301 = vpop.f32.mrb[0].mxu0
    %v4302 = vadd.f32 %v4189, %v4301
    %v4303 = vpop.f32.mrb[0].mxu0
    %v4304 = vadd.f32 %v4191, %v4303
    %v4305 = vpop.f32.mrb[0].mxu0
    %v4306 = vadd.f32 %v4193, %v4305
    %v4307 = vpop.f32.mrb[0].mxu0
    %v4308 = vadd.f32 %v4195, %v4307
    %4309 = vmatprep.mubr.bf16.mxu0 %v902
    %4310 = vmatmul.mubr.bf16.gmra.mrb[0].mxu0 %v901
    %v4311 = vpop.f32.mrb[0].mxu0
    %v4312 = vadd.f32 %v4199, %v4311
    %v4313 = vpop.f32.mrb[0].mxu0
    %v4314 = vadd.f32 %v4201, %v4313
    %v4315 = vpop.f32.mrb[0].mxu0
    %v4316 = vadd.f32 %v4203, %v4315
    %v4317 = vpop.f32.mrb[0].mxu0
    %v4318 = vadd.f32 %v4205, %v4317
    %4319 = vmatprep.mubr.bf16.mxu0 %v909
    %4320 = vmatmul.mubr.bf16.gmra.mrb[0].mxu0 %v908
    %v4321 = vpop.f32.mrb[0].mxu0
    %v4322 = vadd.f32 %v4209, %v4321
    %v4323 = vpop.f32.mrb[0].mxu0
    %v4324 = vadd.f32 %v4211, %v4323
    %v4325 = vpop.f32.mrb[0].mxu0
    %v4326 = vadd.f32 %v4213, %v4325
    %v4327 = vpop.f32.mrb[0].mxu0
    %v4328 = vadd.f32 %v4215, %v4327
    %4329 = vmatprep.mubr.bf16.mxu0 %v916
    %4330 = vmatmul.mubr.bf16.gmra.mrb[0].mxu0 %v915
    %v4331 = vpop.f32.mrb[0].mxu0
    %v4332 = vadd.f32 %v4219, %v4331
    %v4333 = vpop.f32.mrb[0].mxu0
    %v4334 = vadd.f32 %v4221, %v4333
    %v4335 = vpop.f32.mrb[0].mxu0
    %v4336 = vadd.f32 %v4223, %v4335
    %v4337 = vpop.f32.mrb[0].mxu0
    %v4338 = vadd.f32 %v4225, %v4337
    %4339 = vmatprep.mubr.bf16.mxu0 %v923
    %4340 = vmatmul.mubr.bf16.gmra.mrb[0].mxu0 %v922
    %v4341 = vpop.f32.mrb[0].mxu0
    %v4342 = vadd.f32 %v4229, %v4341
    %v4343 = vpop.f32.mrb[0].mxu0
    %v4344 = vadd.f32 %v4231, %v4343
    %v4345 = vpop.f32.mrb[0].mxu0
    %v4346 = vadd.f32 %v4233, %v4345
    %v4347 = vpop.f32.mrb[0].mxu0
    %v4348 = vadd.f32 %v4235, %v4347
    %4349 = vmatprep.mubr.bf16.mxu0 %v930
    %4350 = vmatmul.mubr.bf16.gmra.mrb[0].mxu0 %v929
    %v4351 = vpop.f32.mrb[0].mxu0
    %v4352 = vadd.f32 %v4239, %v4351
    %v4353 = vpop.f32.mrb[0].mxu0
    %v4354 = vadd.f32 %v4241, %v4353
    %v4355 = vpop.f32.mrb[0].mxu0
    %v4356 = vadd.f32 %v4243, %v4355
    %v4357 = vpop.f32.mrb[0].mxu0
    %v4358 = vadd.f32 %v4245, %v4357
    %4359 = vdwg.mxu0
    %4360 = vmatprep.subr.bf16.mxu0 %v2595
    %4361 = vmatpush1.bf16.msra.mxu0 %v2594
    %4362 = vmatprep.subr.bf16.mxu0 %v2603
    %4363 = vmatpush1.bf16.msra.mxu0 %v2602
    %4364 = vmatprep.subr.bf16.mxu0 %v2611
    %4365 = vmatpush1.bf16.msra.mxu0 %v2610
    %4366 = vmatprep.subr.bf16.mxu0 %v2619
    %4367 = vmatpush1.bf16.msra.mxu0 %v2618
    %4368 = vmatprep.subr.bf16.mxu0 %v2627
    %4369 = vmatpush1.bf16.msra.mxu0 %v2626
    %4370 = vmatprep.subr.bf16.mxu0 %v2635
    %4371 = vmatpush1.bf16.msra.mxu0 %v2634
    %4372 = vmatprep.subr.bf16.mxu0 %v2643
    %4373 = vmatpush1.bf16.msra.mxu0 %v2642
    %4374 = vmatprep.subr.bf16.mxu0 %v2651
    %4375 = vmatpush1.bf16.msra.mxu0 %v2650
    %4376 = vmatprep.subr.bf16.mxu0 %v2659
    %4377 = vmatpush1.bf16.msra.mxu0 %v2658
    %4378 = vmatprep.subr.bf16.mxu0 %v2667
    %4379 = vmatpush1.bf16.msra.mxu0 %v2666
    %4380 = vmatprep.subr.bf16.mxu0 %v2675
    %4381 = vmatpush1.bf16.msra.mxu0 %v2674
    %4382 = vmatprep.subr.bf16.mxu0 %v2683
    %4383 = vmatpush1.bf16.msra.mxu0 %v2682
    %4384 = vmatprep.subr.bf16.mxu0 %v2691
    %4385 = vmatpush1.bf16.msra.mxu0 %v2690
    %4386 = vmatprep.subr.bf16.mxu0 %v2699
    %4387 = vmatpush1.bf16.msra.mxu0 %v2698
    %4388 = vmatprep.subr.bf16.mxu0 %v2707
    %4389 = vmatpush1.bf16.msra.mxu0 %v2706
    %4390 = vmatprep.subr.bf16.mxu0 %v2715
    %4391 = vmatpush1.bf16.msra.mxu0 %v2714
    %4392 = vmatprep.mubr.bf16.mxu0 %v883
    %4393 = vmatmul.mubr.bf16.gmra.mrb[0].mxu0 %v882
    %v4394 = vpop.f32.mrb[0].mxu0
    %v4395 = vadd.f32 %v4282, %v4394
    %v4396 = vpop.f32.mrb[0].mxu0
    %v4397 = vadd.f32 %v4284, %v4396
    %v4398 = vpop.f32.mrb[0].mxu0
    %v4399 = vadd.f32 %v4286, %v4398
    %v4400 = vpop.f32.mrb[0].mxu0
    %v4401 = vadd.f32 %v4288, %v4400
    %4402 = vmatprep.mubr.bf16.mxu0 %v890
    %4403 = vmatmul.mubr.bf16.gmra.mrb[0].mxu0 %v889
    %v4404 = vpop.f32.mrb[0].mxu0
    %v4405 = vadd.f32 %v4292, %v4404
    %v4406 = vpop.f32.mrb[0].mxu0
    %v4407 = vadd.f32 %v4294, %v4406
    %v4408 = vpop.f32.mrb[0].mxu0
    %v4409 = vadd.f32 %v4296, %v4408
    %v4410 = vpop.f32.mrb[0].mxu0
    %v4411 = vadd.f32 %v4298, %v4410
    %4412 = vmatprep.mubr.bf16.mxu0 %v897
    %4413 = vmatmul.mubr.bf16.gmra.mrb[0].mxu0 %v896
    %v4414 = vpop.f32.mrb[0].mxu0
    %v4415 = vadd.f32 %v4302, %v4414
    %v4416 = vpop.f32.mrb[0].mxu0
    %v4417 = vadd.f32 %v4304, %v4416
    %v4418 = vpop.f32.mrb[0].mxu0
    %v4419 = vadd.f32 %v4306, %v4418
    %v4420 = vpop.f32.mrb[0].mxu0
    %v4421 = vadd.f32 %v4308, %v4420
    %4422 = vmatprep.mubr.bf16.mxu0 %v904
    %4423 = vmatmul.mubr.bf16.gmra.mrb[0].mxu0 %v903
    %v4424 = vpop.f32.mrb[0].mxu0
    %v4425 = vadd.f32 %v4312, %v4424
    %v4426 = vpop.f32.mrb[0].mxu0
    %v4427 = vadd.f32 %v4314, %v4426
    %v4428 = vpop.f32.mrb[0].mxu0
    %v4429 = vadd.f32 %v4316, %v4428
    %v4430 = vpop.f32.mrb[0].mxu0
    %v4431 = vadd.f32 %v4318, %v4430
    %4432 = vmatprep.mubr.bf16.mxu0 %v911
    %4433 = vmatmul.mubr.bf16.gmra.mrb[0].mxu0 %v910
    %v4434 = vpop.f32.mrb[0].mxu0
    %v4435 = vadd.f32 %v4322, %v4434
    %v4436 = vpop.f32.mrb[0].mxu0
    %v4437 = vadd.f32 %v4324, %v4436
    %v4438 = vpop.f32.mrb[0].mxu0
    %v4439 = vadd.f32 %v4326, %v4438
    %v4440 = vpop.f32.mrb[0].mxu0
    %v4441 = vadd.f32 %v4328, %v4440
    %4442 = vmatprep.mubr.bf16.mxu0 %v918
    %4443 = vmatmul.mubr.bf16.gmra.mrb[0].mxu0 %v917
    %v4444 = vpop.f32.mrb[0].mxu0
    %v4445 = vadd.f32 %v4332, %v4444
    %v4446 = vpop.f32.mrb[0].mxu0
    %v4447 = vadd.f32 %v4334, %v4446
    %v4448 = vpop.f32.mrb[0].mxu0
    %v4449 = vadd.f32 %v4336, %v4448
    %v4450 = vpop.f32.mrb[0].mxu0
    %v4451 = vadd.f32 %v4338, %v4450
    %4452 = vmatprep.mubr.bf16.mxu0 %v925
    %4453 = vmatmul.mubr.bf16.gmra.mrb[0].mxu0 %v924
    %v4454 = vpop.f32.mrb[0].mxu0
    %v4455 = vadd.f32 %v4342, %v4454
    %v4456 = vpop.f32.mrb[0].mxu0
    %v4457 = vadd.f32 %v4344, %v4456
    %v4458 = vpop.f32.mrb[0].mxu0
    %v4459 = vadd.f32 %v4346, %v4458
    %v4460 = vpop.f32.mrb[0].mxu0
    %v4461 = vadd.f32 %v4348, %v4460
    %4462 = vmatprep.mubr.bf16.mxu0 %v932
    %4463 = vmatmul.mubr.bf16.gmra.mrb[0].mxu0 %v931
    %v4464 = vpop.f32.mrb[0].mxu0
    %v4465 = vadd.f32 %v4352, %v4464
    %v4466 = vpop.f32.mrb[0].mxu0
    %v4467 = vadd.f32 %v4354, %v4466
    %v4468 = vpop.f32.mrb[0].mxu0
    %v4469 = vadd.f32 %v4356, %v4468
    %v4470 = vpop.f32.mrb[0].mxu0
    %v4471 = vadd.f32 %v4358, %v4470
    %4472 = vdwg.mxu0
    %4473 = vmatprep.subr.bf16.mxu0 %v2723
    %4474 = vmatpush1.bf16.msra.mxu0 %v2722
    %4475 = vmatprep.subr.bf16.mxu0 %v2731
    %4476 = vmatpush1.bf16.msra.mxu0 %v2730
    %4477 = vmatprep.subr.bf16.mxu0 %v2739
    %4478 = vmatpush1.bf16.msra.mxu0 %v2738
    %4479 = vmatprep.subr.bf16.mxu0 %v2747
    %4480 = vmatpush1.bf16.msra.mxu0 %v2746
    %4481 = vmatprep.subr.bf16.mxu0 %v2755
    %4482 = vmatpush1.bf16.msra.mxu0 %v2754
    %4483 = vmatprep.subr.bf16.mxu0 %v2763
    %4484 = vmatpush1.bf16.msra.mxu0 %v2762
    %4485 = vmatprep.subr.bf16.mxu0 %v2771
    %4486 = vmatpush1.bf16.msra.mxu0 %v2770
    %4487 = vmatprep.subr.bf16.mxu0 %v2779
    %4488 = vmatpush1.bf16.msra.mxu0 %v2778
    %4489 = vmatprep.subr.bf16.mxu0 0
    %4490 = vmatpush1.bf16.msra.mxu0 0
    %4491 = vmatprep.subr.bf16.mxu0 0
    %4492 = vmatpush1.bf16.msra.mxu0 0
    %4493 = vmatprep.subr.bf16.mxu0 0
    %4494 = vmatpush1.bf16.msra.mxu0 0
    %4495 = vmatprep.subr.bf16.mxu0 0
    %4496 = vmatpush1.bf16.msra.mxu0 0
    %4497 = vmatprep.subr.bf16.mxu0 0
    %4498 = vmatpush1.bf16.msra.mxu0 0
    %4499 = vmatprep.subr.bf16.mxu0 0
    %4500 = vmatpush1.bf16.msra.mxu0 0
    %4501 = vmatprep.subr.bf16.mxu0 0
    %4502 = vmatpush1.bf16.msra.mxu0 0
    %4503 = vmatprep.subr.bf16.mxu0 0
    %4504 = vmatpush1.bf16.msra.mxu0 0
    %4505 = vmatprep.mubr.bf16.mxu0 0
    %4506 = vmatmul.mubr.bf16.gmra.mrb[0].mxu0 %v884
    %v4507 = vpop.f32.mrb[0].mxu0
    %v4508 = vadd.f32 %v4395, %v4507
    %v4509 = vpop.f32.mrb[0].mxu0
    %v4510 = vadd.f32 %v4397, %v4509
    %v4511 = vpop.f32.mrb[0].mxu0
    %v4512 = vadd.f32 %v4399, %v4511
    %v4513 = vpop.f32.mrb[0].mxu0
    %v4514 = vadd.f32 %v4401, %v4513
    %4515 = vmatprep.mubr.bf16.mxu0 0
    %4516 = vmatmul.mubr.bf16.gmra.mrb[0].mxu0 %v891
    %v4517 = vpop.f32.mrb[0].mxu0
    %v4518 = vadd.f32 %v4405, %v4517
    %v4519 = vpop.f32.mrb[0].mxu0
    %v4520 = vadd.f32 %v4407, %v4519
    %v4521 = vpop.f32.mrb[0].mxu0
    %v4522 = vadd.f32 %v4409, %v4521
    %v4523 = vpop.f32.mrb[0].mxu0
    %v4524 = vadd.f32 %v4411, %v4523
    %4525 = vmatprep.mubr.bf16.mxu0 0
    %4526 = vmatmul.mubr.bf16.gmra.mrb[0].mxu0 %v898
    %v4527 = vpop.f32.mrb[0].mxu0
    %v4528 = vadd.f32 %v4415, %v4527
    %v4529 = vpop.f32.mrb[0].mxu0
    %v4530 = vadd.f32 %v4417, %v4529
    %v4531 = vpop.f32.mrb[0].mxu0
    %v4532 = vadd.f32 %v4419, %v4531
    %v4533 = vpop.f32.mrb[0].mxu0
    %v4534 = vadd.f32 %v4421, %v4533
    %4535 = vmatprep.mubr.bf16.mxu0 0
    %4536 = vmatmul.mubr.bf16.gmra.mrb[0].mxu0 %v905
    %v4537 = vpop.f32.mrb[0].mxu0
    %v4538 = vadd.f32 %v4425, %v4537
    %v4539 = vpop.f32.mrb[0].mxu0
    %v4540 = vadd.f32 %v4427, %v4539
    %v4541 = vpop.f32.mrb[0].mxu0
    %v4542 = vadd.f32 %v4429, %v4541
    %v4543 = vpop.f32.mrb[0].mxu0
    %v4544 = vadd.f32 %v4431, %v4543
    %4545 = vmatprep.mubr.bf16.mxu0 0
    %4546 = vmatmul.mubr.bf16.gmra.mrb[0].mxu0 %v912
    %v4547 = vpop.f32.mrb[0].mxu0
    %v4548 = vadd.f32 %v4435, %v4547
    %v4549 = vpop.f32.mrb[0].mxu0
    %v4550 = vadd.f32 %v4437, %v4549
    %v4551 = vpop.f32.mrb[0].mxu0
    %v4552 = vadd.f32 %v4439, %v4551
    %v4553 = vpop.f32.mrb[0].mxu0
    %v4554 = vadd.f32 %v4441, %v4553
    %4555 = vmatprep.mubr.bf16.mxu0 0
    %4556 = vmatmul.mubr.bf16.gmra.mrb[0].mxu0 %v919
    %v4557 = vpop.f32.mrb[0].mxu0
    %v4558 = vadd.f32 %v4445, %v4557
    %v4559 = vpop.f32.mrb[0].mxu0
    %v4560 = vadd.f32 %v4447, %v4559
    %v4561 = vpop.f32.mrb[0].mxu0
    %v4562 = vadd.f32 %v4449, %v4561
    %v4563 = vpop.f32.mrb[0].mxu0
    %v4564 = vadd.f32 %v4451, %v4563
    %4565 = vmatprep.mubr.bf16.mxu0 0
    %4566 = vmatmul.mubr.bf16.gmra.mrb[0].mxu0 %v926
    %v4567 = vpop.f32.mrb[0].mxu0
    %v4568 = vadd.f32 %v4455, %v4567
    %v4569 = vpop.f32.mrb[0].mxu0
    %v4570 = vadd.f32 %v4457, %v4569
    %v4571 = vpop.f32.mrb[0].mxu0
    %v4572 = vadd.f32 %v4459, %v4571
    %v4573 = vpop.f32.mrb[0].mxu0
    %v4574 = vadd.f32 %v4461, %v4573
    %4575 = vmatprep.mubr.bf16.mxu0 0
    %4576 = vmatmul.mubr.bf16.gmra.mrb[0].mxu0 %v933
    %v4577 = vpop.f32.mrb[0].mxu0
    %v4578 = vadd.f32 %v4465, %v4577
    %v4579 = vpop.f32.mrb[0].mxu0
    %v4580 = vadd.f32 %v4467, %v4579
    %v4581 = vpop.f32.mrb[0].mxu0
    %v4582 = vadd.f32 %v4469, %v4581
    %v4583 = vpop.f32.mrb[0].mxu0
    %v4584 = vadd.f32 %v4471, %v4583
    %4585 = vdwg.mxu0
    %4586 = vmatprep.subr.bf16.mxu0 %v2341
    %4587 = vmatpush1.bf16.msra.mxu0 %v2340
    %4588 = vmatprep.subr.bf16.mxu0 %v2349
    %4589 = vmatpush1.bf16.msra.mxu0 %v2348
    %4590 = vmatprep.subr.bf16.mxu0 %v2357
    %4591 = vmatpush1.bf16.msra.mxu0 %v2356
    %4592 = vmatprep.subr.bf16.mxu0 %v2365
    %4593 = vmatpush1.bf16.msra.mxu0 %v2364
    %4594 = vmatprep.subr.bf16.mxu0 %v2373
    %4595 = vmatpush1.bf16.msra.mxu0 %v2372
    %4596 = vmatprep.subr.bf16.mxu0 %v2381
    %4597 = vmatpush1.bf16.msra.mxu0 %v2380
    %4598 = vmatprep.subr.bf16.mxu0 %v2389
    %4599 = vmatpush1.bf16.msra.mxu0 %v2388
    %4600 = vmatprep.subr.bf16.mxu0 %v2397
    %4601 = vmatpush1.bf16.msra.mxu0 %v2396
    %4602 = vmatprep.subr.bf16.mxu0 %v2405
    %4603 = vmatpush1.bf16.msra.mxu0 %v2404
    %4604 = vmatprep.subr.bf16.mxu0 %v2413
    %4605 = vmatpush1.bf16.msra.mxu0 %v2412
    %4606 = vmatprep.subr.bf16.mxu0 %v2421
    %4607 = vmatpush1.bf16.msra.mxu0 %v2420
    %4608 = vmatprep.subr.bf16.mxu0 %v2429
    %4609 = vmatpush1.bf16.msra.mxu0 %v2428
    %4610 = vmatprep.subr.bf16.mxu0 %v2437
    %4611 = vmatpush1.bf16.msra.mxu0 %v2436
    %4612 = vmatprep.subr.bf16.mxu0 %v2445
    %4613 = vmatpush1.bf16.msra.mxu0 %v2444
    %4614 = vmatprep.subr.bf16.mxu0 %v2453
    %4615 = vmatpush1.bf16.msra.mxu0 %v2452
    %4616 = vmatprep.subr.bf16.mxu0 %v2461
    %4617 = vmatpush1.bf16.msra.mxu0 %v2460
    %4618 = vmatprep.mubr.bf16.mxu0 %v879
    %4619 = vmatmul.mubr.bf16.gmra.mrb[0].mxu0 %v878
    %v4620 = vpop.f32.mrb[0].mxu0
    %v4621 = vadd.f32 %v689, %v4620
    %v4622 = vpop.f32.mrb[0].mxu0
    %v4623 = vadd.f32 %v693, %v4622
    %v4624 = vpop.f32.mrb[0].mxu0
    %v4625 = vadd.f32 %v689, %v4624
    %v4626 = vpop.f32.mrb[0].mxu0
    %v4627 = vadd.f32 %v693, %v4626
    %4628 = vmatprep.mubr.bf16.mxu0 %v886
    %4629 = vmatmul.mubr.bf16.gmra.mrb[0].mxu0 %v885
    %v4630 = vpop.f32.mrb[0].mxu0
    %v4631 = vadd.f32 %v689, %v4630
    %v4632 = vpop.f32.mrb[0].mxu0
    %v4633 = vadd.f32 %v693, %v4632
    %v4634 = vpop.f32.mrb[0].mxu0
    %v4635 = vadd.f32 %v689, %v4634
    %v4636 = vpop.f32.mrb[0].mxu0
    %v4637 = vadd.f32 %v693, %v4636
    %4638 = vmatprep.mubr.bf16.mxu0 %v893
    %4639 = vmatmul.mubr.bf16.gmra.mrb[0].mxu0 %v892
    %v4640 = vpop.f32.mrb[0].mxu0
    %v4641 = vadd.f32 %v689, %v4640
    %v4642 = vpop.f32.mrb[0].mxu0
    %v4643 = vadd.f32 %v693, %v4642
    %v4644 = vpop.f32.mrb[0].mxu0
    %v4645 = vadd.f32 %v689, %v4644
    %v4646 = vpop.f32.mrb[0].mxu0
    %v4647 = vadd.f32 %v693, %v4646
    %4648 = vmatprep.mubr.bf16.mxu0 %v900
    %4649 = vmatmul.mubr.bf16.gmra.mrb[0].mxu0 %v899
    %v4650 = vpop.f32.mrb[0].mxu0
    %v4651 = vadd.f32 %v689, %v4650
    %v4652 = vpop.f32.mrb[0].mxu0
    %v4653 = vadd.f32 %v693, %v4652
    %v4654 = vpop.f32.mrb[0].mxu0
    %v4655 = vadd.f32 %v689, %v4654
    %v4656 = vpop.f32.mrb[0].mxu0
    %v4657 = vadd.f32 %v693, %v4656
    %4658 = vmatprep.mubr.bf16.mxu0 %v907
    %4659 = vmatmul.mubr.bf16.gmra.mrb[0].mxu0 %v906
    %v4660 = vpop.f32.mrb[0].mxu0
    %v4661 = vadd.f32 %v689, %v4660
    %v4662 = vpop.f32.mrb[0].mxu0
    %v4663 = vadd.f32 %v693, %v4662
    %v4664 = vpop.f32.mrb[0].mxu0
    %v4665 = vadd.f32 %v689, %v4664
    %v4666 = vpop.f32.mrb[0].mxu0
    %v4667 = vadd.f32 %v693, %v4666
    %4668 = vmatprep.mubr.bf16.mxu0 %v914
    %4669 = vmatmul.mubr.bf16.gmra.mrb[0].mxu0 %v913
    %v4670 = vpop.f32.mrb[0].mxu0
    %v4671 = vadd.f32 %v689, %v4670
    %v4672 = vpop.f32.mrb[0].mxu0
    %v4673 = vadd.f32 %v693, %v4672
    %v4674 = vpop.f32.mrb[0].mxu0
    %v4675 = vadd.f32 %v689, %v4674
    %v4676 = vpop.f32.mrb[0].mxu0
    %v4677 = vadd.f32 %v693, %v4676
    %4678 = vmatprep.mubr.bf16.mxu0 %v921
    %4679 = vmatmul.mubr.bf16.gmra.mrb[0].mxu0 %v920
    %v4680 = vpop.f32.mrb[0].mxu0
    %v4681 = vadd.f32 %v689, %v4680
    %v4682 = vpop.f32.mrb[0].mxu0
    %v4683 = vadd.f32 %v693, %v4682
    %v4684 = vpop.f32.mrb[0].mxu0
    %v4685 = vadd.f32 %v689, %v4684
    %v4686 = vpop.f32.mrb[0].mxu0
    %v4687 = vadd.f32 %v693, %v4686
    %4688 = vmatprep.mubr.bf16.mxu0 %v928
    %4689 = vmatmul.mubr.bf16.gmra.mrb[0].mxu0 %v927
    %v4690 = vpop.f32.mrb[0].mxu0
    %v4691 = vadd.f32 %v689, %v4690
    %v4692 = vpop.f32.mrb[0].mxu0
    %v4693 = vadd.f32 %v693, %v4692
    %v4694 = vpop.f32.mrb[0].mxu0
    %v4695 = vadd.f32 %v689, %v4694
    %v4696 = vpop.f32.mrb[0].mxu0
    %v4697 = vadd.f32 %v693, %v4696
    %4698 = vdwg.mxu0
    %4699 = vmatprep.subr.bf16.mxu0 %v2469
    %4700 = vmatpush1.bf16.msra.mxu0 %v2468
    %4701 = vmatprep.subr.bf16.mxu0 %v2477
    %4702 = vmatpush1.bf16.msra.mxu0 %v2476
    %4703 = vmatprep.subr.bf16.mxu0 %v2485
    %4704 = vmatpush1.bf16.msra.mxu0 %v2484
    %4705 = vmatprep.subr.bf16.mxu0 %v2493
    %4706 = vmatpush1.bf16.msra.mxu0 %v2492
    %4707 = vmatprep.subr.bf16.mxu0 %v2501
    %4708 = vmatpush1.bf16.msra.mxu0 %v2500
    %4709 = vmatprep.subr.bf16.mxu0 %v2509
    %4710 = vmatpush1.bf16.msra.mxu0 %v2508
    %4711 = vmatprep.subr.bf16.mxu0 %v2517
    %4712 = vmatpush1.bf16.msra.mxu0 %v2516
    %4713 = vmatprep.subr.bf16.mxu0 %v2525
    %4714 = vmatpush1.bf16.msra.mxu0 %v2524
    %4715 = vmatprep.subr.bf16.mxu0 %v2533
    %4716 = vmatpush1.bf16.msra.mxu0 %v2532
    %4717 = vmatprep.subr.bf16.mxu0 %v2541
    %4718 = vmatpush1.bf16.msra.mxu0 %v2540
    %4719 = vmatprep.subr.bf16.mxu0 %v2549
    %4720 = vmatpush1.bf16.msra.mxu0 %v2548
    %4721 = vmatprep.subr.bf16.mxu0 %v2557
    %4722 = vmatpush1.bf16.msra.mxu0 %v2556
    %4723 = vmatprep.subr.bf16.mxu0 %v2565
    %4724 = vmatpush1.bf16.msra.mxu0 %v2564
    %4725 = vmatprep.subr.bf16.mxu0 %v2573
    %4726 = vmatpush1.bf16.msra.mxu0 %v2572
    %4727 = vmatprep.subr.bf16.mxu0 %v2581
    %4728 = vmatpush1.bf16.msra.mxu0 %v2580
    %4729 = vmatprep.subr.bf16.mxu0 %v2589
    %4730 = vmatpush1.bf16.msra.mxu0 %v2588
    %4731 = vmatprep.mubr.bf16.mxu0 %v881
    %4732 = vmatmul.mubr.bf16.gmra.mrb[0].mxu0 %v880
    %v4733 = vpop.f32.mrb[0].mxu0
    %v4734 = vadd.f32 %v4621, %v4733
    %v4735 = vpop.f32.mrb[0].mxu0
    %v4736 = vadd.f32 %v4623, %v4735
    %v4737 = vpop.f32.mrb[0].mxu0
    %v4738 = vadd.f32 %v4625, %v4737
    %v4739 = vpop.f32.mrb[0].mxu0
    %v4740 = vadd.f32 %v4627, %v4739
    %4741 = vmatprep.mubr.bf16.mxu0 %v888
    %4742 = vmatmul.mubr.bf16.gmra.mrb[0].mxu0 %v887
    %v4743 = vpop.f32.mrb[0].mxu0
    %v4744 = vadd.f32 %v4631, %v4743
    %v4745 = vpop.f32.mrb[0].mxu0
    %v4746 = vadd.f32 %v4633, %v4745
    %v4747 = vpop.f32.mrb[0].mxu0
    %v4748 = vadd.f32 %v4635, %v4747
    %v4749 = vpop.f32.mrb[0].mxu0
    %v4750 = vadd.f32 %v4637, %v4749
    %4751 = vmatprep.mubr.bf16.mxu0 %v895
    %4752 = vmatmul.mubr.bf16.gmra.mrb[0].mxu0 %v894
    %v4753 = vpop.f32.mrb[0].mxu0
    %v4754 = vadd.f32 %v4641, %v4753
    %v4755 = vpop.f32.mrb[0].mxu0
    %v4756 = vadd.f32 %v4643, %v4755
    %v4757 = vpop.f32.mrb[0].mxu0
    %v4758 = vadd.f32 %v4645, %v4757
    %v4759 = vpop.f32.mrb[0].mxu0
    %v4760 = vadd.f32 %v4647, %v4759
    %4761 = vmatprep.mubr.bf16.mxu0 %v902
    %4762 = vmatmul.mubr.bf16.gmra.mrb[0].mxu0 %v901
    %v4763 = vpop.f32.mrb[0].mxu0
    %v4764 = vadd.f32 %v4651, %v4763
    %v4765 = vpop.f32.mrb[0].mxu0
    %v4766 = vadd.f32 %v4653, %v4765
    %v4767 = vpop.f32.mrb[0].mxu0
    %v4768 = vadd.f32 %v4655, %v4767
    %v4769 = vpop.f32.mrb[0].mxu0
    %v4770 = vadd.f32 %v4657, %v4769
    %4771 = vmatprep.mubr.bf16.mxu0 %v909
    %4772 = vmatmul.mubr.bf16.gmra.mrb[0].mxu0 %v908
    %v4773 = vpop.f32.mrb[0].mxu0
    %v4774 = vadd.f32 %v4661, %v4773
    %v4775 = vpop.f32.mrb[0].mxu0
    %v4776 = vadd.f32 %v4663, %v4775
    %v4777 = vpop.f32.mrb[0].mxu0
    %v4778 = vadd.f32 %v4665, %v4777
    %v4779 = vpop.f32.mrb[0].mxu0
    %v4780 = vadd.f32 %v4667, %v4779
    %4781 = vmatprep.mubr.bf16.mxu0 %v916
    %4782 = vmatmul.mubr.bf16.gmra.mrb[0].mxu0 %v915
    %v4783 = vpop.f32.mrb[0].mxu0
    %v4784 = vadd.f32 %v4671, %v4783
    %v4785 = vpop.f32.mrb[0].mxu0
    %v4786 = vadd.f32 %v4673, %v4785
    %v4787 = vpop.f32.mrb[0].mxu0
    %v4788 = vadd.f32 %v4675, %v4787
    %v4789 = vpop.f32.mrb[0].mxu0
    %v4790 = vadd.f32 %v4677, %v4789
    %4791 = vmatprep.mubr.bf16.mxu0 %v923
    %4792 = vmatmul.mubr.bf16.gmra.mrb[0].mxu0 %v922
    %v4793 = vpop.f32.mrb[0].mxu0
    %v4794 = vadd.f32 %v4681, %v4793
    %v4795 = vpop.f32.mrb[0].mxu0
    %v4796 = vadd.f32 %v4683, %v4795
    %v4797 = vpop.f32.mrb[0].mxu0
    %v4798 = vadd.f32 %v4685, %v4797
    %v4799 = vpop.f32.mrb[0].mxu0
    %v4800 = vadd.f32 %v4687, %v4799
    %4801 = vmatprep.mubr.bf16.mxu0 %v930
    %4802 = vmatmul.mubr.bf16.gmra.mrb[0].mxu0 %v929
    %v4803 = vpop.f32.mrb[0].mxu0
    %v4804 = vadd.f32 %v4691, %v4803
    %v4805 = vpop.f32.mrb[0].mxu0
    %v4806 = vadd.f32 %v4693, %v4805
    %v4807 = vpop.f32.mrb[0].mxu0
    %v4808 = vadd.f32 %v4695, %v4807
    %v4809 = vpop.f32.mrb[0].mxu0
    %v4810 = vadd.f32 %v4697, %v4809
    %4811 = vdwg.mxu0
    %4812 = vmatprep.subr.bf16.mxu0 %v2597
    %4813 = vmatpush1.bf16.msra.mxu0 %v2596
    %4814 = vmatprep.subr.bf16.mxu0 %v2605
    %4815 = vmatpush1.bf16.msra.mxu0 %v2604
    %4816 = vmatprep.subr.bf16.mxu0 %v2613
    %4817 = vmatpush1.bf16.msra.mxu0 %v2612
    %4818 = vmatprep.subr.bf16.mxu0 %v2621
    %4819 = vmatpush1.bf16.msra.mxu0 %v2620
    %4820 = vmatprep.subr.bf16.mxu0 %v2629
    %4821 = vmatpush1.bf16.msra.mxu0 %v2628
    %4822 = vmatprep.subr.bf16.mxu0 %v2637
    %4823 = vmatpush1.bf16.msra.mxu0 %v2636
    %4824 = vmatprep.subr.bf16.mxu0 %v2645
    %4825 = vmatpush1.bf16.msra.mxu0 %v2644
    %4826 = vmatprep.subr.bf16.mxu0 %v2653
    %4827 = vmatpush1.bf16.msra.mxu0 %v2652
    %4828 = vmatprep.subr.bf16.mxu0 %v2661
    %4829 = vmatpush1.bf16.msra.mxu0 %v2660
    %4830 = vmatprep.subr.bf16.mxu0 %v2669
    %4831 = vmatpush1.bf16.msra.mxu0 %v2668
    %4832 = vmatprep.subr.bf16.mxu0 %v2677
    %4833 = vmatpush1.bf16.msra.mxu0 %v2676
    %4834 = vmatprep.subr.bf16.mxu0 %v2685
    %4835 = vmatpush1.bf16.msra.mxu0 %v2684
    %4836 = vmatprep.subr.bf16.mxu0 %v2693
    %4837 = vmatpush1.bf16.msra.mxu0 %v2692
    %4838 = vmatprep.subr.bf16.mxu0 %v2701
    %4839 = vmatpush1.bf16.msra.mxu0 %v2700
    %4840 = vmatprep.subr.bf16.mxu0 %v2709
    %4841 = vmatpush1.bf16.msra.mxu0 %v2708
    %4842 = vmatprep.subr.bf16.mxu0 %v2717
    %4843 = vmatpush1.bf16.msra.mxu0 %v2716
    %4844 = vmatprep.mubr.bf16.mxu0 %v883
    %4845 = vmatmul.mubr.bf16.gmra.mrb[0].mxu0 %v882
    %v4846 = vpop.f32.mrb[0].mxu0
    %v4847 = vadd.f32 %v4734, %v4846
    %v4848 = vpop.f32.mrb[0].mxu0
    %v4849 = vadd.f32 %v4736, %v4848
    %v4850 = vpop.f32.mrb[0].mxu0
    %v4851 = vadd.f32 %v4738, %v4850
    %v4852 = vpop.f32.mrb[0].mxu0
    %v4853 = vadd.f32 %v4740, %v4852
    %4854 = vmatprep.mubr.bf16.mxu0 %v890
    %4855 = vmatmul.mubr.bf16.gmra.mrb[0].mxu0 %v889
    %v4856 = vpop.f32.mrb[0].mxu0
    %v4857 = vadd.f32 %v4744, %v4856
    %v4858 = vpop.f32.mrb[0].mxu0
    %v4859 = vadd.f32 %v4746, %v4858
    %v4860 = vpop.f32.mrb[0].mxu0
    %v4861 = vadd.f32 %v4748, %v4860
    %v4862 = vpop.f32.mrb[0].mxu0
    %v4863 = vadd.f32 %v4750, %v4862
    %4864 = vmatprep.mubr.bf16.mxu0 %v897
    %4865 = vmatmul.mubr.bf16.gmra.mrb[0].mxu0 %v896
    %v4866 = vpop.f32.mrb[0].mxu0
    %v4867 = vadd.f32 %v4754, %v4866
    %v4868 = vpop.f32.mrb[0].mxu0
    %v4869 = vadd.f32 %v4756, %v4868
    %v4870 = vpop.f32.mrb[0].mxu0
    %v4871 = vadd.f32 %v4758, %v4870
    %v4872 = vpop.f32.mrb[0].mxu0
    %v4873 = vadd.f32 %v4760, %v4872
    %4874 = vmatprep.mubr.bf16.mxu0 %v904
    %4875 = vmatmul.mubr.bf16.gmra.mrb[0].mxu0 %v903
    %v4876 = vpop.f32.mrb[0].mxu0
    %v4877 = vadd.f32 %v4764, %v4876
    %v4878 = vpop.f32.mrb[0].mxu0
    %v4879 = vadd.f32 %v4766, %v4878
    %v4880 = vpop.f32.mrb[0].mxu0
    %v4881 = vadd.f32 %v4768, %v4880
    %v4882 = vpop.f32.mrb[0].mxu0
    %v4883 = vadd.f32 %v4770, %v4882
    %4884 = vmatprep.mubr.bf16.mxu0 %v911
    %4885 = vmatmul.mubr.bf16.gmra.mrb[0].mxu0 %v910
    %v4886 = vpop.f32.mrb[0].mxu0
    %v4887 = vadd.f32 %v4774, %v4886
    %v4888 = vpop.f32.mrb[0].mxu0
    %v4889 = vadd.f32 %v4776, %v4888
    %v4890 = vpop.f32.mrb[0].mxu0
    %v4891 = vadd.f32 %v4778, %v4890
    %v4892 = vpop.f32.mrb[0].mxu0
    %v4893 = vadd.f32 %v4780, %v4892
    %4894 = vmatprep.mubr.bf16.mxu0 %v918
    %4895 = vmatmul.mubr.bf16.gmra.mrb[0].mxu0 %v917
    %v4896 = vpop.f32.mrb[0].mxu0
    %v4897 = vadd.f32 %v4784, %v4896
    %v4898 = vpop.f32.mrb[0].mxu0
    %v4899 = vadd.f32 %v4786, %v4898
    %v4900 = vpop.f32.mrb[0].mxu0
    %v4901 = vadd.f32 %v4788, %v4900
    %v4902 = vpop.f32.mrb[0].mxu0
    %v4903 = vadd.f32 %v4790, %v4902
    %4904 = vmatprep.mubr.bf16.mxu0 %v925
    %4905 = vmatmul.mubr.bf16.gmra.mrb[0].mxu0 %v924
    %v4906 = vpop.f32.mrb[0].mxu0
    %v4907 = vadd.f32 %v4794, %v4906
    %v4908 = vpop.f32.mrb[0].mxu0
    %v4909 = vadd.f32 %v4796, %v4908
    %v4910 = vpop.f32.mrb[0].mxu0
    %v4911 = vadd.f32 %v4798, %v4910
    %v4912 = vpop.f32.mrb[0].mxu0
    %v4913 = vadd.f32 %v4800, %v4912
    %4914 = vmatprep.mubr.bf16.mxu0 %v932
    %4915 = vmatmul.mubr.bf16.gmra.mrb[0].mxu0 %v931
    %v4916 = vpop.f32.mrb[0].mxu0
    %v4917 = vadd.f32 %v4804, %v4916
    %v4918 = vpop.f32.mrb[0].mxu0
    %v4919 = vadd.f32 %v4806, %v4918
    %v4920 = vpop.f32.mrb[0].mxu0
    %v4921 = vadd.f32 %v4808, %v4920
    %v4922 = vpop.f32.mrb[0].mxu0
    %v4923 = vadd.f32 %v4810, %v4922
    %4924 = vdwg.mxu0
    %4925 = vmatprep.subr.bf16.mxu0 %v2725
    %4926 = vmatpush1.bf16.msra.mxu0 %v2724
    %4927 = vmatprep.subr.bf16.mxu0 %v2733
    %4928 = vmatpush1.bf16.msra.mxu0 %v2732
    %4929 = vmatprep.subr.bf16.mxu0 %v2741
    %4930 = vmatpush1.bf16.msra.mxu0 %v2740
    %4931 = vmatprep.subr.bf16.mxu0 %v2749
    %4932 = vmatpush1.bf16.msra.mxu0 %v2748
    %4933 = vmatprep.subr.bf16.mxu0 %v2757
    %4934 = vmatpush1.bf16.msra.mxu0 %v2756
    %4935 = vmatprep.subr.bf16.mxu0 %v2765
    %4936 = vmatpush1.bf16.msra.mxu0 %v2764
    %4937 = vmatprep.subr.bf16.mxu0 %v2773
    %4938 = vmatpush1.bf16.msra.mxu0 %v2772
    %4939 = vmatprep.subr.bf16.mxu0 %v2781
    %4940 = vmatpush1.bf16.msra.mxu0 %v2780
    %4941 = vmatprep.subr.bf16.mxu0 0
    %4942 = vmatpush1.bf16.msra.mxu0 0
    %4943 = vmatprep.subr.bf16.mxu0 0
    %4944 = vmatpush1.bf16.msra.mxu0 0
    %4945 = vmatprep.subr.bf16.mxu0 0
    %4946 = vmatpush1.bf16.msra.mxu0 0
    %4947 = vmatprep.subr.bf16.mxu0 0
    %4948 = vmatpush1.bf16.msra.mxu0 0
    %4949 = vmatprep.subr.bf16.mxu0 0
    %4950 = vmatpush1.bf16.msra.mxu0 0
    %4951 = vmatprep.subr.bf16.mxu0 0
    %4952 = vmatpush1.bf16.msra.mxu0 0
    %4953 = vmatprep.subr.bf16.mxu0 0
    %4954 = vmatpush1.bf16.msra.mxu0 0
    %4955 = vmatprep.subr.bf16.mxu0 0
    %4956 = vmatpush1.bf16.msra.mxu0 0
    %4957 = vmatprep.mubr.bf16.mxu0 0
    %4958 = vmatmul.mubr.bf16.gmra.mrb[0].mxu0 %v884
    %v4959 = vpop.f32.mrb[0].mxu0
    %v4960 = vadd.f32 %v4847, %v4959
    %v4961 = vpop.f32.mrb[0].mxu0
    %v4962 = vadd.f32 %v4849, %v4961
    %v4963 = vpop.f32.mrb[0].mxu0
    %v4964 = vadd.f32 %v4851, %v4963
    %v4965 = vpop.f32.mrb[0].mxu0
    %v4966 = vadd.f32 %v4853, %v4965
    %4967 = vmatprep.mubr.bf16.mxu0 0
    %4968 = vmatmul.mubr.bf16.gmra.mrb[0].mxu0 %v891
    %v4969 = vpop.f32.mrb[0].mxu0
    %v4970 = vadd.f32 %v4857, %v4969
    %v4971 = vpop.f32.mrb[0].mxu0
    %v4972 = vadd.f32 %v4859, %v4971
    %v4973 = vpop.f32.mrb[0].mxu0
    %v4974 = vadd.f32 %v4861, %v4973
    %v4975 = vpop.f32.mrb[0].mxu0
    %v4976 = vadd.f32 %v4863, %v4975
    %4977 = vmatprep.mubr.bf16.mxu0 0
    %4978 = vmatmul.mubr.bf16.gmra.mrb[0].mxu0 %v898
    %v4979 = vpop.f32.mrb[0].mxu0
    %v4980 = vadd.f32 %v4867, %v4979
    %v4981 = vpop.f32.mrb[0].mxu0
    %v4982 = vadd.f32 %v4869, %v4981
    %v4983 = vpop.f32.mrb[0].mxu0
    %v4984 = vadd.f32 %v4871, %v4983
    %v4985 = vpop.f32.mrb[0].mxu0
    %v4986 = vadd.f32 %v4873, %v4985
    %4987 = vmatprep.mubr.bf16.mxu0 0
    %4988 = vmatmul.mubr.bf16.gmra.mrb[0].mxu0 %v905
    %v4989 = vpop.f32.mrb[0].mxu0
    %v4990 = vadd.f32 %v4877, %v4989
    %v4991 = vpop.f32.mrb[0].mxu0
    %v4992 = vadd.f32 %v4879, %v4991
    %v4993 = vpop.f32.mrb[0].mxu0
    %v4994 = vadd.f32 %v4881, %v4993
    %v4995 = vpop.f32.mrb[0].mxu0
    %v4996 = vadd.f32 %v4883, %v4995
    %4997 = vmatprep.mubr.bf16.mxu0 0
    %4998 = vmatmul.mubr.bf16.gmra.mrb[0].mxu0 %v912
    %v4999 = vpop.f32.mrb[0].mxu0
    %v5000 = vadd.f32 %v4887, %v4999
    %v5001 = vpop.f32.mrb[0].mxu0
    %v5002 = vadd.f32 %v4889, %v5001
    %v5003 = vpop.f32.mrb[0].mxu0
    %v5004 = vadd.f32 %v4891, %v5003
    %v5005 = vpop.f32.mrb[0].mxu0
    %v5006 = vadd.f32 %v4893, %v5005
    %5007 = vmatprep.mubr.bf16.mxu0 0
    %5008 = vmatmul.mubr.bf16.gmra.mrb[0].mxu0 %v919
    %v5009 = vpop.f32.mrb[0].mxu0
    %v5010 = vadd.f32 %v4897, %v5009
    %v5011 = vpop.f32.mrb[0].mxu0
    %v5012 = vadd.f32 %v4899, %v5011
    %v5013 = vpop.f32.mrb[0].mxu0
    %v5014 = vadd.f32 %v4901, %v5013
    %v5015 = vpop.f32.mrb[0].mxu0
    %v5016 = vadd.f32 %v4903, %v5015
    %5017 = vmatprep.mubr.bf16.mxu0 0
    %5018 = vmatmul.mubr.bf16.gmra.mrb[0].mxu0 %v926
    %v5019 = vpop.f32.mrb[0].mxu0
    %v5020 = vadd.f32 %v4907, %v5019
    %v5021 = vpop.f32.mrb[0].mxu0
    %v5022 = vadd.f32 %v4909, %v5021
    %v5023 = vpop.f32.mrb[0].mxu0
    %v5024 = vadd.f32 %v4911, %v5023
    %v5025 = vpop.f32.mrb[0].mxu0
    %v5026 = vadd.f32 %v4913, %v5025
    %5027 = vmatprep.mubr.bf16.mxu0 0
    %5028 = vmatmul.mubr.bf16.gmra.mrb[0].mxu0 %v933
    %v5029 = vpop.f32.mrb[0].mxu0
    %v5030 = vadd.f32 %v4917, %v5029
    %v5031 = vpop.f32.mrb[0].mxu0
    %v5032 = vadd.f32 %v4919, %v5031
    %v5033 = vpop.f32.mrb[0].mxu0
    %v5034 = vadd.f32 %v4921, %v5033
    %v5035 = vpop.f32.mrb[0].mxu0
    %v5036 = vadd.f32 %v4923, %v5035
    %5037 = vdwg.mxu0
    %vm5038 = vcmp.gt.f32.partialorder %v3604, 0.0
    %vm5039 = vcmp.gt.f32.partialorder %v3606, 0.0
    %vm5040 = vcmp.gt.f32.partialorder %v4056, 0.0
    %vm5041 = vcmp.gt.f32.partialorder %v4058, 0.0
    %vm5042 = vcmp.gt.f32.partialorder %v4508, 0.0
    %vm5043 = vcmp.gt.f32.partialorder %v4510, 0.0
    %vm5044 = vcmp.gt.f32.partialorder %v4960, 0.0
    %vm5045 = vcmp.gt.f32.partialorder %v4962, 0.0
    %vm5046 = vcmp.gt.f32.partialorder %v3608, 0.0
    %vm5047 = vcmp.gt.f32.partialorder %v3610, 0.0
    %vm5048 = vcmp.gt.f32.partialorder %v4060, 0.0
    %vm5049 = vcmp.gt.f32.partialorder %v4062, 0.0
    %vm5050 = vcmp.gt.f32.partialorder %v4512, 0.0
    %vm5051 = vcmp.gt.f32.partialorder %v4514, 0.0
    %vm5052 = vcmp.gt.f32.partialorder %v4964, 0.0
    %vm5053 = vcmp.gt.f32.partialorder %v4966, 0.0
    %vm5054 = vcmp.gt.f32.partialorder %v3614, 0.0
    %vm5055 = vcmp.gt.f32.partialorder %v3616, 0.0
    %vm5056 = vcmp.gt.f32.partialorder %v4066, 0.0
    %vm5057 = vcmp.gt.f32.partialorder %v4068, 0.0
    %vm5058 = vcmp.gt.f32.partialorder %v4518, 0.0
    %vm5059 = vcmp.gt.f32.partialorder %v4520, 0.0
    %vm5060 = vcmp.gt.f32.partialorder %v4970, 0.0
    %vm5061 = vcmp.gt.f32.partialorder %v4972, 0.0
    %vm5062 = vcmp.gt.f32.partialorder %v3618, 0.0
    %vm5063 = vcmp.gt.f32.partialorder %v3620, 0.0
    %vm5064 = vcmp.gt.f32.partialorder %v4070, 0.0
    %vm5065 = vcmp.gt.f32.partialorder %v4072, 0.0
    %vm5066 = vcmp.gt.f32.partialorder %v4522, 0.0
    %vm5067 = vcmp.gt.f32.partialorder %v4524, 0.0
    %vm5068 = vcmp.gt.f32.partialorder %v4974, 0.0
    %vm5069 = vcmp.gt.f32.partialorder %v4976, 0.0
    %vm5070 = vcmp.gt.f32.partialorder %v3624, 0.0
    %vm5071 = vcmp.gt.f32.partialorder %v3626, 0.0
    %vm5072 = vcmp.gt.f32.partialorder %v4076, 0.0
    %vm5073 = vcmp.gt.f32.partialorder %v4078, 0.0
    %vm5074 = vcmp.gt.f32.partialorder %v4528, 0.0
    %vm5075 = vcmp.gt.f32.partialorder %v4530, 0.0
    %vm5076 = vcmp.gt.f32.partialorder %v4980, 0.0
    %vm5077 = vcmp.gt.f32.partialorder %v4982, 0.0
    %vm5078 = vcmp.gt.f32.partialorder %v3628, 0.0
    %vm5079 = vcmp.gt.f32.partialorder %v3630, 0.0
    %vm5080 = vcmp.gt.f32.partialorder %v4080, 0.0
    %vm5081 = vcmp.gt.f32.partialorder %v4082, 0.0
    %vm5082 = vcmp.gt.f32.partialorder %v4532, 0.0
    %vm5083 = vcmp.gt.f32.partialorder %v4534, 0.0
    %vm5084 = vcmp.gt.f32.partialorder %v4984, 0.0
    %vm5085 = vcmp.gt.f32.partialorder %v4986, 0.0
    %vm5086 = vcmp.gt.f32.partialorder %v3634, 0.0
    %vm5087 = vcmp.gt.f32.partialorder %v3636, 0.0
    %vm5088 = vcmp.gt.f32.partialorder %v4086, 0.0
    %vm5089 = vcmp.gt.f32.partialorder %v4088, 0.0
    %vm5090 = vcmp.gt.f32.partialorder %v4538, 0.0
    %vm5091 = vcmp.gt.f32.partialorder %v4540, 0.0
    %vm5092 = vcmp.gt.f32.partialorder %v4990, 0.0
    %vm5093 = vcmp.gt.f32.partialorder %v4992, 0.0
    %vm5094 = vcmp.gt.f32.partialorder %v3638, 0.0
    %vm5095 = vcmp.gt.f32.partialorder %v3640, 0.0
    %vm5096 = vcmp.gt.f32.partialorder %v4090, 0.0
    %vm5097 = vcmp.gt.f32.partialorder %v4092, 0.0
    %vm5098 = vcmp.gt.f32.partialorder %v4542, 0.0
    %vm5099 = vcmp.gt.f32.partialorder %v4544, 0.0
    %vm5100 = vcmp.gt.f32.partialorder %v4994, 0.0
    %vm5101 = vcmp.gt.f32.partialorder %v4996, 0.0
    %vm5102 = vcmp.gt.f32.partialorder %v3644, 0.0
    %vm5103 = vcmp.gt.f32.partialorder %v3646, 0.0
    %vm5104 = vcmp.gt.f32.partialorder %v4096, 0.0
    %vm5105 = vcmp.gt.f32.partialorder %v4098, 0.0
    %vm5106 = vcmp.gt.f32.partialorder %v4548, 0.0
    %vm5107 = vcmp.gt.f32.partialorder %v4550, 0.0
    %vm5108 = vcmp.gt.f32.partialorder %v5000, 0.0
    %vm5109 = vcmp.gt.f32.partialorder %v5002, 0.0
    %vm5110 = vcmp.gt.f32.partialorder %v3648, 0.0
    %vm5111 = vcmp.gt.f32.partialorder %v3650, 0.0
    %vm5112 = vcmp.gt.f32.partialorder %v4100, 0.0
    %vm5113 = vcmp.gt.f32.partialorder %v4102, 0.0
    %vm5114 = vcmp.gt.f32.partialorder %v4552, 0.0
    %vm5115 = vcmp.gt.f32.partialorder %v4554, 0.0
    %vm5116 = vcmp.gt.f32.partialorder %v5004, 0.0
    %vm5117 = vcmp.gt.f32.partialorder %v5006, 0.0
    %vm5118 = vcmp.gt.f32.partialorder %v3654, 0.0
    %vm5119 = vcmp.gt.f32.partialorder %v3656, 0.0
    %vm5120 = vcmp.gt.f32.partialorder %v4106, 0.0
    %vm5121 = vcmp.gt.f32.partialorder %v4108, 0.0
    %vm5122 = vcmp.gt.f32.partialorder %v4558, 0.0
    %vm5123 = vcmp.gt.f32.partialorder %v4560, 0.0
    %vm5124 = vcmp.gt.f32.partialorder %v5010, 0.0
    %vm5125 = vcmp.gt.f32.partialorder %v5012, 0.0
    %vm5126 = vcmp.gt.f32.partialorder %v3658, 0.0
    %vm5127 = vcmp.gt.f32.partialorder %v3660, 0.0
    %vm5128 = vcmp.gt.f32.partialorder %v4110, 0.0
    %vm5129 = vcmp.gt.f32.partialorder %v4112, 0.0
    %vm5130 = vcmp.gt.f32.partialorder %v4562, 0.0
    %vm5131 = vcmp.gt.f32.partialorder %v4564, 0.0
    %vm5132 = vcmp.gt.f32.partialorder %v5014, 0.0
    %vm5133 = vcmp.gt.f32.partialorder %v5016, 0.0
    %vm5134 = vcmp.gt.f32.partialorder %v3664, 0.0
    %vm5135 = vcmp.gt.f32.partialorder %v3666, 0.0
    %vm5136 = vcmp.gt.f32.partialorder %v4116, 0.0
    %vm5137 = vcmp.gt.f32.partialorder %v4118, 0.0
    %vm5138 = vcmp.gt.f32.partialorder %v4568, 0.0
    %vm5139 = vcmp.gt.f32.partialorder %v4570, 0.0
    %vm5140 = vcmp.gt.f32.partialorder %v5020, 0.0
    %vm5141 = vcmp.gt.f32.partialorder %v5022, 0.0
    %vm5142 = vcmp.gt.f32.partialorder %v3668, 0.0
    %vm5143 = vcmp.gt.f32.partialorder %v3670, 0.0
    %vm5144 = vcmp.gt.f32.partialorder %v4120, 0.0
    %vm5145 = vcmp.gt.f32.partialorder %v4122, 0.0
    %vm5146 = vcmp.gt.f32.partialorder %v4572, 0.0
    %vm5147 = vcmp.gt.f32.partialorder %v4574, 0.0
    %vm5148 = vcmp.gt.f32.partialorder %v5024, 0.0
    %vm5149 = vcmp.gt.f32.partialorder %v5026, 0.0
    %vm5150 = vcmp.gt.f32.partialorder %v3674, 0.0
    %vm5151 = vcmp.gt.f32.partialorder %v3676, 0.0
    %vm5152 = vcmp.gt.f32.partialorder %v4126, 0.0
    %vm5153 = vcmp.gt.f32.partialorder %v4128, 0.0
    %vm5154 = vcmp.gt.f32.partialorder %v4578, 0.0
    %vm5155 = vcmp.gt.f32.partialorder %v4580, 0.0
    %vm5156 = vcmp.gt.f32.partialorder %v5030, 0.0
    %vm5157 = vcmp.gt.f32.partialorder %v5032, 0.0
    %vm5158 = vcmp.gt.f32.partialorder %v3678, 0.0
    %vm5159 = vcmp.gt.f32.partialorder %v3680, 0.0
    %vm5160 = vcmp.gt.f32.partialorder %v4130, 0.0
    %vm5161 = vcmp.gt.f32.partialorder %v4132, 0.0
    %vm5162 = vcmp.gt.f32.partialorder %v4582, 0.0
    %vm5163 = vcmp.gt.f32.partialorder %v4584, 0.0
    %vm5164 = vcmp.gt.f32.partialorder %v5034, 0.0
    %vm5165 = vcmp.gt.f32.partialorder %v5036, 0.0
    %v5166 = vmul.f32 %v3604, 0.2
    %v5167 = vmul.f32 %v3606, 0.2
    %v5168 = vmul.f32 %v4056, 0.2
    %v5169 = vmul.f32 %v4058, 0.2
    %v5170 = vmul.f32 %v4508, 0.2
    %v5171 = vmul.f32 %v4510, 0.2
    %v5172 = vmul.f32 %v4960, 0.2
    %v5173 = vmul.f32 %v4962, 0.2
    %v5174 = vmul.f32 %v3608, 0.2
    %v5175 = vmul.f32 %v3610, 0.2
    %v5176 = vmul.f32 %v4060, 0.2
    %v5177 = vmul.f32 %v4062, 0.2
    %v5178 = vmul.f32 %v4512, 0.2
    %v5179 = vmul.f32 %v4514, 0.2
    %v5180 = vmul.f32 %v4964, 0.2
    %v5181 = vmul.f32 %v4966, 0.2
    %v5182 = vmul.f32 %v3614, 0.2
    %v5183 = vmul.f32 %v3616, 0.2
    %v5184 = vmul.f32 %v4066, 0.2
    %v5185 = vmul.f32 %v4068, 0.2
    %v5186 = vmul.f32 %v4518, 0.2
    %v5187 = vmul.f32 %v4520, 0.2
    %v5188 = vmul.f32 %v4970, 0.2
    %v5189 = vmul.f32 %v4972, 0.2
    %v5190 = vmul.f32 %v3618, 0.2
    %v5191 = vmul.f32 %v3620, 0.2
    %v5192 = vmul.f32 %v4070, 0.2
    %v5193 = vmul.f32 %v4072, 0.2
    %v5194 = vmul.f32 %v4522, 0.2
    %v5195 = vmul.f32 %v4524, 0.2
    %v5196 = vmul.f32 %v4974, 0.2
    %v5197 = vmul.f32 %v4976, 0.2
    %v5198 = vmul.f32 %v3624, 0.2
    %v5199 = vmul.f32 %v3626, 0.2
    %v5200 = vmul.f32 %v4076, 0.2
    %v5201 = vmul.f32 %v4078, 0.2
    %v5202 = vmul.f32 %v4528, 0.2
    %v5203 = vmul.f32 %v4530, 0.2
    %v5204 = vmul.f32 %v4980, 0.2
    %v5205 = vmul.f32 %v4982, 0.2
    %v5206 = vmul.f32 %v3628, 0.2
    %v5207 = vmul.f32 %v3630, 0.2
    %v5208 = vmul.f32 %v4080, 0.2
    %v5209 = vmul.f32 %v4082, 0.2
    %v5210 = vmul.f32 %v4532, 0.2
    %v5211 = vmul.f32 %v4534, 0.2
    %v5212 = vmul.f32 %v4984, 0.2
    %v5213 = vmul.f32 %v4986, 0.2
    %v5214 = vmul.f32 %v3634, 0.2
    %v5215 = vmul.f32 %v3636, 0.2
    %v5216 = vmul.f32 %v4086, 0.2
    %v5217 = vmul.f32 %v4088, 0.2
    %v5218 = vmul.f32 %v4538, 0.2
    %v5219 = vmul.f32 %v4540, 0.2
    %v5220 = vmul.f32 %v4990, 0.2
    %v5221 = vmul.f32 %v4992, 0.2
    %v5222 = vmul.f32 %v3638, 0.2
    %v5223 = vmul.f32 %v3640, 0.2
    %v5224 = vmul.f32 %v4090, 0.2
    %v5225 = vmul.f32 %v4092, 0.2
    %v5226 = vmul.f32 %v4542, 0.2
    %v5227 = vmul.f32 %v4544, 0.2
    %v5228 = vmul.f32 %v4994, 0.2
    %v5229 = vmul.f32 %v4996, 0.2
    %v5230 = vmul.f32 %v3644, 0.2
    %v5231 = vmul.f32 %v3646, 0.2
    %v5232 = vmul.f32 %v4096, 0.2
    %v5233 = vmul.f32 %v4098, 0.2
    %v5234 = vmul.f32 %v4548, 0.2
    %v5235 = vmul.f32 %v4550, 0.2
    %v5236 = vmul.f32 %v5000, 0.2
    %v5237 = vmul.f32 %v5002, 0.2
    %v5238 = vmul.f32 %v3648, 0.2
    %v5239 = vmul.f32 %v3650, 0.2
    %v5240 = vmul.f32 %v4100, 0.2
    %v5241 = vmul.f32 %v4102, 0.2
    %v5242 = vmul.f32 %v4552, 0.2
    %v5243 = vmul.f32 %v4554, 0.2
    %v5244 = vmul.f32 %v5004, 0.2
    %v5245 = vmul.f32 %v5006, 0.2
    %v5246 = vmul.f32 %v3654, 0.2
    %v5247 = vmul.f32 %v3656, 0.2
    %v5248 = vmul.f32 %v4106, 0.2
    %v5249 = vmul.f32 %v4108, 0.2
    %v5250 = vmul.f32 %v4558, 0.2
    %v5251 = vmul.f32 %v4560, 0.2
    %v5252 = vmul.f32 %v5010, 0.2
    %v5253 = vmul.f32 %v5012, 0.2
    %v5254 = vmul.f32 %v3658, 0.2
    %v5255 = vmul.f32 %v3660, 0.2
    %v5256 = vmul.f32 %v4110, 0.2
    %v5257 = vmul.f32 %v4112, 0.2
    %v5258 = vmul.f32 %v4562, 0.2
    %v5259 = vmul.f32 %v4564, 0.2
    %v5260 = vmul.f32 %v5014, 0.2
    %v5261 = vmul.f32 %v5016, 0.2
    %v5262 = vmul.f32 %v3664, 0.2
    %v5263 = vmul.f32 %v3666, 0.2
    %v5264 = vmul.f32 %v4116, 0.2
    %v5265 = vmul.f32 %v4118, 0.2
    %v5266 = vmul.f32 %v4568, 0.2
    %v5267 = vmul.f32 %v4570, 0.2
    %v5268 = vmul.f32 %v5020, 0.2
    %v5269 = vmul.f32 %v5022, 0.2
    %v5270 = vmul.f32 %v3668, 0.2
    %v5271 = vmul.f32 %v3670, 0.2
    %v5272 = vmul.f32 %v4120, 0.2
    %v5273 = vmul.f32 %v4122, 0.2
    %v5274 = vmul.f32 %v4572, 0.2
    %v5275 = vmul.f32 %v4574, 0.2
    %v5276 = vmul.f32 %v5024, 0.2
    %v5277 = vmul.f32 %v5026, 0.2
    %v5278 = vmul.f32 %v3674, 0.2
    %v5279 = vmul.f32 %v3676, 0.2
    %v5280 = vmul.f32 %v4126, 0.2
    %v5281 = vmul.f32 %v4128, 0.2
    %v5282 = vmul.f32 %v4578, 0.2
    %v5283 = vmul.f32 %v4580, 0.2
    %v5284 = vmul.f32 %v5030, 0.2
    %v5285 = vmul.f32 %v5032, 0.2
    %v5286 = vmul.f32 %v3678, 0.2
    %v5287 = vmul.f32 %v3680, 0.2
    %v5288 = vmul.f32 %v4130, 0.2
    %v5289 = vmul.f32 %v4132, 0.2
    %v5290 = vmul.f32 %v4582, 0.2
    %v5291 = vmul.f32 %v4584, 0.2
    %v5292 = vmul.f32 %v5034, 0.2
    %v5293 = vmul.f32 %v5036, 0.2
    %v5294 = vsel %vm5038, %v3604, %v5166
    %v5295 = vsel %vm5039, %v3606, %v5167
    %v5296 = vsel %vm5040, %v4056, %v5168
    %v5297 = vsel %vm5041, %v4058, %v5169
    %v5298 = vsel %vm5042, %v4508, %v5170
    %v5299 = vsel %vm5043, %v4510, %v5171
    %v5300 = vsel %vm5044, %v4960, %v5172
    %v5301 = vsel %vm5045, %v4962, %v5173
    %v5302 = vsel %vm5046, %v3608, %v5174
    %v5303 = vsel %vm5047, %v3610, %v5175
    %v5304 = vsel %vm5048, %v4060, %v5176
    %v5305 = vsel %vm5049, %v4062, %v5177
    %v5306 = vsel %vm5050, %v4512, %v5178
    %v5307 = vsel %vm5051, %v4514, %v5179
    %v5308 = vsel %vm5052, %v4964, %v5180
    %v5309 = vsel %vm5053, %v4966, %v5181
    %v5310 = vsel %vm5054, %v3614, %v5182
    %v5311 = vsel %vm5055, %v3616, %v5183
    %v5312 = vsel %vm5056, %v4066, %v5184
    %v5313 = vsel %vm5057, %v4068, %v5185
    %v5314 = vsel %vm5058, %v4518, %v5186
    %v5315 = vsel %vm5059, %v4520, %v5187
    %v5316 = vsel %vm5060, %v4970, %v5188
    %v5317 = vsel %vm5061, %v4972, %v5189
    %v5318 = vsel %vm5062, %v3618, %v5190
    %v5319 = vsel %vm5063, %v3620, %v5191
    %v5320 = vsel %vm5064, %v4070, %v5192
    %v5321 = vsel %vm5065, %v4072, %v5193
    %v5322 = vsel %vm5066, %v4522, %v5194
    %v5323 = vsel %vm5067, %v4524, %v5195
    %v5324 = vsel %vm5068, %v4974, %v5196
    %v5325 = vsel %vm5069, %v4976, %v5197
    %v5326 = vsel %vm5070, %v3624, %v5198
    %v5327 = vsel %vm5071, %v3626, %v5199
    %v5328 = vsel %vm5072, %v4076, %v5200
    %v5329 = vsel %vm5073, %v4078, %v5201
    %v5330 = vsel %vm5074, %v4528, %v5202
    %v5331 = vsel %vm5075, %v4530, %v5203
    %v5332 = vsel %vm5076, %v4980, %v5204
    %v5333 = vsel %vm5077, %v4982, %v5205
    %v5334 = vsel %vm5078, %v3628, %v5206
    %v5335 = vsel %vm5079, %v3630, %v5207
    %v5336 = vsel %vm5080, %v4080, %v5208
    %v5337 = vsel %vm5081, %v4082, %v5209
    %v5338 = vsel %vm5082, %v4532, %v5210
    %v5339 = vsel %vm5083, %v4534, %v5211
    %v5340 = vsel %vm5084, %v4984, %v5212
    %v5341 = vsel %vm5085, %v4986, %v5213
    %v5342 = vsel %vm5086, %v3634, %v5214
    %v5343 = vsel %vm5087, %v3636, %v5215
    %v5344 = vsel %vm5088, %v4086, %v5216
    %v5345 = vsel %vm5089, %v4088, %v5217
    %v5346 = vsel %vm5090, %v4538, %v5218
    %v5347 = vsel %vm5091, %v4540, %v5219
    %v5348 = vsel %vm5092, %v4990, %v5220
    %v5349 = vsel %vm5093, %v4992, %v5221
    %v5350 = vsel %vm5094, %v3638, %v5222
    %v5351 = vsel %vm5095, %v3640, %v5223
    %v5352 = vsel %vm5096, %v4090, %v5224
    %v5353 = vsel %vm5097, %v4092, %v5225
    %v5354 = vsel %vm5098, %v4542, %v5226
    %v5355 = vsel %vm5099, %v4544, %v5227
    %v5356 = vsel %vm5100, %v4994, %v5228
    %v5357 = vsel %vm5101, %v4996, %v5229
    %v5358 = vsel %vm5102, %v3644, %v5230
    %v5359 = vsel %vm5103, %v3646, %v5231
    %v5360 = vsel %vm5104, %v4096, %v5232
    %v5361 = vsel %vm5105, %v4098, %v5233
    %v5362 = vsel %vm5106, %v4548, %v5234
    %v5363 = vsel %vm5107, %v4550, %v5235
    %v5364 = vsel %vm5108, %v5000, %v5236
    %v5365 = vsel %vm5109, %v5002, %v5237
    %v5366 = vsel %vm5110, %v3648, %v5238
    %v5367 = vsel %vm5111, %v3650, %v5239
    %v5368 = vsel %vm5112, %v4100, %v5240
    %v5369 = vsel %vm5113, %v4102, %v5241
    %v5370 = vsel %vm5114, %v4552, %v5242
    %v5371 = vsel %vm5115, %v4554, %v5243
    %v5372 = vsel %vm5116, %v5004, %v5244
    %v5373 = vsel %vm5117, %v5006, %v5245
    %v5374 = vsel %vm5118, %v3654, %v5246
    %v5375 = vsel %vm5119, %v3656, %v5247
    %v5376 = vsel %vm5120, %v4106, %v5248
    %v5377 = vsel %vm5121, %v4108, %v5249
    %v5378 = vsel %vm5122, %v4558, %v5250
    %v5379 = vsel %vm5123, %v4560, %v5251
    %v5380 = vsel %vm5124, %v5010, %v5252
    %v5381 = vsel %vm5125, %v5012, %v5253
    %v5382 = vsel %vm5126, %v3658, %v5254
    %v5383 = vsel %vm5127, %v3660, %v5255
    %v5384 = vsel %vm5128, %v4110, %v5256
    %v5385 = vsel %vm5129, %v4112, %v5257
    %v5386 = vsel %vm5130, %v4562, %v5258
    %v5387 = vsel %vm5131, %v4564, %v5259
    %v5388 = vsel %vm5132, %v5014, %v5260
    %v5389 = vsel %vm5133, %v5016, %v5261
    %v5390 = vsel %vm5134, %v3664, %v5262
    %v5391 = vsel %vm5135, %v3666, %v5263
    %v5392 = vsel %vm5136, %v4116, %v5264
    %v5393 = vsel %vm5137, %v4118, %v5265
    %v5394 = vsel %vm5138, %v4568, %v5266
    %v5395 = vsel %vm5139, %v4570, %v5267
    %v5396 = vsel %vm5140, %v5020, %v5268
    %v5397 = vsel %vm5141, %v5022, %v5269
    %v5398 = vsel %vm5142, %v3668, %v5270
    %v5399 = vsel %vm5143, %v3670, %v5271
    %v5400 = vsel %vm5144, %v4120, %v5272
    %v5401 = vsel %vm5145, %v4122, %v5273
    %v5402 = vsel %vm5146, %v4572, %v5274
    %v5403 = vsel %vm5147, %v4574, %v5275
    %v5404 = vsel %vm5148, %v5024, %v5276
    %v5405 = vsel %vm5149, %v5026, %v5277
    %v5406 = vsel %vm5150, %v3674, %v5278
    %v5407 = vsel %vm5151, %v3676, %v5279
    %v5408 = vsel %vm5152, %v4126, %v5280
    %v5409 = vsel %vm5153, %v4128, %v5281
    %v5410 = vsel %vm5154, %v4578, %v5282
    %v5411 = vsel %vm5155, %v4580, %v5283
    %v5412 = vsel %vm5156, %v5030, %v5284
    %v5413 = vsel %vm5157, %v5032, %v5285
    %v5414 = vsel %vm5158, %v3678, %v5286
    %v5415 = vsel %vm5159, %v3680, %v5287
    %v5416 = vsel %vm5160, %v4130, %v5288
    %v5417 = vsel %vm5161, %v4132, %v5289
    %v5418 = vsel %vm5162, %v4582, %v5290
    %v5419 = vsel %vm5163, %v4584, %v5291
    %v5420 = vsel %vm5164, %v5034, %v5292
    %v5421 = vsel %vm5165, %v5036, %v5293
    %v5422 = vpack.c.bf16 %v5302, %v5294
    %v5423 = vpack.c.bf16 %v5303, %v5295
    %v5424 = vpack.c.bf16 %v5304, %v5296
    %v5425 = vpack.c.bf16 %v5305, %v5297
    %v5426 = vpack.c.bf16 %v5306, %v5298
    %v5427 = vpack.c.bf16 %v5307, %v5299
    %v5428 = vpack.c.bf16 %v5308, %v5300
    %v5429 = vpack.c.bf16 %v5309, %v5301
    %v5430 = vpack.c.bf16 %v5318, %v5310
    %v5431 = vpack.c.bf16 %v5319, %v5311
    %v5432 = vpack.c.bf16 %v5320, %v5312
    %v5433 = vpack.c.bf16 %v5321, %v5313
    %v5434 = vpack.c.bf16 %v5322, %v5314
    %v5435 = vpack.c.bf16 %v5323, %v5315
    %v5436 = vpack.c.bf16 %v5324, %v5316
    %v5437 = vpack.c.bf16 %v5325, %v5317
    %v5438 = vpack.c.bf16 %v5334, %v5326
    %v5439 = vpack.c.bf16 %v5335, %v5327
    %v5440 = vpack.c.bf16 %v5336, %v5328
    %v5441 = vpack.c.bf16 %v5337, %v5329
    %v5442 = vpack.c.bf16 %v5338, %v5330
    %v5443 = vpack.c.bf16 %v5339, %v5331
    %v5444 = vpack.c.bf16 %v5340, %v5332
    %v5445 = vpack.c.bf16 %v5341, %v5333
    %v5446 = vpack.c.bf16 %v5350, %v5342
    %v5447 = vpack.c.bf16 %v5351, %v5343
    %v5448 = vpack.c.bf16 %v5352, %v5344
    %v5449 = vpack.c.bf16 %v5353, %v5345
    %v5450 = vpack.c.bf16 %v5354, %v5346
    %v5451 = vpack.c.bf16 %v5355, %v5347
    %v5452 = vpack.c.bf16 %v5356, %v5348
    %v5453 = vpack.c.bf16 %v5357, %v5349
    %v5454 = vpack.c.bf16 %v5366, %v5358
    %v5455 = vpack.c.bf16 %v5367, %v5359
    %v5456 = vpack.c.bf16 %v5368, %v5360
    %v5457 = vpack.c.bf16 %v5369, %v5361
    %v5458 = vpack.c.bf16 %v5370, %v5362
    %v5459 = vpack.c.bf16 %v5371, %v5363
    %v5460 = vpack.c.bf16 %v5372, %v5364
    %v5461 = vpack.c.bf16 %v5373, %v5365
    %v5462 = vpack.c.bf16 %v5382, %v5374
    %v5463 = vpack.c.bf16 %v5383, %v5375
    %v5464 = vpack.c.bf16 %v5384, %v5376
    %v5465 = vpack.c.bf16 %v5385, %v5377
    %v5466 = vpack.c.bf16 %v5386, %v5378
    %v5467 = vpack.c.bf16 %v5387, %v5379
    %v5468 = vpack.c.bf16 %v5388, %v5380
    %v5469 = vpack.c.bf16 %v5389, %v5381
    %v5470 = vpack.c.bf16 %v5398, %v5390
    %v5471 = vpack.c.bf16 %v5399, %v5391
    %v5472 = vpack.c.bf16 %v5400, %v5392
    %v5473 = vpack.c.bf16 %v5401, %v5393
    %v5474 = vpack.c.bf16 %v5402, %v5394
    %v5475 = vpack.c.bf16 %v5403, %v5395
    %v5476 = vpack.c.bf16 %v5404, %v5396
    %v5477 = vpack.c.bf16 %v5405, %v5397
    %v5478 = vpack.c.bf16 %v5414, %v5406
    %v5479 = vpack.c.bf16 %v5415, %v5407
    %v5480 = vpack.c.bf16 %v5416, %v5408
    %v5481 = vpack.c.bf16 %v5417, %v5409
    %v5482 = vpack.c.bf16 %v5418, %v5410
    %v5483 = vpack.c.bf16 %v5419, %v5411
    %v5484 = vpack.c.bf16 %v5420, %v5412
    %v5485 = vpack.c.bf16 %v5421, %v5413
    %v5486 = vld [vmem:[#allocation8] sm:$0xff]
    %v5487 = vld [vmem:[#allocation8 + $0x8] sm:$0xff]
    %v5488 = vld [vmem:[#allocation8 + $0x10] sm:$0xff]
    %v5489 = vld [vmem:[#allocation8 + $0x18] sm:$0xff]
    %v5490 = vld [vmem:[#allocation8 + $0x20] sm:$0xff]
    %v5491 = vld [vmem:[#allocation8 + $0x28] sm:$0xff]
    %v5492 = vld [vmem:[#allocation8 + $0x30] sm:$0xff]
    %v5493 = vld [vmem:[#allocation8 + $0x38] sm:$0xff]
    %v5494 = vld [vmem:[#allocation8 + $0x40] sm:$0xff]
    %v5495 = vld [vmem:[#allocation8 + $0x48] sm:$0xff]
    %v5496 = vld [vmem:[#allocation8 + $0x50] sm:$0xff]
    %v5497 = vld [vmem:[#allocation8 + $0x58] sm:$0xff]
    %v5498 = vld [vmem:[#allocation8 + $0x60] sm:$0xff]
    %v5499 = vld [vmem:[#allocation8 + $0x68] sm:$0xff]
    %v5500 = vld [vmem:[#allocation8 + $0x70] sm:$0xff]
    %v5501 = vld [vmem:[#allocation8 + $0x78] sm:$0xff]
    %v5502 = vld [vmem:[#allocation8 + $0x80] sm:$0xff]
    %v5503 = vld [vmem:[#allocation8 + $0x88] sm:$0xff]
    %v5504 = vld [vmem:[#allocation8 + $0x90] sm:$0xff]
    %v5505 = vld [vmem:[#allocation8 + $0x98] sm:$0xff]
    %v5506 = vld [vmem:[#allocation8 + $0xa0] sm:$0xff]
    %v5507 = vld [vmem:[#allocation8 + $0xa8] sm:$0xff]
    %v5508 = vld [vmem:[#allocation8 + $0xb0] sm:$0xff]
    %v5509 = vld [vmem:[#allocation8 + $0xb8] sm:$0xff]
    %v5510 = vld [vmem:[#allocation8 + $0xc0] sm:$0xff]
    %v5511 = vld [vmem:[#allocation8 + $0xc8] sm:$0xff]
    %v5512 = vld [vmem:[#allocation8 + $0xd0] sm:$0xff]
    %v5513 = vld [vmem:[#allocation8 + $0xd8] sm:$0xff]
    %v5514 = vld [vmem:[#allocation8 + $0xe0] sm:$0xff]
    %v5515 = vld [vmem:[#allocation8 + $0xe8] sm:$0xff]
    %v5516 = vld [vmem:[#allocation8 + $0xf0] sm:$0xff]
    %v5517 = vld [vmem:[#allocation8 + $0xf8] sm:$0xff]
    %v5518 = vld [vmem:[#allocation8 + $0x100] sm:$0xff]
    %v5519 = vld [vmem:[#allocation8 + $0x108] sm:$0xff]
    %v5520 = vld [vmem:[#allocation8 + $0x110] sm:$0xff]
    %v5521 = vld [vmem:[#allocation8 + $0x118] sm:$0xff]
    %v5522 = vld [vmem:[#allocation8 + $0x120] sm:$0xff]
    %v5523 = vld [vmem:[#allocation8 + $0x128] sm:$0xff]
    %v5524 = vld [vmem:[#allocation8 + $0x130] sm:$0xff]
    %v5525 = vld [vmem:[#allocation8 + $0x138] sm:$0xff]
    %v5526 = vld [vmem:[#allocation8 + $0x140] sm:$0xff]
    %v5527 = vld [vmem:[#allocation8 + $0x148] sm:$0xff]
    %v5528 = vld [vmem:[#allocation8 + $0x150] sm:$0xff]
    %v5529 = vld [vmem:[#allocation8 + $0x158] sm:$0xff]
    %v5530 = vld [vmem:[#allocation8 + $0x160] sm:$0xff]
    %v5531 = vld [vmem:[#allocation8 + $0x168] sm:$0xff]
    %v5532 = vld [vmem:[#allocation8 + $0x170] sm:$0xff]
    %v5533 = vld [vmem:[#allocation8 + $0x178] sm:$0xff]
    %v5534 = vld [vmem:[#allocation8 + $0x180] sm:$0xff]
    %v5535 = vld [vmem:[#allocation8 + $0x188] sm:$0xff]
    %v5536 = vld [vmem:[#allocation8 + $0x190] sm:$0xff]
    %v5537 = vld [vmem:[#allocation8 + $0x198] sm:$0xff]
    %v5538 = vld [vmem:[#allocation8 + $0x1a0] sm:$0xff]
    %v5539 = vld [vmem:[#allocation8 + $0x1a8] sm:$0xff]
    %v5540 = vld [vmem:[#allocation8 + $0x1b0] sm:$0xff]
    %v5541 = vld [vmem:[#allocation8 + $0x1b8] sm:$0xff]
    %v5542 = vld [vmem:[#allocation8 + $0x1c0] sm:$0xff]
    %v5543 = vld [vmem:[#allocation8 + $0x1c8] sm:$0xff]
    %v5544 = vld [vmem:[#allocation8 + $0x1d0] sm:$0xff]
    %v5545 = vld [vmem:[#allocation8 + $0x1d8] sm:$0xff]
    %v5546 = vld [vmem:[#allocation8 + $0x1e0] sm:$0xff]
    %v5547 = vld [vmem:[#allocation8 + $0x1e8] sm:$0xff]
    %v5548 = vld [vmem:[#allocation8 + $0x1f0] sm:$0xff]
    %v5549 = vld [vmem:[#allocation8 + $0x1f8] sm:$0xff]
    %v5550 = vld [vmem:[#allocation8 + $0x200] sm:$0xff]
    %v5551 = vld [vmem:[#allocation8 + $0x208] sm:$0xff]
    %v5552 = vld [vmem:[#allocation8 + $0x210] sm:$0xff]
    %v5553 = vld [vmem:[#allocation8 + $0x218] sm:$0xff]
    %v5554 = vld [vmem:[#allocation8 + $0x220] sm:$0xff]
    %v5555 = vld [vmem:[#allocation8 + $0x228] sm:$0xff]
    %v5556 = vld [vmem:[#allocation8 + $0x230] sm:$0xff]
    %v5557 = vld [vmem:[#allocation8 + $0x238] sm:$0xff]
    %v5558 = vld [vmem:[#allocation8 + $0x240] sm:$0xff]
    %v5559 = vld [vmem:[#allocation8 + $0x248] sm:$0xff]
    %v5560 = vld [vmem:[#allocation8 + $0x250] sm:$0xff]
    %v5561 = vld [vmem:[#allocation8 + $0x258] sm:$0xff]
    %v5562 = vld [vmem:[#allocation8 + $0x260] sm:$0xff]
    %v5563 = vld [vmem:[#allocation8 + $0x268] sm:$0xff]
    %v5564 = vld [vmem:[#allocation8 + $0x270] sm:$0xff]
    %v5565 = vld [vmem:[#allocation8 + $0x278] sm:$0xff]
    %v5566 = vld [vmem:[#allocation8 + $0x280] sm:$0xff]
    %v5567 = vld [vmem:[#allocation8 + $0x288] sm:$0xff]
    %v5568 = vld [vmem:[#allocation8 + $0x290] sm:$0xff]
    %v5569 = vld [vmem:[#allocation8 + $0x298] sm:$0xff]
    %v5570 = vld [vmem:[#allocation8 + $0x2a0] sm:$0xff]
    %v5571 = vld [vmem:[#allocation8 + $0x2a8] sm:$0xff]
    %v5572 = vld [vmem:[#allocation8 + $0x2b0] sm:$0xff]
    %v5573 = vld [vmem:[#allocation8 + $0x2b8] sm:$0xff]
    %v5574 = vld [vmem:[#allocation8 + $0x2c0] sm:$0xff]
    %v5575 = vld [vmem:[#allocation8 + $0x2c8] sm:$0xff]
    %v5576 = vld [vmem:[#allocation8 + $0x2d0] sm:$0xff]
    %v5577 = vld [vmem:[#allocation8 + $0x2d8] sm:$0xff]
    %v5578 = vld [vmem:[#allocation8 + $0x2e0] sm:$0xff]
    %v5579 = vld [vmem:[#allocation8 + $0x2e8] sm:$0xff]
    %v5580 = vld [vmem:[#allocation8 + $0x2f0] sm:$0xff]
    %v5581 = vld [vmem:[#allocation8 + $0x2f8] sm:$0xff]
    %v5582 = vld [vmem:[#allocation8 + $0x300] sm:$0xff]
    %v5583 = vld [vmem:[#allocation8 + $0x308] sm:$0xff]
    %v5584 = vld [vmem:[#allocation8 + $0x310] sm:$0xff]
    %v5585 = vld [vmem:[#allocation8 + $0x318] sm:$0xff]
    %v5586 = vld [vmem:[#allocation8 + $0x320] sm:$0xff]
    %v5587 = vld [vmem:[#allocation8 + $0x328] sm:$0xff]
    %v5588 = vld [vmem:[#allocation8 + $0x330] sm:$0xff]
    %v5589 = vld [vmem:[#allocation8 + $0x338] sm:$0xff]
    %v5590 = vld [vmem:[#allocation8 + $0x340] sm:$0xff]
    %v5591 = vld [vmem:[#allocation8 + $0x348] sm:$0xff]
    %v5592 = vld [vmem:[#allocation8 + $0x350] sm:$0xff]
    %v5593 = vld [vmem:[#allocation8 + $0x358] sm:$0xff]
    %v5594 = vld [vmem:[#allocation8 + $0x360] sm:$0xff]
    %v5595 = vld [vmem:[#allocation8 + $0x368] sm:$0xff]
    %v5596 = vld [vmem:[#allocation8 + $0x370] sm:$0xff]
    %v5597 = vld [vmem:[#allocation8 + $0x378] sm:$0xff]
    %v5598 = vld [vmem:[#allocation8 + $0x380] sm:$0xff]
    %v5599 = vld [vmem:[#allocation8 + $0x388] sm:$0xff]
    %v5600 = vld [vmem:[#allocation8 + $0x390] sm:$0xff]
    %v5601 = vld [vmem:[#allocation8 + $0x398] sm:$0xff]
    %v5602 = vld [vmem:[#allocation8 + $0x3a0] sm:$0xff]
    %v5603 = vld [vmem:[#allocation8 + $0x3a8] sm:$0xff]
    %v5604 = vld [vmem:[#allocation8 + $0x3b0] sm:$0xff]
    %v5605 = vld [vmem:[#allocation8 + $0x3b8] sm:$0xff]
    %v5606 = vld [vmem:[#allocation8 + $0x3c0] sm:$0xff]
    %v5607 = vld [vmem:[#allocation8 + $0x3c8] sm:$0xff]
    %v5608 = vld [vmem:[#allocation8 + $0x3d0] sm:$0xff]
    %v5609 = vld [vmem:[#allocation8 + $0x3d8] sm:$0xff]
    %v5610 = vld [vmem:[#allocation8 + $0x3e0] sm:$0xff]
    %v5611 = vld [vmem:[#allocation8 + $0x3e8] sm:$0xff]
    %v5612 = vld [vmem:[#allocation8 + $0x3f0] sm:$0xff]
    %v5613 = vld [vmem:[#allocation8 + $0x3f8] sm:$0xff]
    %v5614 = vld [vmem:[#allocation8 + $0x400] sm:$0xff]
    %v5615 = vld [vmem:[#allocation8 + $0x408] sm:$0xff]
    %v5616 = vld [vmem:[#allocation8 + $0x410] sm:$0xff]
    %v5617 = vld [vmem:[#allocation8 + $0x418] sm:$0xff]
    %v5618 = vld [vmem:[#allocation8 + $0x420] sm:$0xff]
    %v5619 = vld [vmem:[#allocation8 + $0x428] sm:$0xff]
    %v5620 = vld [vmem:[#allocation8 + $0x430] sm:$0xff]
    %v5621 = vld [vmem:[#allocation8 + $0x438] sm:$0xff]
    %v5622 = vld [vmem:[#allocation8 + $0x440] sm:$0xff]
    %v5623 = vld [vmem:[#allocation8 + $0x448] sm:$0xff]
    %v5624 = vld [vmem:[#allocation8 + $0x450] sm:$0xff]
    %v5625 = vld [vmem:[#allocation8 + $0x458] sm:$0xff]
    %v5626 = vld [vmem:[#allocation8 + $0x460] sm:$0xff]
    %v5627 = vld [vmem:[#allocation8 + $0x468] sm:$0xff]
    %v5628 = vld [vmem:[#allocation8 + $0x470] sm:$0xff]
    %v5629 = vld [vmem:[#allocation8 + $0x478] sm:$0xff]
    %v5630 = vld [vmem:[#allocation8 + $0x480] sm:$0xff]
    %v5631 = vld [vmem:[#allocation8 + $0x488] sm:$0xff]
    %v5632 = vld [vmem:[#allocation8 + $0x490] sm:$0xff]
    %v5633 = vld [vmem:[#allocation8 + $0x498] sm:$0xff]
    %v5634 = vld [vmem:[#allocation8 + $0x4a0] sm:$0xff]
    %v5635 = vld [vmem:[#allocation8 + $0x4a8] sm:$0xff]
    %v5636 = vld [vmem:[#allocation8 + $0x4b0] sm:$0xff]
    %v5637 = vld [vmem:[#allocation8 + $0x4b8] sm:$0xff]
    %v5638 = vld [vmem:[#allocation8 + $0x4c0] sm:$0xff]
    %v5639 = vld [vmem:[#allocation8 + $0x4c8] sm:$0xff]
    %v5640 = vld [vmem:[#allocation8 + $0x4d0] sm:$0xff]
    %v5641 = vld [vmem:[#allocation8 + $0x4d8] sm:$0xff]
    %v5642 = vld [vmem:[#allocation8 + $0x4e0] sm:$0xff]
    %v5643 = vld [vmem:[#allocation8 + $0x4e8] sm:$0xff]
    %v5644 = vld [vmem:[#allocation8 + $0x4f0] sm:$0xff]
    %v5645 = vld [vmem:[#allocation8 + $0x4f8] sm:$0xff]
    %v5646 = vld [vmem:[#allocation8 + $0x500] sm:$0xff]
    %v5647 = vld [vmem:[#allocation8 + $0x508] sm:$0xff]
    %v5648 = vld [vmem:[#allocation8 + $0x510] sm:$0xff]
    %v5649 = vld [vmem:[#allocation8 + $0x518] sm:$0xff]
    %v5650 = vld [vmem:[#allocation8 + $0x520] sm:$0xff]
    %v5651 = vld [vmem:[#allocation8 + $0x528] sm:$0xff]
    %v5652 = vld [vmem:[#allocation8 + $0x530] sm:$0xff]
    %v5653 = vld [vmem:[#allocation8 + $0x538] sm:$0xff]
    %v5654 = vld [vmem:[#allocation8 + $0x540] sm:$0xff]
    %v5655 = vld [vmem:[#allocation8 + $0x548] sm:$0xff]
    %v5656 = vld [vmem:[#allocation8 + $0x550] sm:$0xff]
    %v5657 = vld [vmem:[#allocation8 + $0x558] sm:$0xff]
    %v5658 = vld [vmem:[#allocation8 + $0x560] sm:$0xff]
    %v5659 = vld [vmem:[#allocation8 + $0x568] sm:$0xff]
    %v5660 = vld [vmem:[#allocation8 + $0x570] sm:$0xff]
    %v5661 = vld [vmem:[#allocation8 + $0x578] sm:$0xff]
    %v5662 = vld [vmem:[#allocation8 + $0x580] sm:$0xff]
    %v5663 = vld [vmem:[#allocation8 + $0x588] sm:$0xff]
    %v5664 = vld [vmem:[#allocation8 + $0x590] sm:$0xff]
    %v5665 = vld [vmem:[#allocation8 + $0x598] sm:$0xff]
    %v5666 = vld [vmem:[#allocation8 + $0x5a0] sm:$0xff]
    %v5667 = vld [vmem:[#allocation8 + $0x5a8] sm:$0xff]
    %v5668 = vld [vmem:[#allocation8 + $0x5b0] sm:$0xff]
    %v5669 = vld [vmem:[#allocation8 + $0x5b8] sm:$0xff]
    %v5670 = vld [vmem:[#allocation8 + $0x5c0] sm:$0xff]
    %v5671 = vld [vmem:[#allocation8 + $0x5c8] sm:$0xff]
    %v5672 = vld [vmem:[#allocation8 + $0x5d0] sm:$0xff]
    %v5673 = vld [vmem:[#allocation8 + $0x5d8] sm:$0xff]
    %v5674 = vld [vmem:[#allocation8 + $0x5e0] sm:$0xff]
    %v5675 = vld [vmem:[#allocation8 + $0x5e8] sm:$0xff]
    %v5676 = vld [vmem:[#allocation8 + $0x5f0] sm:$0xff]
    %v5677 = vld [vmem:[#allocation8 + $0x5f8] sm:$0xff]
    %v5678 = vld [vmem:[#allocation8 + $0x600] sm:$0xff]
    %v5679 = vld [vmem:[#allocation8 + $0x608] sm:$0xff]
    %v5680 = vld [vmem:[#allocation8 + $0x610] sm:$0xff]
    %v5681 = vld [vmem:[#allocation8 + $0x618] sm:$0xff]
    %v5682 = vld [vmem:[#allocation8 + $0x620] sm:$0xff]
    %v5683 = vld [vmem:[#allocation8 + $0x628] sm:$0xff]
    %v5684 = vld [vmem:[#allocation8 + $0x630] sm:$0xff]
    %v5685 = vld [vmem:[#allocation8 + $0x638] sm:$0xff]
    %v5686 = vld [vmem:[#allocation8 + $0x640] sm:$0xff]
    %v5687 = vld [vmem:[#allocation8 + $0x648] sm:$0xff]
    %v5688 = vld [vmem:[#allocation8 + $0x650] sm:$0xff]
    %v5689 = vld [vmem:[#allocation8 + $0x658] sm:$0xff]
    %v5690 = vld [vmem:[#allocation8 + $0x660] sm:$0xff]
    %v5691 = vld [vmem:[#allocation8 + $0x668] sm:$0xff]
    %v5692 = vld [vmem:[#allocation8 + $0x670] sm:$0xff]
    %v5693 = vld [vmem:[#allocation8 + $0x678] sm:$0xff]
    %v5694 = vld [vmem:[#allocation8 + $0x680] sm:$0xff]
    %v5695 = vld [vmem:[#allocation8 + $0x688] sm:$0xff]
    %v5696 = vld [vmem:[#allocation8 + $0x690] sm:$0xff]
    %v5697 = vld [vmem:[#allocation8 + $0x698] sm:$0xff]
    %v5698 = vld [vmem:[#allocation8 + $0x6a0] sm:$0xff]
    %v5699 = vld [vmem:[#allocation8 + $0x6a8] sm:$0xff]
    %v5700 = vld [vmem:[#allocation8 + $0x6b0] sm:$0xff]
    %v5701 = vld [vmem:[#allocation8 + $0x6b8] sm:$0xff]
    %v5702 = vld [vmem:[#allocation8 + $0x6c0] sm:$0xff]
    %v5703 = vld [vmem:[#allocation8 + $0x6c8] sm:$0xff]
    %v5704 = vld [vmem:[#allocation8 + $0x6d0] sm:$0xff]
    %v5705 = vld [vmem:[#allocation8 + $0x6d8] sm:$0xff]
    %v5706 = vld [vmem:[#allocation8 + $0x6e0] sm:$0xff]
    %v5707 = vld [vmem:[#allocation8 + $0x6e8] sm:$0xff]
    %v5708 = vld [vmem:[#allocation8 + $0x6f0] sm:$0xff]
    %v5709 = vld [vmem:[#allocation8 + $0x6f8] sm:$0xff]
    %v5710 = vld [vmem:[#allocation8 + $0x700] sm:$0xff]
    %v5711 = vld [vmem:[#allocation8 + $0x708] sm:$0xff]
    %v5712 = vld [vmem:[#allocation8 + $0x710] sm:$0xff]
    %v5713 = vld [vmem:[#allocation8 + $0x718] sm:$0xff]
    %v5714 = vld [vmem:[#allocation8 + $0x720] sm:$0xff]
    %v5715 = vld [vmem:[#allocation8 + $0x728] sm:$0xff]
    %v5716 = vld [vmem:[#allocation8 + $0x730] sm:$0xff]
    %v5717 = vld [vmem:[#allocation8 + $0x738] sm:$0xff]
    %v5718 = vld [vmem:[#allocation8 + $0x740] sm:$0xff]
    %v5719 = vld [vmem:[#allocation8 + $0x748] sm:$0xff]
    %v5720 = vld [vmem:[#allocation8 + $0x750] sm:$0xff]
    %v5721 = vld [vmem:[#allocation8 + $0x758] sm:$0xff]
    %v5722 = vld [vmem:[#allocation8 + $0x760] sm:$0xff]
    %v5723 = vld [vmem:[#allocation8 + $0x768] sm:$0xff]
    %v5724 = vld [vmem:[#allocation8 + $0x770] sm:$0xff]
    %v5725 = vld [vmem:[#allocation8 + $0x778] sm:$0xff]
    %v5726 = vld [vmem:[#allocation8 + $0x780] sm:$0xff]
    %v5727 = vld [vmem:[#allocation8 + $0x788] sm:$0xff]
    %v5728 = vld [vmem:[#allocation8 + $0x790] sm:$0xff]
    %v5729 = vld [vmem:[#allocation8 + $0x798] sm:$0xff]
    %v5730 = vld [vmem:[#allocation8 + $0x7a0] sm:$0xff]
    %v5731 = vld [vmem:[#allocation8 + $0x7a8] sm:$0xff]
    %v5732 = vld [vmem:[#allocation8 + $0x7b0] sm:$0xff]
    %v5733 = vld [vmem:[#allocation8 + $0x7b8] sm:$0xff]
    %v5734 = vld [vmem:[#allocation8 + $0x7c0] sm:$0xff]
    %v5735 = vld [vmem:[#allocation8 + $0x7c8] sm:$0xff]
    %v5736 = vld [vmem:[#allocation8 + $0x7d0] sm:$0xff]
    %v5737 = vld [vmem:[#allocation8 + $0x7d8] sm:$0xff]
    %v5738 = vld [vmem:[#allocation8 + $0x7e0] sm:$0xff]
    %v5739 = vld [vmem:[#allocation8 + $0x7e8] sm:$0xff]
    %v5740 = vld [vmem:[#allocation8 + $0x7f0] sm:$0xff]
    %v5741 = vld [vmem:[#allocation8 + $0x7f8] sm:$0xff]
    %v5742 = vld [vmem:[#allocation10] sm:$0xf]
    %v5744 = vlaneseq
    %v5745 = vshrl.u32 %v5744, 7
    %v5746 = vsub.s32 0, %v5745
    %v5747 = vrot.slane %v5742, %v5746
    %v5748 = vlaneseq
    %v5749 = vshrl.u32 %v5748, 7
    %v5750 = vsub.s32 1, %v5749
    %v5751 = vrot.slane %v5742, %v5750
    %v5752 = vlaneseq
    %v5753 = vshrl.u32 %v5752, 7
    %v5754 = vsub.s32 2, %v5753
    %v5755 = vrot.slane %v5742, %v5754
    %v5756 = vlaneseq
    %v5757 = vshrl.u32 %v5756, 7
    %v5758 = vsub.s32 3, %v5757
    %v5759 = vrot.slane %v5742, %v5758
    %v6020 = vunpack.c.l.b16 %v5486
    %v6021 = vunpack.c.h.b16 %v5486
    %v6022 = vunpack.c.l.b16 %v5487
    %v6023 = vunpack.c.h.b16 %v5487
    %v6024 = vunpack.c.l.b16 %v5488
    %v6025 = vunpack.c.h.b16 %v5488
    %v6026 = vunpack.c.l.b16 %v5489
    %v6027 = vunpack.c.h.b16 %v5489
    %v6028 = vunpack.c.l.b16 %v5490
    %v6029 = vunpack.c.h.b16 %v5490
    %v6030 = vunpack.c.l.b16 %v5491
    %v6031 = vunpack.c.h.b16 %v5491
    %v6032 = vunpack.c.l.b16 %v5492
    %v6033 = vunpack.c.h.b16 %v5492
    %v6034 = vunpack.c.l.b16 %v5493
    %v6035 = vunpack.c.h.b16 %v5493
    %v6036 = vunpack.c.l.b16 %v5494
    %v6037 = vunpack.c.h.b16 %v5494
    %v6038 = vunpack.c.l.b16 %v5495
    %v6039 = vunpack.c.h.b16 %v5495
    %v6040 = vunpack.c.l.b16 %v5496
    %v6041 = vunpack.c.h.b16 %v5496
    %v6042 = vunpack.c.l.b16 %v5497
    %v6043 = vunpack.c.h.b16 %v5497
    %v6044 = vunpack.c.l.b16 %v5498
    %v6045 = vunpack.c.h.b16 %v5498
    %v6046 = vunpack.c.l.b16 %v5499
    %v6047 = vunpack.c.h.b16 %v5499
    %v6048 = vunpack.c.l.b16 %v5500
    %v6049 = vunpack.c.h.b16 %v5500
    %v6050 = vunpack.c.l.b16 %v5501
    %v6051 = vunpack.c.h.b16 %v5501
    %v6052 = vunpack.c.l.b16 %v5502
    %v6053 = vunpack.c.h.b16 %v5502
    %v6054 = vunpack.c.l.b16 %v5503
    %v6055 = vunpack.c.h.b16 %v5503
    %v6056 = vunpack.c.l.b16 %v5504
    %v6057 = vunpack.c.h.b16 %v5504
    %v6058 = vunpack.c.l.b16 %v5505
    %v6059 = vunpack.c.h.b16 %v5505
    %v6060 = vunpack.c.l.b16 %v5506
    %v6061 = vunpack.c.h.b16 %v5506
    %v6062 = vunpack.c.l.b16 %v5507
    %v6063 = vunpack.c.h.b16 %v5507
    %v6064 = vunpack.c.l.b16 %v5508
    %v6065 = vunpack.c.h.b16 %v5508
    %v6066 = vunpack.c.l.b16 %v5509
    %v6067 = vunpack.c.h.b16 %v5509
    %v6068 = vunpack.c.l.b16 %v5510
    %v6069 = vunpack.c.h.b16 %v5510
    %v6070 = vunpack.c.l.b16 %v5511
    %v6071 = vunpack.c.h.b16 %v5511
    %v6072 = vunpack.c.l.b16 %v5512
    %v6073 = vunpack.c.h.b16 %v5512
    %v6074 = vunpack.c.l.b16 %v5513
    %v6075 = vunpack.c.h.b16 %v5513
    %v6076 = vunpack.c.l.b16 %v5514
    %v6077 = vunpack.c.h.b16 %v5514
    %v6078 = vunpack.c.l.b16 %v5515
    %v6079 = vunpack.c.h.b16 %v5515
    %v6080 = vunpack.c.l.b16 %v5516
    %v6081 = vunpack.c.h.b16 %v5516
    %v6082 = vunpack.c.l.b16 %v5517
    %v6083 = vunpack.c.h.b16 %v5517
    %v6084 = vunpack.c.l.b16 %v5518
    %v6085 = vunpack.c.h.b16 %v5518
    %v6086 = vunpack.c.l.b16 %v5519
    %v6087 = vunpack.c.h.b16 %v5519
    %v6088 = vunpack.c.l.b16 %v5520
    %v6089 = vunpack.c.h.b16 %v5520
    %v6090 = vunpack.c.l.b16 %v5521
    %v6091 = vunpack.c.h.b16 %v5521
    %v6092 = vunpack.c.l.b16 %v5522
    %v6093 = vunpack.c.h.b16 %v5522
    %v6094 = vunpack.c.l.b16 %v5523
    %v6095 = vunpack.c.h.b16 %v5523
    %v6096 = vunpack.c.l.b16 %v5524
    %v6097 = vunpack.c.h.b16 %v5524
    %v6098 = vunpack.c.l.b16 %v5525
    %v6099 = vunpack.c.h.b16 %v5525
    %v6100 = vunpack.c.l.b16 %v5526
    %v6101 = vunpack.c.h.b16 %v5526
    %v6102 = vunpack.c.l.b16 %v5527
    %v6103 = vunpack.c.h.b16 %v5527
    %v6104 = vunpack.c.l.b16 %v5528
    %v6105 = vunpack.c.h.b16 %v5528
    %v6106 = vunpack.c.l.b16 %v5529
    %v6107 = vunpack.c.h.b16 %v5529
    %v6108 = vunpack.c.l.b16 %v5530
    %v6109 = vunpack.c.h.b16 %v5530
    %v6110 = vunpack.c.l.b16 %v5531
    %v6111 = vunpack.c.h.b16 %v5531
    %v6112 = vunpack.c.l.b16 %v5532
    %v6113 = vunpack.c.h.b16 %v5532
    %v6114 = vunpack.c.l.b16 %v5533
    %v6115 = vunpack.c.h.b16 %v5533
    %v6116 = vunpack.c.l.b16 %v5534
    %v6117 = vunpack.c.h.b16 %v5534
    %v6118 = vunpack.c.l.b16 %v5535
    %v6119 = vunpack.c.h.b16 %v5535
    %v6120 = vunpack.c.l.b16 %v5536
    %v6121 = vunpack.c.h.b16 %v5536
    %v6122 = vunpack.c.l.b16 %v5537
    %v6123 = vunpack.c.h.b16 %v5537
    %v6124 = vunpack.c.l.b16 %v5538
    %v6125 = vunpack.c.h.b16 %v5538
    %v6126 = vunpack.c.l.b16 %v5539
    %v6127 = vunpack.c.h.b16 %v5539
    %v6128 = vunpack.c.l.b16 %v5540
    %v6129 = vunpack.c.h.b16 %v5540
    %v6130 = vunpack.c.l.b16 %v5541
    %v6131 = vunpack.c.h.b16 %v5541
    %v6132 = vunpack.c.l.b16 %v5542
    %v6133 = vunpack.c.h.b16 %v5542
    %v6134 = vunpack.c.l.b16 %v5543
    %v6135 = vunpack.c.h.b16 %v5543
    %v6136 = vunpack.c.l.b16 %v5544
    %v6137 = vunpack.c.h.b16 %v5544
    %v6138 = vunpack.c.l.b16 %v5545
    %v6139 = vunpack.c.h.b16 %v5545
    %v6140 = vunpack.c.l.b16 %v5546
    %v6141 = vunpack.c.h.b16 %v5546
    %v6142 = vunpack.c.l.b16 %v5547
    %v6143 = vunpack.c.h.b16 %v5547
    %v6144 = vunpack.c.l.b16 %v5548
    %v6145 = vunpack.c.h.b16 %v5548
    %v6146 = vunpack.c.l.b16 %v5549
    %v6147 = vunpack.c.h.b16 %v5549
    %v6148 = vunpack.c.l.b16 %v5550
    %v6149 = vunpack.c.h.b16 %v5550
    %v6150 = vunpack.c.l.b16 %v5551
    %v6151 = vunpack.c.h.b16 %v5551
    %v6152 = vunpack.c.l.b16 %v5552
    %v6153 = vunpack.c.h.b16 %v5552
    %v6154 = vunpack.c.l.b16 %v5553
    %v6155 = vunpack.c.h.b16 %v5553
    %v6156 = vunpack.c.l.b16 %v5554
    %v6157 = vunpack.c.h.b16 %v5554
    %v6158 = vunpack.c.l.b16 %v5555
    %v6159 = vunpack.c.h.b16 %v5555
    %v6160 = vunpack.c.l.b16 %v5556
    %v6161 = vunpack.c.h.b16 %v5556
    %v6162 = vunpack.c.l.b16 %v5557
    %v6163 = vunpack.c.h.b16 %v5557
    %v6164 = vunpack.c.l.b16 %v5558
    %v6165 = vunpack.c.h.b16 %v5558
    %v6166 = vunpack.c.l.b16 %v5559
    %v6167 = vunpack.c.h.b16 %v5559
    %v6168 = vunpack.c.l.b16 %v5560
    %v6169 = vunpack.c.h.b16 %v5560
    %v6170 = vunpack.c.l.b16 %v5561
    %v6171 = vunpack.c.h.b16 %v5561
    %v6172 = vunpack.c.l.b16 %v5562
    %v6173 = vunpack.c.h.b16 %v5562
    %v6174 = vunpack.c.l.b16 %v5563
    %v6175 = vunpack.c.h.b16 %v5563
    %v6176 = vunpack.c.l.b16 %v5564
    %v6177 = vunpack.c.h.b16 %v5564
    %v6178 = vunpack.c.l.b16 %v5565
    %v6179 = vunpack.c.h.b16 %v5565
    %v6180 = vunpack.c.l.b16 %v5566
    %v6181 = vunpack.c.h.b16 %v5566
    %v6182 = vunpack.c.l.b16 %v5567
    %v6183 = vunpack.c.h.b16 %v5567
    %v6184 = vunpack.c.l.b16 %v5568
    %v6185 = vunpack.c.h.b16 %v5568
    %v6186 = vunpack.c.l.b16 %v5569
    %v6187 = vunpack.c.h.b16 %v5569
    %v6188 = vunpack.c.l.b16 %v5570
    %v6189 = vunpack.c.h.b16 %v5570
    %v6190 = vunpack.c.l.b16 %v5571
    %v6191 = vunpack.c.h.b16 %v5571
    %v6192 = vunpack.c.l.b16 %v5572
    %v6193 = vunpack.c.h.b16 %v5572
    %v6194 = vunpack.c.l.b16 %v5573
    %v6195 = vunpack.c.h.b16 %v5573
    %v6196 = vunpack.c.l.b16 %v5574
    %v6197 = vunpack.c.h.b16 %v5574
    %v6198 = vunpack.c.l.b16 %v5575
    %v6199 = vunpack.c.h.b16 %v5575
    %v6200 = vunpack.c.l.b16 %v5576
    %v6201 = vunpack.c.h.b16 %v5576
    %v6202 = vunpack.c.l.b16 %v5577
    %v6203 = vunpack.c.h.b16 %v5577
    %v6204 = vunpack.c.l.b16 %v5578
    %v6205 = vunpack.c.h.b16 %v5578
    %v6206 = vunpack.c.l.b16 %v5579
    %v6207 = vunpack.c.h.b16 %v5579
    %v6208 = vunpack.c.l.b16 %v5580
    %v6209 = vunpack.c.h.b16 %v5580
    %v6210 = vunpack.c.l.b16 %v5581
    %v6211 = vunpack.c.h.b16 %v5581
    %v6212 = vunpack.c.l.b16 %v5582
    %v6213 = vunpack.c.h.b16 %v5582
    %v6214 = vunpack.c.l.b16 %v5583
    %v6215 = vunpack.c.h.b16 %v5583
    %v6216 = vunpack.c.l.b16 %v5584
    %v6217 = vunpack.c.h.b16 %v5584
    %v6218 = vunpack.c.l.b16 %v5585
    %v6219 = vunpack.c.h.b16 %v5585
    %v6220 = vunpack.c.l.b16 %v5586
    %v6221 = vunpack.c.h.b16 %v5586
    %v6222 = vunpack.c.l.b16 %v5587
    %v6223 = vunpack.c.h.b16 %v5587
    %v6224 = vunpack.c.l.b16 %v5588
    %v6225 = vunpack.c.h.b16 %v5588
    %v6226 = vunpack.c.l.b16 %v5589
    %v6227 = vunpack.c.h.b16 %v5589
    %v6228 = vunpack.c.l.b16 %v5590
    %v6229 = vunpack.c.h.b16 %v5590
    %v6230 = vunpack.c.l.b16 %v5591
    %v6231 = vunpack.c.h.b16 %v5591
    %v6232 = vunpack.c.l.b16 %v5592
    %v6233 = vunpack.c.h.b16 %v5592
    %v6234 = vunpack.c.l.b16 %v5593
    %v6235 = vunpack.c.h.b16 %v5593
    %v6236 = vunpack.c.l.b16 %v5594
    %v6237 = vunpack.c.h.b16 %v5594
    %v6238 = vunpack.c.l.b16 %v5595
    %v6239 = vunpack.c.h.b16 %v5595
    %v6240 = vunpack.c.l.b16 %v5596
    %v6241 = vunpack.c.h.b16 %v5596
    %v6242 = vunpack.c.l.b16 %v5597
    %v6243 = vunpack.c.h.b16 %v5597
    %v6244 = vunpack.c.l.b16 %v5598
    %v6245 = vunpack.c.h.b16 %v5598
    %v6246 = vunpack.c.l.b16 %v5599
    %v6247 = vunpack.c.h.b16 %v5599
    %v6248 = vunpack.c.l.b16 %v5600
    %v6249 = vunpack.c.h.b16 %v5600
    %v6250 = vunpack.c.l.b16 %v5601
    %v6251 = vunpack.c.h.b16 %v5601
    %v6252 = vunpack.c.l.b16 %v5602
    %v6253 = vunpack.c.h.b16 %v5602
    %v6254 = vunpack.c.l.b16 %v5603
    %v6255 = vunpack.c.h.b16 %v5603
    %v6256 = vunpack.c.l.b16 %v5604
    %v6257 = vunpack.c.h.b16 %v5604
    %v6258 = vunpack.c.l.b16 %v5605
    %v6259 = vunpack.c.h.b16 %v5605
    %v6260 = vunpack.c.l.b16 %v5606
    %v6261 = vunpack.c.h.b16 %v5606
    %v6262 = vunpack.c.l.b16 %v5607
    %v6263 = vunpack.c.h.b16 %v5607
    %v6264 = vunpack.c.l.b16 %v5608
    %v6265 = vunpack.c.h.b16 %v5608
    %v6266 = vunpack.c.l.b16 %v5609
    %v6267 = vunpack.c.h.b16 %v5609
    %v6268 = vunpack.c.l.b16 %v5610
    %v6269 = vunpack.c.h.b16 %v5610
    %v6270 = vunpack.c.l.b16 %v5611
    %v6271 = vunpack.c.h.b16 %v5611
    %v6272 = vunpack.c.l.b16 %v5612
    %v6273 = vunpack.c.h.b16 %v5612
    %v6274 = vunpack.c.l.b16 %v5613
    %v6275 = vunpack.c.h.b16 %v5613
    %v6276 = vunpack.c.l.b16 %v5614
    %v6277 = vunpack.c.h.b16 %v5614
    %v6278 = vunpack.c.l.b16 %v5615
    %v6279 = vunpack.c.h.b16 %v5615
    %v6280 = vunpack.c.l.b16 %v5616
    %v6281 = vunpack.c.h.b16 %v5616
    %v6282 = vunpack.c.l.b16 %v5617
    %v6283 = vunpack.c.h.b16 %v5617
    %v6284 = vunpack.c.l.b16 %v5618
    %v6285 = vunpack.c.h.b16 %v5618
    %v6286 = vunpack.c.l.b16 %v5619
    %v6287 = vunpack.c.h.b16 %v5619
    %v6288 = vunpack.c.l.b16 %v5620
    %v6289 = vunpack.c.h.b16 %v5620
    %v6290 = vunpack.c.l.b16 %v5621
    %v6291 = vunpack.c.h.b16 %v5621
    %v6292 = vunpack.c.l.b16 %v5622
    %v6293 = vunpack.c.h.b16 %v5622
    %v6294 = vunpack.c.l.b16 %v5623
    %v6295 = vunpack.c.h.b16 %v5623
    %v6296 = vunpack.c.l.b16 %v5624
    %v6297 = vunpack.c.h.b16 %v5624
    %v6298 = vunpack.c.l.b16 %v5625
    %v6299 = vunpack.c.h.b16 %v5625
    %v6300 = vunpack.c.l.b16 %v5626
    %v6301 = vunpack.c.h.b16 %v5626
    %v6302 = vunpack.c.l.b16 %v5627
    %v6303 = vunpack.c.h.b16 %v5627
    %v6304 = vunpack.c.l.b16 %v5628
    %v6305 = vunpack.c.h.b16 %v5628
    %v6306 = vunpack.c.l.b16 %v5629
    %v6307 = vunpack.c.h.b16 %v5629
    %v6308 = vunpack.c.l.b16 %v5630
    %v6309 = vunpack.c.h.b16 %v5630
    %v6310 = vunpack.c.l.b16 %v5631
    %v6311 = vunpack.c.h.b16 %v5631
    %v6312 = vunpack.c.l.b16 %v5632
    %v6313 = vunpack.c.h.b16 %v5632
    %v6314 = vunpack.c.l.b16 %v5633
    %v6315 = vunpack.c.h.b16 %v5633
    %v6316 = vunpack.c.l.b16 %v5634
    %v6317 = vunpack.c.h.b16 %v5634
    %v6318 = vunpack.c.l.b16 %v5635
    %v6319 = vunpack.c.h.b16 %v5635
    %v6320 = vunpack.c.l.b16 %v5636
    %v6321 = vunpack.c.h.b16 %v5636
    %v6322 = vunpack.c.l.b16 %v5637
    %v6323 = vunpack.c.h.b16 %v5637
    %v6324 = vunpack.c.l.b16 %v5638
    %v6325 = vunpack.c.h.b16 %v5638
    %v6326 = vunpack.c.l.b16 %v5639
    %v6327 = vunpack.c.h.b16 %v5639
    %v6328 = vunpack.c.l.b16 %v5640
    %v6329 = vunpack.c.h.b16 %v5640
    %v6330 = vunpack.c.l.b16 %v5641
    %v6331 = vunpack.c.h.b16 %v5641
    %v6332 = vunpack.c.l.b16 %v5642
    %v6333 = vunpack.c.h.b16 %v5642
    %v6334 = vunpack.c.l.b16 %v5643
    %v6335 = vunpack.c.h.b16 %v5643
    %v6336 = vunpack.c.l.b16 %v5644
    %v6337 = vunpack.c.h.b16 %v5644
    %v6338 = vunpack.c.l.b16 %v5645
    %v6339 = vunpack.c.h.b16 %v5645
    %v6340 = vunpack.c.l.b16 %v5646
    %v6341 = vunpack.c.h.b16 %v5646
    %v6342 = vunpack.c.l.b16 %v5647
    %v6343 = vunpack.c.h.b16 %v5647
    %v6344 = vunpack.c.l.b16 %v5648
    %v6345 = vunpack.c.h.b16 %v5648
    %v6346 = vunpack.c.l.b16 %v5649
    %v6347 = vunpack.c.h.b16 %v5649
    %v6348 = vunpack.c.l.b16 %v5650
    %v6349 = vunpack.c.h.b16 %v5650
    %v6350 = vunpack.c.l.b16 %v5651
    %v6351 = vunpack.c.h.b16 %v5651
    %v6352 = vunpack.c.l.b16 %v5652
    %v6353 = vunpack.c.h.b16 %v5652
    %v6354 = vunpack.c.l.b16 %v5653
    %v6355 = vunpack.c.h.b16 %v5653
    %v6356 = vunpack.c.l.b16 %v5654
    %v6357 = vunpack.c.h.b16 %v5654
    %v6358 = vunpack.c.l.b16 %v5655
    %v6359 = vunpack.c.h.b16 %v5655
    %v6360 = vunpack.c.l.b16 %v5656
    %v6361 = vunpack.c.h.b16 %v5656
    %v6362 = vunpack.c.l.b16 %v5657
    %v6363 = vunpack.c.h.b16 %v5657
    %v6364 = vunpack.c.l.b16 %v5658
    %v6365 = vunpack.c.h.b16 %v5658
    %v6366 = vunpack.c.l.b16 %v5659
    %v6367 = vunpack.c.h.b16 %v5659
    %v6368 = vunpack.c.l.b16 %v5660
    %v6369 = vunpack.c.h.b16 %v5660
    %v6370 = vunpack.c.l.b16 %v5661
    %v6371 = vunpack.c.h.b16 %v5661
    %v6372 = vunpack.c.l.b16 %v5662
    %v6373 = vunpack.c.h.b16 %v5662
    %v6374 = vunpack.c.l.b16 %v5663
    %v6375 = vunpack.c.h.b16 %v5663
    %v6376 = vunpack.c.l.b16 %v5664
    %v6377 = vunpack.c.h.b16 %v5664
    %v6378 = vunpack.c.l.b16 %v5665
    %v6379 = vunpack.c.h.b16 %v5665
    %v6380 = vunpack.c.l.b16 %v5666
    %v6381 = vunpack.c.h.b16 %v5666
    %v6382 = vunpack.c.l.b16 %v5667
    %v6383 = vunpack.c.h.b16 %v5667
    %v6384 = vunpack.c.l.b16 %v5668
    %v6385 = vunpack.c.h.b16 %v5668
    %v6386 = vunpack.c.l.b16 %v5669
    %v6387 = vunpack.c.h.b16 %v5669
    %v6388 = vunpack.c.l.b16 %v5670
    %v6389 = vunpack.c.h.b16 %v5670
    %v6390 = vunpack.c.l.b16 %v5671
    %v6391 = vunpack.c.h.b16 %v5671
    %v6392 = vunpack.c.l.b16 %v5672
    %v6393 = vunpack.c.h.b16 %v5672
    %v6394 = vunpack.c.l.b16 %v5673
    %v6395 = vunpack.c.h.b16 %v5673
    %v6396 = vunpack.c.l.b16 %v5674
    %v6397 = vunpack.c.h.b16 %v5674
    %v6398 = vunpack.c.l.b16 %v5675
    %v6399 = vunpack.c.h.b16 %v5675
    %v6400 = vunpack.c.l.b16 %v5676
    %v6401 = vunpack.c.h.b16 %v5676
    %v6402 = vunpack.c.l.b16 %v5677
    %v6403 = vunpack.c.h.b16 %v5677
    %v6404 = vunpack.c.l.b16 %v5678
    %v6405 = vunpack.c.h.b16 %v5678
    %v6406 = vunpack.c.l.b16 %v5679
    %v6407 = vunpack.c.h.b16 %v5679
    %v6408 = vunpack.c.l.b16 %v5680
    %v6409 = vunpack.c.h.b16 %v5680
    %v6410 = vunpack.c.l.b16 %v5681
    %v6411 = vunpack.c.h.b16 %v5681
    %v6412 = vunpack.c.l.b16 %v5682
    %v6413 = vunpack.c.h.b16 %v5682
    %v6414 = vunpack.c.l.b16 %v5683
    %v6415 = vunpack.c.h.b16 %v5683
    %v6416 = vunpack.c.l.b16 %v5684
    %v6417 = vunpack.c.h.b16 %v5684
    %v6418 = vunpack.c.l.b16 %v5685
    %v6419 = vunpack.c.h.b16 %v5685
    %v6420 = vunpack.c.l.b16 %v5686
    %v6421 = vunpack.c.h.b16 %v5686
    %v6422 = vunpack.c.l.b16 %v5687
    %v6423 = vunpack.c.h.b16 %v5687
    %v6424 = vunpack.c.l.b16 %v5688
    %v6425 = vunpack.c.h.b16 %v5688
    %v6426 = vunpack.c.l.b16 %v5689
    %v6427 = vunpack.c.h.b16 %v5689
    %v6428 = vunpack.c.l.b16 %v5690
    %v6429 = vunpack.c.h.b16 %v5690
    %v6430 = vunpack.c.l.b16 %v5691
    %v6431 = vunpack.c.h.b16 %v5691
    %v6432 = vunpack.c.l.b16 %v5692
    %v6433 = vunpack.c.h.b16 %v5692
    %v6434 = vunpack.c.l.b16 %v5693
    %v6435 = vunpack.c.h.b16 %v5693
    %v6436 = vunpack.c.l.b16 %v5694
    %v6437 = vunpack.c.h.b16 %v5694
    %v6438 = vunpack.c.l.b16 %v5695
    %v6439 = vunpack.c.h.b16 %v5695
    %v6440 = vunpack.c.l.b16 %v5696
    %v6441 = vunpack.c.h.b16 %v5696
    %v6442 = vunpack.c.l.b16 %v5697
    %v6443 = vunpack.c.h.b16 %v5697
    %v6444 = vunpack.c.l.b16 %v5698
    %v6445 = vunpack.c.h.b16 %v5698
    %v6446 = vunpack.c.l.b16 %v5699
    %v6447 = vunpack.c.h.b16 %v5699
    %v6448 = vunpack.c.l.b16 %v5700
    %v6449 = vunpack.c.h.b16 %v5700
    %v6450 = vunpack.c.l.b16 %v5701
    %v6451 = vunpack.c.h.b16 %v5701
    %v6452 = vunpack.c.l.b16 %v5702
    %v6453 = vunpack.c.h.b16 %v5702
    %v6454 = vunpack.c.l.b16 %v5703
    %v6455 = vunpack.c.h.b16 %v5703
    %v6456 = vunpack.c.l.b16 %v5704
    %v6457 = vunpack.c.h.b16 %v5704
    %v6458 = vunpack.c.l.b16 %v5705
    %v6459 = vunpack.c.h.b16 %v5705
    %v6460 = vunpack.c.l.b16 %v5706
    %v6461 = vunpack.c.h.b16 %v5706
    %v6462 = vunpack.c.l.b16 %v5707
    %v6463 = vunpack.c.h.b16 %v5707
    %v6464 = vunpack.c.l.b16 %v5708
    %v6465 = vunpack.c.h.b16 %v5708
    %v6466 = vunpack.c.l.b16 %v5709
    %v6467 = vunpack.c.h.b16 %v5709
    %v6468 = vunpack.c.l.b16 %v5710
    %v6469 = vunpack.c.h.b16 %v5710
    %v6470 = vunpack.c.l.b16 %v5711
    %v6471 = vunpack.c.h.b16 %v5711
    %v6472 = vunpack.c.l.b16 %v5712
    %v6473 = vunpack.c.h.b16 %v5712
    %v6474 = vunpack.c.l.b16 %v5713
    %v6475 = vunpack.c.h.b16 %v5713
    %v6476 = vunpack.c.l.b16 %v5714
    %v6477 = vunpack.c.h.b16 %v5714
    %v6478 = vunpack.c.l.b16 %v5715
    %v6479 = vunpack.c.h.b16 %v5715
    %v6480 = vunpack.c.l.b16 %v5716
    %v6481 = vunpack.c.h.b16 %v5716
    %v6482 = vunpack.c.l.b16 %v5717
    %v6483 = vunpack.c.h.b16 %v5717
    %v6484 = vunpack.c.l.b16 %v5718
    %v6485 = vunpack.c.h.b16 %v5718
    %v6486 = vunpack.c.l.b16 %v5719
    %v6487 = vunpack.c.h.b16 %v5719
    %v6488 = vunpack.c.l.b16 %v5720
    %v6489 = vunpack.c.h.b16 %v5720
    %v6490 = vunpack.c.l.b16 %v5721
    %v6491 = vunpack.c.h.b16 %v5721
    %v6492 = vunpack.c.l.b16 %v5722
    %v6493 = vunpack.c.h.b16 %v5722
    %v6494 = vunpack.c.l.b16 %v5723
    %v6495 = vunpack.c.h.b16 %v5723
    %v6496 = vunpack.c.l.b16 %v5724
    %v6497 = vunpack.c.h.b16 %v5724
    %v6498 = vunpack.c.l.b16 %v5725
    %v6499 = vunpack.c.h.b16 %v5725
    %v6500 = vunpack.c.l.b16 %v5726
    %v6501 = vunpack.c.h.b16 %v5726
    %v6502 = vunpack.c.l.b16 %v5727
    %v6503 = vunpack.c.h.b16 %v5727
    %v6504 = vunpack.c.l.b16 %v5728
    %v6505 = vunpack.c.h.b16 %v5728
    %v6506 = vunpack.c.l.b16 %v5729
    %v6507 = vunpack.c.h.b16 %v5729
    %v6508 = vunpack.c.l.b16 %v5730
    %v6509 = vunpack.c.h.b16 %v5730
    %v6510 = vunpack.c.l.b16 %v5731
    %v6511 = vunpack.c.h.b16 %v5731
    %v6512 = vunpack.c.l.b16 %v5732
    %v6513 = vunpack.c.h.b16 %v5732
    %v6514 = vunpack.c.l.b16 %v5733
    %v6515 = vunpack.c.h.b16 %v5733
    %v6516 = vunpack.c.l.b16 %v5734
    %v6517 = vunpack.c.h.b16 %v5734
    %v6518 = vunpack.c.l.b16 %v5735
    %v6519 = vunpack.c.h.b16 %v5735
    %v6520 = vunpack.c.l.b16 %v5736
    %v6521 = vunpack.c.h.b16 %v5736
    %v6522 = vunpack.c.l.b16 %v5737
    %v6523 = vunpack.c.h.b16 %v5737
    %v6524 = vunpack.c.l.b16 %v5738
    %v6525 = vunpack.c.h.b16 %v5738
    %v6526 = vunpack.c.l.b16 %v5739
    %v6527 = vunpack.c.h.b16 %v5739
    %v6528 = vunpack.c.l.b16 %v5740
    %v6529 = vunpack.c.h.b16 %v5740
    %v6530 = vunpack.c.l.b16 %v5741
    %v6531 = vunpack.c.h.b16 %v5741
    %v6532 = vpack.c.b16 %v6024, %v6020
    %v6533 = vpack.c.b16 %v6025, %v6021
    %v6534 = vpack.c.b16 %v6026, %v6022
    %v6535 = vpack.c.b16 %v6027, %v6023
    %v6536 = vpack.c.b16 %v6032, %v6028
    %v6537 = vpack.c.b16 %v6033, %v6029
    %v6538 = vpack.c.b16 %v6034, %v6030
    %v6539 = vpack.c.b16 %v6035, %v6031
    %v6540 = vpack.c.b16 %v6040, %v6036
    %v6541 = vpack.c.b16 %v6041, %v6037
    %v6542 = vpack.c.b16 %v6042, %v6038
    %v6543 = vpack.c.b16 %v6043, %v6039
    %v6544 = vpack.c.b16 %v6048, %v6044
    %v6545 = vpack.c.b16 %v6049, %v6045
    %v6546 = vpack.c.b16 %v6050, %v6046
    %v6547 = vpack.c.b16 %v6051, %v6047
    %v6548 = vpack.c.b16 %v6056, %v6052
    %v6549 = vpack.c.b16 %v6057, %v6053
    %v6550 = vpack.c.b16 %v6058, %v6054
    %v6551 = vpack.c.b16 %v6059, %v6055
    %v6552 = vpack.c.b16 %v6064, %v6060
    %v6553 = vpack.c.b16 %v6065, %v6061
    %v6554 = vpack.c.b16 %v6066, %v6062
    %v6555 = vpack.c.b16 %v6067, %v6063
    %v6556 = vpack.c.b16 %v6072, %v6068
    %v6557 = vpack.c.b16 %v6073, %v6069
    %v6558 = vpack.c.b16 %v6074, %v6070
    %v6559 = vpack.c.b16 %v6075, %v6071
    %v6560 = vpack.c.b16 %v6080, %v6076
    %v6561 = vpack.c.b16 %v6081, %v6077
    %v6562 = vpack.c.b16 %v6082, %v6078
    %v6563 = vpack.c.b16 %v6083, %v6079
    %v6564 = vpack.c.b16 %v6088, %v6084
    %v6565 = vpack.c.b16 %v6089, %v6085
    %v6566 = vpack.c.b16 %v6090, %v6086
    %v6567 = vpack.c.b16 %v6091, %v6087
    %v6568 = vpack.c.b16 %v6096, %v6092
    %v6569 = vpack.c.b16 %v6097, %v6093
    %v6570 = vpack.c.b16 %v6098, %v6094
    %v6571 = vpack.c.b16 %v6099, %v6095
    %v6572 = vpack.c.b16 %v6104, %v6100
    %v6573 = vpack.c.b16 %v6105, %v6101
    %v6574 = vpack.c.b16 %v6106, %v6102
    %v6575 = vpack.c.b16 %v6107, %v6103
    %v6576 = vpack.c.b16 %v6112, %v6108
    %v6577 = vpack.c.b16 %v6113, %v6109
    %v6578 = vpack.c.b16 %v6114, %v6110
    %v6579 = vpack.c.b16 %v6115, %v6111
    %v6580 = vpack.c.b16 %v6120, %v6116
    %v6581 = vpack.c.b16 %v6121, %v6117
    %v6582 = vpack.c.b16 %v6122, %v6118
    %v6583 = vpack.c.b16 %v6123, %v6119
    %v6584 = vpack.c.b16 %v6128, %v6124
    %v6585 = vpack.c.b16 %v6129, %v6125
    %v6586 = vpack.c.b16 %v6130, %v6126
    %v6587 = vpack.c.b16 %v6131, %v6127
    %v6588 = vpack.c.b16 %v6136, %v6132
    %v6589 = vpack.c.b16 %v6137, %v6133
    %v6590 = vpack.c.b16 %v6138, %v6134
    %v6591 = vpack.c.b16 %v6139, %v6135
    %v6592 = vpack.c.b16 %v6144, %v6140
    %v6593 = vpack.c.b16 %v6145, %v6141
    %v6594 = vpack.c.b16 %v6146, %v6142
    %v6595 = vpack.c.b16 %v6147, %v6143
    %v6596 = vpack.c.b16 %v6152, %v6148
    %v6597 = vpack.c.b16 %v6153, %v6149
    %v6598 = vpack.c.b16 %v6154, %v6150
    %v6599 = vpack.c.b16 %v6155, %v6151
    %v6600 = vpack.c.b16 %v6160, %v6156
    %v6601 = vpack.c.b16 %v6161, %v6157
    %v6602 = vpack.c.b16 %v6162, %v6158
    %v6603 = vpack.c.b16 %v6163, %v6159
    %v6604 = vpack.c.b16 %v6168, %v6164
    %v6605 = vpack.c.b16 %v6169, %v6165
    %v6606 = vpack.c.b16 %v6170, %v6166
    %v6607 = vpack.c.b16 %v6171, %v6167
    %v6608 = vpack.c.b16 %v6176, %v6172
    %v6609 = vpack.c.b16 %v6177, %v6173
    %v6610 = vpack.c.b16 %v6178, %v6174
    %v6611 = vpack.c.b16 %v6179, %v6175
    %v6612 = vpack.c.b16 %v6184, %v6180
    %v6613 = vpack.c.b16 %v6185, %v6181
    %v6614 = vpack.c.b16 %v6186, %v6182
    %v6615 = vpack.c.b16 %v6187, %v6183
    %v6616 = vpack.c.b16 %v6192, %v6188
    %v6617 = vpack.c.b16 %v6193, %v6189
    %v6618 = vpack.c.b16 %v6194, %v6190
    %v6619 = vpack.c.b16 %v6195, %v6191
    %v6620 = vpack.c.b16 %v6200, %v6196
    %v6621 = vpack.c.b16 %v6201, %v6197
    %v6622 = vpack.c.b16 %v6202, %v6198
    %v6623 = vpack.c.b16 %v6203, %v6199
    %v6624 = vpack.c.b16 %v6208, %v6204
    %v6625 = vpack.c.b16 %v6209, %v6205
    %v6626 = vpack.c.b16 %v6210, %v6206
    %v6627 = vpack.c.b16 %v6211, %v6207
    %v6628 = vpack.c.b16 %v6216, %v6212
    %v6629 = vpack.c.b16 %v6217, %v6213
    %v6630 = vpack.c.b16 %v6218, %v6214
    %v6631 = vpack.c.b16 %v6219, %v6215
    %v6632 = vpack.c.b16 %v6224, %v6220
    %v6633 = vpack.c.b16 %v6225, %v6221
    %v6634 = vpack.c.b16 %v6226, %v6222
    %v6635 = vpack.c.b16 %v6227, %v6223
    %v6636 = vpack.c.b16 %v6232, %v6228
    %v6637 = vpack.c.b16 %v6233, %v6229
    %v6638 = vpack.c.b16 %v6234, %v6230
    %v6639 = vpack.c.b16 %v6235, %v6231
    %v6640 = vpack.c.b16 %v6240, %v6236
    %v6641 = vpack.c.b16 %v6241, %v6237
    %v6642 = vpack.c.b16 %v6242, %v6238
    %v6643 = vpack.c.b16 %v6243, %v6239
    %v6644 = vpack.c.b16 %v6248, %v6244
    %v6645 = vpack.c.b16 %v6249, %v6245
    %v6646 = vpack.c.b16 %v6250, %v6246
    %v6647 = vpack.c.b16 %v6251, %v6247
    %v6648 = vpack.c.b16 %v6256, %v6252
    %v6649 = vpack.c.b16 %v6257, %v6253
    %v6650 = vpack.c.b16 %v6258, %v6254
    %v6651 = vpack.c.b16 %v6259, %v6255
    %v6652 = vpack.c.b16 %v6264, %v6260
    %v6653 = vpack.c.b16 %v6265, %v6261
    %v6654 = vpack.c.b16 %v6266, %v6262
    %v6655 = vpack.c.b16 %v6267, %v6263
    %v6656 = vpack.c.b16 %v6272, %v6268
    %v6657 = vpack.c.b16 %v6273, %v6269
    %v6658 = vpack.c.b16 %v6274, %v6270
    %v6659 = vpack.c.b16 %v6275, %v6271
    %v6660 = vpack.c.b16 %v6280, %v6276
    %v6661 = vpack.c.b16 %v6281, %v6277
    %v6662 = vpack.c.b16 %v6282, %v6278
    %v6663 = vpack.c.b16 %v6283, %v6279
    %v6664 = vpack.c.b16 %v6288, %v6284
    %v6665 = vpack.c.b16 %v6289, %v6285
    %v6666 = vpack.c.b16 %v6290, %v6286
    %v6667 = vpack.c.b16 %v6291, %v6287
    %v6668 = vpack.c.b16 %v6296, %v6292
    %v6669 = vpack.c.b16 %v6297, %v6293
    %v6670 = vpack.c.b16 %v6298, %v6294
    %v6671 = vpack.c.b16 %v6299, %v6295
    %v6672 = vpack.c.b16 %v6304, %v6300
    %v6673 = vpack.c.b16 %v6305, %v6301
    %v6674 = vpack.c.b16 %v6306, %v6302
    %v6675 = vpack.c.b16 %v6307, %v6303
    %v6676 = vpack.c.b16 %v6312, %v6308
    %v6677 = vpack.c.b16 %v6313, %v6309
    %v6678 = vpack.c.b16 %v6314, %v6310
    %v6679 = vpack.c.b16 %v6315, %v6311
    %v6680 = vpack.c.b16 %v6320, %v6316
    %v6681 = vpack.c.b16 %v6321, %v6317
    %v6682 = vpack.c.b16 %v6322, %v6318
    %v6683 = vpack.c.b16 %v6323, %v6319
    %v6684 = vpack.c.b16 %v6328, %v6324
    %v6685 = vpack.c.b16 %v6329, %v6325
    %v6686 = vpack.c.b16 %v6330, %v6326
    %v6687 = vpack.c.b16 %v6331, %v6327
    %v6688 = vpack.c.b16 %v6336, %v6332
    %v6689 = vpack.c.b16 %v6337, %v6333
    %v6690 = vpack.c.b16 %v6338, %v6334
    %v6691 = vpack.c.b16 %v6339, %v6335
    %v6692 = vpack.c.b16 %v6344, %v6340
    %v6693 = vpack.c.b16 %v6345, %v6341
    %v6694 = vpack.c.b16 %v6346, %v6342
    %v6695 = vpack.c.b16 %v6347, %v6343
    %v6696 = vpack.c.b16 %v6352, %v6348
    %v6697 = vpack.c.b16 %v6353, %v6349
    %v6698 = vpack.c.b16 %v6354, %v6350
    %v6699 = vpack.c.b16 %v6355, %v6351
    %v6700 = vpack.c.b16 %v6360, %v6356
    %v6701 = vpack.c.b16 %v6361, %v6357
    %v6702 = vpack.c.b16 %v6362, %v6358
    %v6703 = vpack.c.b16 %v6363, %v6359
    %v6704 = vpack.c.b16 %v6368, %v6364
    %v6705 = vpack.c.b16 %v6369, %v6365
    %v6706 = vpack.c.b16 %v6370, %v6366
    %v6707 = vpack.c.b16 %v6371, %v6367
    %v6708 = vpack.c.b16 %v6376, %v6372
    %v6709 = vpack.c.b16 %v6377, %v6373
    %v6710 = vpack.c.b16 %v6378, %v6374
    %v6711 = vpack.c.b16 %v6379, %v6375
    %v6712 = vpack.c.b16 %v6384, %v6380
    %v6713 = vpack.c.b16 %v6385, %v6381
    %v6714 = vpack.c.b16 %v6386, %v6382
    %v6715 = vpack.c.b16 %v6387, %v6383
    %v6716 = vpack.c.b16 %v6392, %v6388
    %v6717 = vpack.c.b16 %v6393, %v6389
    %v6718 = vpack.c.b16 %v6394, %v6390
    %v6719 = vpack.c.b16 %v6395, %v6391
    %v6720 = vpack.c.b16 %v6400, %v6396
    %v6721 = vpack.c.b16 %v6401, %v6397
    %v6722 = vpack.c.b16 %v6402, %v6398
    %v6723 = vpack.c.b16 %v6403, %v6399
    %v6724 = vpack.c.b16 %v6408, %v6404
    %v6725 = vpack.c.b16 %v6409, %v6405
    %v6726 = vpack.c.b16 %v6410, %v6406
    %v6727 = vpack.c.b16 %v6411, %v6407
    %v6728 = vpack.c.b16 %v6416, %v6412
    %v6729 = vpack.c.b16 %v6417, %v6413
    %v6730 = vpack.c.b16 %v6418, %v6414
    %v6731 = vpack.c.b16 %v6419, %v6415
    %v6732 = vpack.c.b16 %v6424, %v6420
    %v6733 = vpack.c.b16 %v6425, %v6421
    %v6734 = vpack.c.b16 %v6426, %v6422
    %v6735 = vpack.c.b16 %v6427, %v6423
    %v6736 = vpack.c.b16 %v6432, %v6428
    %v6737 = vpack.c.b16 %v6433, %v6429
    %v6738 = vpack.c.b16 %v6434, %v6430
    %v6739 = vpack.c.b16 %v6435, %v6431
    %v6740 = vpack.c.b16 %v6440, %v6436
    %v6741 = vpack.c.b16 %v6441, %v6437
    %v6742 = vpack.c.b16 %v6442, %v6438
    %v6743 = vpack.c.b16 %v6443, %v6439
    %v6744 = vpack.c.b16 %v6448, %v6444
    %v6745 = vpack.c.b16 %v6449, %v6445
    %v6746 = vpack.c.b16 %v6450, %v6446
    %v6747 = vpack.c.b16 %v6451, %v6447
    %v6748 = vpack.c.b16 %v6456, %v6452
    %v6749 = vpack.c.b16 %v6457, %v6453
    %v6750 = vpack.c.b16 %v6458, %v6454
    %v6751 = vpack.c.b16 %v6459, %v6455
    %v6752 = vpack.c.b16 %v6464, %v6460
    %v6753 = vpack.c.b16 %v6465, %v6461
    %v6754 = vpack.c.b16 %v6466, %v6462
    %v6755 = vpack.c.b16 %v6467, %v6463
    %v6756 = vpack.c.b16 %v6472, %v6468
    %v6757 = vpack.c.b16 %v6473, %v6469
    %v6758 = vpack.c.b16 %v6474, %v6470
    %v6759 = vpack.c.b16 %v6475, %v6471
    %v6760 = vpack.c.b16 %v6480, %v6476
    %v6761 = vpack.c.b16 %v6481, %v6477
    %v6762 = vpack.c.b16 %v6482, %v6478
    %v6763 = vpack.c.b16 %v6483, %v6479
    %v6764 = vpack.c.b16 %v6488, %v6484
    %v6765 = vpack.c.b16 %v6489, %v6485
    %v6766 = vpack.c.b16 %v6490, %v6486
    %v6767 = vpack.c.b16 %v6491, %v6487
    %v6768 = vpack.c.b16 %v6496, %v6492
    %v6769 = vpack.c.b16 %v6497, %v6493
    %v6770 = vpack.c.b16 %v6498, %v6494
    %v6771 = vpack.c.b16 %v6499, %v6495
    %v6772 = vpack.c.b16 %v6504, %v6500
    %v6773 = vpack.c.b16 %v6505, %v6501
    %v6774 = vpack.c.b16 %v6506, %v6502
    %v6775 = vpack.c.b16 %v6507, %v6503
    %v6776 = vpack.c.b16 %v6512, %v6508
    %v6777 = vpack.c.b16 %v6513, %v6509
    %v6778 = vpack.c.b16 %v6514, %v6510
    %v6779 = vpack.c.b16 %v6515, %v6511
    %v6780 = vpack.c.b16 %v6520, %v6516
    %v6781 = vpack.c.b16 %v6521, %v6517
    %v6782 = vpack.c.b16 %v6522, %v6518
    %v6783 = vpack.c.b16 %v6523, %v6519
    %v6784 = vpack.c.b16 %v6528, %v6524
    %v6785 = vpack.c.b16 %v6529, %v6525
    %v6786 = vpack.c.b16 %v6530, %v6526
    %v6787 = vpack.c.b16 %v6531, %v6527
    %7044 = vmatprep.subr.bf16.mxu0 %v6533
    %7045 = vmatpush1.bf16.msra.mxu0 %v6532
    %7046 = vmatprep.subr.bf16.mxu0 %v6537
    %7047 = vmatpush1.bf16.msra.mxu0 %v6536
    %7048 = vmatprep.subr.bf16.mxu0 %v6541
    %7049 = vmatpush1.bf16.msra.mxu0 %v6540
    %7050 = vmatprep.subr.bf16.mxu0 %v6545
    %7051 = vmatpush1.bf16.msra.mxu0 %v6544
    %7052 = vmatprep.subr.bf16.mxu0 %v6549
    %7053 = vmatpush1.bf16.msra.mxu0 %v6548
    %7054 = vmatprep.subr.bf16.mxu0 %v6553
    %7055 = vmatpush1.bf16.msra.mxu0 %v6552
    %7056 = vmatprep.subr.bf16.mxu0 %v6557
    %7057 = vmatpush1.bf16.msra.mxu0 %v6556
    %7058 = vmatprep.subr.bf16.mxu0 %v6561
    %7059 = vmatpush1.bf16.msra.mxu0 %v6560
    %7060 = vmatprep.subr.bf16.mxu0 %v6565
    %7061 = vmatpush1.bf16.msra.mxu0 %v6564
    %7062 = vmatprep.subr.bf16.mxu0 %v6569
    %7063 = vmatpush1.bf16.msra.mxu0 %v6568
    %7064 = vmatprep.subr.bf16.mxu0 %v6573
    %7065 = vmatpush1.bf16.msra.mxu0 %v6572
    %7066 = vmatprep.subr.bf16.mxu0 %v6577
    %7067 = vmatpush1.bf16.msra.mxu0 %v6576
    %7068 = vmatprep.subr.bf16.mxu0 %v6581
    %7069 = vmatpush1.bf16.msra.mxu0 %v6580
    %7070 = vmatprep.subr.bf16.mxu0 %v6585
    %7071 = vmatpush1.bf16.msra.mxu0 %v6584
    %7072 = vmatprep.subr.bf16.mxu0 %v6589
    %7073 = vmatpush1.bf16.msra.mxu0 %v6588
    %7074 = vmatprep.subr.bf16.mxu0 %v6593
    %7075 = vmatpush1.bf16.msra.mxu0 %v6592
    %7076 = vmatprep.mubr.bf16.mxu0 %v5423
    %7077 = vmatmul.mubr.bf16.gmra.mrb[0].mxu0 %v5422
    %v7078 = vpop.f32.mrb[0].mxu0
    %v7079 = vadd.f32 %v5747, %v7078
    %v7080 = vpop.f32.mrb[0].mxu0
    %v7081 = vadd.f32 %v5751, %v7080
    %v7082 = vpop.f32.mrb[0].mxu0
    %v7083 = vadd.f32 %v5747, %v7082
    %v7084 = vpop.f32.mrb[0].mxu0
    %v7085 = vadd.f32 %v5751, %v7084
    %7086 = vmatprep.mubr.bf16.mxu0 %v5431
    %7087 = vmatmul.mubr.bf16.gmra.mrb[0].mxu0 %v5430
    %v7088 = vpop.f32.mrb[0].mxu0
    %v7089 = vadd.f32 %v5747, %v7088
    %v7090 = vpop.f32.mrb[0].mxu0
    %v7091 = vadd.f32 %v5751, %v7090
    %v7092 = vpop.f32.mrb[0].mxu0
    %v7093 = vadd.f32 %v5747, %v7092
    %v7094 = vpop.f32.mrb[0].mxu0
    %v7095 = vadd.f32 %v5751, %v7094
    %7096 = vmatprep.mubr.bf16.mxu0 %v5439
    %7097 = vmatmul.mubr.bf16.gmra.mrb[0].mxu0 %v5438
    %v7098 = vpop.f32.mrb[0].mxu0
    %v7099 = vadd.f32 %v5747, %v7098
    %v7100 = vpop.f32.mrb[0].mxu0
    %v7101 = vadd.f32 %v5751, %v7100
    %v7102 = vpop.f32.mrb[0].mxu0
    %v7103 = vadd.f32 %v5747, %v7102
    %v7104 = vpop.f32.mrb[0].mxu0
    %v7105 = vadd.f32 %v5751, %v7104
    %7106 = vmatprep.mubr.bf16.mxu0 %v5447
    %7107 = vmatmul.mubr.bf16.gmra.mrb[0].mxu0 %v5446
    %v7108 = vpop.f32.mrb[0].mxu0
    %v7109 = vadd.f32 %v5747, %v7108
    %v7110 = vpop.f32.mrb[0].mxu0
    %v7111 = vadd.f32 %v5751, %v7110
    %v7112 = vpop.f32.mrb[0].mxu0
    %v7113 = vadd.f32 %v5747, %v7112
    %v7114 = vpop.f32.mrb[0].mxu0
    %v7115 = vadd.f32 %v5751, %v7114
    %7116 = vmatprep.mubr.bf16.mxu0 %v5455
    %7117 = vmatmul.mubr.bf16.gmra.mrb[0].mxu0 %v5454
    %v7118 = vpop.f32.mrb[0].mxu0
    %v7119 = vadd.f32 %v5747, %v7118
    %v7120 = vpop.f32.mrb[0].mxu0
    %v7121 = vadd.f32 %v5751, %v7120
    %v7122 = vpop.f32.mrb[0].mxu0
    %v7123 = vadd.f32 %v5747, %v7122
    %v7124 = vpop.f32.mrb[0].mxu0
    %v7125 = vadd.f32 %v5751, %v7124
    %7126 = vmatprep.mubr.bf16.mxu0 %v5463
    %7127 = vmatmul.mubr.bf16.gmra.mrb[0].mxu0 %v5462
    %v7128 = vpop.f32.mrb[0].mxu0
    %v7129 = vadd.f32 %v5747, %v7128
    %v7130 = vpop.f32.mrb[0].mxu0
    %v7131 = vadd.f32 %v5751, %v7130
    %v7132 = vpop.f32.mrb[0].mxu0
    %v7133 = vadd.f32 %v5747, %v7132
    %v7134 = vpop.f32.mrb[0].mxu0
    %v7135 = vadd.f32 %v5751, %v7134
    %7136 = vmatprep.mubr.bf16.mxu0 %v5471
    %7137 = vmatmul.mubr.bf16.gmra.mrb[0].mxu0 %v5470
    %v7138 = vpop.f32.mrb[0].mxu0
    %v7139 = vadd.f32 %v5747, %v7138
    %v7140 = vpop.f32.mrb[0].mxu0
    %v7141 = vadd.f32 %v5751, %v7140
    %v7142 = vpop.f32.mrb[0].mxu0
    %v7143 = vadd.f32 %v5747, %v7142
    %v7144 = vpop.f32.mrb[0].mxu0
    %v7145 = vadd.f32 %v5751, %v7144
    %7146 = vmatprep.mubr.bf16.mxu0 %v5479
    %7147 = vmatmul.mubr.bf16.gmra.mrb[0].mxu0 %v5478
    %v7148 = vpop.f32.mrb[0].mxu0
    %v7149 = vadd.f32 %v5747, %v7148
    %v7150 = vpop.f32.mrb[0].mxu0
    %v7151 = vadd.f32 %v5751, %v7150
    %v7152 = vpop.f32.mrb[0].mxu0
    %v7153 = vadd.f32 %v5747, %v7152
    %v7154 = vpop.f32.mrb[0].mxu0
    %v7155 = vadd.f32 %v5751, %v7154
    %7156 = vdwg.mxu0
    %7157 = vmatprep.subr.bf16.mxu0 %v6597
    %7158 = vmatpush1.bf16.msra.mxu0 %v6596
    %7159 = vmatprep.subr.bf16.mxu0 %v6601
    %7160 = vmatpush1.bf16.msra.mxu0 %v6600
    %7161 = vmatprep.subr.bf16.mxu0 %v6605
    %7162 = vmatpush1.bf16.msra.mxu0 %v6604
    %7163 = vmatprep.subr.bf16.mxu0 %v6609
    %7164 = vmatpush1.bf16.msra.mxu0 %v6608
    %7165 = vmatprep.subr.bf16.mxu0 %v6613
    %7166 = vmatpush1.bf16.msra.mxu0 %v6612
    %7167 = vmatprep.subr.bf16.mxu0 %v6617
    %7168 = vmatpush1.bf16.msra.mxu0 %v6616
    %7169 = vmatprep.subr.bf16.mxu0 %v6621
    %7170 = vmatpush1.bf16.msra.mxu0 %v6620
    %7171 = vmatprep.subr.bf16.mxu0 %v6625
    %7172 = vmatpush1.bf16.msra.mxu0 %v6624
    %7173 = vmatprep.subr.bf16.mxu0 %v6629
    %7174 = vmatpush1.bf16.msra.mxu0 %v6628
    %7175 = vmatprep.subr.bf16.mxu0 %v6633
    %7176 = vmatpush1.bf16.msra.mxu0 %v6632
    %7177 = vmatprep.subr.bf16.mxu0 %v6637
    %7178 = vmatpush1.bf16.msra.mxu0 %v6636
    %7179 = vmatprep.subr.bf16.mxu0 %v6641
    %7180 = vmatpush1.bf16.msra.mxu0 %v6640
    %7181 = vmatprep.subr.bf16.mxu0 %v6645
    %7182 = vmatpush1.bf16.msra.mxu0 %v6644
    %7183 = vmatprep.subr.bf16.mxu0 %v6649
    %7184 = vmatpush1.bf16.msra.mxu0 %v6648
    %7185 = vmatprep.subr.bf16.mxu0 %v6653
    %7186 = vmatpush1.bf16.msra.mxu0 %v6652
    %7187 = vmatprep.subr.bf16.mxu0 %v6657
    %7188 = vmatpush1.bf16.msra.mxu0 %v6656
    %7189 = vmatprep.mubr.bf16.mxu0 %v5425
    %7190 = vmatmul.mubr.bf16.gmra.mrb[0].mxu0 %v5424
    %v7191 = vpop.f32.mrb[0].mxu0
    %v7192 = vadd.f32 %v7079, %v7191
    %v7193 = vpop.f32.mrb[0].mxu0
    %v7194 = vadd.f32 %v7081, %v7193
    %v7195 = vpop.f32.mrb[0].mxu0
    %v7196 = vadd.f32 %v7083, %v7195
    %v7197 = vpop.f32.mrb[0].mxu0
    %v7198 = vadd.f32 %v7085, %v7197
    %7199 = vmatprep.mubr.bf16.mxu0 %v5433
    %7200 = vmatmul.mubr.bf16.gmra.mrb[0].mxu0 %v5432
    %v7201 = vpop.f32.mrb[0].mxu0
    %v7202 = vadd.f32 %v7089, %v7201
    %v7203 = vpop.f32.mrb[0].mxu0
    %v7204 = vadd.f32 %v7091, %v7203
    %v7205 = vpop.f32.mrb[0].mxu0
    %v7206 = vadd.f32 %v7093, %v7205
    %v7207 = vpop.f32.mrb[0].mxu0
    %v7208 = vadd.f32 %v7095, %v7207
    %7209 = vmatprep.mubr.bf16.mxu0 %v5441
    %7210 = vmatmul.mubr.bf16.gmra.mrb[0].mxu0 %v5440
    %v7211 = vpop.f32.mrb[0].mxu0
    %v7212 = vadd.f32 %v7099, %v7211
    %v7213 = vpop.f32.mrb[0].mxu0
    %v7214 = vadd.f32 %v7101, %v7213
    %v7215 = vpop.f32.mrb[0].mxu0
    %v7216 = vadd.f32 %v7103, %v7215
    %v7217 = vpop.f32.mrb[0].mxu0
    %v7218 = vadd.f32 %v7105, %v7217
    %7219 = vmatprep.mubr.bf16.mxu0 %v5449
    %7220 = vmatmul.mubr.bf16.gmra.mrb[0].mxu0 %v5448
    %v7221 = vpop.f32.mrb[0].mxu0
    %v7222 = vadd.f32 %v7109, %v7221
    %v7223 = vpop.f32.mrb[0].mxu0
    %v7224 = vadd.f32 %v7111, %v7223
    %v7225 = vpop.f32.mrb[0].mxu0
    %v7226 = vadd.f32 %v7113, %v7225
    %v7227 = vpop.f32.mrb[0].mxu0
    %v7228 = vadd.f32 %v7115, %v7227
    %7229 = vmatprep.mubr.bf16.mxu0 %v5457
    %7230 = vmatmul.mubr.bf16.gmra.mrb[0].mxu0 %v5456
    %v7231 = vpop.f32.mrb[0].mxu0
    %v7232 = vadd.f32 %v7119, %v7231
    %v7233 = vpop.f32.mrb[0].mxu0
    %v7234 = vadd.f32 %v7121, %v7233
    %v7235 = vpop.f32.mrb[0].mxu0
    %v7236 = vadd.f32 %v7123, %v7235
    %v7237 = vpop.f32.mrb[0].mxu0
    %v7238 = vadd.f32 %v7125, %v7237
    %7239 = vmatprep.mubr.bf16.mxu0 %v5465
    %7240 = vmatmul.mubr.bf16.gmra.mrb[0].mxu0 %v5464
    %v7241 = vpop.f32.mrb[0].mxu0
    %v7242 = vadd.f32 %v7129, %v7241
    %v7243 = vpop.f32.mrb[0].mxu0
    %v7244 = vadd.f32 %v7131, %v7243
    %v7245 = vpop.f32.mrb[0].mxu0
    %v7246 = vadd.f32 %v7133, %v7245
    %v7247 = vpop.f32.mrb[0].mxu0
    %v7248 = vadd.f32 %v7135, %v7247
    %7249 = vmatprep.mubr.bf16.mxu0 %v5473
    %7250 = vmatmul.mubr.bf16.gmra.mrb[0].mxu0 %v5472
    %v7251 = vpop.f32.mrb[0].mxu0
    %v7252 = vadd.f32 %v7139, %v7251
    %v7253 = vpop.f32.mrb[0].mxu0
    %v7254 = vadd.f32 %v7141, %v7253
    %v7255 = vpop.f32.mrb[0].mxu0
    %v7256 = vadd.f32 %v7143, %v7255
    %v7257 = vpop.f32.mrb[0].mxu0
    %v7258 = vadd.f32 %v7145, %v7257
    %7259 = vmatprep.mubr.bf16.mxu0 %v5481
    %7260 = vmatmul.mubr.bf16.gmra.mrb[0].mxu0 %v5480
    %v7261 = vpop.f32.mrb[0].mxu0
    %v7262 = vadd.f32 %v7149, %v7261
    %v7263 = vpop.f32.mrb[0].mxu0
    %v7264 = vadd.f32 %v7151, %v7263
    %v7265 = vpop.f32.mrb[0].mxu0
    %v7266 = vadd.f32 %v7153, %v7265
    %v7267 = vpop.f32.mrb[0].mxu0
    %v7268 = vadd.f32 %v7155, %v7267
    %7269 = vdwg.mxu0
    %7270 = vmatprep.subr.bf16.mxu0 %v6661
    %7271 = vmatpush1.bf16.msra.mxu0 %v6660
    %7272 = vmatprep.subr.bf16.mxu0 %v6665
    %7273 = vmatpush1.bf16.msra.mxu0 %v6664
    %7274 = vmatprep.subr.bf16.mxu0 %v6669
    %7275 = vmatpush1.bf16.msra.mxu0 %v6668
    %7276 = vmatprep.subr.bf16.mxu0 %v6673
    %7277 = vmatpush1.bf16.msra.mxu0 %v6672
    %7278 = vmatprep.subr.bf16.mxu0 %v6677
    %7279 = vmatpush1.bf16.msra.mxu0 %v6676
    %7280 = vmatprep.subr.bf16.mxu0 %v6681
    %7281 = vmatpush1.bf16.msra.mxu0 %v6680
    %7282 = vmatprep.subr.bf16.mxu0 %v6685
    %7283 = vmatpush1.bf16.msra.mxu0 %v6684
    %7284 = vmatprep.subr.bf16.mxu0 %v6689
    %7285 = vmatpush1.bf16.msra.mxu0 %v6688
    %7286 = vmatprep.subr.bf16.mxu0 %v6693
    %7287 = vmatpush1.bf16.msra.mxu0 %v6692
    %7288 = vmatprep.subr.bf16.mxu0 %v6697
    %7289 = vmatpush1.bf16.msra.mxu0 %v6696
    %7290 = vmatprep.subr.bf16.mxu0 %v6701
    %7291 = vmatpush1.bf16.msra.mxu0 %v6700
    %7292 = vmatprep.subr.bf16.mxu0 %v6705
    %7293 = vmatpush1.bf16.msra.mxu0 %v6704
    %7294 = vmatprep.subr.bf16.mxu0 %v6709
    %7295 = vmatpush1.bf16.msra.mxu0 %v6708
    %7296 = vmatprep.subr.bf16.mxu0 %v6713
    %7297 = vmatpush1.bf16.msra.mxu0 %v6712
    %7298 = vmatprep.subr.bf16.mxu0 %v6717
    %7299 = vmatpush1.bf16.msra.mxu0 %v6716
    %7300 = vmatprep.subr.bf16.mxu0 %v6721
    %7301 = vmatpush1.bf16.msra.mxu0 %v6720
    %7302 = vmatprep.mubr.bf16.mxu0 %v5427
    %7303 = vmatmul.mubr.bf16.gmra.mrb[0].mxu0 %v5426
    %v7304 = vpop.f32.mrb[0].mxu0
    %v7305 = vadd.f32 %v7192, %v7304
    %v7306 = vpop.f32.mrb[0].mxu0
    %v7307 = vadd.f32 %v7194, %v7306
    %v7308 = vpop.f32.mrb[0].mxu0
    %v7309 = vadd.f32 %v7196, %v7308
    %v7310 = vpop.f32.mrb[0].mxu0
    %v7311 = vadd.f32 %v7198, %v7310
    %7312 = vmatprep.mubr.bf16.mxu0 %v5435
    %7313 = vmatmul.mubr.bf16.gmra.mrb[0].mxu0 %v5434
    %v7314 = vpop.f32.mrb[0].mxu0
    %v7315 = vadd.f32 %v7202, %v7314
    %v7316 = vpop.f32.mrb[0].mxu0
    %v7317 = vadd.f32 %v7204, %v7316
    %v7318 = vpop.f32.mrb[0].mxu0
    %v7319 = vadd.f32 %v7206, %v7318
    %v7320 = vpop.f32.mrb[0].mxu0
    %v7321 = vadd.f32 %v7208, %v7320
    %7322 = vmatprep.mubr.bf16.mxu0 %v5443
    %7323 = vmatmul.mubr.bf16.gmra.mrb[0].mxu0 %v5442
    %v7324 = vpop.f32.mrb[0].mxu0
    %v7325 = vadd.f32 %v7212, %v7324
    %v7326 = vpop.f32.mrb[0].mxu0
    %v7327 = vadd.f32 %v7214, %v7326
    %v7328 = vpop.f32.mrb[0].mxu0
    %v7329 = vadd.f32 %v7216, %v7328
    %v7330 = vpop.f32.mrb[0].mxu0
    %v7331 = vadd.f32 %v7218, %v7330
    %7332 = vmatprep.mubr.bf16.mxu0 %v5451
    %7333 = vmatmul.mubr.bf16.gmra.mrb[0].mxu0 %v5450
    %v7334 = vpop.f32.mrb[0].mxu0
    %v7335 = vadd.f32 %v7222, %v7334
    %v7336 = vpop.f32.mrb[0].mxu0
    %v7337 = vadd.f32 %v7224, %v7336
    %v7338 = vpop.f32.mrb[0].mxu0
    %v7339 = vadd.f32 %v7226, %v7338
    %v7340 = vpop.f32.mrb[0].mxu0
    %v7341 = vadd.f32 %v7228, %v7340
    %7342 = vmatprep.mubr.bf16.mxu0 %v5459
    %7343 = vmatmul.mubr.bf16.gmra.mrb[0].mxu0 %v5458
    %v7344 = vpop.f32.mrb[0].mxu0
    %v7345 = vadd.f32 %v7232, %v7344
    %v7346 = vpop.f32.mrb[0].mxu0
    %v7347 = vadd.f32 %v7234, %v7346
    %v7348 = vpop.f32.mrb[0].mxu0
    %v7349 = vadd.f32 %v7236, %v7348
    %v7350 = vpop.f32.mrb[0].mxu0
    %v7351 = vadd.f32 %v7238, %v7350
    %7352 = vmatprep.mubr.bf16.mxu0 %v5467
    %7353 = vmatmul.mubr.bf16.gmra.mrb[0].mxu0 %v5466
    %v7354 = vpop.f32.mrb[0].mxu0
    %v7355 = vadd.f32 %v7242, %v7354
    %v7356 = vpop.f32.mrb[0].mxu0
    %v7357 = vadd.f32 %v7244, %v7356
    %v7358 = vpop.f32.mrb[0].mxu0
    %v7359 = vadd.f32 %v7246, %v7358
    %v7360 = vpop.f32.mrb[0].mxu0
    %v7361 = vadd.f32 %v7248, %v7360
    %7362 = vmatprep.mubr.bf16.mxu0 %v5475
    %7363 = vmatmul.mubr.bf16.gmra.mrb[0].mxu0 %v5474
    %v7364 = vpop.f32.mrb[0].mxu0
    %v7365 = vadd.f32 %v7252, %v7364
    %v7366 = vpop.f32.mrb[0].mxu0
    %v7367 = vadd.f32 %v7254, %v7366
    %v7368 = vpop.f32.mrb[0].mxu0
    %v7369 = vadd.f32 %v7256, %v7368
    %v7370 = vpop.f32.mrb[0].mxu0
    %v7371 = vadd.f32 %v7258, %v7370
    %7372 = vmatprep.mubr.bf16.mxu0 %v5483
    %7373 = vmatmul.mubr.bf16.gmra.mrb[0].mxu0 %v5482
    %v7374 = vpop.f32.mrb[0].mxu0
    %v7375 = vadd.f32 %v7262, %v7374
    %v7376 = vpop.f32.mrb[0].mxu0
    %v7377 = vadd.f32 %v7264, %v7376
    %v7378 = vpop.f32.mrb[0].mxu0
    %v7379 = vadd.f32 %v7266, %v7378
    %v7380 = vpop.f32.mrb[0].mxu0
    %v7381 = vadd.f32 %v7268, %v7380
    %7382 = vdwg.mxu0
    %7383 = vmatprep.subr.bf16.mxu0 %v6725
    %7384 = vmatpush1.bf16.msra.mxu0 %v6724
    %7385 = vmatprep.subr.bf16.mxu0 %v6729
    %7386 = vmatpush1.bf16.msra.mxu0 %v6728
    %7387 = vmatprep.subr.bf16.mxu0 %v6733
    %7388 = vmatpush1.bf16.msra.mxu0 %v6732
    %7389 = vmatprep.subr.bf16.mxu0 %v6737
    %7390 = vmatpush1.bf16.msra.mxu0 %v6736
    %7391 = vmatprep.subr.bf16.mxu0 %v6741
    %7392 = vmatpush1.bf16.msra.mxu0 %v6740
    %7393 = vmatprep.subr.bf16.mxu0 %v6745
    %7394 = vmatpush1.bf16.msra.mxu0 %v6744
    %7395 = vmatprep.subr.bf16.mxu0 %v6749
    %7396 = vmatpush1.bf16.msra.mxu0 %v6748
    %7397 = vmatprep.subr.bf16.mxu0 %v6753
    %7398 = vmatpush1.bf16.msra.mxu0 %v6752
    %7399 = vmatprep.subr.bf16.mxu0 %v6757
    %7400 = vmatpush1.bf16.msra.mxu0 %v6756
    %7401 = vmatprep.subr.bf16.mxu0 %v6761
    %7402 = vmatpush1.bf16.msra.mxu0 %v6760
    %7403 = vmatprep.subr.bf16.mxu0 %v6765
    %7404 = vmatpush1.bf16.msra.mxu0 %v6764
    %7405 = vmatprep.subr.bf16.mxu0 %v6769
    %7406 = vmatpush1.bf16.msra.mxu0 %v6768
    %7407 = vmatprep.subr.bf16.mxu0 %v6773
    %7408 = vmatpush1.bf16.msra.mxu0 %v6772
    %7409 = vmatprep.subr.bf16.mxu0 %v6777
    %7410 = vmatpush1.bf16.msra.mxu0 %v6776
    %7411 = vmatprep.subr.bf16.mxu0 %v6781
    %7412 = vmatpush1.bf16.msra.mxu0 %v6780
    %7413 = vmatprep.subr.bf16.mxu0 %v6785
    %7414 = vmatpush1.bf16.msra.mxu0 %v6784
    %7415 = vmatprep.mubr.bf16.mxu0 %v5429
    %7416 = vmatmul.mubr.bf16.gmra.mrb[0].mxu0 %v5428
    %v7417 = vpop.f32.mrb[0].mxu0
    %v7418 = vadd.f32 %v7305, %v7417
    %v7419 = vpop.f32.mrb[0].mxu0
    %v7420 = vadd.f32 %v7307, %v7419
    %v7421 = vpop.f32.mrb[0].mxu0
    %v7422 = vadd.f32 %v7309, %v7421
    %v7423 = vpop.f32.mrb[0].mxu0
    %v7424 = vadd.f32 %v7311, %v7423
    %7425 = vmatprep.mubr.bf16.mxu0 %v5437
    %7426 = vmatmul.mubr.bf16.gmra.mrb[0].mxu0 %v5436
    %v7427 = vpop.f32.mrb[0].mxu0
    %v7428 = vadd.f32 %v7315, %v7427
    %v7429 = vpop.f32.mrb[0].mxu0
    %v7430 = vadd.f32 %v7317, %v7429
    %v7431 = vpop.f32.mrb[0].mxu0
    %v7432 = vadd.f32 %v7319, %v7431
    %v7433 = vpop.f32.mrb[0].mxu0
    %v7434 = vadd.f32 %v7321, %v7433
    %7435 = vmatprep.mubr.bf16.mxu0 %v5445
    %7436 = vmatmul.mubr.bf16.gmra.mrb[0].mxu0 %v5444
    %v7437 = vpop.f32.mrb[0].mxu0
    %v7438 = vadd.f32 %v7325, %v7437
    %v7439 = vpop.f32.mrb[0].mxu0
    %v7440 = vadd.f32 %v7327, %v7439
    %v7441 = vpop.f32.mrb[0].mxu0
    %v7442 = vadd.f32 %v7329, %v7441
    %v7443 = vpop.f32.mrb[0].mxu0
    %v7444 = vadd.f32 %v7331, %v7443
    %7445 = vmatprep.mubr.bf16.mxu0 %v5453
    %7446 = vmatmul.mubr.bf16.gmra.mrb[0].mxu0 %v5452
    %v7447 = vpop.f32.mrb[0].mxu0
    %v7448 = vadd.f32 %v7335, %v7447
    %v7449 = vpop.f32.mrb[0].mxu0
    %v7450 = vadd.f32 %v7337, %v7449
    %v7451 = vpop.f32.mrb[0].mxu0
    %v7452 = vadd.f32 %v7339, %v7451
    %v7453 = vpop.f32.mrb[0].mxu0
    %v7454 = vadd.f32 %v7341, %v7453
    %7455 = vmatprep.mubr.bf16.mxu0 %v5461
    %7456 = vmatmul.mubr.bf16.gmra.mrb[0].mxu0 %v5460
    %v7457 = vpop.f32.mrb[0].mxu0
    %v7458 = vadd.f32 %v7345, %v7457
    %v7459 = vpop.f32.mrb[0].mxu0
    %v7460 = vadd.f32 %v7347, %v7459
    %v7461 = vpop.f32.mrb[0].mxu0
    %v7462 = vadd.f32 %v7349, %v7461
    %v7463 = vpop.f32.mrb[0].mxu0
    %v7464 = vadd.f32 %v7351, %v7463
    %7465 = vmatprep.mubr.bf16.mxu0 %v5469
    %7466 = vmatmul.mubr.bf16.gmra.mrb[0].mxu0 %v5468
    %v7467 = vpop.f32.mrb[0].mxu0
    %v7468 = vadd.f32 %v7355, %v7467
    %v7469 = vpop.f32.mrb[0].mxu0
    %v7470 = vadd.f32 %v7357, %v7469
    %v7471 = vpop.f32.mrb[0].mxu0
    %v7472 = vadd.f32 %v7359, %v7471
    %v7473 = vpop.f32.mrb[0].mxu0
    %v7474 = vadd.f32 %v7361, %v7473
    %7475 = vmatprep.mubr.bf16.mxu0 %v5477
    %7476 = vmatmul.mubr.bf16.gmra.mrb[0].mxu0 %v5476
    %v7477 = vpop.f32.mrb[0].mxu0
    %v7478 = vadd.f32 %v7365, %v7477
    %v7479 = vpop.f32.mrb[0].mxu0
    %v7480 = vadd.f32 %v7367, %v7479
    %v7481 = vpop.f32.mrb[0].mxu0
    %v7482 = vadd.f32 %v7369, %v7481
    %v7483 = vpop.f32.mrb[0].mxu0
    %v7484 = vadd.f32 %v7371, %v7483
    %7485 = vmatprep.mubr.bf16.mxu0 %v5485
    %7486 = vmatmul.mubr.bf16.gmra.mrb[0].mxu0 %v5484
    %v7487 = vpop.f32.mrb[0].mxu0
    %v7488 = vadd.f32 %v7375, %v7487
    %v7489 = vpop.f32.mrb[0].mxu0
    %v7490 = vadd.f32 %v7377, %v7489
    %v7491 = vpop.f32.mrb[0].mxu0
    %v7492 = vadd.f32 %v7379, %v7491
    %v7493 = vpop.f32.mrb[0].mxu0
    %v7494 = vadd.f32 %v7381, %v7493
    %7495 = vdwg.mxu0
    %7496 = vmatprep.subr.bf16.mxu0 %v6535
    %7497 = vmatpush1.bf16.msra.mxu0 %v6534
    %7498 = vmatprep.subr.bf16.mxu0 %v6539
    %7499 = vmatpush1.bf16.msra.mxu0 %v6538
    %7500 = vmatprep.subr.bf16.mxu0 %v6543
    %7501 = vmatpush1.bf16.msra.mxu0 %v6542
    %7502 = vmatprep.subr.bf16.mxu0 %v6547
    %7503 = vmatpush1.bf16.msra.mxu0 %v6546
    %7504 = vmatprep.subr.bf16.mxu0 %v6551
    %7505 = vmatpush1.bf16.msra.mxu0 %v6550
    %7506 = vmatprep.subr.bf16.mxu0 %v6555
    %7507 = vmatpush1.bf16.msra.mxu0 %v6554
    %7508 = vmatprep.subr.bf16.mxu0 %v6559
    %7509 = vmatpush1.bf16.msra.mxu0 %v6558
    %7510 = vmatprep.subr.bf16.mxu0 %v6563
    %7511 = vmatpush1.bf16.msra.mxu0 %v6562
    %7512 = vmatprep.subr.bf16.mxu0 %v6567
    %7513 = vmatpush1.bf16.msra.mxu0 %v6566
    %7514 = vmatprep.subr.bf16.mxu0 %v6571
    %7515 = vmatpush1.bf16.msra.mxu0 %v6570
    %7516 = vmatprep.subr.bf16.mxu0 %v6575
    %7517 = vmatpush1.bf16.msra.mxu0 %v6574
    %7518 = vmatprep.subr.bf16.mxu0 %v6579
    %7519 = vmatpush1.bf16.msra.mxu0 %v6578
    %7520 = vmatprep.subr.bf16.mxu0 %v6583
    %7521 = vmatpush1.bf16.msra.mxu0 %v6582
    %7522 = vmatprep.subr.bf16.mxu0 %v6587
    %7523 = vmatpush1.bf16.msra.mxu0 %v6586
    %7524 = vmatprep.subr.bf16.mxu0 %v6591
    %7525 = vmatpush1.bf16.msra.mxu0 %v6590
    %7526 = vmatprep.subr.bf16.mxu0 %v6595
    %7527 = vmatpush1.bf16.msra.mxu0 %v6594
    %7528 = vmatprep.mubr.bf16.mxu0 %v5423
    %7529 = vmatmul.mubr.bf16.gmra.mrb[0].mxu0 %v5422
    %v7530 = vpop.f32.mrb[0].mxu0
    %v7531 = vadd.f32 %v5755, %v7530
    %v7532 = vpop.f32.mrb[0].mxu0
    %v7533 = vadd.f32 %v5759, %v7532
    %v7534 = vpop.f32.mrb[0].mxu0
    %v7535 = vadd.f32 %v5755, %v7534
    %v7536 = vpop.f32.mrb[0].mxu0
    %v7537 = vadd.f32 %v5759, %v7536
    %7538 = vmatprep.mubr.bf16.mxu0 %v5431
    %7539 = vmatmul.mubr.bf16.gmra.mrb[0].mxu0 %v5430
    %v7540 = vpop.f32.mrb[0].mxu0
    %v7541 = vadd.f32 %v5755, %v7540
    %v7542 = vpop.f32.mrb[0].mxu0
    %v7543 = vadd.f32 %v5759, %v7542
    %v7544 = vpop.f32.mrb[0].mxu0
    %v7545 = vadd.f32 %v5755, %v7544
    %v7546 = vpop.f32.mrb[0].mxu0
    %v7547 = vadd.f32 %v5759, %v7546
    %7548 = vmatprep.mubr.bf16.mxu0 %v5439
    %7549 = vmatmul.mubr.bf16.gmra.mrb[0].mxu0 %v5438
    %v7550 = vpop.f32.mrb[0].mxu0
    %v7551 = vadd.f32 %v5755, %v7550
    %v7552 = vpop.f32.mrb[0].mxu0
    %v7553 = vadd.f32 %v5759, %v7552
    %v7554 = vpop.f32.mrb[0].mxu0
    %v7555 = vadd.f32 %v5755, %v7554
    %v7556 = vpop.f32.mrb[0].mxu0
    %v7557 = vadd.f32 %v5759, %v7556
    %7558 = vmatprep.mubr.bf16.mxu0 %v5447
    %7559 = vmatmul.mubr.bf16.gmra.mrb[0].mxu0 %v5446
    %v7560 = vpop.f32.mrb[0].mxu0
    %v7561 = vadd.f32 %v5755, %v7560
    %v7562 = vpop.f32.mrb[0].mxu0
    %v7563 = vadd.f32 %v5759, %v7562
    %v7564 = vpop.f32.mrb[0].mxu0
    %v7565 = vadd.f32 %v5755, %v7564
    %v7566 = vpop.f32.mrb[0].mxu0
    %v7567 = vadd.f32 %v5759, %v7566
    %7568 = vmatprep.mubr.bf16.mxu0 %v5455
    %7569 = vmatmul.mubr.bf16.gmra.mrb[0].mxu0 %v5454
    %v7570 = vpop.f32.mrb[0].mxu0
    %v7571 = vadd.f32 %v5755, %v7570
    %v7572 = vpop.f32.mrb[0].mxu0
    %v7573 = vadd.f32 %v5759, %v7572
    %v7574 = vpop.f32.mrb[0].mxu0
    %v7575 = vadd.f32 %v5755, %v7574
    %v7576 = vpop.f32.mrb[0].mxu0
    %v7577 = vadd.f32 %v5759, %v7576
    %7578 = vmatprep.mubr.bf16.mxu0 %v5463
    %7579 = vmatmul.mubr.bf16.gmra.mrb[0].mxu0 %v5462
    %v7580 = vpop.f32.mrb[0].mxu0
    %v7581 = vadd.f32 %v5755, %v7580
    %v7582 = vpop.f32.mrb[0].mxu0
    %v7583 = vadd.f32 %v5759, %v7582
    %v7584 = vpop.f32.mrb[0].mxu0
    %v7585 = vadd.f32 %v5755, %v7584
    %v7586 = vpop.f32.mrb[0].mxu0
    %v7587 = vadd.f32 %v5759, %v7586
    %7588 = vmatprep.mubr.bf16.mxu0 %v5471
    %7589 = vmatmul.mubr.bf16.gmra.mrb[0].mxu0 %v5470
    %v7590 = vpop.f32.mrb[0].mxu0
    %v7591 = vadd.f32 %v5755, %v7590
    %v7592 = vpop.f32.mrb[0].mxu0
    %v7593 = vadd.f32 %v5759, %v7592
    %v7594 = vpop.f32.mrb[0].mxu0
    %v7595 = vadd.f32 %v5755, %v7594
    %v7596 = vpop.f32.mrb[0].mxu0
    %v7597 = vadd.f32 %v5759, %v7596
    %7598 = vmatprep.mubr.bf16.mxu0 %v5479
    %7599 = vmatmul.mubr.bf16.gmra.mrb[0].mxu0 %v5478
    %v7600 = vpop.f32.mrb[0].mxu0
    %v7601 = vadd.f32 %v5755, %v7600
    %v7602 = vpop.f32.mrb[0].mxu0
    %v7603 = vadd.f32 %v5759, %v7602
    %v7604 = vpop.f32.mrb[0].mxu0
    %v7605 = vadd.f32 %v5755, %v7604
    %v7606 = vpop.f32.mrb[0].mxu0
    %v7607 = vadd.f32 %v5759, %v7606
    %7608 = vdwg.mxu0
    %7609 = vmatprep.subr.bf16.mxu0 %v6599
    %7610 = vmatpush1.bf16.msra.mxu0 %v6598
    %7611 = vmatprep.subr.bf16.mxu0 %v6603
    %7612 = vmatpush1.bf16.msra.mxu0 %v6602
    %7613 = vmatprep.subr.bf16.mxu0 %v6607
    %7614 = vmatpush1.bf16.msra.mxu0 %v6606
    %7615 = vmatprep.subr.bf16.mxu0 %v6611
    %7616 = vmatpush1.bf16.msra.mxu0 %v6610
    %7617 = vmatprep.subr.bf16.mxu0 %v6615
    %7618 = vmatpush1.bf16.msra.mxu0 %v6614
    %7619 = vmatprep.subr.bf16.mxu0 %v6619
    %7620 = vmatpush1.bf16.msra.mxu0 %v6618
    %7621 = vmatprep.subr.bf16.mxu0 %v6623
    %7622 = vmatpush1.bf16.msra.mxu0 %v6622
    %7623 = vmatprep.subr.bf16.mxu0 %v6627
    %7624 = vmatpush1.bf16.msra.mxu0 %v6626
    %7625 = vmatprep.subr.bf16.mxu0 %v6631
    %7626 = vmatpush1.bf16.msra.mxu0 %v6630
    %7627 = vmatprep.subr.bf16.mxu0 %v6635
    %7628 = vmatpush1.bf16.msra.mxu0 %v6634
    %7629 = vmatprep.subr.bf16.mxu0 %v6639
    %7630 = vmatpush1.bf16.msra.mxu0 %v6638
    %7631 = vmatprep.subr.bf16.mxu0 %v6643
    %7632 = vmatpush1.bf16.msra.mxu0 %v6642
    %7633 = vmatprep.subr.bf16.mxu0 %v6647
    %7634 = vmatpush1.bf16.msra.mxu0 %v6646
    %7635 = vmatprep.subr.bf16.mxu0 %v6651
    %7636 = vmatpush1.bf16.msra.mxu0 %v6650
    %7637 = vmatprep.subr.bf16.mxu0 %v6655
    %7638 = vmatpush1.bf16.msra.mxu0 %v6654
    %7639 = vmatprep.subr.bf16.mxu0 %v6659
    %7640 = vmatpush1.bf16.msra.mxu0 %v6658
    %7641 = vmatprep.mubr.bf16.mxu0 %v5425
    %7642 = vmatmul.mubr.bf16.gmra.mrb[0].mxu0 %v5424
    %v7643 = vpop.f32.mrb[0].mxu0
    %v7644 = vadd.f32 %v7531, %v7643
    %v7645 = vpop.f32.mrb[0].mxu0
    %v7646 = vadd.f32 %v7533, %v7645
    %v7647 = vpop.f32.mrb[0].mxu0
    %v7648 = vadd.f32 %v7535, %v7647
    %v7649 = vpop.f32.mrb[0].mxu0
    %v7650 = vadd.f32 %v7537, %v7649
    %7651 = vmatprep.mubr.bf16.mxu0 %v5433
    %7652 = vmatmul.mubr.bf16.gmra.mrb[0].mxu0 %v5432
    %v7653 = vpop.f32.mrb[0].mxu0
    %v7654 = vadd.f32 %v7541, %v7653
    %v7655 = vpop.f32.mrb[0].mxu0
    %v7656 = vadd.f32 %v7543, %v7655
    %v7657 = vpop.f32.mrb[0].mxu0
    %v7658 = vadd.f32 %v7545, %v7657
    %v7659 = vpop.f32.mrb[0].mxu0
    %v7660 = vadd.f32 %v7547, %v7659
    %7661 = vmatprep.mubr.bf16.mxu0 %v5441
    %7662 = vmatmul.mubr.bf16.gmra.mrb[0].mxu0 %v5440
    %v7663 = vpop.f32.mrb[0].mxu0
    %v7664 = vadd.f32 %v7551, %v7663
    %v7665 = vpop.f32.mrb[0].mxu0
    %v7666 = vadd.f32 %v7553, %v7665
    %v7667 = vpop.f32.mrb[0].mxu0
    %v7668 = vadd.f32 %v7555, %v7667
    %v7669 = vpop.f32.mrb[0].mxu0
    %v7670 = vadd.f32 %v7557, %v7669
    %7671 = vmatprep.mubr.bf16.mxu0 %v5449
    %7672 = vmatmul.mubr.bf16.gmra.mrb[0].mxu0 %v5448
    %v7673 = vpop.f32.mrb[0].mxu0
    %v7674 = vadd.f32 %v7561, %v7673
    %v7675 = vpop.f32.mrb[0].mxu0
    %v7676 = vadd.f32 %v7563, %v7675
    %v7677 = vpop.f32.mrb[0].mxu0
    %v7678 = vadd.f32 %v7565, %v7677
    %v7679 = vpop.f32.mrb[0].mxu0
    %v7680 = vadd.f32 %v7567, %v7679
    %7681 = vmatprep.mubr.bf16.mxu0 %v5457
    %7682 = vmatmul.mubr.bf16.gmra.mrb[0].mxu0 %v5456
    %v7683 = vpop.f32.mrb[0].mxu0
    %v7684 = vadd.f32 %v7571, %v7683
    %v7685 = vpop.f32.mrb[0].mxu0
    %v7686 = vadd.f32 %v7573, %v7685
    %v7687 = vpop.f32.mrb[0].mxu0
    %v7688 = vadd.f32 %v7575, %v7687
    %v7689 = vpop.f32.mrb[0].mxu0
    %v7690 = vadd.f32 %v7577, %v7689
    %7691 = vmatprep.mubr.bf16.mxu0 %v5465
    %7692 = vmatmul.mubr.bf16.gmra.mrb[0].mxu0 %v5464
    %v7693 = vpop.f32.mrb[0].mxu0
    %v7694 = vadd.f32 %v7581, %v7693
    %v7695 = vpop.f32.mrb[0].mxu0
    %v7696 = vadd.f32 %v7583, %v7695
    %v7697 = vpop.f32.mrb[0].mxu0
    %v7698 = vadd.f32 %v7585, %v7697
    %v7699 = vpop.f32.mrb[0].mxu0
    %v7700 = vadd.f32 %v7587, %v7699
    %7701 = vmatprep.mubr.bf16.mxu0 %v5473
    %7702 = vmatmul.mubr.bf16.gmra.mrb[0].mxu0 %v5472
    %v7703 = vpop.f32.mrb[0].mxu0
    %v7704 = vadd.f32 %v7591, %v7703
    %v7705 = vpop.f32.mrb[0].mxu0
    %v7706 = vadd.f32 %v7593, %v7705
    %v7707 = vpop.f32.mrb[0].mxu0
    %v7708 = vadd.f32 %v7595, %v7707
    %v7709 = vpop.f32.mrb[0].mxu0
    %v7710 = vadd.f32 %v7597, %v7709
    %7711 = vmatprep.mubr.bf16.mxu0 %v5481
    %7712 = vmatmul.mubr.bf16.gmra.mrb[0].mxu0 %v5480
    %v7713 = vpop.f32.mrb[0].mxu0
    %v7714 = vadd.f32 %v7601, %v7713
    %v7715 = vpop.f32.mrb[0].mxu0
    %v7716 = vadd.f32 %v7603, %v7715
    %v7717 = vpop.f32.mrb[0].mxu0
    %v7718 = vadd.f32 %v7605, %v7717
    %v7719 = vpop.f32.mrb[0].mxu0
    %v7720 = vadd.f32 %v7607, %v7719
    %7721 = vdwg.mxu0
    %7722 = vmatprep.subr.bf16.mxu0 %v6663
    %7723 = vmatpush1.bf16.msra.mxu0 %v6662
    %7724 = vmatprep.subr.bf16.mxu0 %v6667
    %7725 = vmatpush1.bf16.msra.mxu0 %v6666
    %7726 = vmatprep.subr.bf16.mxu0 %v6671
    %7727 = vmatpush1.bf16.msra.mxu0 %v6670
    %7728 = vmatprep.subr.bf16.mxu0 %v6675
    %7729 = vmatpush1.bf16.msra.mxu0 %v6674
    %7730 = vmatprep.subr.bf16.mxu0 %v6679
    %7731 = vmatpush1.bf16.msra.mxu0 %v6678
    %7732 = vmatprep.subr.bf16.mxu0 %v6683
    %7733 = vmatpush1.bf16.msra.mxu0 %v6682
    %7734 = vmatprep.subr.bf16.mxu0 %v6687
    %7735 = vmatpush1.bf16.msra.mxu0 %v6686
    %7736 = vmatprep.subr.bf16.mxu0 %v6691
    %7737 = vmatpush1.bf16.msra.mxu0 %v6690
    %7738 = vmatprep.subr.bf16.mxu0 %v6695
    %7739 = vmatpush1.bf16.msra.mxu0 %v6694
    %7740 = vmatprep.subr.bf16.mxu0 %v6699
    %7741 = vmatpush1.bf16.msra.mxu0 %v6698
    %7742 = vmatprep.subr.bf16.mxu0 %v6703
    %7743 = vmatpush1.bf16.msra.mxu0 %v6702
    %7744 = vmatprep.subr.bf16.mxu0 %v6707
    %7745 = vmatpush1.bf16.msra.mxu0 %v6706
    %7746 = vmatprep.subr.bf16.mxu0 %v6711
    %7747 = vmatpush1.bf16.msra.mxu0 %v6710
    %7748 = vmatprep.subr.bf16.mxu0 %v6715
    %7749 = vmatpush1.bf16.msra.mxu0 %v6714
    %7750 = vmatprep.subr.bf16.mxu0 %v6719
    %7751 = vmatpush1.bf16.msra.mxu0 %v6718
    %7752 = vmatprep.subr.bf16.mxu0 %v6723
    %7753 = vmatpush1.bf16.msra.mxu0 %v6722
    %7754 = vmatprep.mubr.bf16.mxu0 %v5427
    %7755 = vmatmul.mubr.bf16.gmra.mrb[0].mxu0 %v5426
    %v7756 = vpop.f32.mrb[0].mxu0
    %v7757 = vadd.f32 %v7644, %v7756
    %v7758 = vpop.f32.mrb[0].mxu0
    %v7759 = vadd.f32 %v7646, %v7758
    %v7760 = vpop.f32.mrb[0].mxu0
    %v7761 = vadd.f32 %v7648, %v7760
    %v7762 = vpop.f32.mrb[0].mxu0
    %v7763 = vadd.f32 %v7650, %v7762
    %7764 = vmatprep.mubr.bf16.mxu0 %v5435
    %7765 = vmatmul.mubr.bf16.gmra.mrb[0].mxu0 %v5434
    %v7766 = vpop.f32.mrb[0].mxu0
    %v7767 = vadd.f32 %v7654, %v7766
    %v7768 = vpop.f32.mrb[0].mxu0
    %v7769 = vadd.f32 %v7656, %v7768
    %v7770 = vpop.f32.mrb[0].mxu0
    %v7771 = vadd.f32 %v7658, %v7770
    %v7772 = vpop.f32.mrb[0].mxu0
    %v7773 = vadd.f32 %v7660, %v7772
    %7774 = vmatprep.mubr.bf16.mxu0 %v5443
    %7775 = vmatmul.mubr.bf16.gmra.mrb[0].mxu0 %v5442
    %v7776 = vpop.f32.mrb[0].mxu0
    %v7777 = vadd.f32 %v7664, %v7776
    %v7778 = vpop.f32.mrb[0].mxu0
    %v7779 = vadd.f32 %v7666, %v7778
    %v7780 = vpop.f32.mrb[0].mxu0
    %v7781 = vadd.f32 %v7668, %v7780
    %v7782 = vpop.f32.mrb[0].mxu0
    %v7783 = vadd.f32 %v7670, %v7782
    %7784 = vmatprep.mubr.bf16.mxu0 %v5451
    %7785 = vmatmul.mubr.bf16.gmra.mrb[0].mxu0 %v5450
    %v7786 = vpop.f32.mrb[0].mxu0
    %v7787 = vadd.f32 %v7674, %v7786
    %v7788 = vpop.f32.mrb[0].mxu0
    %v7789 = vadd.f32 %v7676, %v7788
    %v7790 = vpop.f32.mrb[0].mxu0
    %v7791 = vadd.f32 %v7678, %v7790
    %v7792 = vpop.f32.mrb[0].mxu0
    %v7793 = vadd.f32 %v7680, %v7792
    %7794 = vmatprep.mubr.bf16.mxu0 %v5459
    %7795 = vmatmul.mubr.bf16.gmra.mrb[0].mxu0 %v5458
    %v7796 = vpop.f32.mrb[0].mxu0
    %v7797 = vadd.f32 %v7684, %v7796
    %v7798 = vpop.f32.mrb[0].mxu0
    %v7799 = vadd.f32 %v7686, %v7798
    %v7800 = vpop.f32.mrb[0].mxu0
    %v7801 = vadd.f32 %v7688, %v7800
    %v7802 = vpop.f32.mrb[0].mxu0
    %v7803 = vadd.f32 %v7690, %v7802
    %7804 = vmatprep.mubr.bf16.mxu0 %v5467
    %7805 = vmatmul.mubr.bf16.gmra.mrb[0].mxu0 %v5466
    %v7806 = vpop.f32.mrb[0].mxu0
    %v7807 = vadd.f32 %v7694, %v7806
    %v7808 = vpop.f32.mrb[0].mxu0
    %v7809 = vadd.f32 %v7696, %v7808
    %v7810 = vpop.f32.mrb[0].mxu0
    %v7811 = vadd.f32 %v7698, %v7810
    %v7812 = vpop.f32.mrb[0].mxu0
    %v7813 = vadd.f32 %v7700, %v7812
    %7814 = vmatprep.mubr.bf16.mxu0 %v5475
    %7815 = vmatmul.mubr.bf16.gmra.mrb[0].mxu0 %v5474
    %v7816 = vpop.f32.mrb[0].mxu0
    %v7817 = vadd.f32 %v7704, %v7816
    %v7818 = vpop.f32.mrb[0].mxu0
    %v7819 = vadd.f32 %v7706, %v7818
    %v7820 = vpop.f32.mrb[0].mxu0
    %v7821 = vadd.f32 %v7708, %v7820
    %v7822 = vpop.f32.mrb[0].mxu0
    %v7823 = vadd.f32 %v7710, %v7822
    %7824 = vmatprep.mubr.bf16.mxu0 %v5483
    %7825 = vmatmul.mubr.bf16.gmra.mrb[0].mxu0 %v5482
    %v7826 = vpop.f32.mrb[0].mxu0
    %v7827 = vadd.f32 %v7714, %v7826
    %v7828 = vpop.f32.mrb[0].mxu0
    %v7829 = vadd.f32 %v7716, %v7828
    %v7830 = vpop.f32.mrb[0].mxu0
    %v7831 = vadd.f32 %v7718, %v7830
    %v7832 = vpop.f32.mrb[0].mxu0
    %v7833 = vadd.f32 %v7720, %v7832
    %7834 = vdwg.mxu0
    %7835 = vmatprep.subr.bf16.mxu0 %v6727
    %7836 = vmatpush1.bf16.msra.mxu0 %v6726
    %7837 = vmatprep.subr.bf16.mxu0 %v6731
    %7838 = vmatpush1.bf16.msra.mxu0 %v6730
    %7839 = vmatprep.subr.bf16.mxu0 %v6735
    %7840 = vmatpush1.bf16.msra.mxu0 %v6734
    %7841 = vmatprep.subr.bf16.mxu0 %v6739
    %7842 = vmatpush1.bf16.msra.mxu0 %v6738
    %7843 = vmatprep.subr.bf16.mxu0 %v6743
    %7844 = vmatpush1.bf16.msra.mxu0 %v6742
    %7845 = vmatprep.subr.bf16.mxu0 %v6747
    %7846 = vmatpush1.bf16.msra.mxu0 %v6746
    %7847 = vmatprep.subr.bf16.mxu0 %v6751
    %7848 = vmatpush1.bf16.msra.mxu0 %v6750
    %7849 = vmatprep.subr.bf16.mxu0 %v6755
    %7850 = vmatpush1.bf16.msra.mxu0 %v6754
    %7851 = vmatprep.subr.bf16.mxu0 %v6759
    %7852 = vmatpush1.bf16.msra.mxu0 %v6758
    %7853 = vmatprep.subr.bf16.mxu0 %v6763
    %7854 = vmatpush1.bf16.msra.mxu0 %v6762
    %7855 = vmatprep.subr.bf16.mxu0 %v6767
    %7856 = vmatpush1.bf16.msra.mxu0 %v6766
    %7857 = vmatprep.subr.bf16.mxu0 %v6771
    %7858 = vmatpush1.bf16.msra.mxu0 %v6770
    %7859 = vmatprep.subr.bf16.mxu0 %v6775
    %7860 = vmatpush1.bf16.msra.mxu0 %v6774
    %7861 = vmatprep.subr.bf16.mxu0 %v6779
    %7862 = vmatpush1.bf16.msra.mxu0 %v6778
    %7863 = vmatprep.subr.bf16.mxu0 %v6783
    %7864 = vmatpush1.bf16.msra.mxu0 %v6782
    %7865 = vmatprep.subr.bf16.mxu0 %v6787
    %7866 = vmatpush1.bf16.msra.mxu0 %v6786
    %7867 = vmatprep.mubr.bf16.mxu0 %v5429
    %7868 = vmatmul.mubr.bf16.gmra.mrb[0].mxu0 %v5428
    %v7869 = vpop.f32.mrb[0].mxu0
    %v7870 = vadd.f32 %v7757, %v7869
    %v7871 = vpop.f32.mrb[0].mxu0
    %v7872 = vadd.f32 %v7759, %v7871
    %v7873 = vpop.f32.mrb[0].mxu0
    %v7874 = vadd.f32 %v7761, %v7873
    %v7875 = vpop.f32.mrb[0].mxu0
    %v7876 = vadd.f32 %v7763, %v7875
    %7877 = vmatprep.mubr.bf16.mxu0 %v5437
    %7878 = vmatmul.mubr.bf16.gmra.mrb[0].mxu0 %v5436
    %v7879 = vpop.f32.mrb[0].mxu0
    %v7880 = vadd.f32 %v7767, %v7879
    %v7881 = vpop.f32.mrb[0].mxu0
    %v7882 = vadd.f32 %v7769, %v7881
    %v7883 = vpop.f32.mrb[0].mxu0
    %v7884 = vadd.f32 %v7771, %v7883
    %v7885 = vpop.f32.mrb[0].mxu0
    %v7886 = vadd.f32 %v7773, %v7885
    %7887 = vmatprep.mubr.bf16.mxu0 %v5445
    %7888 = vmatmul.mubr.bf16.gmra.mrb[0].mxu0 %v5444
    %v7889 = vpop.f32.mrb[0].mxu0
    %v7890 = vadd.f32 %v7777, %v7889
    %v7891 = vpop.f32.mrb[0].mxu0
    %v7892 = vadd.f32 %v7779, %v7891
    %v7893 = vpop.f32.mrb[0].mxu0
    %v7894 = vadd.f32 %v7781, %v7893
    %v7895 = vpop.f32.mrb[0].mxu0
    %v7896 = vadd.f32 %v7783, %v7895
    %7897 = vmatprep.mubr.bf16.mxu0 %v5453
    %7898 = vmatmul.mubr.bf16.gmra.mrb[0].mxu0 %v5452
    %v7899 = vpop.f32.mrb[0].mxu0
    %v7900 = vadd.f32 %v7787, %v7899
    %v7901 = vpop.f32.mrb[0].mxu0
    %v7902 = vadd.f32 %v7789, %v7901
    %v7903 = vpop.f32.mrb[0].mxu0
    %v7904 = vadd.f32 %v7791, %v7903
    %v7905 = vpop.f32.mrb[0].mxu0
    %v7906 = vadd.f32 %v7793, %v7905
    %7907 = vmatprep.mubr.bf16.mxu0 %v5461
    %7908 = vmatmul.mubr.bf16.gmra.mrb[0].mxu0 %v5460
    %v7909 = vpop.f32.mrb[0].mxu0
    %v7910 = vadd.f32 %v7797, %v7909
    %v7911 = vpop.f32.mrb[0].mxu0
    %v7912 = vadd.f32 %v7799, %v7911
    %v7913 = vpop.f32.mrb[0].mxu0
    %v7914 = vadd.f32 %v7801, %v7913
    %v7915 = vpop.f32.mrb[0].mxu0
    %v7916 = vadd.f32 %v7803, %v7915
    %7917 = vmatprep.mubr.bf16.mxu0 %v5469
    %7918 = vmatmul.mubr.bf16.gmra.mrb[0].mxu0 %v5468
    %v7919 = vpop.f32.mrb[0].mxu0
    %v7920 = vadd.f32 %v7807, %v7919
    %v7921 = vpop.f32.mrb[0].mxu0
    %v7922 = vadd.f32 %v7809, %v7921
    %v7923 = vpop.f32.mrb[0].mxu0
    %v7924 = vadd.f32 %v7811, %v7923
    %v7925 = vpop.f32.mrb[0].mxu0
    %v7926 = vadd.f32 %v7813, %v7925
    %7927 = vmatprep.mubr.bf16.mxu0 %v5477
    %7928 = vmatmul.mubr.bf16.gmra.mrb[0].mxu0 %v5476
    %v7929 = vpop.f32.mrb[0].mxu0
    %v7930 = vadd.f32 %v7817, %v7929
    %v7931 = vpop.f32.mrb[0].mxu0
    %v7932 = vadd.f32 %v7819, %v7931
    %v7933 = vpop.f32.mrb[0].mxu0
    %v7934 = vadd.f32 %v7821, %v7933
    %v7935 = vpop.f32.mrb[0].mxu0
    %v7936 = vadd.f32 %v7823, %v7935
    %7937 = vmatprep.mubr.bf16.mxu0 %v5485
    %7938 = vmatmul.mubr.bf16.gmra.mrb[0].mxu0 %v5484
    %v7939 = vpop.f32.mrb[0].mxu0
    %v7940 = vadd.f32 %v7827, %v7939
    %v7941 = vpop.f32.mrb[0].mxu0
    %v7942 = vadd.f32 %v7829, %v7941
    %v7943 = vpop.f32.mrb[0].mxu0
    %v7944 = vadd.f32 %v7831, %v7943
    %v7945 = vpop.f32.mrb[0].mxu0
    %v7946 = vadd.f32 %v7833, %v7945
    %7947 = vdwg.mxu0
    %vm7948 = vcmp.gt.f32.partialorder %v7418, 0.0
    %vm7949 = vcmp.gt.f32.partialorder %v7420, 0.0
    %vm7950 = vcmp.gt.f32.partialorder %v7870, 0.0
    %vm7951 = vcmp.gt.f32.partialorder %v7872, 0.0
    %vm7952 = vcmp.gt.f32.partialorder %v7422, 0.0
    %vm7953 = vcmp.gt.f32.partialorder %v7424, 0.0
    %vm7954 = vcmp.gt.f32.partialorder %v7874, 0.0
    %vm7955 = vcmp.gt.f32.partialorder %v7876, 0.0
    %vm7956 = vcmp.gt.f32.partialorder %v7428, 0.0
    %vm7957 = vcmp.gt.f32.partialorder %v7430, 0.0
    %vm7958 = vcmp.gt.f32.partialorder %v7880, 0.0
    %vm7959 = vcmp.gt.f32.partialorder %v7882, 0.0
    %vm7960 = vcmp.gt.f32.partialorder %v7432, 0.0
    %vm7961 = vcmp.gt.f32.partialorder %v7434, 0.0
    %vm7962 = vcmp.gt.f32.partialorder %v7884, 0.0
    %vm7963 = vcmp.gt.f32.partialorder %v7886, 0.0
    %vm7964 = vcmp.gt.f32.partialorder %v7438, 0.0
    %vm7965 = vcmp.gt.f32.partialorder %v7440, 0.0
    %vm7966 = vcmp.gt.f32.partialorder %v7890, 0.0
    %vm7967 = vcmp.gt.f32.partialorder %v7892, 0.0
    %vm7968 = vcmp.gt.f32.partialorder %v7442, 0.0
    %vm7969 = vcmp.gt.f32.partialorder %v7444, 0.0
    %vm7970 = vcmp.gt.f32.partialorder %v7894, 0.0
    %vm7971 = vcmp.gt.f32.partialorder %v7896, 0.0
    %vm7972 = vcmp.gt.f32.partialorder %v7448, 0.0
    %vm7973 = vcmp.gt.f32.partialorder %v7450, 0.0
    %vm7974 = vcmp.gt.f32.partialorder %v7900, 0.0
    %vm7975 = vcmp.gt.f32.partialorder %v7902, 0.0
    %vm7976 = vcmp.gt.f32.partialorder %v7452, 0.0
    %vm7977 = vcmp.gt.f32.partialorder %v7454, 0.0
    %vm7978 = vcmp.gt.f32.partialorder %v7904, 0.0
    %vm7979 = vcmp.gt.f32.partialorder %v7906, 0.0
    %vm7980 = vcmp.gt.f32.partialorder %v7458, 0.0
    %vm7981 = vcmp.gt.f32.partialorder %v7460, 0.0
    %vm7982 = vcmp.gt.f32.partialorder %v7910, 0.0
    %vm7983 = vcmp.gt.f32.partialorder %v7912, 0.0
    %vm7984 = vcmp.gt.f32.partialorder %v7462, 0.0
    %vm7985 = vcmp.gt.f32.partialorder %v7464, 0.0
    %vm7986 = vcmp.gt.f32.partialorder %v7914, 0.0
    %vm7987 = vcmp.gt.f32.partialorder %v7916, 0.0
    %vm7988 = vcmp.gt.f32.partialorder %v7468, 0.0
    %vm7989 = vcmp.gt.f32.partialorder %v7470, 0.0
    %vm7990 = vcmp.gt.f32.partialorder %v7920, 0.0
    %vm7991 = vcmp.gt.f32.partialorder %v7922, 0.0
    %vm7992 = vcmp.gt.f32.partialorder %v7472, 0.0
    %vm7993 = vcmp.gt.f32.partialorder %v7474, 0.0
    %vm7994 = vcmp.gt.f32.partialorder %v7924, 0.0
    %vm7995 = vcmp.gt.f32.partialorder %v7926, 0.0
    %vm7996 = vcmp.gt.f32.partialorder %v7478, 0.0
    %vm7997 = vcmp.gt.f32.partialorder %v7480, 0.0
    %vm7998 = vcmp.gt.f32.partialorder %v7930, 0.0
    %vm7999 = vcmp.gt.f32.partialorder %v7932, 0.0
    %vm8000 = vcmp.gt.f32.partialorder %v7482, 0.0
    %vm8001 = vcmp.gt.f32.partialorder %v7484, 0.0
    %vm8002 = vcmp.gt.f32.partialorder %v7934, 0.0
    %vm8003 = vcmp.gt.f32.partialorder %v7936, 0.0
    %vm8004 = vcmp.gt.f32.partialorder %v7488, 0.0
    %vm8005 = vcmp.gt.f32.partialorder %v7490, 0.0
    %vm8006 = vcmp.gt.f32.partialorder %v7940, 0.0
    %vm8007 = vcmp.gt.f32.partialorder %v7942, 0.0
    %vm8008 = vcmp.gt.f32.partialorder %v7492, 0.0
    %vm8009 = vcmp.gt.f32.partialorder %v7494, 0.0
    %vm8010 = vcmp.gt.f32.partialorder %v7944, 0.0
    %vm8011 = vcmp.gt.f32.partialorder %v7946, 0.0
    %v8012 = vmul.f32 %v7418, 0.2
    %v8013 = vmul.f32 %v7420, 0.2
    %v8014 = vmul.f32 %v7870, 0.2
    %v8015 = vmul.f32 %v7872, 0.2
    %v8016 = vmul.f32 %v7422, 0.2
    %v8017 = vmul.f32 %v7424, 0.2
    %v8018 = vmul.f32 %v7874, 0.2
    %v8019 = vmul.f32 %v7876, 0.2
    %v8020 = vmul.f32 %v7428, 0.2
    %v8021 = vmul.f32 %v7430, 0.2
    %v8022 = vmul.f32 %v7880, 0.2
    %v8023 = vmul.f32 %v7882, 0.2
    %v8024 = vmul.f32 %v7432, 0.2
    %v8025 = vmul.f32 %v7434, 0.2
    %v8026 = vmul.f32 %v7884, 0.2
    %v8027 = vmul.f32 %v7886, 0.2
    %v8028 = vmul.f32 %v7438, 0.2
    %v8029 = vmul.f32 %v7440, 0.2
    %v8030 = vmul.f32 %v7890, 0.2
    %v8031 = vmul.f32 %v7892, 0.2
    %v8032 = vmul.f32 %v7442, 0.2
    %v8033 = vmul.f32 %v7444, 0.2
    %v8034 = vmul.f32 %v7894, 0.2
    %v8035 = vmul.f32 %v7896, 0.2
    %v8036 = vmul.f32 %v7448, 0.2
    %v8037 = vmul.f32 %v7450, 0.2
    %v8038 = vmul.f32 %v7900, 0.2
    %v8039 = vmul.f32 %v7902, 0.2
    %v8040 = vmul.f32 %v7452, 0.2
    %v8041 = vmul.f32 %v7454, 0.2
    %v8042 = vmul.f32 %v7904, 0.2
    %v8043 = vmul.f32 %v7906, 0.2
    %v8044 = vmul.f32 %v7458, 0.2
    %v8045 = vmul.f32 %v7460, 0.2
    %v8046 = vmul.f32 %v7910, 0.2
    %v8047 = vmul.f32 %v7912, 0.2
    %v8048 = vmul.f32 %v7462, 0.2
    %v8049 = vmul.f32 %v7464, 0.2
    %v8050 = vmul.f32 %v7914, 0.2
    %v8051 = vmul.f32 %v7916, 0.2
    %v8052 = vmul.f32 %v7468, 0.2
    %v8053 = vmul.f32 %v7470, 0.2
    %v8054 = vmul.f32 %v7920, 0.2
    %v8055 = vmul.f32 %v7922, 0.2
    %v8056 = vmul.f32 %v7472, 0.2
    %v8057 = vmul.f32 %v7474, 0.2
    %v8058 = vmul.f32 %v7924, 0.2
    %v8059 = vmul.f32 %v7926, 0.2
    %v8060 = vmul.f32 %v7478, 0.2
    %v8061 = vmul.f32 %v7480, 0.2
    %v8062 = vmul.f32 %v7930, 0.2
    %v8063 = vmul.f32 %v7932, 0.2
    %v8064 = vmul.f32 %v7482, 0.2
    %v8065 = vmul.f32 %v7484, 0.2
    %v8066 = vmul.f32 %v7934, 0.2
    %v8067 = vmul.f32 %v7936, 0.2
    %v8068 = vmul.f32 %v7488, 0.2
    %v8069 = vmul.f32 %v7490, 0.2
    %v8070 = vmul.f32 %v7940, 0.2
    %v8071 = vmul.f32 %v7942, 0.2
    %v8072 = vmul.f32 %v7492, 0.2
    %v8073 = vmul.f32 %v7494, 0.2
    %v8074 = vmul.f32 %v7944, 0.2
    %v8075 = vmul.f32 %v7946, 0.2
    %v8076 = vsel %vm7948, %v7418, %v8012
    %v8077 = vsel %vm7949, %v7420, %v8013
    %v8078 = vsel %vm7950, %v7870, %v8014
    %v8079 = vsel %vm7951, %v7872, %v8015
    %v8080 = vsel %vm7952, %v7422, %v8016
    %v8081 = vsel %vm7953, %v7424, %v8017
    %v8082 = vsel %vm7954, %v7874, %v8018
    %v8083 = vsel %vm7955, %v7876, %v8019
    %v8084 = vsel %vm7956, %v7428, %v8020
    %v8085 = vsel %vm7957, %v7430, %v8021
    %v8086 = vsel %vm7958, %v7880, %v8022
    %v8087 = vsel %vm7959, %v7882, %v8023
    %v8088 = vsel %vm7960, %v7432, %v8024
    %v8089 = vsel %vm7961, %v7434, %v8025
    %v8090 = vsel %vm7962, %v7884, %v8026
    %v8091 = vsel %vm7963, %v7886, %v8027
    %v8092 = vsel %vm7964, %v7438, %v8028
    %v8093 = vsel %vm7965, %v7440, %v8029
    %v8094 = vsel %vm7966, %v7890, %v8030
    %v8095 = vsel %vm7967, %v7892, %v8031
    %v8096 = vsel %vm7968, %v7442, %v8032
    %v8097 = vsel %vm7969, %v7444, %v8033
    %v8098 = vsel %vm7970, %v7894, %v8034
    %v8099 = vsel %vm7971, %v7896, %v8035
    %v8100 = vsel %vm7972, %v7448, %v8036
    %v8101 = vsel %vm7973, %v7450, %v8037
    %v8102 = vsel %vm7974, %v7900, %v8038
    %v8103 = vsel %vm7975, %v7902, %v8039
    %v8104 = vsel %vm7976, %v7452, %v8040
    %v8105 = vsel %vm7977, %v7454, %v8041
    %v8106 = vsel %vm7978, %v7904, %v8042
    %v8107 = vsel %vm7979, %v7906, %v8043
    %v8108 = vsel %vm7980, %v7458, %v8044
    %v8109 = vsel %vm7981, %v7460, %v8045
    %v8110 = vsel %vm7982, %v7910, %v8046
    %v8111 = vsel %vm7983, %v7912, %v8047
    %v8112 = vsel %vm7984, %v7462, %v8048
    %v8113 = vsel %vm7985, %v7464, %v8049
    %v8114 = vsel %vm7986, %v7914, %v8050
    %v8115 = vsel %vm7987, %v7916, %v8051
    %v8116 = vsel %vm7988, %v7468, %v8052
    %v8117 = vsel %vm7989, %v7470, %v8053
    %v8118 = vsel %vm7990, %v7920, %v8054
    %v8119 = vsel %vm7991, %v7922, %v8055
    %v8120 = vsel %vm7992, %v7472, %v8056
    %v8121 = vsel %vm7993, %v7474, %v8057
    %v8122 = vsel %vm7994, %v7924, %v8058
    %v8123 = vsel %vm7995, %v7926, %v8059
    %v8124 = vsel %vm7996, %v7478, %v8060
    %v8125 = vsel %vm7997, %v7480, %v8061
    %v8126 = vsel %vm7998, %v7930, %v8062
    %v8127 = vsel %vm7999, %v7932, %v8063
    %v8128 = vsel %vm8000, %v7482, %v8064
    %v8129 = vsel %vm8001, %v7484, %v8065
    %v8130 = vsel %vm8002, %v7934, %v8066
    %v8131 = vsel %vm8003, %v7936, %v8067
    %v8132 = vsel %vm8004, %v7488, %v8068
    %v8133 = vsel %vm8005, %v7490, %v8069
    %v8134 = vsel %vm8006, %v7940, %v8070
    %v8135 = vsel %vm8007, %v7942, %v8071
    %v8136 = vsel %vm8008, %v7492, %v8072
    %v8137 = vsel %vm8009, %v7494, %v8073
    %v8138 = vsel %vm8010, %v7944, %v8074
    %v8139 = vsel %vm8011, %v7946, %v8075
    %v8140 = vpack.c.bf16 %v8080, %v8076
    %v8141 = vpack.c.bf16 %v8081, %v8077
    %v8142 = vpack.c.bf16 %v8082, %v8078
    %v8143 = vpack.c.bf16 %v8083, %v8079
    %v8144 = vpack.c.bf16 %v8088, %v8084
    %v8145 = vpack.c.bf16 %v8089, %v8085
    %v8146 = vpack.c.bf16 %v8090, %v8086
    %v8147 = vpack.c.bf16 %v8091, %v8087
    %v8148 = vpack.c.bf16 %v8096, %v8092
    %v8149 = vpack.c.bf16 %v8097, %v8093
    %v8150 = vpack.c.bf16 %v8098, %v8094
    %v8151 = vpack.c.bf16 %v8099, %v8095
    %v8152 = vpack.c.bf16 %v8104, %v8100
    %v8153 = vpack.c.bf16 %v8105, %v8101
    %v8154 = vpack.c.bf16 %v8106, %v8102
    %v8155 = vpack.c.bf16 %v8107, %v8103
    %v8156 = vpack.c.bf16 %v8112, %v8108
    %v8157 = vpack.c.bf16 %v8113, %v8109
    %v8158 = vpack.c.bf16 %v8114, %v8110
    %v8159 = vpack.c.bf16 %v8115, %v8111
    %v8160 = vpack.c.bf16 %v8120, %v8116
    %v8161 = vpack.c.bf16 %v8121, %v8117
    %v8162 = vpack.c.bf16 %v8122, %v8118
    %v8163 = vpack.c.bf16 %v8123, %v8119
    %v8164 = vpack.c.bf16 %v8128, %v8124
    %v8165 = vpack.c.bf16 %v8129, %v8125
    %v8166 = vpack.c.bf16 %v8130, %v8126
    %v8167 = vpack.c.bf16 %v8131, %v8127
    %v8168 = vpack.c.bf16 %v8136, %v8132
    %v8169 = vpack.c.bf16 %v8137, %v8133
    %v8170 = vpack.c.bf16 %v8138, %v8134
    %v8171 = vpack.c.bf16 %v8139, %v8135
    %v8172 = vld [vmem:[#allocation11] sm:$0xff]
    %v8173 = vld [vmem:[#allocation11 + $0x8] sm:$0xff]
    %v8174 = vld [vmem:[#allocation11 + $0x10] sm:$0xff]
    %v8175 = vld [vmem:[#allocation11 + $0x18] sm:$0xff]
    %v8176 = vld [vmem:[#allocation11 + $0x20] sm:$0xff]
    %v8177 = vld [vmem:[#allocation11 + $0x28] sm:$0xff]
    %v8178 = vld [vmem:[#allocation11 + $0x30] sm:$0xff]
    %v8179 = vld [vmem:[#allocation11 + $0x38] sm:$0xff]
    %v8180 = vld [vmem:[#allocation11 + $0x40] sm:$0xff]
    %v8181 = vld [vmem:[#allocation11 + $0x48] sm:$0xff]
    %v8182 = vld [vmem:[#allocation11 + $0x50] sm:$0xff]
    %v8183 = vld [vmem:[#allocation11 + $0x58] sm:$0xff]
    %v8184 = vld [vmem:[#allocation11 + $0x60] sm:$0xff]
    %v8185 = vld [vmem:[#allocation11 + $0x68] sm:$0xff]
    %v8186 = vld [vmem:[#allocation11 + $0x70] sm:$0xff]
    %v8187 = vld [vmem:[#allocation11 + $0x78] sm:$0xff]
    %v8188 = vld [vmem:[#allocation11 + $0x80] sm:$0xff]
    %v8189 = vld [vmem:[#allocation11 + $0x88] sm:$0xff]
    %v8190 = vld [vmem:[#allocation11 + $0x90] sm:$0xff]
    %v8191 = vld [vmem:[#allocation11 + $0x98] sm:$0xff]
    %v8192 = vld [vmem:[#allocation11 + $0xa0] sm:$0xff]
    %v8193 = vld [vmem:[#allocation11 + $0xa8] sm:$0xff]
    %v8194 = vld [vmem:[#allocation11 + $0xb0] sm:$0xff]
    %v8195 = vld [vmem:[#allocation11 + $0xb8] sm:$0xff]
    %v8196 = vld [vmem:[#allocation11 + $0xc0] sm:$0xff]
    %v8197 = vld [vmem:[#allocation11 + $0xc8] sm:$0xff]
    %v8198 = vld [vmem:[#allocation11 + $0xd0] sm:$0xff]
    %v8199 = vld [vmem:[#allocation11 + $0xd8] sm:$0xff]
    %v8200 = vld [vmem:[#allocation11 + $0xe0] sm:$0xff]
    %v8201 = vld [vmem:[#allocation11 + $0xe8] sm:$0xff]
    %v8202 = vld [vmem:[#allocation11 + $0xf0] sm:$0xff]
    %v8203 = vld [vmem:[#allocation11 + $0xf8] sm:$0xff]
    %v8204 = vld [vmem:[#allocation11 + $0x100] sm:$0xff]
    %v8205 = vld [vmem:[#allocation11 + $0x108] sm:$0xff]
    %v8206 = vld [vmem:[#allocation11 + $0x110] sm:$0xff]
    %v8207 = vld [vmem:[#allocation11 + $0x118] sm:$0xff]
    %v8208 = vld [vmem:[#allocation11 + $0x120] sm:$0xff]
    %v8209 = vld [vmem:[#allocation11 + $0x128] sm:$0xff]
    %v8210 = vld [vmem:[#allocation11 + $0x130] sm:$0xff]
    %v8211 = vld [vmem:[#allocation11 + $0x138] sm:$0xff]
    %v8212 = vld [vmem:[#allocation11 + $0x140] sm:$0xff]
    %v8213 = vld [vmem:[#allocation11 + $0x148] sm:$0xff]
    %v8214 = vld [vmem:[#allocation11 + $0x150] sm:$0xff]
    %v8215 = vld [vmem:[#allocation11 + $0x158] sm:$0xff]
    %v8216 = vld [vmem:[#allocation11 + $0x160] sm:$0xff]
    %v8217 = vld [vmem:[#allocation11 + $0x168] sm:$0xff]
    %v8218 = vld [vmem:[#allocation11 + $0x170] sm:$0xff]
    %v8219 = vld [vmem:[#allocation11 + $0x178] sm:$0xff]
    %v8220 = vld [vmem:[#allocation11 + $0x180] sm:$0xff]
    %v8221 = vld [vmem:[#allocation11 + $0x188] sm:$0xff]
    %v8222 = vld [vmem:[#allocation11 + $0x190] sm:$0xff]
    %v8223 = vld [vmem:[#allocation11 + $0x198] sm:$0xff]
    %v8224 = vld [vmem:[#allocation11 + $0x1a0] sm:$0xff]
    %v8225 = vld [vmem:[#allocation11 + $0x1a8] sm:$0xff]
    %v8226 = vld [vmem:[#allocation11 + $0x1b0] sm:$0xff]
    %v8227 = vld [vmem:[#allocation11 + $0x1b8] sm:$0xff]
    %v8228 = vld [vmem:[#allocation11 + $0x1c0] sm:$0xff]
    %v8229 = vld [vmem:[#allocation11 + $0x1c8] sm:$0xff]
    %v8230 = vld [vmem:[#allocation11 + $0x1d0] sm:$0xff]
    %v8231 = vld [vmem:[#allocation11 + $0x1d8] sm:$0xff]
    %v8232 = vld [vmem:[#allocation11 + $0x1e0] sm:$0xff]
    %v8233 = vld [vmem:[#allocation11 + $0x1e8] sm:$0xff]
    %v8234 = vld [vmem:[#allocation11 + $0x1f0] sm:$0xff]
    %v8235 = vld [vmem:[#allocation11 + $0x1f8] sm:$0xff]
    %v8236 = vld [vmem:[#allocation13] sm:$0x3]
    %v8238 = vlaneseq
    %v8239 = vshrl.u32 %v8238, 7
    %v8240 = vsub.s32 0, %v8239
    %v8241 = vrot.slane %v8236, %v8240
    %v8242 = vlaneseq
    %v8243 = vshrl.u32 %v8242, 7
    %v8244 = vsub.s32 1, %v8243
    %v8245 = vrot.slane %v8236, %v8244
    %v8312 = vunpack.c.l.b16 %v8172
    %v8313 = vunpack.c.h.b16 %v8172
    %v8314 = vunpack.c.l.b16 %v8173
    %v8315 = vunpack.c.h.b16 %v8173
    %v8316 = vunpack.c.l.b16 %v8174
    %v8317 = vunpack.c.h.b16 %v8174
    %v8318 = vunpack.c.l.b16 %v8175
    %v8319 = vunpack.c.h.b16 %v8175
    %v8320 = vunpack.c.l.b16 %v8176
    %v8321 = vunpack.c.h.b16 %v8176
    %v8322 = vunpack.c.l.b16 %v8177
    %v8323 = vunpack.c.h.b16 %v8177
    %v8324 = vunpack.c.l.b16 %v8178
    %v8325 = vunpack.c.h.b16 %v8178
    %v8326 = vunpack.c.l.b16 %v8179
    %v8327 = vunpack.c.h.b16 %v8179
    %v8328 = vunpack.c.l.b16 %v8180
    %v8329 = vunpack.c.h.b16 %v8180
    %v8330 = vunpack.c.l.b16 %v8181
    %v8331 = vunpack.c.h.b16 %v8181
    %v8332 = vunpack.c.l.b16 %v8182
    %v8333 = vunpack.c.h.b16 %v8182
    %v8334 = vunpack.c.l.b16 %v8183
    %v8335 = vunpack.c.h.b16 %v8183
    %v8336 = vunpack.c.l.b16 %v8184
    %v8337 = vunpack.c.h.b16 %v8184
    %v8338 = vunpack.c.l.b16 %v8185
    %v8339 = vunpack.c.h.b16 %v8185
    %v8340 = vunpack.c.l.b16 %v8186
    %v8341 = vunpack.c.h.b16 %v8186
    %v8342 = vunpack.c.l.b16 %v8187
    %v8343 = vunpack.c.h.b16 %v8187
    %v8344 = vunpack.c.l.b16 %v8188
    %v8345 = vunpack.c.h.b16 %v8188
    %v8346 = vunpack.c.l.b16 %v8189
    %v8347 = vunpack.c.h.b16 %v8189
    %v8348 = vunpack.c.l.b16 %v8190
    %v8349 = vunpack.c.h.b16 %v8190
    %v8350 = vunpack.c.l.b16 %v8191
    %v8351 = vunpack.c.h.b16 %v8191
    %v8352 = vunpack.c.l.b16 %v8192
    %v8353 = vunpack.c.h.b16 %v8192
    %v8354 = vunpack.c.l.b16 %v8193
    %v8355 = vunpack.c.h.b16 %v8193
    %v8356 = vunpack.c.l.b16 %v8194
    %v8357 = vunpack.c.h.b16 %v8194
    %v8358 = vunpack.c.l.b16 %v8195
    %v8359 = vunpack.c.h.b16 %v8195
    %v8360 = vunpack.c.l.b16 %v8196
    %v8361 = vunpack.c.h.b16 %v8196
    %v8362 = vunpack.c.l.b16 %v8197
    %v8363 = vunpack.c.h.b16 %v8197
    %v8364 = vunpack.c.l.b16 %v8198
    %v8365 = vunpack.c.h.b16 %v8198
    %v8366 = vunpack.c.l.b16 %v8199
    %v8367 = vunpack.c.h.b16 %v8199
    %v8368 = vunpack.c.l.b16 %v8200
    %v8369 = vunpack.c.h.b16 %v8200
    %v8370 = vunpack.c.l.b16 %v8201
    %v8371 = vunpack.c.h.b16 %v8201
    %v8372 = vunpack.c.l.b16 %v8202
    %v8373 = vunpack.c.h.b16 %v8202
    %v8374 = vunpack.c.l.b16 %v8203
    %v8375 = vunpack.c.h.b16 %v8203
    %v8376 = vunpack.c.l.b16 %v8204
    %v8377 = vunpack.c.h.b16 %v8204
    %v8378 = vunpack.c.l.b16 %v8205
    %v8379 = vunpack.c.h.b16 %v8205
    %v8380 = vunpack.c.l.b16 %v8206
    %v8381 = vunpack.c.h.b16 %v8206
    %v8382 = vunpack.c.l.b16 %v8207
    %v8383 = vunpack.c.h.b16 %v8207
    %v8384 = vunpack.c.l.b16 %v8208
    %v8385 = vunpack.c.h.b16 %v8208
    %v8386 = vunpack.c.l.b16 %v8209
    %v8387 = vunpack.c.h.b16 %v8209
    %v8388 = vunpack.c.l.b16 %v8210
    %v8389 = vunpack.c.h.b16 %v8210
    %v8390 = vunpack.c.l.b16 %v8211
    %v8391 = vunpack.c.h.b16 %v8211
    %v8392 = vunpack.c.l.b16 %v8212
    %v8393 = vunpack.c.h.b16 %v8212
    %v8394 = vunpack.c.l.b16 %v8213
    %v8395 = vunpack.c.h.b16 %v8213
    %v8396 = vunpack.c.l.b16 %v8214
    %v8397 = vunpack.c.h.b16 %v8214
    %v8398 = vunpack.c.l.b16 %v8215
    %v8399 = vunpack.c.h.b16 %v8215
    %v8400 = vunpack.c.l.b16 %v8216
    %v8401 = vunpack.c.h.b16 %v8216
    %v8402 = vunpack.c.l.b16 %v8217
    %v8403 = vunpack.c.h.b16 %v8217
    %v8404 = vunpack.c.l.b16 %v8218
    %v8405 = vunpack.c.h.b16 %v8218
    %v8406 = vunpack.c.l.b16 %v8219
    %v8407 = vunpack.c.h.b16 %v8219
    %v8408 = vunpack.c.l.b16 %v8220
    %v8409 = vunpack.c.h.b16 %v8220
    %v8410 = vunpack.c.l.b16 %v8221
    %v8411 = vunpack.c.h.b16 %v8221
    %v8412 = vunpack.c.l.b16 %v8222
    %v8413 = vunpack.c.h.b16 %v8222
    %v8414 = vunpack.c.l.b16 %v8223
    %v8415 = vunpack.c.h.b16 %v8223
    %v8416 = vunpack.c.l.b16 %v8224
    %v8417 = vunpack.c.h.b16 %v8224
    %v8418 = vunpack.c.l.b16 %v8225
    %v8419 = vunpack.c.h.b16 %v8225
    %v8420 = vunpack.c.l.b16 %v8226
    %v8421 = vunpack.c.h.b16 %v8226
    %v8422 = vunpack.c.l.b16 %v8227
    %v8423 = vunpack.c.h.b16 %v8227
    %v8424 = vunpack.c.l.b16 %v8228
    %v8425 = vunpack.c.h.b16 %v8228
    %v8426 = vunpack.c.l.b16 %v8229
    %v8427 = vunpack.c.h.b16 %v8229
    %v8428 = vunpack.c.l.b16 %v8230
    %v8429 = vunpack.c.h.b16 %v8230
    %v8430 = vunpack.c.l.b16 %v8231
    %v8431 = vunpack.c.h.b16 %v8231
    %v8432 = vunpack.c.l.b16 %v8232
    %v8433 = vunpack.c.h.b16 %v8232
    %v8434 = vunpack.c.l.b16 %v8233
    %v8435 = vunpack.c.h.b16 %v8233
    %v8436 = vunpack.c.l.b16 %v8234
    %v8437 = vunpack.c.h.b16 %v8234
    %v8438 = vunpack.c.l.b16 %v8235
    %v8439 = vunpack.c.h.b16 %v8235
    %v8440 = vpack.c.b16 %v8314, %v8312
    %v8441 = vpack.c.b16 %v8315, %v8313
    %v8442 = vpack.c.b16 %v8318, %v8316
    %v8443 = vpack.c.b16 %v8319, %v8317
    %v8444 = vpack.c.b16 %v8322, %v8320
    %v8445 = vpack.c.b16 %v8323, %v8321
    %v8446 = vpack.c.b16 %v8326, %v8324
    %v8447 = vpack.c.b16 %v8327, %v8325
    %v8448 = vpack.c.b16 %v8330, %v8328
    %v8449 = vpack.c.b16 %v8331, %v8329
    %v8450 = vpack.c.b16 %v8334, %v8332
    %v8451 = vpack.c.b16 %v8335, %v8333
    %v8452 = vpack.c.b16 %v8338, %v8336
    %v8453 = vpack.c.b16 %v8339, %v8337
    %v8454 = vpack.c.b16 %v8342, %v8340
    %v8455 = vpack.c.b16 %v8343, %v8341
    %v8456 = vpack.c.b16 %v8346, %v8344
    %v8457 = vpack.c.b16 %v8347, %v8345
    %v8458 = vpack.c.b16 %v8350, %v8348
    %v8459 = vpack.c.b16 %v8351, %v8349
    %v8460 = vpack.c.b16 %v8354, %v8352
    %v8461 = vpack.c.b16 %v8355, %v8353
    %v8462 = vpack.c.b16 %v8358, %v8356
    %v8463 = vpack.c.b16 %v8359, %v8357
    %v8464 = vpack.c.b16 %v8362, %v8360
    %v8465 = vpack.c.b16 %v8363, %v8361
    %v8466 = vpack.c.b16 %v8366, %v8364
    %v8467 = vpack.c.b16 %v8367, %v8365
    %v8468 = vpack.c.b16 %v8370, %v8368
    %v8469 = vpack.c.b16 %v8371, %v8369
    %v8470 = vpack.c.b16 %v8374, %v8372
    %v8471 = vpack.c.b16 %v8375, %v8373
    %v8472 = vpack.c.b16 %v8378, %v8376
    %v8473 = vpack.c.b16 %v8379, %v8377
    %v8474 = vpack.c.b16 %v8382, %v8380
    %v8475 = vpack.c.b16 %v8383, %v8381
    %v8476 = vpack.c.b16 %v8386, %v8384
    %v8477 = vpack.c.b16 %v8387, %v8385
    %v8478 = vpack.c.b16 %v8390, %v8388
    %v8479 = vpack.c.b16 %v8391, %v8389
    %v8480 = vpack.c.b16 %v8394, %v8392
    %v8481 = vpack.c.b16 %v8395, %v8393
    %v8482 = vpack.c.b16 %v8398, %v8396
    %v8483 = vpack.c.b16 %v8399, %v8397
    %v8484 = vpack.c.b16 %v8402, %v8400
    %v8485 = vpack.c.b16 %v8403, %v8401
    %v8486 = vpack.c.b16 %v8406, %v8404
    %v8487 = vpack.c.b16 %v8407, %v8405
    %v8488 = vpack.c.b16 %v8410, %v8408
    %v8489 = vpack.c.b16 %v8411, %v8409
    %v8490 = vpack.c.b16 %v8414, %v8412
    %v8491 = vpack.c.b16 %v8415, %v8413
    %v8492 = vpack.c.b16 %v8418, %v8416
    %v8493 = vpack.c.b16 %v8419, %v8417
    %v8494 = vpack.c.b16 %v8422, %v8420
    %v8495 = vpack.c.b16 %v8423, %v8421
    %v8496 = vpack.c.b16 %v8426, %v8424
    %v8497 = vpack.c.b16 %v8427, %v8425
    %v8498 = vpack.c.b16 %v8430, %v8428
    %v8499 = vpack.c.b16 %v8431, %v8429
    %v8500 = vpack.c.b16 %v8434, %v8432
    %v8501 = vpack.c.b16 %v8435, %v8433
    %v8502 = vpack.c.b16 %v8438, %v8436
    %v8503 = vpack.c.b16 %v8439, %v8437
    %8568 = vmatprep.subr.bf16.mxu0 %v8441
    %8569 = vmatpush1.bf16.msra.mxu0 %v8440
    %8570 = vmatprep.subr.bf16.mxu0 %v8443
    %8571 = vmatpush1.bf16.msra.mxu0 %v8442
    %8572 = vmatprep.subr.bf16.mxu0 %v8445
    %8573 = vmatpush1.bf16.msra.mxu0 %v8444
    %8574 = vmatprep.subr.bf16.mxu0 %v8447
    %8575 = vmatpush1.bf16.msra.mxu0 %v8446
    %8576 = vmatprep.subr.bf16.mxu0 %v8449
    %8577 = vmatpush1.bf16.msra.mxu0 %v8448
    %8578 = vmatprep.subr.bf16.mxu0 %v8451
    %8579 = vmatpush1.bf16.msra.mxu0 %v8450
    %8580 = vmatprep.subr.bf16.mxu0 %v8453
    %8581 = vmatpush1.bf16.msra.mxu0 %v8452
    %8582 = vmatprep.subr.bf16.mxu0 %v8455
    %8583 = vmatpush1.bf16.msra.mxu0 %v8454
    %8584 = vmatprep.subr.bf16.mxu0 %v8457
    %8585 = vmatpush1.bf16.msra.mxu0 %v8456
    %8586 = vmatprep.subr.bf16.mxu0 %v8459
    %8587 = vmatpush1.bf16.msra.mxu0 %v8458
    %8588 = vmatprep.subr.bf16.mxu0 %v8461
    %8589 = vmatpush1.bf16.msra.mxu0 %v8460
    %8590 = vmatprep.subr.bf16.mxu0 %v8463
    %8591 = vmatpush1.bf16.msra.mxu0 %v8462
    %8592 = vmatprep.subr.bf16.mxu0 %v8465
    %8593 = vmatpush1.bf16.msra.mxu0 %v8464
    %8594 = vmatprep.subr.bf16.mxu0 %v8467
    %8595 = vmatpush1.bf16.msra.mxu0 %v8466
    %8596 = vmatprep.subr.bf16.mxu0 %v8469
    %8597 = vmatpush1.bf16.msra.mxu0 %v8468
    %8598 = vmatprep.subr.bf16.mxu0 %v8471
    %8599 = vmatpush1.bf16.msra.mxu0 %v8470
    %8600 = vmatprep.mubr.bf16.mxu0 %v8141
    %8601 = vmatmul.mubr.bf16.gmra.mrb[0].mxu0 %v8140
    %v8602 = vpop.f32.mrb[0].mxu0
    %v8603 = vadd.f32 %v8241, %v8602
    %v8604 = vpop.f32.mrb[0].mxu0
    %v8605 = vadd.f32 %v8245, %v8604
    %v8606 = vpop.f32.mrb[0].mxu0
    %v8607 = vadd.f32 %v8241, %v8606
    %v8608 = vpop.f32.mrb[0].mxu0
    %v8609 = vadd.f32 %v8245, %v8608
    %8610 = vmatprep.mubr.bf16.mxu0 %v8145
    %8611 = vmatmul.mubr.bf16.gmra.mrb[0].mxu0 %v8144
    %v8612 = vpop.f32.mrb[0].mxu0
    %v8613 = vadd.f32 %v8241, %v8612
    %v8614 = vpop.f32.mrb[0].mxu0
    %v8615 = vadd.f32 %v8245, %v8614
    %v8616 = vpop.f32.mrb[0].mxu0
    %v8617 = vadd.f32 %v8241, %v8616
    %v8618 = vpop.f32.mrb[0].mxu0
    %v8619 = vadd.f32 %v8245, %v8618
    %8620 = vmatprep.mubr.bf16.mxu0 %v8149
    %8621 = vmatmul.mubr.bf16.gmra.mrb[0].mxu0 %v8148
    %v8622 = vpop.f32.mrb[0].mxu0
    %v8623 = vadd.f32 %v8241, %v8622
    %v8624 = vpop.f32.mrb[0].mxu0
    %v8625 = vadd.f32 %v8245, %v8624
    %v8626 = vpop.f32.mrb[0].mxu0
    %v8627 = vadd.f32 %v8241, %v8626
    %v8628 = vpop.f32.mrb[0].mxu0
    %v8629 = vadd.f32 %v8245, %v8628
    %8630 = vmatprep.mubr.bf16.mxu0 %v8153
    %8631 = vmatmul.mubr.bf16.gmra.mrb[0].mxu0 %v8152
    %v8632 = vpop.f32.mrb[0].mxu0
    %v8633 = vadd.f32 %v8241, %v8632
    %v8634 = vpop.f32.mrb[0].mxu0
    %v8635 = vadd.f32 %v8245, %v8634
    %v8636 = vpop.f32.mrb[0].mxu0
    %v8637 = vadd.f32 %v8241, %v8636
    %v8638 = vpop.f32.mrb[0].mxu0
    %v8639 = vadd.f32 %v8245, %v8638
    %8640 = vmatprep.mubr.bf16.mxu0 %v8157
    %8641 = vmatmul.mubr.bf16.gmra.mrb[0].mxu0 %v8156
    %v8642 = vpop.f32.mrb[0].mxu0
    %v8643 = vadd.f32 %v8241, %v8642
    %v8644 = vpop.f32.mrb[0].mxu0
    %v8645 = vadd.f32 %v8245, %v8644
    %v8646 = vpop.f32.mrb[0].mxu0
    %v8647 = vadd.f32 %v8241, %v8646
    %v8648 = vpop.f32.mrb[0].mxu0
    %v8649 = vadd.f32 %v8245, %v8648
    %8650 = vmatprep.mubr.bf16.mxu0 %v8161
    %8651 = vmatmul.mubr.bf16.gmra.mrb[0].mxu0 %v8160
    %v8652 = vpop.f32.mrb[0].mxu0
    %v8653 = vadd.f32 %v8241, %v8652
    %v8654 = vpop.f32.mrb[0].mxu0
    %v8655 = vadd.f32 %v8245, %v8654
    %v8656 = vpop.f32.mrb[0].mxu0
    %v8657 = vadd.f32 %v8241, %v8656
    %v8658 = vpop.f32.mrb[0].mxu0
    %v8659 = vadd.f32 %v8245, %v8658
    %8660 = vmatprep.mubr.bf16.mxu0 %v8165
    %8661 = vmatmul.mubr.bf16.gmra.mrb[0].mxu0 %v8164
    %v8662 = vpop.f32.mrb[0].mxu0
    %v8663 = vadd.f32 %v8241, %v8662
    %v8664 = vpop.f32.mrb[0].mxu0
    %v8665 = vadd.f32 %v8245, %v8664
    %v8666 = vpop.f32.mrb[0].mxu0
    %v8667 = vadd.f32 %v8241, %v8666
    %v8668 = vpop.f32.mrb[0].mxu0
    %v8669 = vadd.f32 %v8245, %v8668
    %8670 = vmatprep.mubr.bf16.mxu0 %v8169
    %8671 = vmatmul.mubr.bf16.gmra.mrb[0].mxu0 %v8168
    %v8672 = vpop.f32.mrb[0].mxu0
    %v8673 = vadd.f32 %v8241, %v8672
    %v8674 = vpop.f32.mrb[0].mxu0
    %v8675 = vadd.f32 %v8245, %v8674
    %v8676 = vpop.f32.mrb[0].mxu0
    %v8677 = vadd.f32 %v8241, %v8676
    %v8678 = vpop.f32.mrb[0].mxu0
    %v8679 = vadd.f32 %v8245, %v8678
    %8680 = vdwg.mxu0
    %8681 = vmatprep.subr.bf16.mxu0 %v8473
    %8682 = vmatpush1.bf16.msra.mxu0 %v8472
    %8683 = vmatprep.subr.bf16.mxu0 %v8475
    %8684 = vmatpush1.bf16.msra.mxu0 %v8474
    %8685 = vmatprep.subr.bf16.mxu0 %v8477
    %8686 = vmatpush1.bf16.msra.mxu0 %v8476
    %8687 = vmatprep.subr.bf16.mxu0 %v8479
    %8688 = vmatpush1.bf16.msra.mxu0 %v8478
    %8689 = vmatprep.subr.bf16.mxu0 %v8481
    %8690 = vmatpush1.bf16.msra.mxu0 %v8480
    %8691 = vmatprep.subr.bf16.mxu0 %v8483
    %8692 = vmatpush1.bf16.msra.mxu0 %v8482
    %8693 = vmatprep.subr.bf16.mxu0 %v8485
    %8694 = vmatpush1.bf16.msra.mxu0 %v8484
    %8695 = vmatprep.subr.bf16.mxu0 %v8487
    %8696 = vmatpush1.bf16.msra.mxu0 %v8486
    %8697 = vmatprep.subr.bf16.mxu0 %v8489
    %8698 = vmatpush1.bf16.msra.mxu0 %v8488
    %8699 = vmatprep.subr.bf16.mxu0 %v8491
    %8700 = vmatpush1.bf16.msra.mxu0 %v8490
    %8701 = vmatprep.subr.bf16.mxu0 %v8493
    %8702 = vmatpush1.bf16.msra.mxu0 %v8492
    %8703 = vmatprep.subr.bf16.mxu0 %v8495
    %8704 = vmatpush1.bf16.msra.mxu0 %v8494
    %8705 = vmatprep.subr.bf16.mxu0 %v8497
    %8706 = vmatpush1.bf16.msra.mxu0 %v8496
    %8707 = vmatprep.subr.bf16.mxu0 %v8499
    %8708 = vmatpush1.bf16.msra.mxu0 %v8498
    %8709 = vmatprep.subr.bf16.mxu0 %v8501
    %8710 = vmatpush1.bf16.msra.mxu0 %v8500
    %8711 = vmatprep.subr.bf16.mxu0 %v8503
    %8712 = vmatpush1.bf16.msra.mxu0 %v8502
    %8713 = vmatprep.mubr.bf16.mxu0 %v8143
    %8714 = vmatmul.mubr.bf16.gmra.mrb[0].mxu0 %v8142
    %v8715 = vpop.f32.mrb[0].mxu0
    %v8716 = vadd.f32 %v8603, %v8715
    %v8717 = vpop.f32.mrb[0].mxu0
    %v8718 = vadd.f32 %v8605, %v8717
    %v8719 = vpop.f32.mrb[0].mxu0
    %v8720 = vadd.f32 %v8607, %v8719
    %v8721 = vpop.f32.mrb[0].mxu0
    %v8722 = vadd.f32 %v8609, %v8721
    %8723 = vmatprep.mubr.bf16.mxu0 %v8147
    %8724 = vmatmul.mubr.bf16.gmra.mrb[0].mxu0 %v8146
    %v8725 = vpop.f32.mrb[0].mxu0
    %v8726 = vadd.f32 %v8613, %v8725
    %v8727 = vpop.f32.mrb[0].mxu0
    %v8728 = vadd.f32 %v8615, %v8727
    %v8729 = vpop.f32.mrb[0].mxu0
    %v8730 = vadd.f32 %v8617, %v8729
    %v8731 = vpop.f32.mrb[0].mxu0
    %v8732 = vadd.f32 %v8619, %v8731
    %8733 = vmatprep.mubr.bf16.mxu0 %v8151
    %8734 = vmatmul.mubr.bf16.gmra.mrb[0].mxu0 %v8150
    %v8735 = vpop.f32.mrb[0].mxu0
    %v8736 = vadd.f32 %v8623, %v8735
    %v8737 = vpop.f32.mrb[0].mxu0
    %v8738 = vadd.f32 %v8625, %v8737
    %v8739 = vpop.f32.mrb[0].mxu0
    %v8740 = vadd.f32 %v8627, %v8739
    %v8741 = vpop.f32.mrb[0].mxu0
    %v8742 = vadd.f32 %v8629, %v8741
    %8743 = vmatprep.mubr.bf16.mxu0 %v8155
    %8744 = vmatmul.mubr.bf16.gmra.mrb[0].mxu0 %v8154
    %v8745 = vpop.f32.mrb[0].mxu0
    %v8746 = vadd.f32 %v8633, %v8745
    %v8747 = vpop.f32.mrb[0].mxu0
    %v8748 = vadd.f32 %v8635, %v8747
    %v8749 = vpop.f32.mrb[0].mxu0
    %v8750 = vadd.f32 %v8637, %v8749
    %v8751 = vpop.f32.mrb[0].mxu0
    %v8752 = vadd.f32 %v8639, %v8751
    %8753 = vmatprep.mubr.bf16.mxu0 %v8159
    %8754 = vmatmul.mubr.bf16.gmra.mrb[0].mxu0 %v8158
    %v8755 = vpop.f32.mrb[0].mxu0
    %v8756 = vadd.f32 %v8643, %v8755
    %v8757 = vpop.f32.mrb[0].mxu0
    %v8758 = vadd.f32 %v8645, %v8757
    %v8759 = vpop.f32.mrb[0].mxu0
    %v8760 = vadd.f32 %v8647, %v8759
    %v8761 = vpop.f32.mrb[0].mxu0
    %v8762 = vadd.f32 %v8649, %v8761
    %8763 = vmatprep.mubr.bf16.mxu0 %v8163
    %8764 = vmatmul.mubr.bf16.gmra.mrb[0].mxu0 %v8162
    %v8765 = vpop.f32.mrb[0].mxu0
    %v8766 = vadd.f32 %v8653, %v8765
    %v8767 = vpop.f32.mrb[0].mxu0
    %v8768 = vadd.f32 %v8655, %v8767
    %v8769 = vpop.f32.mrb[0].mxu0
    %v8770 = vadd.f32 %v8657, %v8769
    %v8771 = vpop.f32.mrb[0].mxu0
    %v8772 = vadd.f32 %v8659, %v8771
    %8773 = vmatprep.mubr.bf16.mxu0 %v8167
    %8774 = vmatmul.mubr.bf16.gmra.mrb[0].mxu0 %v8166
    %v8775 = vpop.f32.mrb[0].mxu0
    %v8776 = vadd.f32 %v8663, %v8775
    %v8777 = vpop.f32.mrb[0].mxu0
    %v8778 = vadd.f32 %v8665, %v8777
    %v8779 = vpop.f32.mrb[0].mxu0
    %v8780 = vadd.f32 %v8667, %v8779
    %v8781 = vpop.f32.mrb[0].mxu0
    %v8782 = vadd.f32 %v8669, %v8781
    %8783 = vmatprep.mubr.bf16.mxu0 %v8171
    %8784 = vmatmul.mubr.bf16.gmra.mrb[0].mxu0 %v8170
    %v8785 = vpop.f32.mrb[0].mxu0
    %v8786 = vadd.f32 %v8673, %v8785
    %v8787 = vpop.f32.mrb[0].mxu0
    %v8788 = vadd.f32 %v8675, %v8787
    %v8789 = vpop.f32.mrb[0].mxu0
    %v8790 = vadd.f32 %v8677, %v8789
    %v8791 = vpop.f32.mrb[0].mxu0
    %v8792 = vadd.f32 %v8679, %v8791
    %8793 = vdwg.mxu0
    %vm8794 = vcmp.gt.f32.partialorder %v8716, 0.0
    %vm8795 = vcmp.gt.f32.partialorder %v8718, 0.0
    %vm8796 = vcmp.gt.f32.partialorder %v8720, 0.0
    %vm8797 = vcmp.gt.f32.partialorder %v8722, 0.0
    %vm8798 = vcmp.gt.f32.partialorder %v8726, 0.0
    %vm8799 = vcmp.gt.f32.partialorder %v8728, 0.0
    %vm8800 = vcmp.gt.f32.partialorder %v8730, 0.0
    %vm8801 = vcmp.gt.f32.partialorder %v8732, 0.0
    %vm8802 = vcmp.gt.f32.partialorder %v8736, 0.0
    %vm8803 = vcmp.gt.f32.partialorder %v8738, 0.0
    %vm8804 = vcmp.gt.f32.partialorder %v8740, 0.0
    %vm8805 = vcmp.gt.f32.partialorder %v8742, 0.0
    %vm8806 = vcmp.gt.f32.partialorder %v8746, 0.0
    %vm8807 = vcmp.gt.f32.partialorder %v8748, 0.0
    %vm8808 = vcmp.gt.f32.partialorder %v8750, 0.0
    %vm8809 = vcmp.gt.f32.partialorder %v8752, 0.0
    %vm8810 = vcmp.gt.f32.partialorder %v8756, 0.0
    %vm8811 = vcmp.gt.f32.partialorder %v8758, 0.0
    %vm8812 = vcmp.gt.f32.partialorder %v8760, 0.0
    %vm8813 = vcmp.gt.f32.partialorder %v8762, 0.0
    %vm8814 = vcmp.gt.f32.partialorder %v8766, 0.0
    %vm8815 = vcmp.gt.f32.partialorder %v8768, 0.0
    %vm8816 = vcmp.gt.f32.partialorder %v8770, 0.0
    %vm8817 = vcmp.gt.f32.partialorder %v8772, 0.0
    %vm8818 = vcmp.gt.f32.partialorder %v8776, 0.0
    %vm8819 = vcmp.gt.f32.partialorder %v8778, 0.0
    %vm8820 = vcmp.gt.f32.partialorder %v8780, 0.0
    %vm8821 = vcmp.gt.f32.partialorder %v8782, 0.0
    %vm8822 = vcmp.gt.f32.partialorder %v8786, 0.0
    %vm8823 = vcmp.gt.f32.partialorder %v8788, 0.0
    %vm8824 = vcmp.gt.f32.partialorder %v8790, 0.0
    %vm8825 = vcmp.gt.f32.partialorder %v8792, 0.0
    %v8826 = vmul.f32 %v8716, 0.2
    %v8827 = vmul.f32 %v8718, 0.2
    %v8828 = vmul.f32 %v8720, 0.2
    %v8829 = vmul.f32 %v8722, 0.2
    %v8830 = vmul.f32 %v8726, 0.2
    %v8831 = vmul.f32 %v8728, 0.2
    %v8832 = vmul.f32 %v8730, 0.2
    %v8833 = vmul.f32 %v8732, 0.2
    %v8834 = vmul.f32 %v8736, 0.2
    %v8835 = vmul.f32 %v8738, 0.2
    %v8836 = vmul.f32 %v8740, 0.2
    %v8837 = vmul.f32 %v8742, 0.2
    %v8838 = vmul.f32 %v8746, 0.2
    %v8839 = vmul.f32 %v8748, 0.2
    %v8840 = vmul.f32 %v8750, 0.2
    %v8841 = vmul.f32 %v8752, 0.2
    %v8842 = vmul.f32 %v8756, 0.2
    %v8843 = vmul.f32 %v8758, 0.2
    %v8844 = vmul.f32 %v8760, 0.2
    %v8845 = vmul.f32 %v8762, 0.2
    %v8846 = vmul.f32 %v8766, 0.2
    %v8847 = vmul.f32 %v8768, 0.2
    %v8848 = vmul.f32 %v8770, 0.2
    %v8849 = vmul.f32 %v8772, 0.2
    %v8850 = vmul.f32 %v8776, 0.2
    %v8851 = vmul.f32 %v8778, 0.2
    %v8852 = vmul.f32 %v8780, 0.2
    %v8853 = vmul.f32 %v8782, 0.2
    %v8854 = vmul.f32 %v8786, 0.2
    %v8855 = vmul.f32 %v8788, 0.2
    %v8856 = vmul.f32 %v8790, 0.2
    %v8857 = vmul.f32 %v8792, 0.2
    %v8858 = vsel %vm8794, %v8716, %v8826
    %v8859 = vsel %vm8795, %v8718, %v8827
    %v8860 = vsel %vm8796, %v8720, %v8828
    %v8861 = vsel %vm8797, %v8722, %v8829
    %v8862 = vsel %vm8798, %v8726, %v8830
    %v8863 = vsel %vm8799, %v8728, %v8831
    %v8864 = vsel %vm8800, %v8730, %v8832
    %v8865 = vsel %vm8801, %v8732, %v8833
    %v8866 = vsel %vm8802, %v8736, %v8834
    %v8867 = vsel %vm8803, %v8738, %v8835
    %v8868 = vsel %vm8804, %v8740, %v8836
    %v8869 = vsel %vm8805, %v8742, %v8837
    %v8870 = vsel %vm8806, %v8746, %v8838
    %v8871 = vsel %vm8807, %v8748, %v8839
    %v8872 = vsel %vm8808, %v8750, %v8840
    %v8873 = vsel %vm8809, %v8752, %v8841
    %v8874 = vsel %vm8810, %v8756, %v8842
    %v8875 = vsel %vm8811, %v8758, %v8843
    %v8876 = vsel %vm8812, %v8760, %v8844
    %v8877 = vsel %vm8813, %v8762, %v8845
    %v8878 = vsel %vm8814, %v8766, %v8846
    %v8879 = vsel %vm8815, %v8768, %v8847
    %v8880 = vsel %vm8816, %v8770, %v8848
    %v8881 = vsel %vm8817, %v8772, %v8849
    %v8882 = vsel %vm8818, %v8776, %v8850
    %v8883 = vsel %vm8819, %v8778, %v8851
    %v8884 = vsel %vm8820, %v8780, %v8852
    %v8885 = vsel %vm8821, %v8782, %v8853
    %v8886 = vsel %vm8822, %v8786, %v8854
    %v8887 = vsel %vm8823, %v8788, %v8855
    %v8888 = vsel %vm8824, %v8790, %v8856
    %v8889 = vsel %vm8825, %v8792, %v8857
    %v8890 = vpack.c.bf16 %v8860, %v8858
    %v8891 = vpack.c.bf16 %v8861, %v8859
    %v8892 = vpack.c.bf16 %v8864, %v8862
    %v8893 = vpack.c.bf16 %v8865, %v8863
    %v8894 = vpack.c.bf16 %v8868, %v8866
    %v8895 = vpack.c.bf16 %v8869, %v8867
    %v8896 = vpack.c.bf16 %v8872, %v8870
    %v8897 = vpack.c.bf16 %v8873, %v8871
    %v8898 = vpack.c.bf16 %v8876, %v8874
    %v8899 = vpack.c.bf16 %v8877, %v8875
    %v8900 = vpack.c.bf16 %v8880, %v8878
    %v8901 = vpack.c.bf16 %v8881, %v8879
    %v8902 = vpack.c.bf16 %v8884, %v8882
    %v8903 = vpack.c.bf16 %v8885, %v8883
    %v8904 = vpack.c.bf16 %v8888, %v8886
    %v8905 = vpack.c.bf16 %v8889, %v8887
    %v8906 = vld [vmem:[#allocation14] sm:$0xf]
    %v8907 = vld [vmem:[#allocation14 + $0x4] sm:$0xf]
    %v8908 = vld [vmem:[#allocation14 + $0x8] sm:$0xf]
    %v8909 = vld [vmem:[#allocation14 + $0xc] sm:$0xf]
    %v8910 = vld [vmem:[#allocation14 + $0x10] sm:$0xf]
    %v8911 = vld [vmem:[#allocation14 + $0x14] sm:$0xf]
    %v8912 = vld [vmem:[#allocation14 + $0x18] sm:$0xf]
    %v8913 = vld [vmem:[#allocation14 + $0x1c] sm:$0xf]
    %v8914 = vld [vmem:[#allocation14 + $0x20] sm:$0xf]
    %v8915 = vld [vmem:[#allocation14 + $0x24] sm:$0xf]
    %v8916 = vld [vmem:[#allocation14 + $0x28] sm:$0xf]
    %v8917 = vld [vmem:[#allocation14 + $0x2c] sm:$0xf]
    %v8918 = vld [vmem:[#allocation14 + $0x30] sm:$0xf]
    %v8919 = vld [vmem:[#allocation14 + $0x34] sm:$0xf]
    %v8920 = vld [vmem:[#allocation14 + $0x38] sm:$0xf]
    %v8921 = vld [vmem:[#allocation14 + $0x3c] sm:$0xf]
    %v8922 = vld [vmem:[#allocation14 + $0x40] sm:$0xf]
    %v8923 = vld [vmem:[#allocation14 + $0x44] sm:$0xf]
    %v8924 = vld [vmem:[#allocation14 + $0x48] sm:$0xf]
    %v8925 = vld [vmem:[#allocation14 + $0x4c] sm:$0xf]
    %v8926 = vld [vmem:[#allocation14 + $0x50] sm:$0xf]
    %v8927 = vld [vmem:[#allocation14 + $0x54] sm:$0xf]
    %v8928 = vld [vmem:[#allocation14 + $0x58] sm:$0xf]
    %v8929 = vld [vmem:[#allocation14 + $0x5c] sm:$0xf]
    %v8930 = vld [vmem:[#allocation14 + $0x60] sm:$0xf]
    %v8931 = vld [vmem:[#allocation14 + $0x64] sm:$0xf]
    %v8932 = vld [vmem:[#allocation14 + $0x68] sm:$0xf]
    %v8933 = vld [vmem:[#allocation14 + $0x6c] sm:$0xf]
    %v8934 = vld [vmem:[#allocation14 + $0x70] sm:$0xf]
    %v8935 = vld [vmem:[#allocation14 + $0x74] sm:$0xf]
    %v8936 = vld [vmem:[#allocation14 + $0x78] sm:$0xf]
    %v8937 = vld [vmem:[#allocation14 + $0x7c] sm:$0xf]
    %v8938 = vld [vmem:[#allocation16] sm:$0x1]
    %v8940 = vlaneseq
    %v8941 = vshrl.u32 %v8940, 7
    %v8942 = vsub.s32 0, %v8941
    %v8943 = vrot.slane %v8938, %v8942
    %v8977 = vunpack.c.l.b16 %v8906
    %v8978 = vunpack.c.l.b16 %v8907
    %v8979 = vunpack.c.l.b16 %v8908
    %v8980 = vunpack.c.l.b16 %v8909
    %v8981 = vunpack.c.l.b16 %v8910
    %v8982 = vunpack.c.l.b16 %v8911
    %v8983 = vunpack.c.l.b16 %v8912
    %v8984 = vunpack.c.l.b16 %v8913
    %v8985 = vunpack.c.l.b16 %v8914
    %v8986 = vunpack.c.l.b16 %v8915
    %v8987 = vunpack.c.l.b16 %v8916
    %v8988 = vunpack.c.l.b16 %v8917
    %v8989 = vunpack.c.l.b16 %v8918
    %v8990 = vunpack.c.l.b16 %v8919
    %v8991 = vunpack.c.l.b16 %v8920
    %v8992 = vunpack.c.l.b16 %v8921
    %v8993 = vunpack.c.l.b16 %v8922
    %v8994 = vunpack.c.l.b16 %v8923
    %v8995 = vunpack.c.l.b16 %v8924
    %v8996 = vunpack.c.l.b16 %v8925
    %v8997 = vunpack.c.l.b16 %v8926
    %v8998 = vunpack.c.l.b16 %v8927
    %v8999 = vunpack.c.l.b16 %v8928
    %v9000 = vunpack.c.l.b16 %v8929
    %v9001 = vunpack.c.l.b16 %v8930
    %v9002 = vunpack.c.l.b16 %v8931
    %v9003 = vunpack.c.l.b16 %v8932
    %v9004 = vunpack.c.l.b16 %v8933
    %v9005 = vunpack.c.l.b16 %v8934
    %v9006 = vunpack.c.l.b16 %v8935
    %v9007 = vunpack.c.l.b16 %v8936
    %v9008 = vunpack.c.l.b16 %v8937
    %v9009 = vpack.c.b16 %v8978, %v8977
    %v9010 = vpack.c.b16 %v8980, %v8979
    %v9011 = vpack.c.b16 %v8982, %v8981
    %v9012 = vpack.c.b16 %v8984, %v8983
    %v9013 = vpack.c.b16 %v8986, %v8985
    %v9014 = vpack.c.b16 %v8988, %v8987
    %v9015 = vpack.c.b16 %v8990, %v8989
    %v9016 = vpack.c.b16 %v8992, %v8991
    %v9017 = vpack.c.b16 %v8994, %v8993
    %v9018 = vpack.c.b16 %v8996, %v8995
    %v9019 = vpack.c.b16 %v8998, %v8997
    %v9020 = vpack.c.b16 %v9000, %v8999
    %v9021 = vpack.c.b16 %v9002, %v9001
    %v9022 = vpack.c.b16 %v9004, %v9003
    %v9023 = vpack.c.b16 %v9006, %v9005
    %v9024 = vpack.c.b16 %v9008, %v9007
    %9041 = vmatprep.subr.bf16.mxu0 0
    %9042 = vmatpush1.bf16.msra.mxu0 %v9009
    %9043 = vmatprep.subr.bf16.mxu0 0
    %9044 = vmatpush1.bf16.msra.mxu0 %v9010
    %9045 = vmatprep.subr.bf16.mxu0 0
    %9046 = vmatpush1.bf16.msra.mxu0 %v9011
    %9047 = vmatprep.subr.bf16.mxu0 0
    %9048 = vmatpush1.bf16.msra.mxu0 %v9012
    %9049 = vmatprep.subr.bf16.mxu0 0
    %9050 = vmatpush1.bf16.msra.mxu0 %v9013
    %9051 = vmatprep.subr.bf16.mxu0 0
    %9052 = vmatpush1.bf16.msra.mxu0 %v9014
    %9053 = vmatprep.subr.bf16.mxu0 0
    %9054 = vmatpush1.bf16.msra.mxu0 %v9015
    %9055 = vmatprep.subr.bf16.mxu0 0
    %9056 = vmatpush1.bf16.msra.mxu0 %v9016
    %9057 = vmatprep.subr.bf16.mxu0 0
    %9058 = vmatpush1.bf16.msra.mxu0 %v9017
    %9059 = vmatprep.subr.bf16.mxu0 0
    %9060 = vmatpush1.bf16.msra.mxu0 %v9018
    %9061 = vmatprep.subr.bf16.mxu0 0
    %9062 = vmatpush1.bf16.msra.mxu0 %v9019
    %9063 = vmatprep.subr.bf16.mxu0 0
    %9064 = vmatpush1.bf16.msra.mxu0 %v9020
    %9065 = vmatprep.subr.bf16.mxu0 0
    %9066 = vmatpush1.bf16.msra.mxu0 %v9021
    %9067 = vmatprep.subr.bf16.mxu0 0
    %9068 = vmatpush1.bf16.msra.mxu0 %v9022
    %9069 = vmatprep.subr.bf16.mxu0 0
    %9070 = vmatpush1.bf16.msra.mxu0 %v9023
    %9071 = vmatprep.subr.bf16.mxu0 0
    %9072 = vmatpush1.bf16.msra.mxu0 %v9024
    %9073 = vmatprep.mubr.bf16.mxu0 %v8891
    %9074 = vmatmul.mubr.bf16.gmra.mrb[0].mxu0 %v8890
    %v9075 = vpop.f32.mrb[0].mxu0
    %v9076 = vadd.f32 %v8943, %v9075
    %v9077 = vpop.f32.mrb[0].mxu0
    %v9078 = vpop.f32.mrb[0].mxu0
    %v9079 = vadd.f32 %v8943, %v9078
    %v9080 = vpop.f32.mrb[0].mxu0
    %9081 = vmatprep.mubr.bf16.mxu0 %v8893
    %9082 = vmatmul.mubr.bf16.gmra.mrb[0].mxu0 %v8892
    %v9083 = vpop.f32.mrb[0].mxu0
    %v9084 = vadd.f32 %v8943, %v9083
    %v9085 = vpop.f32.mrb[0].mxu0
    %v9086 = vpop.f32.mrb[0].mxu0
    %v9087 = vadd.f32 %v8943, %v9086
    %v9088 = vpop.f32.mrb[0].mxu0
    %9089 = vmatprep.mubr.bf16.mxu0 %v8895
    %9090 = vmatmul.mubr.bf16.gmra.mrb[0].mxu0 %v8894
    %v9091 = vpop.f32.mrb[0].mxu0
    %v9092 = vadd.f32 %v8943, %v9091
    %v9093 = vpop.f32.mrb[0].mxu0
    %v9094 = vpop.f32.mrb[0].mxu0
    %v9095 = vadd.f32 %v8943, %v9094
    %v9096 = vpop.f32.mrb[0].mxu0
    %9097 = vmatprep.mubr.bf16.mxu0 %v8897
    %9098 = vmatmul.mubr.bf16.gmra.mrb[0].mxu0 %v8896
    %v9099 = vpop.f32.mrb[0].mxu0
    %v9100 = vadd.f32 %v8943, %v9099
    %v9101 = vpop.f32.mrb[0].mxu0
    %v9102 = vpop.f32.mrb[0].mxu0
    %v9103 = vadd.f32 %v8943, %v9102
    %v9104 = vpop.f32.mrb[0].mxu0
    %9105 = vmatprep.mubr.bf16.mxu0 %v8899
    %9106 = vmatmul.mubr.bf16.gmra.mrb[0].mxu0 %v8898
    %v9107 = vpop.f32.mrb[0].mxu0
    %v9108 = vadd.f32 %v8943, %v9107
    %v9109 = vpop.f32.mrb[0].mxu0
    %v9110 = vpop.f32.mrb[0].mxu0
    %v9111 = vadd.f32 %v8943, %v9110
    %v9112 = vpop.f32.mrb[0].mxu0
    %9113 = vmatprep.mubr.bf16.mxu0 %v8901
    %9114 = vmatmul.mubr.bf16.gmra.mrb[0].mxu0 %v8900
    %v9115 = vpop.f32.mrb[0].mxu0
    %v9116 = vadd.f32 %v8943, %v9115
    %v9117 = vpop.f32.mrb[0].mxu0
    %v9118 = vpop.f32.mrb[0].mxu0
    %v9119 = vadd.f32 %v8943, %v9118
    %v9120 = vpop.f32.mrb[0].mxu0
    %9121 = vmatprep.mubr.bf16.mxu0 %v8903
    %9122 = vmatmul.mubr.bf16.gmra.mrb[0].mxu0 %v8902
    %v9123 = vpop.f32.mrb[0].mxu0
    %v9124 = vadd.f32 %v8943, %v9123
    %v9125 = vpop.f32.mrb[0].mxu0
    %v9126 = vpop.f32.mrb[0].mxu0
    %v9127 = vadd.f32 %v8943, %v9126
    %v9128 = vpop.f32.mrb[0].mxu0
    %9129 = vmatprep.mubr.bf16.mxu0 %v8905
    %9130 = vmatmul.mubr.bf16.gmra.mrb[0].mxu0 %v8904
    %v9131 = vpop.f32.mrb[0].mxu0
    %v9132 = vadd.f32 %v8943, %v9131
    %v9133 = vpop.f32.mrb[0].mxu0
    %v9134 = vpop.f32.mrb[0].mxu0
    %v9135 = vadd.f32 %v8943, %v9134
    %v9136 = vpop.f32.mrb[0].mxu0
    %9137 = vdwg.mxu0
    %v9138 = vxor.u32 %v9076, 2147483648
    %v9139 = vxor.u32 %v9079, 2147483648
    %v9140 = vxor.u32 %v9084, 2147483648
    %v9141 = vxor.u32 %v9087, 2147483648
    %v9142 = vxor.u32 %v9092, 2147483648
    %v9143 = vxor.u32 %v9095, 2147483648
    %v9144 = vxor.u32 %v9100, 2147483648
    %v9145 = vxor.u32 %v9103, 2147483648
    %v9146 = vxor.u32 %v9108, 2147483648
    %v9147 = vxor.u32 %v9111, 2147483648
    %v9148 = vxor.u32 %v9116, 2147483648
    %v9149 = vxor.u32 %v9119, 2147483648
    %v9150 = vxor.u32 %v9124, 2147483648
    %v9151 = vxor.u32 %v9127, 2147483648
    %v9152 = vxor.u32 %v9132, 2147483648
    %v9153 = vxor.u32 %v9135, 2147483648
    %v9154 = vmul.f32 %v9138, 1.442695
    %v9155 = vpow.pop %v9154
    %v9156 = vmul.f32 %v9139, 1.442695
    %v9157 = vpow.pop %v9156
    %v9158 = vmul.f32 %v9140, 1.442695
    %v9159 = vpow.pop %v9158
    %v9160 = vmul.f32 %v9141, 1.442695
    %v9161 = vpow.pop %v9160
    %v9162 = vmul.f32 %v9142, 1.442695
    %v9163 = vpow.pop %v9162
    %v9164 = vmul.f32 %v9143, 1.442695
    %v9165 = vpow.pop %v9164
    %v9166 = vmul.f32 %v9144, 1.442695
    %v9167 = vpow.pop %v9166
    %v9168 = vmul.f32 %v9145, 1.442695
    %v9169 = vpow.pop %v9168
    %v9170 = vmul.f32 %v9146, 1.442695
    %v9171 = vpow.pop %v9170
    %v9172 = vmul.f32 %v9147, 1.442695
    %v9173 = vpow.pop %v9172
    %v9174 = vmul.f32 %v9148, 1.442695
    %v9175 = vpow.pop %v9174
    %v9176 = vmul.f32 %v9149, 1.442695
    %v9177 = vpow.pop %v9176
    %v9178 = vmul.f32 %v9150, 1.442695
    %v9179 = vpow.pop %v9178
    %v9180 = vmul.f32 %v9151, 1.442695
    %v9181 = vpow.pop %v9180
    %v9182 = vmul.f32 %v9152, 1.442695
    %v9183 = vpow.pop %v9182
    %v9184 = vmul.f32 %v9153, 1.442695
    %v9185 = vpow.pop %v9184
    %v9186 = vadd.f32 %v9155, 1.0
    %v9187 = vadd.f32 %v9157, 1.0
    %v9188 = vadd.f32 %v9159, 1.0
    %v9189 = vadd.f32 %v9161, 1.0
    %v9190 = vadd.f32 %v9163, 1.0
    %v9191 = vadd.f32 %v9165, 1.0
    %v9192 = vadd.f32 %v9167, 1.0
    %v9193 = vadd.f32 %v9169, 1.0
    %v9194 = vadd.f32 %v9171, 1.0
    %v9195 = vadd.f32 %v9173, 1.0
    %v9196 = vadd.f32 %v9175, 1.0
    %v9197 = vadd.f32 %v9177, 1.0
    %v9198 = vadd.f32 %v9179, 1.0
    %v9199 = vadd.f32 %v9181, 1.0
    %v9200 = vadd.f32 %v9183, 1.0
    %v9201 = vadd.f32 %v9185, 1.0
    %v9202 = vrcp.pop %v9186
    %v9203 = vmul.f32 1.0, %v9202
    %v9204 = vrcp.pop %v9187
    %v9205 = vmul.f32 1.0, %v9204
    %v9206 = vrcp.pop %v9188
    %v9207 = vmul.f32 1.0, %v9206
    %v9208 = vrcp.pop %v9189
    %v9209 = vmul.f32 1.0, %v9208
    %v9210 = vrcp.pop %v9190
    %v9211 = vmul.f32 1.0, %v9210
    %v9212 = vrcp.pop %v9191
    %v9213 = vmul.f32 1.0, %v9212
    %v9214 = vrcp.pop %v9192
    %v9215 = vmul.f32 1.0, %v9214
    %v9216 = vrcp.pop %v9193
    %v9217 = vmul.f32 1.0, %v9216
    %v9218 = vrcp.pop %v9194
    %v9219 = vmul.f32 1.0, %v9218
    %v9220 = vrcp.pop %v9195
    %v9221 = vmul.f32 1.0, %v9220
    %v9222 = vrcp.pop %v9196
    %v9223 = vmul.f32 1.0, %v9222
    %v9224 = vrcp.pop %v9197
    %v9225 = vmul.f32 1.0, %v9224
    %v9226 = vrcp.pop %v9198
    %v9227 = vmul.f32 1.0, %v9226
    %v9228 = vrcp.pop %v9199
    %v9229 = vmul.f32 1.0, %v9228
    %v9230 = vrcp.pop %v9200
    %v9231 = vmul.f32 1.0, %v9230
    %v9232 = vrcp.pop %v9201
    %v9233 = vmul.f32 1.0, %v9232
    %9234 = vst [vmem:[#allocation17] sm:$0xff] %v9203
    %9235 = vst [vmem:[#allocation17 + $0x8] sm:$0xff] %v9205
    %9236 = vst [vmem:[#allocation17 + $0x10] sm:$0xff] %v9207
    %9237 = vst [vmem:[#allocation17 + $0x18] sm:$0xff] %v9209
    %9238 = vst [vmem:[#allocation17 + $0x20] sm:$0xff] %v9211
    %9239 = vst [vmem:[#allocation17 + $0x28] sm:$0xff] %v9213
    %9240 = vst [vmem:[#allocation17 + $0x30] sm:$0xff] %v9215
    %9241 = vst [vmem:[#allocation17 + $0x38] sm:$0xff] %v9217
    %9242 = vst [vmem:[#allocation17 + $0x40] sm:$0xff] %v9219
    %9243 = vst [vmem:[#allocation17 + $0x48] sm:$0xff] %v9221
    %9244 = vst [vmem:[#allocation17 + $0x50] sm:$0xff] %v9223
    %9245 = vst [vmem:[#allocation17 + $0x58] sm:$0xff] %v9225
    %9246 = vst [vmem:[#allocation17 + $0x60] sm:$0xff] %v9227
    %9247 = vst [vmem:[#allocation17 + $0x68] sm:$0xff] %v9229
    %9248 = vst [vmem:[#allocation17 + $0x70] sm:$0xff] %v9231
    %9249 = vst [vmem:[#allocation17 + $0x78] sm:$0xff] %v9233
    // Predicated region
    $region74: #{tpu_custom_call.1} parent=1 // pred_check
      _
    $region75: #{tpu_custom_call.1} parent=1 // pred_check_branch
      %9251 = sbr.rel (0) target = $region77
    $region76: #{tpu_custom_call.1} parent=1 // pred_region
      %s9253 = ssub.s32 2048, 2048
      %9254 = vsyncadd [#allocation4], %s9253
      %s9255 = sshll.u32 [#allocation17], 4
      %s9256 = int_to_ptr.vmem [resolvable:$true] %s9255
      %9261 = dma.vmem_to_hbm [thread:$0]  %s9256, 2048, %s9, [#allocation4], 128, 128, 8
    $region77: #{tpu_custom_call.1} parent=1 // pred_fallthru
      _
    // Predicated region
    $region78: #{tpu_custom_call.1} parent=1 // pred_check
      _
    $region79: #{tpu_custom_call.1} parent=1 // pred_check_branch
      %9263 = sbr.rel (0) target = $region81
    $region80: #{tpu_custom_call.1} parent=1 // pred_region
      %9264 = dma.done [#allocation4], 2048
    $region81: #{tpu_custom_call.1} parent=1 // pred_fallthru
      _
    %9265 = vsyncpa [#allocation3], 1
    %9266 = vsyncpa [#allocation6], 1
    %9267 = vsyncpa [#allocation9], 1
    %9268 = vsyncpa [#allocation12], 1
    %9269 = vsyncpa [#allocation15], 1
    %9270 = vsyncpa [#allocation4], 1

</llo_original>
